<compile_context>
chip_gen: v7x
topology: tpu7x:2x2x1
jax: 0.10.0
libtpu: 0.0.40
codegen_flags: <defaults>
</compile_context>

<pallas_src>
import jax
import jax.numpy as jnp
import numpy as np
from jax.experimental import pallas as pl
from jax.experimental.pallas import tpu as pltpu

LAYERS = [1, 50, 50, 20, 50, 50, 1]
N_LAYERS = len(LAYERS) - 1   # 6 linear layers
N_MID = N_LAYERS - 2         # 4 middle layers that actually use the MXU
PAD = 128                    # padded hidden width (one vreg of sublanes)


def _mlp_kernel(x_ref, wmid_ref, vec_ref, o_ref):
    """Fused MLP forward for one (1, TILE) tile of input points.

    x_ref    : (1, TILE)          input points, lane-dense
    wmid_ref : (N_MID, PAD, PAD)  zero-padded middle weights, (out, in) layout
    vec_ref  : (PAD, 8)           columns = [w0, b0, b1, b2, b3, b4, w5, b5]
    o_ref    : (1, TILE)          output, lane-dense

    Activations live as (PAD, TILE): features on sublanes, points on lanes.
    Padded rows/columns are exactly zero (zero weights/bias, tanh(0)=0), so the
    result matches the unpadded forward.
    """
    x = x_ref[...]                                    # (1, TILE)

    # Layer 0 (1 -> 50): rank-1, pure VPU broadcast multiply-add (no MXU).
    w0 = vec_ref[:, 0:1]                              # (PAD, 1)
    b0 = vec_ref[:, 1:2]                              # (PAD, 1)
    a = jnp.tanh(w0 * x + b0)                         # (PAD, TILE)

    # Layers 1..4: (PAD,PAD) x (PAD,TILE) MXU matmuls, fp32 accumulation.
    for j in range(N_MID):
        w = wmid_ref[j]                               # (PAD, PAD)
        b = vec_ref[:, 2 + j:3 + j]                   # (PAD, 1)
        z = jnp.dot(w, a,
                    preferred_element_type=jnp.float32,
                    precision=jax.lax.Precision.HIGHEST) + b
        a = jnp.tanh(z)

    # Layer 5 (50 -> 1): rank-1, VPU multiply + sublane reduction (XLU),
    # result is already lane-dense.
    w5 = vec_ref[:, 6:7]                              # (PAD, 1)
    b5 = vec_ref[0:1, 7:8]                            # (1, 1)
    o_ref[...] = jnp.sum(w5 * a, axis=0, keepdims=True) + b5


def pack_params(weights, biases):
    """Pad/stack parameters once (hoisted out of the per-call path).

    weights[i]: (out_i, in_i) PyTorch layout; biases[i]: (out_i,).
    Returns:
      wmid: (N_MID, PAD, PAD)  weights[1..4] zero-padded, (out, in) layout
      vecs: (PAD, 8)           [w0, b0, b1, b2, b3, b4, w5, b5] as sublane cols
    """
    wmid = np.zeros((N_MID, PAD, PAD), np.float32)
    for j in range(N_MID):
        w = np.asarray(weights[j + 1], np.float32)
        wmid[j, :w.shape[0], :w.shape[1]] = w

    vecs = np.zeros((PAD, 8), np.float32)
    w0 = np.asarray(weights[0], np.float32).reshape(-1)     # (50,)
    vecs[:w0.shape[0], 0] = w0
    for i in range(N_LAYERS - 1):                            # biases 0..4
        b = np.asarray(biases[i], np.float32)
        vecs[:b.shape[0], 1 + i] = b
    w5 = np.asarray(weights[N_LAYERS - 1], np.float32).reshape(-1)   # (50,)
    vecs[:w5.shape[0], 6] = w5
    vecs[0, 7] = float(np.asarray(biases[N_LAYERS - 1]).reshape(-1)[0])
    return jnp.asarray(wmid), jnp.asarray(vecs)


def _grid_and_tile(n):
    """Pick (grid_steps, points_per_step).

    Big tiles (<= 2048 points/step, multiple of 128) to amortize the ~0.35 us
    per-step pipeline overhead, but keep >= 2 steps when possible so v7x's
    second TensorCore is used via the "parallel" grid axis.
    """
    n128 = ((n + 127) // 128) * 128
    if n128 <= 128:
        return 1, 128
    g = max(2, -(-n128 // 2048))
    tile = -(-n128 // g)
    tile = ((tile + 127) // 128) * 128
    return g, tile


def fcn_forward(x, wmid, vecs):
    """x: (N, 1) float32 -> (N, 1) float32, same semantics as FCN.forward."""
    n = x.shape[0]
    g, tile = _grid_and_tile(n)
    n_pad = g * tile

    # Lane-dense input row: (1, n_pad), real points in the first n lanes.
    x_row = jnp.pad(x.astype(jnp.float32).reshape(-1),
                    (0, n_pad - n)).reshape(1, n_pad)

    out = pl.pallas_call(
        _mlp_kernel,
        out_shape=jax.ShapeDtypeStruct((1, n_pad), jnp.float32),
        grid_spec=pltpu.PrefetchScalarGridSpec(
            num_scalar_prefetch=0,
            grid=(g,),
            in_specs=[
                pl.BlockSpec((1, tile), lambda i: (0, i)),            # points
                pl.BlockSpec((N_MID, PAD, PAD), lambda i: (0, 0, 0)),  # weights (constant)
                pl.BlockSpec((PAD, 8), lambda i: (0, 0)),              # vectors (constant)
            ],
            out_specs=pl.BlockSpec((1, tile), lambda i: (0, i)),
        ),
        compiler_params=pltpu.CompilerParams(
            dimension_semantics=("parallel",)),
    )(x_row, wmid, vecs)

    return out[0, :n].reshape(n, 1)


def init_params(key):
    """Xavier-normal weights (gain=1.0), zero biases — matches FCN.__init__."""
    weights, biases = [], []
    for i in range(N_LAYERS):
        key, sub = jax.random.split(key)
        fan_in, fan_out = LAYERS[i], LAYERS[i + 1]
        std = float(np.sqrt(2.0 / (fan_in + fan_out)))  # gain = 1.0
        # PyTorch nn.Linear weight shape: (out_features, in_features)
        w = std * jax.random.normal(sub, (fan_out, fan_in), jnp.float32)
        b = jnp.zeros((fan_out,), jnp.float32)
        weights.append(w)
        biases.append(b)
    return weights, biases


def _reference_forward(x, weights, biases):
    """Pure-JAX reference of FCN.forward (fp32, HIGHEST precision)."""
    a = x.astype(jnp.float32)
    for i in range(N_LAYERS):
        z = jnp.dot(a, weights[i].T,
                    precision=jax.lax.Precision.HIGHEST) + biases[i]
        a = jnp.tanh(z) if i < N_LAYERS - 1 else z
    return a


# TODO(synk): lossBC/lossPDE (autograd.grad w.r.t. inputs, MSE) and the Adam
# training loop are training-time code, not part of the forward pass kernel.

if __name__ == "__main__":
    key = jax.random.PRNGKey(0)
    weights, biases = init_params(key)
    wmid, vecs = pack_params(weights, biases)   # packed once, reused per call

    # Same input the original script builds: 500 points on [0, 2*pi], (500, 1).
    total_points = 500
    x = jnp.linspace(0.0, 2.0 * np.pi, total_points,
                     dtype=jnp.float32).reshape(-1, 1)

    y = fcn_forward(x, wmid, vecs)
    y = jax.block_until_ready(y)

    y_ref = _reference_forward(x, weights, biases)
    np.testing.assert_allclose(np.asarray(y), np.asarray(y_ref),
                               rtol=1e-5, atol=1e-5)

    print("KERNEL_OK")
</pallas_src>

<mosaic_0001>
module attributes {stable_mosaic.version = 11 : i64} {
  func.func @_mlp_kernel(%arg0: i32, %arg1: memref<1x256xf32, #tpu.memory_space<vmem>>, %arg2: memref<4x128x128xf32, #tpu.memory_space<vmem>>, %arg3: memref<128x8xf32, #tpu.memory_space<vmem>>, %arg4: memref<1x256xf32, #tpu.memory_space<vmem>>) attributes {dimension_semantics = [#tpu.dimension_semantics<parallel>], iteration_bounds = array<i64: 2>, scalar_prefetch = 0 : i64, scratch_operands = 0 : i64, tpu.core_type = #tpu.core_type<tc>, window_params = [{transform_indices = @transform_0, window_bounds = array<i64: 1, 256>}, {pipeline_mode = #tpu.pipeline_mode<synchronous>, transform_indices = @transform_1, window_bounds = array<i64: 4, 128, 128>}, {pipeline_mode = #tpu.pipeline_mode<synchronous>, transform_indices = @transform_2, window_bounds = array<i64: 128, 8>}, {transform_indices = @transform_3, window_bounds = array<i64: 1, 256>}]} {
    %c0 = arith.constant 0 : index
    %c0_0 = arith.constant 0 : index
    %0 = vector.load %arg1[%c0, %c0_0] : memref<1x256xf32, #tpu.memory_space<vmem>>, vector<1x256xf32>
    %c0_1 = arith.constant 0 : index
    %c0_2 = arith.constant 0 : index
    %1 = vector.load %arg3[%c0_1, %c0_2] : memref<128x8xf32, #tpu.memory_space<vmem>>, vector<128x1xf32>
    %c0_3 = arith.constant 0 : index
    %c1 = arith.constant 1 : index
    %2 = vector.load %arg3[%c0_3, %c1] : memref<128x8xf32, #tpu.memory_space<vmem>>, vector<128x1xf32>
    %3 = vector.broadcast %1 : vector<128x1xf32> to vector<128x256xf32>
    %4 = vector.broadcast %0 : vector<1x256xf32> to vector<128x256xf32>
    %5 = arith.mulf %3, %4 : vector<128x256xf32>
    %6 = vector.broadcast %2 : vector<128x1xf32> to vector<128x256xf32>
    %7 = arith.addf %5, %6 : vector<128x256xf32>
    %8 = math.tanh %7 : vector<128x256xf32>
    %c0_4 = arith.constant 0 : index
    %c0_5 = arith.constant 0 : index
    %c0_6 = arith.constant 0 : index
    %9 = vector.load %arg2[%c0_4, %c0_5, %c0_6] : memref<4x128x128xf32, #tpu.memory_space<vmem>>, vector<1x128x128xf32>
    %10 = vector.shape_cast %9 : vector<1x128x128xf32> to vector<128x128xf32>
    %c0_7 = arith.constant 0 : index
    %c2 = arith.constant 2 : index
    %11 = vector.load %arg3[%c0_7, %c2] : memref<128x8xf32, #tpu.memory_space<vmem>>, vector<128x1xf32>
    %cst = arith.constant dense<0.000000e+00> : vector<128x256xf32>
    %12 = tpu.matmul %10, %8, %cst {dimension_numbers = #tpu.dot_dimension_numbers<[1], [0], [0], [1], [0, 0, 1, 1], [], []>, precision = #tpu.contract_precision<fp32>} : vector<128x128xf32>, vector<128x256xf32>, vector<128x256xf32> -> vector<128x256xf32>
    %13 = vector.broadcast %11 : vector<128x1xf32> to vector<128x256xf32>
    %14 = arith.addf %12, %13 : vector<128x256xf32>
    %15 = math.tanh %14 : vector<128x256xf32>
    %c1_8 = arith.constant 1 : index
    %c0_9 = arith.constant 0 : index
    %c0_10 = arith.constant 0 : index
    %16 = vector.load %arg2[%c1_8, %c0_9, %c0_10] : memref<4x128x128xf32, #tpu.memory_space<vmem>>, vector<1x128x128xf32>
    %17 = vector.shape_cast %16 : vector<1x128x128xf32> to vector<128x128xf32>
    %c0_11 = arith.constant 0 : index
    %c3 = arith.constant 3 : index
    %18 = vector.load %arg3[%c0_11, %c3] : memref<128x8xf32, #tpu.memory_space<vmem>>, vector<128x1xf32>
    %cst_12 = arith.constant dense<0.000000e+00> : vector<128x256xf32>
    %19 = tpu.matmul %17, %15, %cst_12 {dimension_numbers = #tpu.dot_dimension_numbers<[1], [0], [0], [1], [0, 0, 1, 1], [], []>, precision = #tpu.contract_precision<fp32>} : vector<128x128xf32>, vector<128x256xf32>, vector<128x256xf32> -> vector<128x256xf32>
    %20 = vector.broadcast %18 : vector<128x1xf32> to vector<128x256xf32>
    %21 = arith.addf %19, %20 : vector<128x256xf32>
    %22 = math.tanh %21 : vector<128x256xf32>
    %c2_13 = arith.constant 2 : index
    %c0_14 = arith.constant 0 : index
    %c0_15 = arith.constant 0 : index
    %23 = vector.load %arg2[%c2_13, %c0_14, %c0_15] : memref<4x128x128xf32, #tpu.memory_space<vmem>>, vector<1x128x128xf32>
    %24 = vector.shape_cast %23 : vector<1x128x128xf32> to vector<128x128xf32>
    %c0_16 = arith.constant 0 : index
    %c4 = arith.constant 4 : index
    %25 = vector.load %arg3[%c0_16, %c4] : memref<128x8xf32, #tpu.memory_space<vmem>>, vector<128x1xf32>
    %cst_17 = arith.constant dense<0.000000e+00> : vector<128x256xf32>
    %26 = tpu.matmul %24, %22, %cst_17 {dimension_numbers = #tpu.dot_dimension_numbers<[1], [0], [0], [1], [0, 0, 1, 1], [], []>, precision = #tpu.contract_precision<fp32>} : vector<128x128xf32>, vector<128x256xf32>, vector<128x256xf32> -> vector<128x256xf32>
    %27 = vector.broadcast %25 : vector<128x1xf32> to vector<128x256xf32>
    %28 = arith.addf %26, %27 : vector<128x256xf32>
    %29 = math.tanh %28 : vector<128x256xf32>
    %c3_18 = arith.constant 3 : index
    %c0_19 = arith.constant 0 : index
    %c0_20 = arith.constant 0 : index
    %30 = vector.load %arg2[%c3_18, %c0_19, %c0_20] : memref<4x128x128xf32, #tpu.memory_space<vmem>>, vector<1x128x128xf32>
    %31 = vector.shape_cast %30 : vector<1x128x128xf32> to vector<128x128xf32>
    %c0_21 = arith.constant 0 : index
    %c5 = arith.constant 5 : index
    %32 = vector.load %arg3[%c0_21, %c5] : memref<128x8xf32, #tpu.memory_space<vmem>>, vector<128x1xf32>
    %cst_22 = arith.constant dense<0.000000e+00> : vector<128x256xf32>
    %33 = tpu.matmul %31, %29, %cst_22 {dimension_numbers = #tpu.dot_dimension_numbers<[1], [0], [0], [1], [0, 0, 1, 1], [], []>, precision = #tpu.contract_precision<fp32>} : vector<128x128xf32>, vector<128x256xf32>, vector<128x256xf32> -> vector<128x256xf32>
    %34 = vector.broadcast %32 : vector<128x1xf32> to vector<128x256xf32>
    %35 = arith.addf %33, %34 : vector<128x256xf32>
    %36 = math.tanh %35 : vector<128x256xf32>
    %c0_23 = arith.constant 0 : index
    %c6 = arith.constant 6 : index
    %37 = vector.load %arg3[%c0_23, %c6] : memref<128x8xf32, #tpu.memory_space<vmem>>, vector<128x1xf32>
    %c0_24 = arith.constant 0 : index
    %c7 = arith.constant 7 : index
    %38 = vector.load %arg3[%c0_24, %c7] : memref<128x8xf32, #tpu.memory_space<vmem>>, vector<1x1xf32>
    %39 = vector.broadcast %37 : vector<128x1xf32> to vector<128x256xf32>
    %40 = arith.mulf %39, %36 : vector<128x256xf32>
    %cst_25 = arith.constant dense<0.000000e+00> : vector<256xf32>
    %41 = vector.multi_reduction <add>, %40, %cst_25 [0] : vector<128x256xf32> to vector<256xf32>
    %42 = vector.shape_cast %41 : vector<256xf32> to vector<1x256xf32>
    %43 = vector.broadcast %38 : vector<1x1xf32> to vector<1x256xf32>
    %44 = arith.addf %42, %43 : vector<1x256xf32>
    %c0_26 = arith.constant 0 : index
    %c0_27 = arith.constant 0 : index
    %45 = vector.load %arg4[%c0_26, %c0_27] : memref<1x256xf32, #tpu.memory_space<vmem>>, vector<1x256xf32>
    tpu.vector_store %arg4[%c0_26, %c0_27], %44 {strides = array<i32>} : memref<1x256xf32, #tpu.memory_space<vmem>>, vector<1x256xf32>,
    return
  }
  func.func @transform_0(%arg0: i32) -> (i32, i32) {
    %c0_i32 = arith.constant 0 : i32
    %c0_i32_0 = arith.constant 0 : i32
    return %c0_i32, %arg0 : i32, i32
  }
  func.func @transform_1(%arg0: i32) -> (i32, i32, i32) {
    %c0_i32 = arith.constant 0 : i32
    %c0_i32_0 = arith.constant 0 : i32
    %c0_i32_1 = arith.constant 0 : i32
    %c0_i32_2 = arith.constant 0 : i32
    return %c0_i32, %c0_i32_0, %c0_i32_1 : i32, i32, i32
  }
  func.func @transform_2(%arg0: i32) -> (i32, i32) {
    %c0_i32 = arith.constant 0 : i32
    %c0_i32_0 = arith.constant 0 : i32
    %c0_i32_1 = arith.constant 0 : i32
    return %c0_i32, %c0_i32_0 : i32, i32
  }
  func.func @transform_3(%arg0: i32) -> (i32, i32) {
    %c0_i32 = arith.constant 0 : i32
    %c0_i32_0 = arith.constant 0 : i32
    return %c0_i32, %arg0 : i32, i32
  }
}

</mosaic_0001>

<llo_original>
// kernel: tpu_custom_call.1
$region0: #{tpu_custom_call.1}
  #allocation0 [shape = 'u32[]', space=smem, size = 0x4, offset = 0x4, fixed_abs, tag = 'smem constant byte address 0x4 - core index']
  #allocation1 [shape = 'u32[144,128]{1,0:T(1,128)}', space=vmem, size = 0x12000, scoped, tag = 'internal scratch']
  %s0 = inlined_call_operand.vmem [shape: f32[1,512], index: 0, kind: input, shape index: {}]
  %s1 = inlined_call_operand.hbm [shape: f32[4,128,128], index: 1, kind: input, shape index: {}]
  %s2 = inlined_call_operand.vmem [shape: f32[128,8], index: 2, kind: input, shape index: {}]
  %s3 = inlined_call_operand.hbm [shape: f32[1,512], index: 3, kind: output, shape index: {}]
  %s4 = sld [smem:[#allocation0]]
  $region49: #{tpu_custom_call.1} parent=0
    _
  %s6 = ssub.s32 1, %s4
  %s7 = scalar_select 0, %s6, %s4
  $region1: #{tpu_custom_call.1} parent=0
    #allocation2 [shape = 'u8[262144]{0}', space=vmem, size = 0x40000, scoped, tag = 'input window, operand 1, single buffered']
    #allocation3 [shape = 's32[2]{0}', space=sflag, size = 0x8, scoped, tag = 'scoped memory for tpu_custom_call.1']
    #allocation4 [shape = 's32[2]{0}', space=sflag, size = 0x8, scoped, tag = 'scoped memory for tpu_custom_call.1']
    #allocation5 [shape = 'u8[2048]{0}', space=vmem, size = 0x800, scoped, tag = 'output window, operand 0']
    %8 = vsyncpa [#allocation3], 0
    %9 = vsyncpa [#allocation4], 0
    %s10 = scalar_lea.sflag [#allocation4], 1
    %11 = vsyncpa %s10, 0
    loop: start=0, step=1, limit=4
    $region2: #{tpu_custom_call.1} parent=1 // loop_pre_header
      _
    $region3: #{tpu_custom_call.1} parent=1 // loop_header
      %s13 = sphi 0, %s17
      %p14 = scmp.ge.s32.totalorder %s13, 4
      %s23 = sphi 0, %s25
      %s26 = sphi 0, %s23
      %s27 = sphi 0, %s26
      %s43 = sphi 0, %s27
      %s47 = sphi 0, %s47
      %s49 = sphi 0, %s47
      %s50 = sphi 0, %s49
      %s64 = sphi 0, %s50
      %s68 = sphi 0, %s68
      %s70 = sphi 0, %s68
      %s71 = sphi 0, %s70
      %s85 = sphi 0, %s71
      %s91 = sphi 0, %s93
      %s94 = sphi 0, %s91
      %s95 = sphi 0, %s94
      %s111 = sphi 0, %s95
    $region4: #{tpu_custom_call.1} parent=1 // loop_header_branch
      %16 = sbr.rel (%p14) target = $region8
    $region5: #{tpu_custom_call.1} parent=1 // loop_body
      %s18 = ssub.s32 %s13, 1
      %s19 = ssub.s32 %s13, 2
      %s20 = sadd.s32 %s13, 1
      %s21 = ssub.s32 %s13, %s20
      %p22 = scmp.eq.s32.totalorder %s21, 0
      %s24 = sadd.s32 %s23, 1
      %s25 = scalar_select %p22, %s23, %s24
      %p28 = pneg %p22
      %p29 = scmp.eq.s32.totalorder %s13, 1
      %p30 = por %p28, %p29
      %p31 = scmp.ne.s32.totalorder %s23, %s26
      %p32 = scmp.eq.s32.totalorder %s13, 0
      %p33 = por %p31, %p32
      %p34 = scmp.ne.s32.totalorder %s23, %s26
      %p35 = scmp.eq.s32.totalorder %s18, 1
      %p36 = por %p34, %p35
      %p37 = scmp.ne.s32.totalorder %s26, %s27
      %p38 = scmp.eq.s32.totalorder %s18, 0
      %p39 = por %p37, %p38
      %p40 = scmp.ne.s32.totalorder %s26, %s27
      %p41 = scmp.eq.s32.totalorder %s19, 1
      %p42 = por %p40, %p41
      %p44 = scmp.ne.s32.totalorder %s27, %s43
      %p45 = scmp.eq.s32.totalorder %s19, 0
      %p46 = por %p44, %p45
      %s48 = sadd.s32 %s47, 1
      %p51 = scmp.eq.s32.totalorder %s13, 1
      %p52 = scmp.ne.s32.totalorder %s47, %s49
      %p53 = scmp.eq.s32.totalorder %s13, 0
      %p54 = por %p52, %p53
      %p55 = scmp.ne.s32.totalorder %s47, %s49
      %p56 = scmp.eq.s32.totalorder %s18, 1
      %p57 = por %p55, %p56
      %p58 = scmp.ne.s32.totalorder %s49, %s50
      %p59 = scmp.eq.s32.totalorder %s18, 0
      %p60 = por %p58, %p59
      %p61 = scmp.ne.s32.totalorder %s49, %s50
      %p62 = scmp.eq.s32.totalorder %s19, 1
      %p63 = por %p61, %p62
      %p65 = scmp.ne.s32.totalorder %s50, %s64
      %p66 = scmp.eq.s32.totalorder %s19, 0
      %p67 = por %p65, %p66
      %s69 = sadd.s32 %s68, 1
      %p72 = scmp.eq.s32.totalorder %s13, 1
      %p73 = scmp.ne.s32.totalorder %s68, %s70
      %p74 = scmp.eq.s32.totalorder %s13, 0
      %p75 = por %p73, %p74
      %p76 = scmp.ne.s32.totalorder %s68, %s70
      %p77 = scmp.eq.s32.totalorder %s18, 1
      %p78 = por %p76, %p77
      %p79 = scmp.ne.s32.totalorder %s70, %s71
      %p80 = scmp.eq.s32.totalorder %s18, 0
      %p81 = por %p79, %p80
      %p82 = scmp.ne.s32.totalorder %s70, %s71
      %p83 = scmp.eq.s32.totalorder %s19, 1
      %p84 = por %p82, %p83
      %p86 = scmp.ne.s32.totalorder %s71, %s85
      %p87 = scmp.eq.s32.totalorder %s19, 0
      %p88 = por %p86, %p87
      %s89 = ssub.s32 %s13, %s20
      %p90 = scmp.eq.s32.totalorder %s89, 0
      %s92 = sadd.s32 %s91, 1
      %s93 = scalar_select %p90, %s91, %s92
      %p96 = pneg %p90
      %p97 = scmp.eq.s32.totalorder %s13, 1
      %p98 = por %p96, %p97
      %p99 = scmp.ne.s32.totalorder %s91, %s94
      %p100 = scmp.eq.s32.totalorder %s13, 0
      %p101 = por %p99, %p100
      %p102 = scmp.ne.s32.totalorder %s91, %s94
      %p103 = scmp.eq.s32.totalorder %s18, 1
      %p104 = por %p102, %p103
      %p105 = scmp.ne.s32.totalorder %s94, %s95
      %p106 = scmp.eq.s32.totalorder %s18, 0
      %p107 = por %p105, %p106
      %p108 = scmp.ne.s32.totalorder %s94, %s95
      %p109 = scmp.eq.s32.totalorder %s19, 1
      %p110 = por %p108, %p109
      %p112 = scmp.ne.s32.totalorder %s95, %s111
      %p113 = scmp.eq.s32.totalorder %s19, 0
      %p114 = por %p112, %p113
      %p115 = scmp.le.s32.totalorder 1, %s13
      %p116 = scmp.lt.s32.totalorder %s13, 3
      %p117 = pnand %p115, %p116
      %p118 = pneg %p117
      // Predicated region
      $region9: #{tpu_custom_call.1} parent=5 // pred_check
        _
      $region10: #{tpu_custom_call.1} parent=5 // pred_check_branch
        %120 = sbr.rel (%p117) target = $region12
      $region11: #{tpu_custom_call.1} parent=5 // pred_region
        %s121 = ssub.s32 %s13, 1
        // Predicated region
        $region13: #{tpu_custom_call.1} parent=11 // pred_check
          %p122 = pneg %p60
        $region14: #{tpu_custom_call.1} parent=11 // pred_check_branch
          %124 = sbr.rel (%p122) target = $region16
        $region15: #{tpu_custom_call.1} parent=11 // pred_region
          %s126 = ssub.s32 8192, 8192
          %127 = vsyncadd [#allocation3], %s126
          %s128 = sshll.u32 [#allocation2], 4
          %s129 = int_to_ptr.vmem [resolvable:$true] %s128
          %134 = dma.hbm_to_vmem [thread:$0]  %s1, 8192, %s129, [#allocation3], 128, 128, 8
        $region16: #{tpu_custom_call.1} parent=11 // pred_fallthru
          _
        // Predicated region
        $region17: #{tpu_custom_call.1} parent=11 // pred_check
          %p135 = pneg %p81
        $region18: #{tpu_custom_call.1} parent=11 // pred_check_branch
          %137 = sbr.rel (%p135) target = $region20
        $region19: #{tpu_custom_call.1} parent=11 // pred_region
          _
        $region20: #{tpu_custom_call.1} parent=11 // pred_fallthru
          _
      $region12: #{tpu_custom_call.1} parent=5 // pred_fallthru
        _
      %p138 = scmp.lt.s32.totalorder %s13, 2
      // Predicated region
      $region21: #{tpu_custom_call.1} parent=5 // pred_check
        %p139 = pneg %p138
      $region22: #{tpu_custom_call.1} parent=5 // pred_check_branch
        %141 = sbr.rel (%p139) target = $region24
      $region23: #{tpu_custom_call.1} parent=5 // pred_region
        // Predicated region
        $region25: #{tpu_custom_call.1} parent=23 // pred_check
          %p142 = pneg %p33
        $region26: #{tpu_custom_call.1} parent=23 // pred_check_branch
          %144 = sbr.rel (%p142) target = $region28
        $region27: #{tpu_custom_call.1} parent=23 // pred_region
          %s145 = smul.u32 2, %s13
          %p146 = scmp.lt.s32.totalorder %s145, 3
          %s147 = scalar_select %p146, %s145, 3
          %s148 = scalar_lea.vmem %s0, %s147
          %s149 = smul.u32 2, %s13
        $region28: #{tpu_custom_call.1} parent=23 // pred_fallthru
          _
      $region24: #{tpu_custom_call.1} parent=5 // pred_fallthru
        _
      %p150 = scmp.le.s32.totalorder 1, %s13
      %p151 = scmp.lt.s32.totalorder %s13, 3
      %p152 = pnand %p150, %p151
      %p153 = pneg %p152
      // Predicated region
      $region29: #{tpu_custom_call.1} parent=5 // pred_check
        _
      $region30: #{tpu_custom_call.1} parent=5 // pred_check_branch
        %155 = sbr.rel (%p152) target = $region32
      $region31: #{tpu_custom_call.1} parent=5 // pred_region
        %s156 = ssub.s32 %s13, 1
        // Predicated region
        $region33: #{tpu_custom_call.1} parent=31 // pred_check
          %p157 = pneg %p60
        $region34: #{tpu_custom_call.1} parent=31 // pred_check_branch
          %159 = sbr.rel (%p157) target = $region36
        $region35: #{tpu_custom_call.1} parent=31 // pred_region
          %160 = dma.done [#allocation3], 8192
        $region36: #{tpu_custom_call.1} parent=31 // pred_fallthru
          _
        %s161 = smul.u32 2, %s18
        %p162 = scmp.lt.s32.totalorder %s161, 3
        %s163 = scalar_select %p162, %s161, 3
        %s164 = scalar_lea.vmem %s0, %s163
        %p165 = pneg %p39
        %p166 = pneg %p36
        %p167 = pneg %p60
        %p168 = pneg %p57
        %p169 = pneg %p81
        %p170 = pneg %p78
        %p171 = pneg %p107
        %p172 = pneg %p104
        %s173 = sand.u32 %s94, 1
        %s174 = scalar_lea.sflag [#allocation4], %s173
        %s175 = sand.u32 %s94, 1
        %s176 = smul.addr %s175, 2
        %s177 = scalar_lea.vmem [#allocation5], %s176
        %s178 = smul.u32 2, %s18
        %p179 = scmp.lt.s32.totalorder %s178, 3
        %s180 = scalar_select %p179, %s178, 3
        %s181 = scalar_lea.vmem %s0, %s180
        %s182 = smul.u32 2, %s18
        %s183 = smul.u32 2, %s18
        %v184 = vld [vmem:[%s181] sm:$0x3]
        %v185 = vld [vmem:[%s2] sm:$0xff]
        %v186 = vld [vmem:[%s2 + $0x8] sm:$0xff]
        %v187 = vld [vmem:[%s2 + $0x10] sm:$0xff]
        %v188 = vld [vmem:[%s2 + $0x18] sm:$0xff]
        %v189 = vld [vmem:[%s2 + $0x20] sm:$0xff]
        %v190 = vld [vmem:[%s2 + $0x28] sm:$0xff]
        %v191 = vld [vmem:[%s2 + $0x30] sm:$0xff]
        %v192 = vld [vmem:[%s2 + $0x38] sm:$0xff]
        %v193 = vld [vmem:[%s2 + $0x40] sm:$0xff]
        %v194 = vld [vmem:[%s2 + $0x48] sm:$0xff]
        %v195 = vld [vmem:[%s2 + $0x50] sm:$0xff]
        %v196 = vld [vmem:[%s2 + $0x58] sm:$0xff]
        %v197 = vld [vmem:[%s2 + $0x60] sm:$0xff]
        %v198 = vld [vmem:[%s2 + $0x68] sm:$0xff]
        %v199 = vld [vmem:[%s2 + $0x70] sm:$0xff]
        %v200 = vld [vmem:[%s2 + $0x78] sm:$0xff]
        %202 = vset.pattern.permute.xlu0 0
        %203 = vperm.xlu0 %202, %v185
        %v204 = vpop.permute.xlu0 %203
        %207 = vset.pattern.permute.xlu0 0
        %208 = vperm.xlu0 %207, %v186
        %v209 = vpop.permute.xlu0 %208
        %212 = vset.pattern.permute.xlu0 0
        %213 = vperm.xlu0 %212, %v187
        %v214 = vpop.permute.xlu0 %213
        %217 = vset.pattern.permute.xlu0 0
        %218 = vperm.xlu0 %217, %v188
        %v219 = vpop.permute.xlu0 %218
        %222 = vset.pattern.permute.xlu0 0
        %223 = vperm.xlu0 %222, %v189
        %v224 = vpop.permute.xlu0 %223
        %227 = vset.pattern.permute.xlu0 0
        %228 = vperm.xlu0 %227, %v190
        %v229 = vpop.permute.xlu0 %228
        %232 = vset.pattern.permute.xlu0 0
        %233 = vperm.xlu0 %232, %v191
        %v234 = vpop.permute.xlu0 %233
        %237 = vset.pattern.permute.xlu0 0
        %238 = vperm.xlu0 %237, %v192
        %v239 = vpop.permute.xlu0 %238
        %242 = vset.pattern.permute.xlu0 0
        %243 = vperm.xlu0 %242, %v193
        %v244 = vpop.permute.xlu0 %243
        %247 = vset.pattern.permute.xlu0 0
        %248 = vperm.xlu0 %247, %v194
        %v249 = vpop.permute.xlu0 %248
        %252 = vset.pattern.permute.xlu0 0
        %253 = vperm.xlu0 %252, %v195
        %v254 = vpop.permute.xlu0 %253
        %257 = vset.pattern.permute.xlu0 0
        %258 = vperm.xlu0 %257, %v196
        %v259 = vpop.permute.xlu0 %258
        %262 = vset.pattern.permute.xlu0 0
        %263 = vperm.xlu0 %262, %v197
        %v264 = vpop.permute.xlu0 %263
        %267 = vset.pattern.permute.xlu0 0
        %268 = vperm.xlu0 %267, %v198
        %v269 = vpop.permute.xlu0 %268
        %272 = vset.pattern.permute.xlu0 0
        %273 = vperm.xlu0 %272, %v199
        %v274 = vpop.permute.xlu0 %273
        %277 = vset.pattern.permute.xlu0 0
        %278 = vperm.xlu0 %277, %v200
        %v279 = vpop.permute.xlu0 %278
        %v282 = vlaneseq
        %v283 = vshrl.u32 %v282, 7
        %v284 = vsub.s32 0, %v283
        %v285 = vrot.slane %v184, %v284
        %v286 = vlaneseq
        %v287 = vshrl.u32 %v286, 7
        %v288 = vsub.s32 1, %v287
        %v289 = vrot.slane %v184, %v288
        %v292 = vmul.f32 %v204, %v285
        %v293 = vmul.f32 %v204, %v289
        %v294 = vmul.f32 %v209, %v285
        %v295 = vmul.f32 %v209, %v289
        %v296 = vmul.f32 %v214, %v285
        %v297 = vmul.f32 %v214, %v289
        %v298 = vmul.f32 %v219, %v285
        %v299 = vmul.f32 %v219, %v289
        %v300 = vmul.f32 %v224, %v285
        %v301 = vmul.f32 %v224, %v289
        %v302 = vmul.f32 %v229, %v285
        %v303 = vmul.f32 %v229, %v289
        %v304 = vmul.f32 %v234, %v285
        %v305 = vmul.f32 %v234, %v289
        %v306 = vmul.f32 %v239, %v285
        %v307 = vmul.f32 %v239, %v289
        %v308 = vmul.f32 %v244, %v285
        %v309 = vmul.f32 %v244, %v289
        %v310 = vmul.f32 %v249, %v285
        %v311 = vmul.f32 %v249, %v289
        %v312 = vmul.f32 %v254, %v285
        %v313 = vmul.f32 %v254, %v289
        %v314 = vmul.f32 %v259, %v285
        %v315 = vmul.f32 %v259, %v289
        %v316 = vmul.f32 %v264, %v285
        %v317 = vmul.f32 %v264, %v289
        %v318 = vmul.f32 %v269, %v285
        %v319 = vmul.f32 %v269, %v289
        %v320 = vmul.f32 %v274, %v285
        %v321 = vmul.f32 %v274, %v289
        %v322 = vmul.f32 %v279, %v285
        %v323 = vmul.f32 %v279, %v289
        %324 = vset.pattern.permute.xlu0 1
        %325 = vperm.xlu0 %324, %v185
        %v326 = vpop.permute.xlu0 %325
        %328 = vset.pattern.permute.xlu0 1
        %329 = vperm.xlu0 %328, %v186
        %v330 = vpop.permute.xlu0 %329
        %332 = vset.pattern.permute.xlu0 1
        %333 = vperm.xlu0 %332, %v187
        %v334 = vpop.permute.xlu0 %333
        %336 = vset.pattern.permute.xlu0 1
        %337 = vperm.xlu0 %336, %v188
        %v338 = vpop.permute.xlu0 %337
        %340 = vset.pattern.permute.xlu0 1
        %341 = vperm.xlu0 %340, %v189
        %v342 = vpop.permute.xlu0 %341
        %344 = vset.pattern.permute.xlu0 1
        %345 = vperm.xlu0 %344, %v190
        %v346 = vpop.permute.xlu0 %345
        %348 = vset.pattern.permute.xlu0 1
        %349 = vperm.xlu0 %348, %v191
        %v350 = vpop.permute.xlu0 %349
        %352 = vset.pattern.permute.xlu0 1
        %353 = vperm.xlu0 %352, %v192
        %v354 = vpop.permute.xlu0 %353
        %356 = vset.pattern.permute.xlu0 1
        %357 = vperm.xlu0 %356, %v193
        %v358 = vpop.permute.xlu0 %357
        %360 = vset.pattern.permute.xlu0 1
        %361 = vperm.xlu0 %360, %v194
        %v362 = vpop.permute.xlu0 %361
        %364 = vset.pattern.permute.xlu0 1
        %365 = vperm.xlu0 %364, %v195
        %v366 = vpop.permute.xlu0 %365
        %368 = vset.pattern.permute.xlu0 1
        %369 = vperm.xlu0 %368, %v196
        %v370 = vpop.permute.xlu0 %369
        %372 = vset.pattern.permute.xlu0 1
        %373 = vperm.xlu0 %372, %v197
        %v374 = vpop.permute.xlu0 %373
        %376 = vset.pattern.permute.xlu0 1
        %377 = vperm.xlu0 %376, %v198
        %v378 = vpop.permute.xlu0 %377
        %380 = vset.pattern.permute.xlu0 1
        %381 = vperm.xlu0 %380, %v199
        %v382 = vpop.permute.xlu0 %381
        %384 = vset.pattern.permute.xlu0 1
        %385 = vperm.xlu0 %384, %v200
        %v386 = vpop.permute.xlu0 %385
        %v388 = vadd.f32 %v292, %v326
        %v389 = vadd.f32 %v293, %v326
        %v390 = vadd.f32 %v294, %v330
        %v391 = vadd.f32 %v295, %v330
        %v392 = vadd.f32 %v296, %v334
        %v393 = vadd.f32 %v297, %v334
        %v394 = vadd.f32 %v298, %v338
        %v395 = vadd.f32 %v299, %v338
        %v396 = vadd.f32 %v300, %v342
        %v397 = vadd.f32 %v301, %v342
        %v398 = vadd.f32 %v302, %v346
        %v399 = vadd.f32 %v303, %v346
        %v400 = vadd.f32 %v304, %v350
        %v401 = vadd.f32 %v305, %v350
        %v402 = vadd.f32 %v306, %v354
        %v403 = vadd.f32 %v307, %v354
        %v404 = vadd.f32 %v308, %v358
        %v405 = vadd.f32 %v309, %v358
        %v406 = vadd.f32 %v310, %v362
        %v407 = vadd.f32 %v311, %v362
        %v408 = vadd.f32 %v312, %v366
        %v409 = vadd.f32 %v313, %v366
        %v410 = vadd.f32 %v314, %v370
        %v411 = vadd.f32 %v315, %v370
        %v412 = vadd.f32 %v316, %v374
        %v413 = vadd.f32 %v317, %v374
        %v414 = vadd.f32 %v318, %v378
        %v415 = vadd.f32 %v319, %v378
        %v416 = vadd.f32 %v320, %v382
        %v417 = vadd.f32 %v321, %v382
        %v418 = vadd.f32 %v322, %v386
        %v419 = vadd.f32 %v323, %v386
        %v420 = vtanh.pop %v388
        %v421 = vtanh.pop %v389
        %v422 = vtanh.pop %v390
        %v423 = vtanh.pop %v391
        %v424 = vtanh.pop %v392
        %v425 = vtanh.pop %v393
        %v426 = vtanh.pop %v394
        %v427 = vtanh.pop %v395
        %v428 = vtanh.pop %v396
        %v429 = vtanh.pop %v397
        %v430 = vtanh.pop %v398
        %v431 = vtanh.pop %v399
        %v432 = vtanh.pop %v400
        %v433 = vtanh.pop %v401
        %v434 = vtanh.pop %v402
        %v435 = vtanh.pop %v403
        %v436 = vtanh.pop %v404
        %v437 = vtanh.pop %v405
        %v438 = vtanh.pop %v406
        %v439 = vtanh.pop %v407
        %v440 = vtanh.pop %v408
        %v441 = vtanh.pop %v409
        %v442 = vtanh.pop %v410
        %v443 = vtanh.pop %v411
        %v444 = vtanh.pop %v412
        %v445 = vtanh.pop %v413
        %v446 = vtanh.pop %v414
        %v447 = vtanh.pop %v415
        %v448 = vtanh.pop %v416
        %v449 = vtanh.pop %v417
        %v450 = vtanh.pop %v418
        %v451 = vtanh.pop %v419
        %v452 = vld [vmem:[#allocation2] sm:$0xff]
        %v453 = vld [vmem:[#allocation2 + $0x8] sm:$0xff]
        %v454 = vld [vmem:[#allocation2 + $0x10] sm:$0xff]
        %v455 = vld [vmem:[#allocation2 + $0x18] sm:$0xff]
        %v456 = vld [vmem:[#allocation2 + $0x20] sm:$0xff]
        %v457 = vld [vmem:[#allocation2 + $0x28] sm:$0xff]
        %v458 = vld [vmem:[#allocation2 + $0x30] sm:$0xff]
        %v459 = vld [vmem:[#allocation2 + $0x38] sm:$0xff]
        %v460 = vld [vmem:[#allocation2 + $0x40] sm:$0xff]
        %v461 = vld [vmem:[#allocation2 + $0x48] sm:$0xff]
        %v462 = vld [vmem:[#allocation2 + $0x50] sm:$0xff]
        %v463 = vld [vmem:[#allocation2 + $0x58] sm:$0xff]
        %v464 = vld [vmem:[#allocation2 + $0x60] sm:$0xff]
        %v465 = vld [vmem:[#allocation2 + $0x68] sm:$0xff]
        %v466 = vld [vmem:[#allocation2 + $0x70] sm:$0xff]
        %v467 = vld [vmem:[#allocation2 + $0x78] sm:$0xff]
        %468 = vset.pattern.permute.xlu0 2
        %469 = vperm.xlu0 %468, %v185
        %v470 = vpop.permute.xlu0 %469
        %472 = vset.pattern.permute.xlu0 2
        %473 = vperm.xlu0 %472, %v186
        %v474 = vpop.permute.xlu0 %473
        %476 = vset.pattern.permute.xlu0 2
        %477 = vperm.xlu0 %476, %v187
        %v478 = vpop.permute.xlu0 %477
        %480 = vset.pattern.permute.xlu0 2
        %481 = vperm.xlu0 %480, %v188
        %v482 = vpop.permute.xlu0 %481
        %484 = vset.pattern.permute.xlu0 2
        %485 = vperm.xlu0 %484, %v189
        %v486 = vpop.permute.xlu0 %485
        %488 = vset.pattern.permute.xlu0 2
        %489 = vperm.xlu0 %488, %v190
        %v490 = vpop.permute.xlu0 %489
        %492 = vset.pattern.permute.xlu0 2
        %493 = vperm.xlu0 %492, %v191
        %v494 = vpop.permute.xlu0 %493
        %496 = vset.pattern.permute.xlu0 2
        %497 = vperm.xlu0 %496, %v192
        %v498 = vpop.permute.xlu0 %497
        %500 = vset.pattern.permute.xlu0 2
        %501 = vperm.xlu0 %500, %v193
        %v502 = vpop.permute.xlu0 %501
        %504 = vset.pattern.permute.xlu0 2
        %505 = vperm.xlu0 %504, %v194
        %v506 = vpop.permute.xlu0 %505
        %508 = vset.pattern.permute.xlu0 2
        %509 = vperm.xlu0 %508, %v195
        %v510 = vpop.permute.xlu0 %509
        %512 = vset.pattern.permute.xlu0 2
        %513 = vperm.xlu0 %512, %v196
        %v514 = vpop.permute.xlu0 %513
        %516 = vset.pattern.permute.xlu0 2
        %517 = vperm.xlu0 %516, %v197
        %v518 = vpop.permute.xlu0 %517
        %520 = vset.pattern.permute.xlu0 2
        %521 = vperm.xlu0 %520, %v198
        %v522 = vpop.permute.xlu0 %521
        %524 = vset.pattern.permute.xlu0 2
        %525 = vperm.xlu0 %524, %v199
        %v526 = vpop.permute.xlu0 %525
        %528 = vset.pattern.permute.xlu0 2
        %529 = vperm.xlu0 %528, %v200
        %v530 = vpop.permute.xlu0 %529
        %v532 = vand.u32 %v421, 4294901760
        %533 = vmatprep.subr.mxu0 %v532
        %v534 = vand.u32 %v420, 4294901760
        %535 = vmatpush1.msra.mxu0 %v534
        %v536 = vand.u32 %v423, 4294901760
        %537 = vmatprep.subr.mxu0 %v536
        %v538 = vand.u32 %v422, 4294901760
        %539 = vmatpush1.msra.mxu0 %v538
        %v540 = vand.u32 %v425, 4294901760
        %541 = vmatprep.subr.mxu0 %v540
        %v542 = vand.u32 %v424, 4294901760
        %543 = vmatpush1.msra.mxu0 %v542
        %v544 = vand.u32 %v427, 4294901760
        %545 = vmatprep.subr.mxu0 %v544
        %v546 = vand.u32 %v426, 4294901760
        %547 = vmatpush1.msra.mxu0 %v546
        %v548 = vand.u32 %v429, 4294901760
        %549 = vmatprep.subr.mxu0 %v548
        %v550 = vand.u32 %v428, 4294901760
        %551 = vmatpush1.msra.mxu0 %v550
        %v552 = vand.u32 %v431, 4294901760
        %553 = vmatprep.subr.mxu0 %v552
        %v554 = vand.u32 %v430, 4294901760
        %555 = vmatpush1.msra.mxu0 %v554
        %v556 = vand.u32 %v433, 4294901760
        %557 = vmatprep.subr.mxu0 %v556
        %v558 = vand.u32 %v432, 4294901760
        %559 = vmatpush1.msra.mxu0 %v558
        %v560 = vand.u32 %v435, 4294901760
        %561 = vmatprep.subr.mxu0 %v560
        %v562 = vand.u32 %v434, 4294901760
        %563 = vmatpush1.msra.mxu0 %v562
        %v564 = vand.u32 %v437, 4294901760
        %565 = vmatprep.subr.mxu0 %v564
        %v566 = vand.u32 %v436, 4294901760
        %567 = vmatpush1.msra.mxu0 %v566
        %v568 = vand.u32 %v439, 4294901760
        %569 = vmatprep.subr.mxu0 %v568
        %v570 = vand.u32 %v438, 4294901760
        %571 = vmatpush1.msra.mxu0 %v570
        %v572 = vand.u32 %v441, 4294901760
        %573 = vmatprep.subr.mxu0 %v572
        %v574 = vand.u32 %v440, 4294901760
        %575 = vmatpush1.msra.mxu0 %v574
        %v576 = vand.u32 %v443, 4294901760
        %577 = vmatprep.subr.mxu0 %v576
        %v578 = vand.u32 %v442, 4294901760
        %579 = vmatpush1.msra.mxu0 %v578
        %v580 = vand.u32 %v445, 4294901760
        %581 = vmatprep.subr.mxu0 %v580
        %v582 = vand.u32 %v444, 4294901760
        %583 = vmatpush1.msra.mxu0 %v582
        %v584 = vand.u32 %v447, 4294901760
        %585 = vmatprep.subr.mxu0 %v584
        %v586 = vand.u32 %v446, 4294901760
        %587 = vmatpush1.msra.mxu0 %v586
        %v588 = vand.u32 %v449, 4294901760
        %589 = vmatprep.subr.mxu0 %v588
        %v590 = vand.u32 %v448, 4294901760
        %591 = vmatpush1.msra.mxu0 %v590
        %v592 = vand.u32 %v451, 4294901760
        %593 = vmatprep.subr.mxu0 %v592
        %v594 = vand.u32 %v450, 4294901760
        %595 = vmatpush1.msra.mxu0 %v594
        %596 = vmatprep.subr.mxu0 0.0
        %597 = vmatpush1.msra.mxu0 0.0
        %598 = vmatprep.subr.mxu0 0.0
        %599 = vmatpush1.msra.mxu0 0.0
        %600 = vmatprep.subr.mxu0 0.0
        %601 = vmatpush1.msra.mxu0 0.0
        %602 = vmatprep.subr.mxu0 0.0
        %603 = vmatpush1.msra.mxu0 0.0
        %604 = vmatprep.subr.mxu0 0.0
        %605 = vmatpush1.msra.mxu0 0.0
        %606 = vmatprep.subr.mxu0 0.0
        %607 = vmatpush1.msra.mxu0 0.0
        %608 = vmatprep.subr.mxu0 0.0
        %609 = vmatpush1.msra.mxu0 0.0
        %610 = vmatprep.subr.mxu0 0.0
        %611 = vmatpush1.msra.mxu0 0.0
        %612 = vmatprep.subr.mxu0 0.0
        %613 = vmatpush1.msra.mxu0 0.0
        %614 = vmatprep.subr.mxu0 0.0
        %615 = vmatpush1.msra.mxu0 0.0
        %616 = vmatprep.subr.mxu0 0.0
        %617 = vmatpush1.msra.mxu0 0.0
        %618 = vmatprep.subr.mxu0 0.0
        %619 = vmatpush1.msra.mxu0 0.0
        %620 = vmatprep.subr.mxu0 0.0
        %621 = vmatpush1.msra.mxu0 0.0
        %622 = vmatprep.subr.mxu0 0.0
        %623 = vmatpush1.msra.mxu0 0.0
        %624 = vmatprep.subr.mxu0 0.0
        %625 = vmatpush1.msra.mxu0 0.0
        %626 = vmatprep.subr.mxu0 0.0
        %627 = vmatpush1.msra.mxu0 0.0
        %628 = vmatprep.mubr.f32.mxu0 0.0
        %v629 = vand.u32 %v452, 4294901760
        %v630 = vsub.f32 %v452, %v629
        %v631 = vand.u32 %v630, 4294901760
        %v632 = vsub.f32 %v630, %v631
        %v633 = vand.u32 %v632, 4294901760
        %634 = vmatmul.mubr.f32.gmra.mrb[0].mxu0 %v633
        %v635 = vpop.f32.mrb[0].mxu0
        %v636 = vadd.f32 %v470, %v635
        %v637 = vpop.f32.mrb[0].mxu0
        %v638 = vadd.f32 %v470, %v637
        %639 = vmatprep.mubr.f32.mxu0 0.0
        %v640 = vand.u32 %v453, 4294901760
        %v641 = vsub.f32 %v453, %v640
        %v642 = vand.u32 %v641, 4294901760
        %v643 = vsub.f32 %v641, %v642
        %v644 = vand.u32 %v643, 4294901760
        %645 = vmatmul.mubr.f32.gmra.mrb[0].mxu0 %v644
        %v646 = vpop.f32.mrb[0].mxu0
        %v647 = vadd.f32 %v474, %v646
        %v648 = vpop.f32.mrb[0].mxu0
        %v649 = vadd.f32 %v474, %v648
        %650 = vmatprep.mubr.f32.mxu0 0.0
        %v651 = vand.u32 %v454, 4294901760
        %v652 = vsub.f32 %v454, %v651
        %v653 = vand.u32 %v652, 4294901760
        %v654 = vsub.f32 %v652, %v653
        %v655 = vand.u32 %v654, 4294901760
        %656 = vmatmul.mubr.f32.gmra.mrb[0].mxu0 %v655
        %v657 = vpop.f32.mrb[0].mxu0
        %v658 = vadd.f32 %v478, %v657
        %v659 = vpop.f32.mrb[0].mxu0
        %v660 = vadd.f32 %v478, %v659
        %661 = vmatprep.mubr.f32.mxu0 0.0
        %v662 = vand.u32 %v455, 4294901760
        %v663 = vsub.f32 %v455, %v662
        %v664 = vand.u32 %v663, 4294901760
        %v665 = vsub.f32 %v663, %v664
        %v666 = vand.u32 %v665, 4294901760
        %667 = vmatmul.mubr.f32.gmra.mrb[0].mxu0 %v666
        %v668 = vpop.f32.mrb[0].mxu0
        %v669 = vadd.f32 %v482, %v668
        %v670 = vpop.f32.mrb[0].mxu0
        %v671 = vadd.f32 %v482, %v670
        %672 = vmatprep.mubr.f32.mxu0 0.0
        %v673 = vand.u32 %v456, 4294901760
        %v674 = vsub.f32 %v456, %v673
        %v675 = vand.u32 %v674, 4294901760
        %v676 = vsub.f32 %v674, %v675
        %v677 = vand.u32 %v676, 4294901760
        %678 = vmatmul.mubr.f32.gmra.mrb[0].mxu0 %v677
        %v679 = vpop.f32.mrb[0].mxu0
        %v680 = vadd.f32 %v486, %v679
        %v681 = vpop.f32.mrb[0].mxu0
        %v682 = vadd.f32 %v486, %v681
        %683 = vmatprep.mubr.f32.mxu0 0.0
        %v684 = vand.u32 %v457, 4294901760
        %v685 = vsub.f32 %v457, %v684
        %v686 = vand.u32 %v685, 4294901760
        %v687 = vsub.f32 %v685, %v686
        %v688 = vand.u32 %v687, 4294901760
        %689 = vmatmul.mubr.f32.gmra.mrb[0].mxu0 %v688
        %v690 = vpop.f32.mrb[0].mxu0
        %v691 = vadd.f32 %v490, %v690
        %v692 = vpop.f32.mrb[0].mxu0
        %v693 = vadd.f32 %v490, %v692
        %694 = vmatprep.mubr.f32.mxu0 0.0
        %v695 = vand.u32 %v458, 4294901760
        %v696 = vsub.f32 %v458, %v695
        %v697 = vand.u32 %v696, 4294901760
        %v698 = vsub.f32 %v696, %v697
        %v699 = vand.u32 %v698, 4294901760
        %700 = vmatmul.mubr.f32.gmra.mrb[0].mxu0 %v699
        %v701 = vpop.f32.mrb[0].mxu0
        %v702 = vadd.f32 %v494, %v701
        %v703 = vpop.f32.mrb[0].mxu0
        %v704 = vadd.f32 %v494, %v703
        %705 = vmatprep.mubr.f32.mxu0 0.0
        %v706 = vand.u32 %v459, 4294901760
        %v707 = vsub.f32 %v459, %v706
        %v708 = vand.u32 %v707, 4294901760
        %v709 = vsub.f32 %v707, %v708
        %v710 = vand.u32 %v709, 4294901760
        %711 = vmatmul.mubr.f32.gmra.mrb[0].mxu0 %v710
        %v712 = vpop.f32.mrb[0].mxu0
        %v713 = vadd.f32 %v498, %v712
        %v714 = vpop.f32.mrb[0].mxu0
        %v715 = vadd.f32 %v498, %v714
        %716 = vmatprep.mubr.f32.mxu0 0.0
        %v717 = vand.u32 %v460, 4294901760
        %v718 = vsub.f32 %v460, %v717
        %v719 = vand.u32 %v718, 4294901760
        %v720 = vsub.f32 %v718, %v719
        %v721 = vand.u32 %v720, 4294901760
        %722 = vmatmul.mubr.f32.gmra.mrb[0].mxu0 %v721
        %v723 = vpop.f32.mrb[0].mxu0
        %v724 = vadd.f32 %v502, %v723
        %v725 = vpop.f32.mrb[0].mxu0
        %v726 = vadd.f32 %v502, %v725
        %727 = vmatprep.mubr.f32.mxu0 0.0
        %v728 = vand.u32 %v461, 4294901760
        %v729 = vsub.f32 %v461, %v728
        %v730 = vand.u32 %v729, 4294901760
        %v731 = vsub.f32 %v729, %v730
        %v732 = vand.u32 %v731, 4294901760
        %733 = vmatmul.mubr.f32.gmra.mrb[0].mxu0 %v732
        %v734 = vpop.f32.mrb[0].mxu0
        %v735 = vadd.f32 %v506, %v734
        %v736 = vpop.f32.mrb[0].mxu0
        %v737 = vadd.f32 %v506, %v736
        %738 = vmatprep.mubr.f32.mxu0 0.0
        %v739 = vand.u32 %v462, 4294901760
        %v740 = vsub.f32 %v462, %v739
        %v741 = vand.u32 %v740, 4294901760
        %v742 = vsub.f32 %v740, %v741
        %v743 = vand.u32 %v742, 4294901760
        %744 = vmatmul.mubr.f32.gmra.mrb[0].mxu0 %v743
        %v745 = vpop.f32.mrb[0].mxu0
        %v746 = vadd.f32 %v510, %v745
        %v747 = vpop.f32.mrb[0].mxu0
        %v748 = vadd.f32 %v510, %v747
        %749 = vmatprep.mubr.f32.mxu0 0.0
        %v750 = vand.u32 %v463, 4294901760
        %v751 = vsub.f32 %v463, %v750
        %v752 = vand.u32 %v751, 4294901760
        %v753 = vsub.f32 %v751, %v752
        %v754 = vand.u32 %v753, 4294901760
        %755 = vmatmul.mubr.f32.gmra.mrb[0].mxu0 %v754
        %v756 = vpop.f32.mrb[0].mxu0
        %v757 = vadd.f32 %v514, %v756
        %v758 = vpop.f32.mrb[0].mxu0
        %v759 = vadd.f32 %v514, %v758
        %760 = vmatprep.mubr.f32.mxu0 0.0
        %v761 = vand.u32 %v464, 4294901760
        %v762 = vsub.f32 %v464, %v761
        %v763 = vand.u32 %v762, 4294901760
        %v764 = vsub.f32 %v762, %v763
        %v765 = vand.u32 %v764, 4294901760
        %766 = vmatmul.mubr.f32.gmra.mrb[0].mxu0 %v765
        %v767 = vpop.f32.mrb[0].mxu0
        %v768 = vadd.f32 %v518, %v767
        %v769 = vpop.f32.mrb[0].mxu0
        %v770 = vadd.f32 %v518, %v769
        %771 = vmatprep.mubr.f32.mxu0 0.0
        %v772 = vand.u32 %v465, 4294901760
        %v773 = vsub.f32 %v465, %v772
        %v774 = vand.u32 %v773, 4294901760
        %v775 = vsub.f32 %v773, %v774
        %v776 = vand.u32 %v775, 4294901760
        %777 = vmatmul.mubr.f32.gmra.mrb[0].mxu0 %v776
        %v778 = vpop.f32.mrb[0].mxu0
        %v779 = vadd.f32 %v522, %v778
        %v780 = vpop.f32.mrb[0].mxu0
        %v781 = vadd.f32 %v522, %v780
        %782 = vmatprep.mubr.f32.mxu0 0.0
        %v783 = vand.u32 %v466, 4294901760
        %v784 = vsub.f32 %v466, %v783
        %v785 = vand.u32 %v784, 4294901760
        %v786 = vsub.f32 %v784, %v785
        %v787 = vand.u32 %v786, 4294901760
        %788 = vmatmul.mubr.f32.gmra.mrb[0].mxu0 %v787
        %v789 = vpop.f32.mrb[0].mxu0
        %v790 = vadd.f32 %v526, %v789
        %v791 = vpop.f32.mrb[0].mxu0
        %v792 = vadd.f32 %v526, %v791
        %793 = vmatprep.mubr.f32.mxu0 0.0
        %v794 = vand.u32 %v467, 4294901760
        %v795 = vsub.f32 %v467, %v794
        %v796 = vand.u32 %v795, 4294901760
        %v797 = vsub.f32 %v795, %v796
        %v798 = vand.u32 %v797, 4294901760
        %799 = vmatmul.mubr.f32.gmra.mrb[0].mxu0 %v798
        %v800 = vpop.f32.mrb[0].mxu0
        %v801 = vadd.f32 %v530, %v800
        %v802 = vpop.f32.mrb[0].mxu0
        %v803 = vadd.f32 %v530, %v802
        %804 = vdwg.mxu0
        %v805 = vand.u32 %v421, 4294901760
        %v806 = vsub.f32 %v421, %v805
        %v807 = vand.u32 %v806, 4294901760
        %v808 = vsub.f32 %v806, %v807
        %v809 = vand.u32 %v808, 4294901760
        %810 = vmatprep.subr.mxu0 %v809
        %v811 = vand.u32 %v420, 4294901760
        %v812 = vsub.f32 %v420, %v811
        %v813 = vand.u32 %v812, 4294901760
        %v814 = vsub.f32 %v812, %v813
        %v815 = vand.u32 %v814, 4294901760
        %816 = vmatpush1.msra.mxu0 %v815
        %v817 = vand.u32 %v423, 4294901760
        %v818 = vsub.f32 %v423, %v817
        %v819 = vand.u32 %v818, 4294901760
        %v820 = vsub.f32 %v818, %v819
        %v821 = vand.u32 %v820, 4294901760
        %822 = vmatprep.subr.mxu0 %v821
        %v823 = vand.u32 %v422, 4294901760
        %v824 = vsub.f32 %v422, %v823
        %v825 = vand.u32 %v824, 4294901760
        %v826 = vsub.f32 %v824, %v825
        %v827 = vand.u32 %v826, 4294901760
        %828 = vmatpush1.msra.mxu0 %v827
        %v829 = vand.u32 %v425, 4294901760
        %v830 = vsub.f32 %v425, %v829
        %v831 = vand.u32 %v830, 4294901760
        %v832 = vsub.f32 %v830, %v831
        %v833 = vand.u32 %v832, 4294901760
        %834 = vmatprep.subr.mxu0 %v833
        %v835 = vand.u32 %v424, 4294901760
        %v836 = vsub.f32 %v424, %v835
        %v837 = vand.u32 %v836, 4294901760
        %v838 = vsub.f32 %v836, %v837
        %v839 = vand.u32 %v838, 4294901760
        %840 = vmatpush1.msra.mxu0 %v839
        %v841 = vand.u32 %v427, 4294901760
        %v842 = vsub.f32 %v427, %v841
        %v843 = vand.u32 %v842, 4294901760
        %v844 = vsub.f32 %v842, %v843
        %v845 = vand.u32 %v844, 4294901760
        %846 = vmatprep.subr.mxu0 %v845
        %v847 = vand.u32 %v426, 4294901760
        %v848 = vsub.f32 %v426, %v847
        %v849 = vand.u32 %v848, 4294901760
        %v850 = vsub.f32 %v848, %v849
        %v851 = vand.u32 %v850, 4294901760
        %852 = vmatpush1.msra.mxu0 %v851
        %v853 = vand.u32 %v429, 4294901760
        %v854 = vsub.f32 %v429, %v853
        %v855 = vand.u32 %v854, 4294901760
        %v856 = vsub.f32 %v854, %v855
        %v857 = vand.u32 %v856, 4294901760
        %858 = vmatprep.subr.mxu0 %v857
        %v859 = vand.u32 %v428, 4294901760
        %v860 = vsub.f32 %v428, %v859
        %v861 = vand.u32 %v860, 4294901760
        %v862 = vsub.f32 %v860, %v861
        %v863 = vand.u32 %v862, 4294901760
        %864 = vmatpush1.msra.mxu0 %v863
        %v865 = vand.u32 %v431, 4294901760
        %v866 = vsub.f32 %v431, %v865
        %v867 = vand.u32 %v866, 4294901760
        %v868 = vsub.f32 %v866, %v867
        %v869 = vand.u32 %v868, 4294901760
        %870 = vmatprep.subr.mxu0 %v869
        %v871 = vand.u32 %v430, 4294901760
        %v872 = vsub.f32 %v430, %v871
        %v873 = vand.u32 %v872, 4294901760
        %v874 = vsub.f32 %v872, %v873
        %v875 = vand.u32 %v874, 4294901760
        %876 = vmatpush1.msra.mxu0 %v875
        %v877 = vand.u32 %v433, 4294901760
        %v878 = vsub.f32 %v433, %v877
        %v879 = vand.u32 %v878, 4294901760
        %v880 = vsub.f32 %v878, %v879
        %v881 = vand.u32 %v880, 4294901760
        %882 = vmatprep.subr.mxu0 %v881
        %v883 = vand.u32 %v432, 4294901760
        %v884 = vsub.f32 %v432, %v883
        %v885 = vand.u32 %v884, 4294901760
        %v886 = vsub.f32 %v884, %v885
        %v887 = vand.u32 %v886, 4294901760
        %888 = vmatpush1.msra.mxu0 %v887
        %v889 = vand.u32 %v435, 4294901760
        %v890 = vsub.f32 %v435, %v889
        %v891 = vand.u32 %v890, 4294901760
        %v892 = vsub.f32 %v890, %v891
        %v893 = vand.u32 %v892, 4294901760
        %894 = vmatprep.subr.mxu0 %v893
        %v895 = vand.u32 %v434, 4294901760
        %v896 = vsub.f32 %v434, %v895
        %v897 = vand.u32 %v896, 4294901760
        %v898 = vsub.f32 %v896, %v897
        %v899 = vand.u32 %v898, 4294901760
        %900 = vmatpush1.msra.mxu0 %v899
        %v901 = vand.u32 %v437, 4294901760
        %v902 = vsub.f32 %v437, %v901
        %v903 = vand.u32 %v902, 4294901760
        %v904 = vsub.f32 %v902, %v903
        %v905 = vand.u32 %v904, 4294901760
        %906 = vmatprep.subr.mxu0 %v905
        %v907 = vand.u32 %v436, 4294901760
        %v908 = vsub.f32 %v436, %v907
        %v909 = vand.u32 %v908, 4294901760
        %v910 = vsub.f32 %v908, %v909
        %v911 = vand.u32 %v910, 4294901760
        %912 = vmatpush1.msra.mxu0 %v911
        %v913 = vand.u32 %v439, 4294901760
        %v914 = vsub.f32 %v439, %v913
        %v915 = vand.u32 %v914, 4294901760
        %v916 = vsub.f32 %v914, %v915
        %v917 = vand.u32 %v916, 4294901760
        %918 = vmatprep.subr.mxu0 %v917
        %v919 = vand.u32 %v438, 4294901760
        %v920 = vsub.f32 %v438, %v919
        %v921 = vand.u32 %v920, 4294901760
        %v922 = vsub.f32 %v920, %v921
        %v923 = vand.u32 %v922, 4294901760
        %924 = vmatpush1.msra.mxu0 %v923
        %v925 = vand.u32 %v441, 4294901760
        %v926 = vsub.f32 %v441, %v925
        %v927 = vand.u32 %v926, 4294901760
        %v928 = vsub.f32 %v926, %v927
        %v929 = vand.u32 %v928, 4294901760
        %930 = vmatprep.subr.mxu0 %v929
        %v931 = vand.u32 %v440, 4294901760
        %v932 = vsub.f32 %v440, %v931
        %v933 = vand.u32 %v932, 4294901760
        %v934 = vsub.f32 %v932, %v933
        %v935 = vand.u32 %v934, 4294901760
        %936 = vmatpush1.msra.mxu0 %v935
        %v937 = vand.u32 %v443, 4294901760
        %v938 = vsub.f32 %v443, %v937
        %v939 = vand.u32 %v938, 4294901760
        %v940 = vsub.f32 %v938, %v939
        %v941 = vand.u32 %v940, 4294901760
        %942 = vmatprep.subr.mxu0 %v941
        %v943 = vand.u32 %v442, 4294901760
        %v944 = vsub.f32 %v442, %v943
        %v945 = vand.u32 %v944, 4294901760
        %v946 = vsub.f32 %v944, %v945
        %v947 = vand.u32 %v946, 4294901760
        %948 = vmatpush1.msra.mxu0 %v947
        %v949 = vand.u32 %v445, 4294901760
        %v950 = vsub.f32 %v445, %v949
        %v951 = vand.u32 %v950, 4294901760
        %v952 = vsub.f32 %v950, %v951
        %v953 = vand.u32 %v952, 4294901760
        %954 = vmatprep.subr.mxu0 %v953
        %v955 = vand.u32 %v444, 4294901760
        %v956 = vsub.f32 %v444, %v955
        %v957 = vand.u32 %v956, 4294901760
        %v958 = vsub.f32 %v956, %v957
        %v959 = vand.u32 %v958, 4294901760
        %960 = vmatpush1.msra.mxu0 %v959
        %v961 = vand.u32 %v447, 4294901760
        %v962 = vsub.f32 %v447, %v961
        %v963 = vand.u32 %v962, 4294901760
        %v964 = vsub.f32 %v962, %v963
        %v965 = vand.u32 %v964, 4294901760
        %966 = vmatprep.subr.mxu0 %v965
        %v967 = vand.u32 %v446, 4294901760
        %v968 = vsub.f32 %v446, %v967
        %v969 = vand.u32 %v968, 4294901760
        %v970 = vsub.f32 %v968, %v969
        %v971 = vand.u32 %v970, 4294901760
        %972 = vmatpush1.msra.mxu0 %v971
        %v973 = vand.u32 %v449, 4294901760
        %v974 = vsub.f32 %v449, %v973
        %v975 = vand.u32 %v974, 4294901760
        %v976 = vsub.f32 %v974, %v975
        %v977 = vand.u32 %v976, 4294901760
        %978 = vmatprep.subr.mxu0 %v977
        %v979 = vand.u32 %v448, 4294901760
        %v980 = vsub.f32 %v448, %v979
        %v981 = vand.u32 %v980, 4294901760
        %v982 = vsub.f32 %v980, %v981
        %v983 = vand.u32 %v982, 4294901760
        %984 = vmatpush1.msra.mxu0 %v983
        %v985 = vand.u32 %v451, 4294901760
        %v986 = vsub.f32 %v451, %v985
        %v987 = vand.u32 %v986, 4294901760
        %v988 = vsub.f32 %v986, %v987
        %v989 = vand.u32 %v988, 4294901760
        %990 = vmatprep.subr.mxu0 %v989
        %v991 = vand.u32 %v450, 4294901760
        %v992 = vsub.f32 %v450, %v991
        %v993 = vand.u32 %v992, 4294901760
        %v994 = vsub.f32 %v992, %v993
        %v995 = vand.u32 %v994, 4294901760
        %996 = vmatpush1.msra.mxu0 %v995
        %997 = vmatprep.subr.mxu0 0.0
        %998 = vmatpush1.msra.mxu0 0.0
        %999 = vmatprep.subr.mxu0 0.0
        %1000 = vmatpush1.msra.mxu0 0.0
        %1001 = vmatprep.subr.mxu0 0.0
        %1002 = vmatpush1.msra.mxu0 0.0
        %1003 = vmatprep.subr.mxu0 0.0
        %1004 = vmatpush1.msra.mxu0 0.0
        %1005 = vmatprep.subr.mxu0 0.0
        %1006 = vmatpush1.msra.mxu0 0.0
        %1007 = vmatprep.subr.mxu0 0.0
        %1008 = vmatpush1.msra.mxu0 0.0
        %1009 = vmatprep.subr.mxu0 0.0
        %1010 = vmatpush1.msra.mxu0 0.0
        %1011 = vmatprep.subr.mxu0 0.0
        %1012 = vmatpush1.msra.mxu0 0.0
        %1013 = vmatprep.subr.mxu0 0.0
        %1014 = vmatpush1.msra.mxu0 0.0
        %1015 = vmatprep.subr.mxu0 0.0
        %1016 = vmatpush1.msra.mxu0 0.0
        %1017 = vmatprep.subr.mxu0 0.0
        %1018 = vmatpush1.msra.mxu0 0.0
        %1019 = vmatprep.subr.mxu0 0.0
        %1020 = vmatpush1.msra.mxu0 0.0
        %1021 = vmatprep.subr.mxu0 0.0
        %1022 = vmatpush1.msra.mxu0 0.0
        %1023 = vmatprep.subr.mxu0 0.0
        %1024 = vmatpush1.msra.mxu0 0.0
        %1025 = vmatprep.subr.mxu0 0.0
        %1026 = vmatpush1.msra.mxu0 0.0
        %1027 = vmatprep.subr.mxu0 0.0
        %1028 = vmatpush1.msra.mxu0 0.0
        %1029 = vmatprep.mubr.f32.mxu0 0.0
        %v1030 = vand.u32 %v452, 4294901760
        %1031 = vmatmul.mubr.f32.gmra.mrb[0].mxu0 %v1030
        %v1032 = vpop.f32.mrb[0].mxu0
        %v1033 = vadd.f32 %v636, %v1032
        %v1034 = vpop.f32.mrb[0].mxu0
        %v1035 = vadd.f32 %v638, %v1034
        %1036 = vmatprep.mubr.f32.mxu0 0.0
        %v1037 = vand.u32 %v453, 4294901760
        %1038 = vmatmul.mubr.f32.gmra.mrb[0].mxu0 %v1037
        %v1039 = vpop.f32.mrb[0].mxu0
        %v1040 = vadd.f32 %v647, %v1039
        %v1041 = vpop.f32.mrb[0].mxu0
        %v1042 = vadd.f32 %v649, %v1041
        %1043 = vmatprep.mubr.f32.mxu0 0.0
        %v1044 = vand.u32 %v454, 4294901760
        %1045 = vmatmul.mubr.f32.gmra.mrb[0].mxu0 %v1044
        %v1046 = vpop.f32.mrb[0].mxu0
        %v1047 = vadd.f32 %v658, %v1046
        %v1048 = vpop.f32.mrb[0].mxu0
        %v1049 = vadd.f32 %v660, %v1048
        %1050 = vmatprep.mubr.f32.mxu0 0.0
        %v1051 = vand.u32 %v455, 4294901760
        %1052 = vmatmul.mubr.f32.gmra.mrb[0].mxu0 %v1051
        %v1053 = vpop.f32.mrb[0].mxu0
        %v1054 = vadd.f32 %v669, %v1053
        %v1055 = vpop.f32.mrb[0].mxu0
        %v1056 = vadd.f32 %v671, %v1055
        %1057 = vmatprep.mubr.f32.mxu0 0.0
        %v1058 = vand.u32 %v456, 4294901760
        %1059 = vmatmul.mubr.f32.gmra.mrb[0].mxu0 %v1058
        %v1060 = vpop.f32.mrb[0].mxu0
        %v1061 = vadd.f32 %v680, %v1060
        %v1062 = vpop.f32.mrb[0].mxu0
        %v1063 = vadd.f32 %v682, %v1062
        %1064 = vmatprep.mubr.f32.mxu0 0.0
        %v1065 = vand.u32 %v457, 4294901760
        %1066 = vmatmul.mubr.f32.gmra.mrb[0].mxu0 %v1065
        %v1067 = vpop.f32.mrb[0].mxu0
        %v1068 = vadd.f32 %v691, %v1067
        %v1069 = vpop.f32.mrb[0].mxu0
        %v1070 = vadd.f32 %v693, %v1069
        %1071 = vmatprep.mubr.f32.mxu0 0.0
        %v1072 = vand.u32 %v458, 4294901760
        %1073 = vmatmul.mubr.f32.gmra.mrb[0].mxu0 %v1072
        %v1074 = vpop.f32.mrb[0].mxu0
        %v1075 = vadd.f32 %v702, %v1074
        %v1076 = vpop.f32.mrb[0].mxu0
        %v1077 = vadd.f32 %v704, %v1076
        %1078 = vmatprep.mubr.f32.mxu0 0.0
        %v1079 = vand.u32 %v459, 4294901760
        %1080 = vmatmul.mubr.f32.gmra.mrb[0].mxu0 %v1079
        %v1081 = vpop.f32.mrb[0].mxu0
        %v1082 = vadd.f32 %v713, %v1081
        %v1083 = vpop.f32.mrb[0].mxu0
        %v1084 = vadd.f32 %v715, %v1083
        %1085 = vmatprep.mubr.f32.mxu0 0.0
        %v1086 = vand.u32 %v460, 4294901760
        %1087 = vmatmul.mubr.f32.gmra.mrb[0].mxu0 %v1086
        %v1088 = vpop.f32.mrb[0].mxu0
        %v1089 = vadd.f32 %v724, %v1088
        %v1090 = vpop.f32.mrb[0].mxu0
        %v1091 = vadd.f32 %v726, %v1090
        %1092 = vmatprep.mubr.f32.mxu0 0.0
        %v1093 = vand.u32 %v461, 4294901760
        %1094 = vmatmul.mubr.f32.gmra.mrb[0].mxu0 %v1093
        %v1095 = vpop.f32.mrb[0].mxu0
        %v1096 = vadd.f32 %v735, %v1095
        %v1097 = vpop.f32.mrb[0].mxu0
        %v1098 = vadd.f32 %v737, %v1097
        %1099 = vmatprep.mubr.f32.mxu0 0.0
        %v1100 = vand.u32 %v462, 4294901760
        %1101 = vmatmul.mubr.f32.gmra.mrb[0].mxu0 %v1100
        %v1102 = vpop.f32.mrb[0].mxu0
        %v1103 = vadd.f32 %v746, %v1102
        %v1104 = vpop.f32.mrb[0].mxu0
        %v1105 = vadd.f32 %v748, %v1104
        %1106 = vmatprep.mubr.f32.mxu0 0.0
        %v1107 = vand.u32 %v463, 4294901760
        %1108 = vmatmul.mubr.f32.gmra.mrb[0].mxu0 %v1107
        %v1109 = vpop.f32.mrb[0].mxu0
        %v1110 = vadd.f32 %v757, %v1109
        %v1111 = vpop.f32.mrb[0].mxu0
        %v1112 = vadd.f32 %v759, %v1111
        %1113 = vmatprep.mubr.f32.mxu0 0.0
        %v1114 = vand.u32 %v464, 4294901760
        %1115 = vmatmul.mubr.f32.gmra.mrb[0].mxu0 %v1114
        %v1116 = vpop.f32.mrb[0].mxu0
        %v1117 = vadd.f32 %v768, %v1116
        %v1118 = vpop.f32.mrb[0].mxu0
        %v1119 = vadd.f32 %v770, %v1118
        %1120 = vmatprep.mubr.f32.mxu0 0.0
        %v1121 = vand.u32 %v465, 4294901760
        %1122 = vmatmul.mubr.f32.gmra.mrb[0].mxu0 %v1121
        %v1123 = vpop.f32.mrb[0].mxu0
        %v1124 = vadd.f32 %v779, %v1123
        %v1125 = vpop.f32.mrb[0].mxu0
        %v1126 = vadd.f32 %v781, %v1125
        %1127 = vmatprep.mubr.f32.mxu0 0.0
        %v1128 = vand.u32 %v466, 4294901760
        %1129 = vmatmul.mubr.f32.gmra.mrb[0].mxu0 %v1128
        %v1130 = vpop.f32.mrb[0].mxu0
        %v1131 = vadd.f32 %v790, %v1130
        %v1132 = vpop.f32.mrb[0].mxu0
        %v1133 = vadd.f32 %v792, %v1132
        %1134 = vmatprep.mubr.f32.mxu0 0.0
        %v1135 = vand.u32 %v467, 4294901760
        %1136 = vmatmul.mubr.f32.gmra.mrb[0].mxu0 %v1135
        %v1137 = vpop.f32.mrb[0].mxu0
        %v1138 = vadd.f32 %v801, %v1137
        %v1139 = vpop.f32.mrb[0].mxu0
        %v1140 = vadd.f32 %v803, %v1139
        %1141 = vdwg.mxu0
        %v1142 = vand.u32 %v421, 4294901760
        %v1143 = vsub.f32 %v421, %v1142
        %1144 = vmatprep.subr.mxu0 %v1143
        %v1145 = vand.u32 %v420, 4294901760
        %v1146 = vsub.f32 %v420, %v1145
        %1147 = vmatpush1.msra.mxu0 %v1146
        %v1148 = vand.u32 %v423, 4294901760
        %v1149 = vsub.f32 %v423, %v1148
        %1150 = vmatprep.subr.mxu0 %v1149
        %v1151 = vand.u32 %v422, 4294901760
        %v1152 = vsub.f32 %v422, %v1151
        %1153 = vmatpush1.msra.mxu0 %v1152
        %v1154 = vand.u32 %v425, 4294901760
        %v1155 = vsub.f32 %v425, %v1154
        %1156 = vmatprep.subr.mxu0 %v1155
        %v1157 = vand.u32 %v424, 4294901760
        %v1158 = vsub.f32 %v424, %v1157
        %1159 = vmatpush1.msra.mxu0 %v1158
        %v1160 = vand.u32 %v427, 4294901760
        %v1161 = vsub.f32 %v427, %v1160
        %1162 = vmatprep.subr.mxu0 %v1161
        %v1163 = vand.u32 %v426, 4294901760
        %v1164 = vsub.f32 %v426, %v1163
        %1165 = vmatpush1.msra.mxu0 %v1164
        %v1166 = vand.u32 %v429, 4294901760
        %v1167 = vsub.f32 %v429, %v1166
        %1168 = vmatprep.subr.mxu0 %v1167
        %v1169 = vand.u32 %v428, 4294901760
        %v1170 = vsub.f32 %v428, %v1169
        %1171 = vmatpush1.msra.mxu0 %v1170
        %v1172 = vand.u32 %v431, 4294901760
        %v1173 = vsub.f32 %v431, %v1172
        %1174 = vmatprep.subr.mxu0 %v1173
        %v1175 = vand.u32 %v430, 4294901760
        %v1176 = vsub.f32 %v430, %v1175
        %1177 = vmatpush1.msra.mxu0 %v1176
        %v1178 = vand.u32 %v433, 4294901760
        %v1179 = vsub.f32 %v433, %v1178
        %1180 = vmatprep.subr.mxu0 %v1179
        %v1181 = vand.u32 %v432, 4294901760
        %v1182 = vsub.f32 %v432, %v1181
        %1183 = vmatpush1.msra.mxu0 %v1182
        %v1184 = vand.u32 %v435, 4294901760
        %v1185 = vsub.f32 %v435, %v1184
        %1186 = vmatprep.subr.mxu0 %v1185
        %v1187 = vand.u32 %v434, 4294901760
        %v1188 = vsub.f32 %v434, %v1187
        %1189 = vmatpush1.msra.mxu0 %v1188
        %v1190 = vand.u32 %v437, 4294901760
        %v1191 = vsub.f32 %v437, %v1190
        %1192 = vmatprep.subr.mxu0 %v1191
        %v1193 = vand.u32 %v436, 4294901760
        %v1194 = vsub.f32 %v436, %v1193
        %1195 = vmatpush1.msra.mxu0 %v1194
        %v1196 = vand.u32 %v439, 4294901760
        %v1197 = vsub.f32 %v439, %v1196
        %1198 = vmatprep.subr.mxu0 %v1197
        %v1199 = vand.u32 %v438, 4294901760
        %v1200 = vsub.f32 %v438, %v1199
        %1201 = vmatpush1.msra.mxu0 %v1200
        %v1202 = vand.u32 %v441, 4294901760
        %v1203 = vsub.f32 %v441, %v1202
        %1204 = vmatprep.subr.mxu0 %v1203
        %v1205 = vand.u32 %v440, 4294901760
        %v1206 = vsub.f32 %v440, %v1205
        %1207 = vmatpush1.msra.mxu0 %v1206
        %v1208 = vand.u32 %v443, 4294901760
        %v1209 = vsub.f32 %v443, %v1208
        %1210 = vmatprep.subr.mxu0 %v1209
        %v1211 = vand.u32 %v442, 4294901760
        %v1212 = vsub.f32 %v442, %v1211
        %1213 = vmatpush1.msra.mxu0 %v1212
        %v1214 = vand.u32 %v445, 4294901760
        %v1215 = vsub.f32 %v445, %v1214
        %1216 = vmatprep.subr.mxu0 %v1215
        %v1217 = vand.u32 %v444, 4294901760
        %v1218 = vsub.f32 %v444, %v1217
        %1219 = vmatpush1.msra.mxu0 %v1218
        %v1220 = vand.u32 %v447, 4294901760
        %v1221 = vsub.f32 %v447, %v1220
        %1222 = vmatprep.subr.mxu0 %v1221
        %v1223 = vand.u32 %v446, 4294901760
        %v1224 = vsub.f32 %v446, %v1223
        %1225 = vmatpush1.msra.mxu0 %v1224
        %v1226 = vand.u32 %v449, 4294901760
        %v1227 = vsub.f32 %v449, %v1226
        %1228 = vmatprep.subr.mxu0 %v1227
        %v1229 = vand.u32 %v448, 4294901760
        %v1230 = vsub.f32 %v448, %v1229
        %1231 = vmatpush1.msra.mxu0 %v1230
        %v1232 = vand.u32 %v451, 4294901760
        %v1233 = vsub.f32 %v451, %v1232
        %1234 = vmatprep.subr.mxu0 %v1233
        %v1235 = vand.u32 %v450, 4294901760
        %v1236 = vsub.f32 %v450, %v1235
        %1237 = vmatpush1.msra.mxu0 %v1236
        %1238 = vmatprep.subr.mxu0 0.0
        %1239 = vmatpush1.msra.mxu0 0.0
        %1240 = vmatprep.subr.mxu0 0.0
        %1241 = vmatpush1.msra.mxu0 0.0
        %1242 = vmatprep.subr.mxu0 0.0
        %1243 = vmatpush1.msra.mxu0 0.0
        %1244 = vmatprep.subr.mxu0 0.0
        %1245 = vmatpush1.msra.mxu0 0.0
        %1246 = vmatprep.subr.mxu0 0.0
        %1247 = vmatpush1.msra.mxu0 0.0
        %1248 = vmatprep.subr.mxu0 0.0
        %1249 = vmatpush1.msra.mxu0 0.0
        %1250 = vmatprep.subr.mxu0 0.0
        %1251 = vmatpush1.msra.mxu0 0.0
        %1252 = vmatprep.subr.mxu0 0.0
        %1253 = vmatpush1.msra.mxu0 0.0
        %1254 = vmatprep.subr.mxu0 0.0
        %1255 = vmatpush1.msra.mxu0 0.0
        %1256 = vmatprep.subr.mxu0 0.0
        %1257 = vmatpush1.msra.mxu0 0.0
        %1258 = vmatprep.subr.mxu0 0.0
        %1259 = vmatpush1.msra.mxu0 0.0
        %1260 = vmatprep.subr.mxu0 0.0
        %1261 = vmatpush1.msra.mxu0 0.0
        %1262 = vmatprep.subr.mxu0 0.0
        %1263 = vmatpush1.msra.mxu0 0.0
        %1264 = vmatprep.subr.mxu0 0.0
        %1265 = vmatpush1.msra.mxu0 0.0
        %1266 = vmatprep.subr.mxu0 0.0
        %1267 = vmatpush1.msra.mxu0 0.0
        %1268 = vmatprep.subr.mxu0 0.0
        %1269 = vmatpush1.msra.mxu0 0.0
        %1270 = vmatprep.mubr.f32.mxu0 0.0
        %v1271 = vand.u32 %v452, 4294901760
        %v1272 = vsub.f32 %v452, %v1271
        %1273 = vmatmul.mubr.f32.gmra.mrb[0].mxu0 %v1272
        %v1274 = vpop.f32.mrb[0].mxu0
        %v1275 = vadd.f32 %v1033, %v1274
        %v1276 = vpop.f32.mrb[0].mxu0
        %v1277 = vadd.f32 %v1035, %v1276
        %1278 = vmatprep.mubr.f32.mxu0 0.0
        %v1279 = vand.u32 %v453, 4294901760
        %v1280 = vsub.f32 %v453, %v1279
        %1281 = vmatmul.mubr.f32.gmra.mrb[0].mxu0 %v1280
        %v1282 = vpop.f32.mrb[0].mxu0
        %v1283 = vadd.f32 %v1040, %v1282
        %v1284 = vpop.f32.mrb[0].mxu0
        %v1285 = vadd.f32 %v1042, %v1284
        %1286 = vmatprep.mubr.f32.mxu0 0.0
        %v1287 = vand.u32 %v454, 4294901760
        %v1288 = vsub.f32 %v454, %v1287
        %1289 = vmatmul.mubr.f32.gmra.mrb[0].mxu0 %v1288
        %v1290 = vpop.f32.mrb[0].mxu0
        %v1291 = vadd.f32 %v1047, %v1290
        %v1292 = vpop.f32.mrb[0].mxu0
        %v1293 = vadd.f32 %v1049, %v1292
        %1294 = vmatprep.mubr.f32.mxu0 0.0
        %v1295 = vand.u32 %v455, 4294901760
        %v1296 = vsub.f32 %v455, %v1295
        %1297 = vmatmul.mubr.f32.gmra.mrb[0].mxu0 %v1296
        %v1298 = vpop.f32.mrb[0].mxu0
        %v1299 = vadd.f32 %v1054, %v1298
        %v1300 = vpop.f32.mrb[0].mxu0
        %v1301 = vadd.f32 %v1056, %v1300
        %1302 = vmatprep.mubr.f32.mxu0 0.0
        %v1303 = vand.u32 %v456, 4294901760
        %v1304 = vsub.f32 %v456, %v1303
        %1305 = vmatmul.mubr.f32.gmra.mrb[0].mxu0 %v1304
        %v1306 = vpop.f32.mrb[0].mxu0
        %v1307 = vadd.f32 %v1061, %v1306
        %v1308 = vpop.f32.mrb[0].mxu0
        %v1309 = vadd.f32 %v1063, %v1308
        %1310 = vmatprep.mubr.f32.mxu0 0.0
        %v1311 = vand.u32 %v457, 4294901760
        %v1312 = vsub.f32 %v457, %v1311
        %1313 = vmatmul.mubr.f32.gmra.mrb[0].mxu0 %v1312
        %v1314 = vpop.f32.mrb[0].mxu0
        %v1315 = vadd.f32 %v1068, %v1314
        %v1316 = vpop.f32.mrb[0].mxu0
        %v1317 = vadd.f32 %v1070, %v1316
        %1318 = vmatprep.mubr.f32.mxu0 0.0
        %v1319 = vand.u32 %v458, 4294901760
        %v1320 = vsub.f32 %v458, %v1319
        %1321 = vmatmul.mubr.f32.gmra.mrb[0].mxu0 %v1320
        %v1322 = vpop.f32.mrb[0].mxu0
        %v1323 = vadd.f32 %v1075, %v1322
        %v1324 = vpop.f32.mrb[0].mxu0
        %v1325 = vadd.f32 %v1077, %v1324
        %1326 = vmatprep.mubr.f32.mxu0 0.0
        %v1327 = vand.u32 %v459, 4294901760
        %v1328 = vsub.f32 %v459, %v1327
        %1329 = vmatmul.mubr.f32.gmra.mrb[0].mxu0 %v1328
        %v1330 = vpop.f32.mrb[0].mxu0
        %v1331 = vadd.f32 %v1082, %v1330
        %v1332 = vpop.f32.mrb[0].mxu0
        %v1333 = vadd.f32 %v1084, %v1332
        %1334 = vmatprep.mubr.f32.mxu0 0.0
        %v1335 = vand.u32 %v460, 4294901760
        %v1336 = vsub.f32 %v460, %v1335
        %1337 = vmatmul.mubr.f32.gmra.mrb[0].mxu0 %v1336
        %v1338 = vpop.f32.mrb[0].mxu0
        %v1339 = vadd.f32 %v1089, %v1338
        %v1340 = vpop.f32.mrb[0].mxu0
        %v1341 = vadd.f32 %v1091, %v1340
        %1342 = vmatprep.mubr.f32.mxu0 0.0
        %v1343 = vand.u32 %v461, 4294901760
        %v1344 = vsub.f32 %v461, %v1343
        %1345 = vmatmul.mubr.f32.gmra.mrb[0].mxu0 %v1344
        %v1346 = vpop.f32.mrb[0].mxu0
        %v1347 = vadd.f32 %v1096, %v1346
        %v1348 = vpop.f32.mrb[0].mxu0
        %v1349 = vadd.f32 %v1098, %v1348
        %1350 = vmatprep.mubr.f32.mxu0 0.0
        %v1351 = vand.u32 %v462, 4294901760
        %v1352 = vsub.f32 %v462, %v1351
        %1353 = vmatmul.mubr.f32.gmra.mrb[0].mxu0 %v1352
        %v1354 = vpop.f32.mrb[0].mxu0
        %v1355 = vadd.f32 %v1103, %v1354
        %v1356 = vpop.f32.mrb[0].mxu0
        %v1357 = vadd.f32 %v1105, %v1356
        %1358 = vmatprep.mubr.f32.mxu0 0.0
        %v1359 = vand.u32 %v463, 4294901760
        %v1360 = vsub.f32 %v463, %v1359
        %1361 = vmatmul.mubr.f32.gmra.mrb[0].mxu0 %v1360
        %v1362 = vpop.f32.mrb[0].mxu0
        %v1363 = vadd.f32 %v1110, %v1362
        %v1364 = vpop.f32.mrb[0].mxu0
        %v1365 = vadd.f32 %v1112, %v1364
        %1366 = vmatprep.mubr.f32.mxu0 0.0
        %v1367 = vand.u32 %v464, 4294901760
        %v1368 = vsub.f32 %v464, %v1367
        %1369 = vmatmul.mubr.f32.gmra.mrb[0].mxu0 %v1368
        %v1370 = vpop.f32.mrb[0].mxu0
        %v1371 = vadd.f32 %v1117, %v1370
        %v1372 = vpop.f32.mrb[0].mxu0
        %v1373 = vadd.f32 %v1119, %v1372
        %1374 = vmatprep.mubr.f32.mxu0 0.0
        %v1375 = vand.u32 %v465, 4294901760
        %v1376 = vsub.f32 %v465, %v1375
        %1377 = vmatmul.mubr.f32.gmra.mrb[0].mxu0 %v1376
        %v1378 = vpop.f32.mrb[0].mxu0
        %v1379 = vadd.f32 %v1124, %v1378
        %v1380 = vpop.f32.mrb[0].mxu0
        %v1381 = vadd.f32 %v1126, %v1380
        %1382 = vmatprep.mubr.f32.mxu0 0.0
        %v1383 = vand.u32 %v466, 4294901760
        %v1384 = vsub.f32 %v466, %v1383
        %1385 = vmatmul.mubr.f32.gmra.mrb[0].mxu0 %v1384
        %v1386 = vpop.f32.mrb[0].mxu0
        %v1387 = vadd.f32 %v1131, %v1386
        %v1388 = vpop.f32.mrb[0].mxu0
        %v1389 = vadd.f32 %v1133, %v1388
        %1390 = vmatprep.mubr.f32.mxu0 0.0
        %v1391 = vand.u32 %v467, 4294901760
        %v1392 = vsub.f32 %v467, %v1391
        %1393 = vmatmul.mubr.f32.gmra.mrb[0].mxu0 %v1392
        %v1394 = vpop.f32.mrb[0].mxu0
        %v1395 = vadd.f32 %v1138, %v1394
        %v1396 = vpop.f32.mrb[0].mxu0
        %v1397 = vadd.f32 %v1140, %v1396
        %1398 = vdwg.mxu0
        %v1399 = vand.u32 %v421, 4294901760
        %1400 = vmatprep.subr.mxu0 %v1399
        %v1401 = vand.u32 %v420, 4294901760
        %1402 = vmatpush1.msra.mxu0 %v1401
        %v1403 = vand.u32 %v423, 4294901760
        %1404 = vmatprep.subr.mxu0 %v1403
        %v1405 = vand.u32 %v422, 4294901760
        %1406 = vmatpush1.msra.mxu0 %v1405
        %v1407 = vand.u32 %v425, 4294901760
        %1408 = vmatprep.subr.mxu0 %v1407
        %v1409 = vand.u32 %v424, 4294901760
        %1410 = vmatpush1.msra.mxu0 %v1409
        %v1411 = vand.u32 %v427, 4294901760
        %1412 = vmatprep.subr.mxu0 %v1411
        %v1413 = vand.u32 %v426, 4294901760
        %1414 = vmatpush1.msra.mxu0 %v1413
        %v1415 = vand.u32 %v429, 4294901760
        %1416 = vmatprep.subr.mxu0 %v1415
        %v1417 = vand.u32 %v428, 4294901760
        %1418 = vmatpush1.msra.mxu0 %v1417
        %v1419 = vand.u32 %v431, 4294901760
        %1420 = vmatprep.subr.mxu0 %v1419
        %v1421 = vand.u32 %v430, 4294901760
        %1422 = vmatpush1.msra.mxu0 %v1421
        %v1423 = vand.u32 %v433, 4294901760
        %1424 = vmatprep.subr.mxu0 %v1423
        %v1425 = vand.u32 %v432, 4294901760
        %1426 = vmatpush1.msra.mxu0 %v1425
        %v1427 = vand.u32 %v435, 4294901760
        %1428 = vmatprep.subr.mxu0 %v1427
        %v1429 = vand.u32 %v434, 4294901760
        %1430 = vmatpush1.msra.mxu0 %v1429
        %v1431 = vand.u32 %v437, 4294901760
        %1432 = vmatprep.subr.mxu0 %v1431
        %v1433 = vand.u32 %v436, 4294901760
        %1434 = vmatpush1.msra.mxu0 %v1433
        %v1435 = vand.u32 %v439, 4294901760
        %1436 = vmatprep.subr.mxu0 %v1435
        %v1437 = vand.u32 %v438, 4294901760
        %1438 = vmatpush1.msra.mxu0 %v1437
        %v1439 = vand.u32 %v441, 4294901760
        %1440 = vmatprep.subr.mxu0 %v1439
        %v1441 = vand.u32 %v440, 4294901760
        %1442 = vmatpush1.msra.mxu0 %v1441
        %v1443 = vand.u32 %v443, 4294901760
        %1444 = vmatprep.subr.mxu0 %v1443
        %v1445 = vand.u32 %v442, 4294901760
        %1446 = vmatpush1.msra.mxu0 %v1445
        %v1447 = vand.u32 %v445, 4294901760
        %1448 = vmatprep.subr.mxu0 %v1447
        %v1449 = vand.u32 %v444, 4294901760
        %1450 = vmatpush1.msra.mxu0 %v1449
        %v1451 = vand.u32 %v447, 4294901760
        %1452 = vmatprep.subr.mxu0 %v1451
        %v1453 = vand.u32 %v446, 4294901760
        %1454 = vmatpush1.msra.mxu0 %v1453
        %v1455 = vand.u32 %v449, 4294901760
        %1456 = vmatprep.subr.mxu0 %v1455
        %v1457 = vand.u32 %v448, 4294901760
        %1458 = vmatpush1.msra.mxu0 %v1457
        %v1459 = vand.u32 %v451, 4294901760
        %1460 = vmatprep.subr.mxu0 %v1459
        %v1461 = vand.u32 %v450, 4294901760
        %1462 = vmatpush1.msra.mxu0 %v1461
        %1463 = vmatprep.subr.mxu0 0.0
        %1464 = vmatpush1.msra.mxu0 0.0
        %1465 = vmatprep.subr.mxu0 0.0
        %1466 = vmatpush1.msra.mxu0 0.0
        %1467 = vmatprep.subr.mxu0 0.0
        %1468 = vmatpush1.msra.mxu0 0.0
        %1469 = vmatprep.subr.mxu0 0.0
        %1470 = vmatpush1.msra.mxu0 0.0
        %1471 = vmatprep.subr.mxu0 0.0
        %1472 = vmatpush1.msra.mxu0 0.0
        %1473 = vmatprep.subr.mxu0 0.0
        %1474 = vmatpush1.msra.mxu0 0.0
        %1475 = vmatprep.subr.mxu0 0.0
        %1476 = vmatpush1.msra.mxu0 0.0
        %1477 = vmatprep.subr.mxu0 0.0
        %1478 = vmatpush1.msra.mxu0 0.0
        %1479 = vmatprep.subr.mxu0 0.0
        %1480 = vmatpush1.msra.mxu0 0.0
        %1481 = vmatprep.subr.mxu0 0.0
        %1482 = vmatpush1.msra.mxu0 0.0
        %1483 = vmatprep.subr.mxu0 0.0
        %1484 = vmatpush1.msra.mxu0 0.0
        %1485 = vmatprep.subr.mxu0 0.0
        %1486 = vmatpush1.msra.mxu0 0.0
        %1487 = vmatprep.subr.mxu0 0.0
        %1488 = vmatpush1.msra.mxu0 0.0
        %1489 = vmatprep.subr.mxu0 0.0
        %1490 = vmatpush1.msra.mxu0 0.0
        %1491 = vmatprep.subr.mxu0 0.0
        %1492 = vmatpush1.msra.mxu0 0.0
        %1493 = vmatprep.subr.mxu0 0.0
        %1494 = vmatpush1.msra.mxu0 0.0
        %1495 = vmatprep.mubr.f32.mxu0 0.0
        %v1496 = vand.u32 %v452, 4294901760
        %v1497 = vsub.f32 %v452, %v1496
        %v1498 = vand.u32 %v1497, 4294901760
        %1499 = vmatmul.mubr.f32.gmra.mrb[0].mxu0 %v1498
        %v1500 = vpop.f32.mrb[0].mxu0
        %v1501 = vadd.f32 %v1275, %v1500
        %v1502 = vpop.f32.mrb[0].mxu0
        %v1503 = vadd.f32 %v1277, %v1502
        %1504 = vmatprep.mubr.f32.mxu0 0.0
        %v1505 = vand.u32 %v453, 4294901760
        %v1506 = vsub.f32 %v453, %v1505
        %v1507 = vand.u32 %v1506, 4294901760
        %1508 = vmatmul.mubr.f32.gmra.mrb[0].mxu0 %v1507
        %v1509 = vpop.f32.mrb[0].mxu0
        %v1510 = vadd.f32 %v1283, %v1509
        %v1511 = vpop.f32.mrb[0].mxu0
        %v1512 = vadd.f32 %v1285, %v1511
        %1513 = vmatprep.mubr.f32.mxu0 0.0
        %v1514 = vand.u32 %v454, 4294901760
        %v1515 = vsub.f32 %v454, %v1514
        %v1516 = vand.u32 %v1515, 4294901760
        %1517 = vmatmul.mubr.f32.gmra.mrb[0].mxu0 %v1516
        %v1518 = vpop.f32.mrb[0].mxu0
        %v1519 = vadd.f32 %v1291, %v1518
        %v1520 = vpop.f32.mrb[0].mxu0
        %v1521 = vadd.f32 %v1293, %v1520
        %1522 = vmatprep.mubr.f32.mxu0 0.0
        %v1523 = vand.u32 %v455, 4294901760
        %v1524 = vsub.f32 %v455, %v1523
        %v1525 = vand.u32 %v1524, 4294901760
        %1526 = vmatmul.mubr.f32.gmra.mrb[0].mxu0 %v1525
        %v1527 = vpop.f32.mrb[0].mxu0
        %v1528 = vadd.f32 %v1299, %v1527
        %v1529 = vpop.f32.mrb[0].mxu0
        %v1530 = vadd.f32 %v1301, %v1529
        %1531 = vmatprep.mubr.f32.mxu0 0.0
        %v1532 = vand.u32 %v456, 4294901760
        %v1533 = vsub.f32 %v456, %v1532
        %v1534 = vand.u32 %v1533, 4294901760
        %1535 = vmatmul.mubr.f32.gmra.mrb[0].mxu0 %v1534
        %v1536 = vpop.f32.mrb[0].mxu0
        %v1537 = vadd.f32 %v1307, %v1536
        %v1538 = vpop.f32.mrb[0].mxu0
        %v1539 = vadd.f32 %v1309, %v1538
        %1540 = vmatprep.mubr.f32.mxu0 0.0
        %v1541 = vand.u32 %v457, 4294901760
        %v1542 = vsub.f32 %v457, %v1541
        %v1543 = vand.u32 %v1542, 4294901760
        %1544 = vmatmul.mubr.f32.gmra.mrb[0].mxu0 %v1543
        %v1545 = vpop.f32.mrb[0].mxu0
        %v1546 = vadd.f32 %v1315, %v1545
        %v1547 = vpop.f32.mrb[0].mxu0
        %v1548 = vadd.f32 %v1317, %v1547
        %1549 = vmatprep.mubr.f32.mxu0 0.0
        %v1550 = vand.u32 %v458, 4294901760
        %v1551 = vsub.f32 %v458, %v1550
        %v1552 = vand.u32 %v1551, 4294901760
        %1553 = vmatmul.mubr.f32.gmra.mrb[0].mxu0 %v1552
        %v1554 = vpop.f32.mrb[0].mxu0
        %v1555 = vadd.f32 %v1323, %v1554
        %v1556 = vpop.f32.mrb[0].mxu0
        %v1557 = vadd.f32 %v1325, %v1556
        %1558 = vmatprep.mubr.f32.mxu0 0.0
        %v1559 = vand.u32 %v459, 4294901760
        %v1560 = vsub.f32 %v459, %v1559
        %v1561 = vand.u32 %v1560, 4294901760
        %1562 = vmatmul.mubr.f32.gmra.mrb[0].mxu0 %v1561
        %v1563 = vpop.f32.mrb[0].mxu0
        %v1564 = vadd.f32 %v1331, %v1563
        %v1565 = vpop.f32.mrb[0].mxu0
        %v1566 = vadd.f32 %v1333, %v1565
        %1567 = vmatprep.mubr.f32.mxu0 0.0
        %v1568 = vand.u32 %v460, 4294901760
        %v1569 = vsub.f32 %v460, %v1568
        %v1570 = vand.u32 %v1569, 4294901760
        %1571 = vmatmul.mubr.f32.gmra.mrb[0].mxu0 %v1570
        %v1572 = vpop.f32.mrb[0].mxu0
        %v1573 = vadd.f32 %v1339, %v1572
        %v1574 = vpop.f32.mrb[0].mxu0
        %v1575 = vadd.f32 %v1341, %v1574
        %1576 = vmatprep.mubr.f32.mxu0 0.0
        %v1577 = vand.u32 %v461, 4294901760
        %v1578 = vsub.f32 %v461, %v1577
        %v1579 = vand.u32 %v1578, 4294901760
        %1580 = vmatmul.mubr.f32.gmra.mrb[0].mxu0 %v1579
        %v1581 = vpop.f32.mrb[0].mxu0
        %v1582 = vadd.f32 %v1347, %v1581
        %v1583 = vpop.f32.mrb[0].mxu0
        %v1584 = vadd.f32 %v1349, %v1583
        %1585 = vmatprep.mubr.f32.mxu0 0.0
        %v1586 = vand.u32 %v462, 4294901760
        %v1587 = vsub.f32 %v462, %v1586
        %v1588 = vand.u32 %v1587, 4294901760
        %1589 = vmatmul.mubr.f32.gmra.mrb[0].mxu0 %v1588
        %v1590 = vpop.f32.mrb[0].mxu0
        %v1591 = vadd.f32 %v1355, %v1590
        %v1592 = vpop.f32.mrb[0].mxu0
        %v1593 = vadd.f32 %v1357, %v1592
        %1594 = vmatprep.mubr.f32.mxu0 0.0
        %v1595 = vand.u32 %v463, 4294901760
        %v1596 = vsub.f32 %v463, %v1595
        %v1597 = vand.u32 %v1596, 4294901760
        %1598 = vmatmul.mubr.f32.gmra.mrb[0].mxu0 %v1597
        %v1599 = vpop.f32.mrb[0].mxu0
        %v1600 = vadd.f32 %v1363, %v1599
        %v1601 = vpop.f32.mrb[0].mxu0
        %v1602 = vadd.f32 %v1365, %v1601
        %1603 = vmatprep.mubr.f32.mxu0 0.0
        %v1604 = vand.u32 %v464, 4294901760
        %v1605 = vsub.f32 %v464, %v1604
        %v1606 = vand.u32 %v1605, 4294901760
        %1607 = vmatmul.mubr.f32.gmra.mrb[0].mxu0 %v1606
        %v1608 = vpop.f32.mrb[0].mxu0
        %v1609 = vadd.f32 %v1371, %v1608
        %v1610 = vpop.f32.mrb[0].mxu0
        %v1611 = vadd.f32 %v1373, %v1610
        %1612 = vmatprep.mubr.f32.mxu0 0.0
        %v1613 = vand.u32 %v465, 4294901760
        %v1614 = vsub.f32 %v465, %v1613
        %v1615 = vand.u32 %v1614, 4294901760
        %1616 = vmatmul.mubr.f32.gmra.mrb[0].mxu0 %v1615
        %v1617 = vpop.f32.mrb[0].mxu0
        %v1618 = vadd.f32 %v1379, %v1617
        %v1619 = vpop.f32.mrb[0].mxu0
        %v1620 = vadd.f32 %v1381, %v1619
        %1621 = vmatprep.mubr.f32.mxu0 0.0
        %v1622 = vand.u32 %v466, 4294901760
        %v1623 = vsub.f32 %v466, %v1622
        %v1624 = vand.u32 %v1623, 4294901760
        %1625 = vmatmul.mubr.f32.gmra.mrb[0].mxu0 %v1624
        %v1626 = vpop.f32.mrb[0].mxu0
        %v1627 = vadd.f32 %v1387, %v1626
        %v1628 = vpop.f32.mrb[0].mxu0
        %v1629 = vadd.f32 %v1389, %v1628
        %1630 = vmatprep.mubr.f32.mxu0 0.0
        %v1631 = vand.u32 %v467, 4294901760
        %v1632 = vsub.f32 %v467, %v1631
        %v1633 = vand.u32 %v1632, 4294901760
        %1634 = vmatmul.mubr.f32.gmra.mrb[0].mxu0 %v1633
        %v1635 = vpop.f32.mrb[0].mxu0
        %v1636 = vadd.f32 %v1395, %v1635
        %v1637 = vpop.f32.mrb[0].mxu0
        %v1638 = vadd.f32 %v1397, %v1637
        %1639 = vdwg.mxu0
        %v1640 = vand.u32 %v421, 4294901760
        %v1641 = vsub.f32 %v421, %v1640
        %v1642 = vand.u32 %v1641, 4294901760
        %1643 = vmatprep.subr.mxu0 %v1642
        %v1644 = vand.u32 %v420, 4294901760
        %v1645 = vsub.f32 %v420, %v1644
        %v1646 = vand.u32 %v1645, 4294901760
        %1647 = vmatpush1.msra.mxu0 %v1646
        %v1648 = vand.u32 %v423, 4294901760
        %v1649 = vsub.f32 %v423, %v1648
        %v1650 = vand.u32 %v1649, 4294901760
        %1651 = vmatprep.subr.mxu0 %v1650
        %v1652 = vand.u32 %v422, 4294901760
        %v1653 = vsub.f32 %v422, %v1652
        %v1654 = vand.u32 %v1653, 4294901760
        %1655 = vmatpush1.msra.mxu0 %v1654
        %v1656 = vand.u32 %v425, 4294901760
        %v1657 = vsub.f32 %v425, %v1656
        %v1658 = vand.u32 %v1657, 4294901760
        %1659 = vmatprep.subr.mxu0 %v1658
        %v1660 = vand.u32 %v424, 4294901760
        %v1661 = vsub.f32 %v424, %v1660
        %v1662 = vand.u32 %v1661, 4294901760
        %1663 = vmatpush1.msra.mxu0 %v1662
        %v1664 = vand.u32 %v427, 4294901760
        %v1665 = vsub.f32 %v427, %v1664
        %v1666 = vand.u32 %v1665, 4294901760
        %1667 = vmatprep.subr.mxu0 %v1666
        %v1668 = vand.u32 %v426, 4294901760
        %v1669 = vsub.f32 %v426, %v1668
        %v1670 = vand.u32 %v1669, 4294901760
        %1671 = vmatpush1.msra.mxu0 %v1670
        %v1672 = vand.u32 %v429, 4294901760
        %v1673 = vsub.f32 %v429, %v1672
        %v1674 = vand.u32 %v1673, 4294901760
        %1675 = vmatprep.subr.mxu0 %v1674
        %v1676 = vand.u32 %v428, 4294901760
        %v1677 = vsub.f32 %v428, %v1676
        %v1678 = vand.u32 %v1677, 4294901760
        %1679 = vmatpush1.msra.mxu0 %v1678
        %v1680 = vand.u32 %v431, 4294901760
        %v1681 = vsub.f32 %v431, %v1680
        %v1682 = vand.u32 %v1681, 4294901760
        %1683 = vmatprep.subr.mxu0 %v1682
        %v1684 = vand.u32 %v430, 4294901760
        %v1685 = vsub.f32 %v430, %v1684
        %v1686 = vand.u32 %v1685, 4294901760
        %1687 = vmatpush1.msra.mxu0 %v1686
        %v1688 = vand.u32 %v433, 4294901760
        %v1689 = vsub.f32 %v433, %v1688
        %v1690 = vand.u32 %v1689, 4294901760
        %1691 = vmatprep.subr.mxu0 %v1690
        %v1692 = vand.u32 %v432, 4294901760
        %v1693 = vsub.f32 %v432, %v1692
        %v1694 = vand.u32 %v1693, 4294901760
        %1695 = vmatpush1.msra.mxu0 %v1694
        %v1696 = vand.u32 %v435, 4294901760
        %v1697 = vsub.f32 %v435, %v1696
        %v1698 = vand.u32 %v1697, 4294901760
        %1699 = vmatprep.subr.mxu0 %v1698
        %v1700 = vand.u32 %v434, 4294901760
        %v1701 = vsub.f32 %v434, %v1700
        %v1702 = vand.u32 %v1701, 4294901760
        %1703 = vmatpush1.msra.mxu0 %v1702
        %v1704 = vand.u32 %v437, 4294901760
        %v1705 = vsub.f32 %v437, %v1704
        %v1706 = vand.u32 %v1705, 4294901760
        %1707 = vmatprep.subr.mxu0 %v1706
        %v1708 = vand.u32 %v436, 4294901760
        %v1709 = vsub.f32 %v436, %v1708
        %v1710 = vand.u32 %v1709, 4294901760
        %1711 = vmatpush1.msra.mxu0 %v1710
        %v1712 = vand.u32 %v439, 4294901760
        %v1713 = vsub.f32 %v439, %v1712
        %v1714 = vand.u32 %v1713, 4294901760
        %1715 = vmatprep.subr.mxu0 %v1714
        %v1716 = vand.u32 %v438, 4294901760
        %v1717 = vsub.f32 %v438, %v1716
        %v1718 = vand.u32 %v1717, 4294901760
        %1719 = vmatpush1.msra.mxu0 %v1718
        %v1720 = vand.u32 %v441, 4294901760
        %v1721 = vsub.f32 %v441, %v1720
        %v1722 = vand.u32 %v1721, 4294901760
        %1723 = vmatprep.subr.mxu0 %v1722
        %v1724 = vand.u32 %v440, 4294901760
        %v1725 = vsub.f32 %v440, %v1724
        %v1726 = vand.u32 %v1725, 4294901760
        %1727 = vmatpush1.msra.mxu0 %v1726
        %v1728 = vand.u32 %v443, 4294901760
        %v1729 = vsub.f32 %v443, %v1728
        %v1730 = vand.u32 %v1729, 4294901760
        %1731 = vmatprep.subr.mxu0 %v1730
        %v1732 = vand.u32 %v442, 4294901760
        %v1733 = vsub.f32 %v442, %v1732
        %v1734 = vand.u32 %v1733, 4294901760
        %1735 = vmatpush1.msra.mxu0 %v1734
        %v1736 = vand.u32 %v445, 4294901760
        %v1737 = vsub.f32 %v445, %v1736
        %v1738 = vand.u32 %v1737, 4294901760
        %1739 = vmatprep.subr.mxu0 %v1738
        %v1740 = vand.u32 %v444, 4294901760
        %v1741 = vsub.f32 %v444, %v1740
        %v1742 = vand.u32 %v1741, 4294901760
        %1743 = vmatpush1.msra.mxu0 %v1742
        %v1744 = vand.u32 %v447, 4294901760
        %v1745 = vsub.f32 %v447, %v1744
        %v1746 = vand.u32 %v1745, 4294901760
        %1747 = vmatprep.subr.mxu0 %v1746
        %v1748 = vand.u32 %v446, 4294901760
        %v1749 = vsub.f32 %v446, %v1748
        %v1750 = vand.u32 %v1749, 4294901760
        %1751 = vmatpush1.msra.mxu0 %v1750
        %v1752 = vand.u32 %v449, 4294901760
        %v1753 = vsub.f32 %v449, %v1752
        %v1754 = vand.u32 %v1753, 4294901760
        %1755 = vmatprep.subr.mxu0 %v1754
        %v1756 = vand.u32 %v448, 4294901760
        %v1757 = vsub.f32 %v448, %v1756
        %v1758 = vand.u32 %v1757, 4294901760
        %1759 = vmatpush1.msra.mxu0 %v1758
        %v1760 = vand.u32 %v451, 4294901760
        %v1761 = vsub.f32 %v451, %v1760
        %v1762 = vand.u32 %v1761, 4294901760
        %1763 = vmatprep.subr.mxu0 %v1762
        %v1764 = vand.u32 %v450, 4294901760
        %v1765 = vsub.f32 %v450, %v1764
        %v1766 = vand.u32 %v1765, 4294901760
        %1767 = vmatpush1.msra.mxu0 %v1766
        %1768 = vmatprep.subr.mxu0 0.0
        %1769 = vmatpush1.msra.mxu0 0.0
        %1770 = vmatprep.subr.mxu0 0.0
        %1771 = vmatpush1.msra.mxu0 0.0
        %1772 = vmatprep.subr.mxu0 0.0
        %1773 = vmatpush1.msra.mxu0 0.0
        %1774 = vmatprep.subr.mxu0 0.0
        %1775 = vmatpush1.msra.mxu0 0.0
        %1776 = vmatprep.subr.mxu0 0.0
        %1777 = vmatpush1.msra.mxu0 0.0
        %1778 = vmatprep.subr.mxu0 0.0
        %1779 = vmatpush1.msra.mxu0 0.0
        %1780 = vmatprep.subr.mxu0 0.0
        %1781 = vmatpush1.msra.mxu0 0.0
        %1782 = vmatprep.subr.mxu0 0.0
        %1783 = vmatpush1.msra.mxu0 0.0
        %1784 = vmatprep.subr.mxu0 0.0
        %1785 = vmatpush1.msra.mxu0 0.0
        %1786 = vmatprep.subr.mxu0 0.0
        %1787 = vmatpush1.msra.mxu0 0.0
        %1788 = vmatprep.subr.mxu0 0.0
        %1789 = vmatpush1.msra.mxu0 0.0
        %1790 = vmatprep.subr.mxu0 0.0
        %1791 = vmatpush1.msra.mxu0 0.0
        %1792 = vmatprep.subr.mxu0 0.0
        %1793 = vmatpush1.msra.mxu0 0.0
        %1794 = vmatprep.subr.mxu0 0.0
        %1795 = vmatpush1.msra.mxu0 0.0
        %1796 = vmatprep.subr.mxu0 0.0
        %1797 = vmatpush1.msra.mxu0 0.0
        %1798 = vmatprep.subr.mxu0 0.0
        %1799 = vmatpush1.msra.mxu0 0.0
        %1800 = vmatprep.mubr.f32.mxu0 0.0
        %v1801 = vand.u32 %v452, 4294901760
        %1802 = vmatmul.mubr.f32.gmra.mrb[0].mxu0 %v1801
        %v1803 = vpop.f32.mrb[0].mxu0
        %v1804 = vadd.f32 %v1501, %v1803
        %v1805 = vpop.f32.mrb[0].mxu0
        %v1806 = vadd.f32 %v1503, %v1805
        %1807 = vmatprep.mubr.f32.mxu0 0.0
        %v1808 = vand.u32 %v453, 4294901760
        %1809 = vmatmul.mubr.f32.gmra.mrb[0].mxu0 %v1808
        %v1810 = vpop.f32.mrb[0].mxu0
        %v1811 = vadd.f32 %v1510, %v1810
        %v1812 = vpop.f32.mrb[0].mxu0
        %v1813 = vadd.f32 %v1512, %v1812
        %1814 = vmatprep.mubr.f32.mxu0 0.0
        %v1815 = vand.u32 %v454, 4294901760
        %1816 = vmatmul.mubr.f32.gmra.mrb[0].mxu0 %v1815
        %v1817 = vpop.f32.mrb[0].mxu0
        %v1818 = vadd.f32 %v1519, %v1817
        %v1819 = vpop.f32.mrb[0].mxu0
        %v1820 = vadd.f32 %v1521, %v1819
        %1821 = vmatprep.mubr.f32.mxu0 0.0
        %v1822 = vand.u32 %v455, 4294901760
        %1823 = vmatmul.mubr.f32.gmra.mrb[0].mxu0 %v1822
        %v1824 = vpop.f32.mrb[0].mxu0
        %v1825 = vadd.f32 %v1528, %v1824
        %v1826 = vpop.f32.mrb[0].mxu0
        %v1827 = vadd.f32 %v1530, %v1826
        %1828 = vmatprep.mubr.f32.mxu0 0.0
        %v1829 = vand.u32 %v456, 4294901760
        %1830 = vmatmul.mubr.f32.gmra.mrb[0].mxu0 %v1829
        %v1831 = vpop.f32.mrb[0].mxu0
        %v1832 = vadd.f32 %v1537, %v1831
        %v1833 = vpop.f32.mrb[0].mxu0
        %v1834 = vadd.f32 %v1539, %v1833
        %1835 = vmatprep.mubr.f32.mxu0 0.0
        %v1836 = vand.u32 %v457, 4294901760
        %1837 = vmatmul.mubr.f32.gmra.mrb[0].mxu0 %v1836
        %v1838 = vpop.f32.mrb[0].mxu0
        %v1839 = vadd.f32 %v1546, %v1838
        %v1840 = vpop.f32.mrb[0].mxu0
        %v1841 = vadd.f32 %v1548, %v1840
        %1842 = vmatprep.mubr.f32.mxu0 0.0
        %v1843 = vand.u32 %v458, 4294901760
        %1844 = vmatmul.mubr.f32.gmra.mrb[0].mxu0 %v1843
        %v1845 = vpop.f32.mrb[0].mxu0
        %v1846 = vadd.f32 %v1555, %v1845
        %v1847 = vpop.f32.mrb[0].mxu0
        %v1848 = vadd.f32 %v1557, %v1847
        %1849 = vmatprep.mubr.f32.mxu0 0.0
        %v1850 = vand.u32 %v459, 4294901760
        %1851 = vmatmul.mubr.f32.gmra.mrb[0].mxu0 %v1850
        %v1852 = vpop.f32.mrb[0].mxu0
        %v1853 = vadd.f32 %v1564, %v1852
        %v1854 = vpop.f32.mrb[0].mxu0
        %v1855 = vadd.f32 %v1566, %v1854
        %1856 = vmatprep.mubr.f32.mxu0 0.0
        %v1857 = vand.u32 %v460, 4294901760
        %1858 = vmatmul.mubr.f32.gmra.mrb[0].mxu0 %v1857
        %v1859 = vpop.f32.mrb[0].mxu0
        %v1860 = vadd.f32 %v1573, %v1859
        %v1861 = vpop.f32.mrb[0].mxu0
        %v1862 = vadd.f32 %v1575, %v1861
        %1863 = vmatprep.mubr.f32.mxu0 0.0
        %v1864 = vand.u32 %v461, 4294901760
        %1865 = vmatmul.mubr.f32.gmra.mrb[0].mxu0 %v1864
        %v1866 = vpop.f32.mrb[0].mxu0
        %v1867 = vadd.f32 %v1582, %v1866
        %v1868 = vpop.f32.mrb[0].mxu0
        %v1869 = vadd.f32 %v1584, %v1868
        %1870 = vmatprep.mubr.f32.mxu0 0.0
        %v1871 = vand.u32 %v462, 4294901760
        %1872 = vmatmul.mubr.f32.gmra.mrb[0].mxu0 %v1871
        %v1873 = vpop.f32.mrb[0].mxu0
        %v1874 = vadd.f32 %v1591, %v1873
        %v1875 = vpop.f32.mrb[0].mxu0
        %v1876 = vadd.f32 %v1593, %v1875
        %1877 = vmatprep.mubr.f32.mxu0 0.0
        %v1878 = vand.u32 %v463, 4294901760
        %1879 = vmatmul.mubr.f32.gmra.mrb[0].mxu0 %v1878
        %v1880 = vpop.f32.mrb[0].mxu0
        %v1881 = vadd.f32 %v1600, %v1880
        %v1882 = vpop.f32.mrb[0].mxu0
        %v1883 = vadd.f32 %v1602, %v1882
        %1884 = vmatprep.mubr.f32.mxu0 0.0
        %v1885 = vand.u32 %v464, 4294901760
        %1886 = vmatmul.mubr.f32.gmra.mrb[0].mxu0 %v1885
        %v1887 = vpop.f32.mrb[0].mxu0
        %v1888 = vadd.f32 %v1609, %v1887
        %v1889 = vpop.f32.mrb[0].mxu0
        %v1890 = vadd.f32 %v1611, %v1889
        %1891 = vmatprep.mubr.f32.mxu0 0.0
        %v1892 = vand.u32 %v465, 4294901760
        %1893 = vmatmul.mubr.f32.gmra.mrb[0].mxu0 %v1892
        %v1894 = vpop.f32.mrb[0].mxu0
        %v1895 = vadd.f32 %v1618, %v1894
        %v1896 = vpop.f32.mrb[0].mxu0
        %v1897 = vadd.f32 %v1620, %v1896
        %1898 = vmatprep.mubr.f32.mxu0 0.0
        %v1899 = vand.u32 %v466, 4294901760
        %1900 = vmatmul.mubr.f32.gmra.mrb[0].mxu0 %v1899
        %v1901 = vpop.f32.mrb[0].mxu0
        %v1902 = vadd.f32 %v1627, %v1901
        %v1903 = vpop.f32.mrb[0].mxu0
        %v1904 = vadd.f32 %v1629, %v1903
        %1905 = vmatprep.mubr.f32.mxu0 0.0
        %v1906 = vand.u32 %v467, 4294901760
        %1907 = vmatmul.mubr.f32.gmra.mrb[0].mxu0 %v1906
        %v1908 = vpop.f32.mrb[0].mxu0
        %v1909 = vadd.f32 %v1636, %v1908
        %v1910 = vpop.f32.mrb[0].mxu0
        %v1911 = vadd.f32 %v1638, %v1910
        %1912 = vdwg.mxu0
        %v1913 = vand.u32 %v421, 4294901760
        %1914 = vmatprep.subr.mxu0 %v1913
        %v1915 = vand.u32 %v420, 4294901760
        %1916 = vmatpush1.msra.mxu0 %v1915
        %v1917 = vand.u32 %v423, 4294901760
        %1918 = vmatprep.subr.mxu0 %v1917
        %v1919 = vand.u32 %v422, 4294901760
        %1920 = vmatpush1.msra.mxu0 %v1919
        %v1921 = vand.u32 %v425, 4294901760
        %1922 = vmatprep.subr.mxu0 %v1921
        %v1923 = vand.u32 %v424, 4294901760
        %1924 = vmatpush1.msra.mxu0 %v1923
        %v1925 = vand.u32 %v427, 4294901760
        %1926 = vmatprep.subr.mxu0 %v1925
        %v1927 = vand.u32 %v426, 4294901760
        %1928 = vmatpush1.msra.mxu0 %v1927
        %v1929 = vand.u32 %v429, 4294901760
        %1930 = vmatprep.subr.mxu0 %v1929
        %v1931 = vand.u32 %v428, 4294901760
        %1932 = vmatpush1.msra.mxu0 %v1931
        %v1933 = vand.u32 %v431, 4294901760
        %1934 = vmatprep.subr.mxu0 %v1933
        %v1935 = vand.u32 %v430, 4294901760
        %1936 = vmatpush1.msra.mxu0 %v1935
        %v1937 = vand.u32 %v433, 4294901760
        %1938 = vmatprep.subr.mxu0 %v1937
        %v1939 = vand.u32 %v432, 4294901760
        %1940 = vmatpush1.msra.mxu0 %v1939
        %v1941 = vand.u32 %v435, 4294901760
        %1942 = vmatprep.subr.mxu0 %v1941
        %v1943 = vand.u32 %v434, 4294901760
        %1944 = vmatpush1.msra.mxu0 %v1943
        %v1945 = vand.u32 %v437, 4294901760
        %1946 = vmatprep.subr.mxu0 %v1945
        %v1947 = vand.u32 %v436, 4294901760
        %1948 = vmatpush1.msra.mxu0 %v1947
        %v1949 = vand.u32 %v439, 4294901760
        %1950 = vmatprep.subr.mxu0 %v1949
        %v1951 = vand.u32 %v438, 4294901760
        %1952 = vmatpush1.msra.mxu0 %v1951
        %v1953 = vand.u32 %v441, 4294901760
        %1954 = vmatprep.subr.mxu0 %v1953
        %v1955 = vand.u32 %v440, 4294901760
        %1956 = vmatpush1.msra.mxu0 %v1955
        %v1957 = vand.u32 %v443, 4294901760
        %1958 = vmatprep.subr.mxu0 %v1957
        %v1959 = vand.u32 %v442, 4294901760
        %1960 = vmatpush1.msra.mxu0 %v1959
        %v1961 = vand.u32 %v445, 4294901760
        %1962 = vmatprep.subr.mxu0 %v1961
        %v1963 = vand.u32 %v444, 4294901760
        %1964 = vmatpush1.msra.mxu0 %v1963
        %v1965 = vand.u32 %v447, 4294901760
        %1966 = vmatprep.subr.mxu0 %v1965
        %v1967 = vand.u32 %v446, 4294901760
        %1968 = vmatpush1.msra.mxu0 %v1967
        %v1969 = vand.u32 %v449, 4294901760
        %1970 = vmatprep.subr.mxu0 %v1969
        %v1971 = vand.u32 %v448, 4294901760
        %1972 = vmatpush1.msra.mxu0 %v1971
        %v1973 = vand.u32 %v451, 4294901760
        %1974 = vmatprep.subr.mxu0 %v1973
        %v1975 = vand.u32 %v450, 4294901760
        %1976 = vmatpush1.msra.mxu0 %v1975
        %1977 = vmatprep.subr.mxu0 0.0
        %1978 = vmatpush1.msra.mxu0 0.0
        %1979 = vmatprep.subr.mxu0 0.0
        %1980 = vmatpush1.msra.mxu0 0.0
        %1981 = vmatprep.subr.mxu0 0.0
        %1982 = vmatpush1.msra.mxu0 0.0
        %1983 = vmatprep.subr.mxu0 0.0
        %1984 = vmatpush1.msra.mxu0 0.0
        %1985 = vmatprep.subr.mxu0 0.0
        %1986 = vmatpush1.msra.mxu0 0.0
        %1987 = vmatprep.subr.mxu0 0.0
        %1988 = vmatpush1.msra.mxu0 0.0
        %1989 = vmatprep.subr.mxu0 0.0
        %1990 = vmatpush1.msra.mxu0 0.0
        %1991 = vmatprep.subr.mxu0 0.0
        %1992 = vmatpush1.msra.mxu0 0.0
        %1993 = vmatprep.subr.mxu0 0.0
        %1994 = vmatpush1.msra.mxu0 0.0
        %1995 = vmatprep.subr.mxu0 0.0
        %1996 = vmatpush1.msra.mxu0 0.0
        %1997 = vmatprep.subr.mxu0 0.0
        %1998 = vmatpush1.msra.mxu0 0.0
        %1999 = vmatprep.subr.mxu0 0.0
        %2000 = vmatpush1.msra.mxu0 0.0
        %2001 = vmatprep.subr.mxu0 0.0
        %2002 = vmatpush1.msra.mxu0 0.0
        %2003 = vmatprep.subr.mxu0 0.0
        %2004 = vmatpush1.msra.mxu0 0.0
        %2005 = vmatprep.subr.mxu0 0.0
        %2006 = vmatpush1.msra.mxu0 0.0
        %2007 = vmatprep.subr.mxu0 0.0
        %2008 = vmatpush1.msra.mxu0 0.0
        %2009 = vmatprep.mubr.f32.mxu0 0.0
        %v2010 = vand.u32 %v452, 4294901760
        %2011 = vmatmul.mubr.f32.gmra.mrb[0].mxu0 %v2010
        %v2012 = vpop.f32.mrb[0].mxu0
        %v2013 = vadd.f32 %v1804, %v2012
        %v2014 = vpop.f32.mrb[0].mxu0
        %v2015 = vadd.f32 %v1806, %v2014
        %2016 = vmatprep.mubr.f32.mxu0 0.0
        %v2017 = vand.u32 %v453, 4294901760
        %2018 = vmatmul.mubr.f32.gmra.mrb[0].mxu0 %v2017
        %v2019 = vpop.f32.mrb[0].mxu0
        %v2020 = vadd.f32 %v1811, %v2019
        %v2021 = vpop.f32.mrb[0].mxu0
        %v2022 = vadd.f32 %v1813, %v2021
        %2023 = vmatprep.mubr.f32.mxu0 0.0
        %v2024 = vand.u32 %v454, 4294901760
        %2025 = vmatmul.mubr.f32.gmra.mrb[0].mxu0 %v2024
        %v2026 = vpop.f32.mrb[0].mxu0
        %v2027 = vadd.f32 %v1818, %v2026
        %v2028 = vpop.f32.mrb[0].mxu0
        %v2029 = vadd.f32 %v1820, %v2028
        %2030 = vmatprep.mubr.f32.mxu0 0.0
        %v2031 = vand.u32 %v455, 4294901760
        %2032 = vmatmul.mubr.f32.gmra.mrb[0].mxu0 %v2031
        %v2033 = vpop.f32.mrb[0].mxu0
        %v2034 = vadd.f32 %v1825, %v2033
        %v2035 = vpop.f32.mrb[0].mxu0
        %v2036 = vadd.f32 %v1827, %v2035
        %2037 = vmatprep.mubr.f32.mxu0 0.0
        %v2038 = vand.u32 %v456, 4294901760
        %2039 = vmatmul.mubr.f32.gmra.mrb[0].mxu0 %v2038
        %v2040 = vpop.f32.mrb[0].mxu0
        %v2041 = vadd.f32 %v1832, %v2040
        %v2042 = vpop.f32.mrb[0].mxu0
        %v2043 = vadd.f32 %v1834, %v2042
        %2044 = vmatprep.mubr.f32.mxu0 0.0
        %v2045 = vand.u32 %v457, 4294901760
        %2046 = vmatmul.mubr.f32.gmra.mrb[0].mxu0 %v2045
        %v2047 = vpop.f32.mrb[0].mxu0
        %v2048 = vadd.f32 %v1839, %v2047
        %v2049 = vpop.f32.mrb[0].mxu0
        %v2050 = vadd.f32 %v1841, %v2049
        %2051 = vmatprep.mubr.f32.mxu0 0.0
        %v2052 = vand.u32 %v458, 4294901760
        %2053 = vmatmul.mubr.f32.gmra.mrb[0].mxu0 %v2052
        %v2054 = vpop.f32.mrb[0].mxu0
        %v2055 = vadd.f32 %v1846, %v2054
        %v2056 = vpop.f32.mrb[0].mxu0
        %v2057 = vadd.f32 %v1848, %v2056
        %2058 = vmatprep.mubr.f32.mxu0 0.0
        %v2059 = vand.u32 %v459, 4294901760
        %2060 = vmatmul.mubr.f32.gmra.mrb[0].mxu0 %v2059
        %v2061 = vpop.f32.mrb[0].mxu0
        %v2062 = vadd.f32 %v1853, %v2061
        %v2063 = vpop.f32.mrb[0].mxu0
        %v2064 = vadd.f32 %v1855, %v2063
        %2065 = vmatprep.mubr.f32.mxu0 0.0
        %v2066 = vand.u32 %v460, 4294901760
        %2067 = vmatmul.mubr.f32.gmra.mrb[0].mxu0 %v2066
        %v2068 = vpop.f32.mrb[0].mxu0
        %v2069 = vadd.f32 %v1860, %v2068
        %v2070 = vpop.f32.mrb[0].mxu0
        %v2071 = vadd.f32 %v1862, %v2070
        %2072 = vmatprep.mubr.f32.mxu0 0.0
        %v2073 = vand.u32 %v461, 4294901760
        %2074 = vmatmul.mubr.f32.gmra.mrb[0].mxu0 %v2073
        %v2075 = vpop.f32.mrb[0].mxu0
        %v2076 = vadd.f32 %v1867, %v2075
        %v2077 = vpop.f32.mrb[0].mxu0
        %v2078 = vadd.f32 %v1869, %v2077
        %2079 = vmatprep.mubr.f32.mxu0 0.0
        %v2080 = vand.u32 %v462, 4294901760
        %2081 = vmatmul.mubr.f32.gmra.mrb[0].mxu0 %v2080
        %v2082 = vpop.f32.mrb[0].mxu0
        %v2083 = vadd.f32 %v1874, %v2082
        %v2084 = vpop.f32.mrb[0].mxu0
        %v2085 = vadd.f32 %v1876, %v2084
        %2086 = vmatprep.mubr.f32.mxu0 0.0
        %v2087 = vand.u32 %v463, 4294901760
        %2088 = vmatmul.mubr.f32.gmra.mrb[0].mxu0 %v2087
        %v2089 = vpop.f32.mrb[0].mxu0
        %v2090 = vadd.f32 %v1881, %v2089
        %v2091 = vpop.f32.mrb[0].mxu0
        %v2092 = vadd.f32 %v1883, %v2091
        %2093 = vmatprep.mubr.f32.mxu0 0.0
        %v2094 = vand.u32 %v464, 4294901760
        %2095 = vmatmul.mubr.f32.gmra.mrb[0].mxu0 %v2094
        %v2096 = vpop.f32.mrb[0].mxu0
        %v2097 = vadd.f32 %v1888, %v2096
        %v2098 = vpop.f32.mrb[0].mxu0
        %v2099 = vadd.f32 %v1890, %v2098
        %2100 = vmatprep.mubr.f32.mxu0 0.0
        %v2101 = vand.u32 %v465, 4294901760
        %2102 = vmatmul.mubr.f32.gmra.mrb[0].mxu0 %v2101
        %v2103 = vpop.f32.mrb[0].mxu0
        %v2104 = vadd.f32 %v1895, %v2103
        %v2105 = vpop.f32.mrb[0].mxu0
        %v2106 = vadd.f32 %v1897, %v2105
        %2107 = vmatprep.mubr.f32.mxu0 0.0
        %v2108 = vand.u32 %v466, 4294901760
        %2109 = vmatmul.mubr.f32.gmra.mrb[0].mxu0 %v2108
        %v2110 = vpop.f32.mrb[0].mxu0
        %v2111 = vadd.f32 %v1902, %v2110
        %v2112 = vpop.f32.mrb[0].mxu0
        %v2113 = vadd.f32 %v1904, %v2112
        %2114 = vmatprep.mubr.f32.mxu0 0.0
        %v2115 = vand.u32 %v467, 4294901760
        %2116 = vmatmul.mubr.f32.gmra.mrb[0].mxu0 %v2115
        %v2117 = vpop.f32.mrb[0].mxu0
        %v2118 = vadd.f32 %v1909, %v2117
        %v2119 = vpop.f32.mrb[0].mxu0
        %v2120 = vadd.f32 %v1911, %v2119
        %2121 = vdwg.mxu0
        %v2122 = vtanh.pop %v2013
        %v2123 = vtanh.pop %v2015
        %v2124 = vtanh.pop %v2020
        %v2125 = vtanh.pop %v2022
        %v2126 = vtanh.pop %v2027
        %v2127 = vtanh.pop %v2029
        %v2128 = vtanh.pop %v2034
        %v2129 = vtanh.pop %v2036
        %v2130 = vtanh.pop %v2041
        %v2131 = vtanh.pop %v2043
        %v2132 = vtanh.pop %v2048
        %v2133 = vtanh.pop %v2050
        %v2134 = vtanh.pop %v2055
        %v2135 = vtanh.pop %v2057
        %v2136 = vtanh.pop %v2062
        %v2137 = vtanh.pop %v2064
        %v2138 = vtanh.pop %v2069
        %v2139 = vtanh.pop %v2071
        %v2140 = vtanh.pop %v2076
        %v2141 = vtanh.pop %v2078
        %v2142 = vtanh.pop %v2083
        %v2143 = vtanh.pop %v2085
        %v2144 = vtanh.pop %v2090
        %v2145 = vtanh.pop %v2092
        %v2146 = vtanh.pop %v2097
        %v2147 = vtanh.pop %v2099
        %v2148 = vtanh.pop %v2104
        %v2149 = vtanh.pop %v2106
        %v2150 = vtanh.pop %v2111
        %v2151 = vtanh.pop %v2113
        %v2152 = vtanh.pop %v2118
        %v2153 = vtanh.pop %v2120
        %s2154 = scalar_lea.vmem [#allocation2], 128
        %v2155 = vld [vmem:[%s2154] sm:$0xff]
        %v2156 = vld [vmem:[%s2154 + $0x8] sm:$0xff]
        %v2157 = vld [vmem:[%s2154 + $0x10] sm:$0xff]
        %v2158 = vld [vmem:[%s2154 + $0x18] sm:$0xff]
        %v2159 = vld [vmem:[%s2154 + $0x20] sm:$0xff]
        %v2160 = vld [vmem:[%s2154 + $0x28] sm:$0xff]
        %v2161 = vld [vmem:[%s2154 + $0x30] sm:$0xff]
        %v2162 = vld [vmem:[%s2154 + $0x38] sm:$0xff]
        %v2163 = vld [vmem:[%s2154 + $0x40] sm:$0xff]
        %v2164 = vld [vmem:[%s2154 + $0x48] sm:$0xff]
        %v2165 = vld [vmem:[%s2154 + $0x50] sm:$0xff]
        %v2166 = vld [vmem:[%s2154 + $0x58] sm:$0xff]
        %v2167 = vld [vmem:[%s2154 + $0x60] sm:$0xff]
        %v2168 = vld [vmem:[%s2154 + $0x68] sm:$0xff]
        %v2169 = vld [vmem:[%s2154 + $0x70] sm:$0xff]
        %v2170 = vld [vmem:[%s2154 + $0x78] sm:$0xff]
        %2171 = vset.pattern.permute.xlu0 3
        %2172 = vperm.xlu0 %2171, %v185
        %v2173 = vpop.permute.xlu0 %2172
        %2175 = vset.pattern.permute.xlu0 3
        %2176 = vperm.xlu0 %2175, %v186
        %v2177 = vpop.permute.xlu0 %2176
        %2179 = vset.pattern.permute.xlu0 3
        %2180 = vperm.xlu0 %2179, %v187
        %v2181 = vpop.permute.xlu0 %2180
        %2183 = vset.pattern.permute.xlu0 3
        %2184 = vperm.xlu0 %2183, %v188
        %v2185 = vpop.permute.xlu0 %2184
        %2187 = vset.pattern.permute.xlu0 3
        %2188 = vperm.xlu0 %2187, %v189
        %v2189 = vpop.permute.xlu0 %2188
        %2191 = vset.pattern.permute.xlu0 3
        %2192 = vperm.xlu0 %2191, %v190
        %v2193 = vpop.permute.xlu0 %2192
        %2195 = vset.pattern.permute.xlu0 3
        %2196 = vperm.xlu0 %2195, %v191
        %v2197 = vpop.permute.xlu0 %2196
        %2199 = vset.pattern.permute.xlu0 3
        %2200 = vperm.xlu0 %2199, %v192
        %v2201 = vpop.permute.xlu0 %2200
        %2203 = vset.pattern.permute.xlu0 3
        %2204 = vperm.xlu0 %2203, %v193
        %v2205 = vpop.permute.xlu0 %2204
        %2207 = vset.pattern.permute.xlu0 3
        %2208 = vperm.xlu0 %2207, %v194
        %v2209 = vpop.permute.xlu0 %2208
        %2211 = vset.pattern.permute.xlu0 3
        %2212 = vperm.xlu0 %2211, %v195
        %v2213 = vpop.permute.xlu0 %2212
        %2215 = vset.pattern.permute.xlu0 3
        %2216 = vperm.xlu0 %2215, %v196
        %v2217 = vpop.permute.xlu0 %2216
        %2219 = vset.pattern.permute.xlu0 3
        %2220 = vperm.xlu0 %2219, %v197
        %v2221 = vpop.permute.xlu0 %2220
        %2223 = vset.pattern.permute.xlu0 3
        %2224 = vperm.xlu0 %2223, %v198
        %v2225 = vpop.permute.xlu0 %2224
        %2227 = vset.pattern.permute.xlu0 3
        %2228 = vperm.xlu0 %2227, %v199
        %v2229 = vpop.permute.xlu0 %2228
        %2231 = vset.pattern.permute.xlu0 3
        %2232 = vperm.xlu0 %2231, %v200
        %v2233 = vpop.permute.xlu0 %2232
        %v2235 = vand.u32 %v2123, 4294901760
        %2236 = vmatprep.subr.mxu0 %v2235
        %v2237 = vand.u32 %v2122, 4294901760
        %2238 = vmatpush1.msra.mxu0 %v2237
        %v2239 = vand.u32 %v2125, 4294901760
        %2240 = vmatprep.subr.mxu0 %v2239
        %v2241 = vand.u32 %v2124, 4294901760
        %2242 = vmatpush1.msra.mxu0 %v2241
        %v2243 = vand.u32 %v2127, 4294901760
        %2244 = vmatprep.subr.mxu0 %v2243
        %v2245 = vand.u32 %v2126, 4294901760
        %2246 = vmatpush1.msra.mxu0 %v2245
        %v2247 = vand.u32 %v2129, 4294901760
        %2248 = vmatprep.subr.mxu0 %v2247
        %v2249 = vand.u32 %v2128, 4294901760
        %2250 = vmatpush1.msra.mxu0 %v2249
        %v2251 = vand.u32 %v2131, 4294901760
        %2252 = vmatprep.subr.mxu0 %v2251
        %v2253 = vand.u32 %v2130, 4294901760
        %2254 = vmatpush1.msra.mxu0 %v2253
        %v2255 = vand.u32 %v2133, 4294901760
        %2256 = vmatprep.subr.mxu0 %v2255
        %v2257 = vand.u32 %v2132, 4294901760
        %2258 = vmatpush1.msra.mxu0 %v2257
        %v2259 = vand.u32 %v2135, 4294901760
        %2260 = vmatprep.subr.mxu0 %v2259
        %v2261 = vand.u32 %v2134, 4294901760
        %2262 = vmatpush1.msra.mxu0 %v2261
        %v2263 = vand.u32 %v2137, 4294901760
        %2264 = vmatprep.subr.mxu0 %v2263
        %v2265 = vand.u32 %v2136, 4294901760
        %2266 = vmatpush1.msra.mxu0 %v2265
        %v2267 = vand.u32 %v2139, 4294901760
        %2268 = vmatprep.subr.mxu0 %v2267
        %v2269 = vand.u32 %v2138, 4294901760
        %2270 = vmatpush1.msra.mxu0 %v2269
        %v2271 = vand.u32 %v2141, 4294901760
        %2272 = vmatprep.subr.mxu0 %v2271
        %v2273 = vand.u32 %v2140, 4294901760
        %2274 = vmatpush1.msra.mxu0 %v2273
        %v2275 = vand.u32 %v2143, 4294901760
        %2276 = vmatprep.subr.mxu0 %v2275
        %v2277 = vand.u32 %v2142, 4294901760
        %2278 = vmatpush1.msra.mxu0 %v2277
        %v2279 = vand.u32 %v2145, 4294901760
        %2280 = vmatprep.subr.mxu0 %v2279
        %v2281 = vand.u32 %v2144, 4294901760
        %2282 = vmatpush1.msra.mxu0 %v2281
        %v2283 = vand.u32 %v2147, 4294901760
        %2284 = vmatprep.subr.mxu0 %v2283
        %v2285 = vand.u32 %v2146, 4294901760
        %2286 = vmatpush1.msra.mxu0 %v2285
        %v2287 = vand.u32 %v2149, 4294901760
        %2288 = vmatprep.subr.mxu0 %v2287
        %v2289 = vand.u32 %v2148, 4294901760
        %2290 = vmatpush1.msra.mxu0 %v2289
        %v2291 = vand.u32 %v2151, 4294901760
        %2292 = vmatprep.subr.mxu0 %v2291
        %v2293 = vand.u32 %v2150, 4294901760
        %2294 = vmatpush1.msra.mxu0 %v2293
        %v2295 = vand.u32 %v2153, 4294901760
        %2296 = vmatprep.subr.mxu0 %v2295
        %v2297 = vand.u32 %v2152, 4294901760
        %2298 = vmatpush1.msra.mxu0 %v2297
        %2299 = vmatprep.subr.mxu0 0.0
        %2300 = vmatpush1.msra.mxu0 0.0
        %2301 = vmatprep.subr.mxu0 0.0
        %2302 = vmatpush1.msra.mxu0 0.0
        %2303 = vmatprep.subr.mxu0 0.0
        %2304 = vmatpush1.msra.mxu0 0.0
        %2305 = vmatprep.subr.mxu0 0.0
        %2306 = vmatpush1.msra.mxu0 0.0
        %2307 = vmatprep.subr.mxu0 0.0
        %2308 = vmatpush1.msra.mxu0 0.0
        %2309 = vmatprep.subr.mxu0 0.0
        %2310 = vmatpush1.msra.mxu0 0.0
        %2311 = vmatprep.subr.mxu0 0.0
        %2312 = vmatpush1.msra.mxu0 0.0
        %2313 = vmatprep.subr.mxu0 0.0
        %2314 = vmatpush1.msra.mxu0 0.0
        %2315 = vmatprep.subr.mxu0 0.0
        %2316 = vmatpush1.msra.mxu0 0.0
        %2317 = vmatprep.subr.mxu0 0.0
        %2318 = vmatpush1.msra.mxu0 0.0
        %2319 = vmatprep.subr.mxu0 0.0
        %2320 = vmatpush1.msra.mxu0 0.0
        %2321 = vmatprep.subr.mxu0 0.0
        %2322 = vmatpush1.msra.mxu0 0.0
        %2323 = vmatprep.subr.mxu0 0.0
        %2324 = vmatpush1.msra.mxu0 0.0
        %2325 = vmatprep.subr.mxu0 0.0
        %2326 = vmatpush1.msra.mxu0 0.0
        %2327 = vmatprep.subr.mxu0 0.0
        %2328 = vmatpush1.msra.mxu0 0.0
        %2329 = vmatprep.subr.mxu0 0.0
        %2330 = vmatpush1.msra.mxu0 0.0
        %2331 = vmatprep.mubr.f32.mxu0 0.0
        %v2332 = vand.u32 %v2155, 4294901760
        %v2333 = vsub.f32 %v2155, %v2332
        %v2334 = vand.u32 %v2333, 4294901760
        %v2335 = vsub.f32 %v2333, %v2334
        %v2336 = vand.u32 %v2335, 4294901760
        %2337 = vmatmul.mubr.f32.gmra.mrb[0].mxu0 %v2336
        %v2338 = vpop.f32.mrb[0].mxu0
        %v2339 = vadd.f32 %v2173, %v2338
        %v2340 = vpop.f32.mrb[0].mxu0
        %v2341 = vadd.f32 %v2173, %v2340
        %2342 = vmatprep.mubr.f32.mxu0 0.0
        %v2343 = vand.u32 %v2156, 4294901760
        %v2344 = vsub.f32 %v2156, %v2343
        %v2345 = vand.u32 %v2344, 4294901760
        %v2346 = vsub.f32 %v2344, %v2345
        %v2347 = vand.u32 %v2346, 4294901760
        %2348 = vmatmul.mubr.f32.gmra.mrb[0].mxu0 %v2347
        %v2349 = vpop.f32.mrb[0].mxu0
        %v2350 = vadd.f32 %v2177, %v2349
        %v2351 = vpop.f32.mrb[0].mxu0
        %v2352 = vadd.f32 %v2177, %v2351
        %2353 = vmatprep.mubr.f32.mxu0 0.0
        %v2354 = vand.u32 %v2157, 4294901760
        %v2355 = vsub.f32 %v2157, %v2354
        %v2356 = vand.u32 %v2355, 4294901760
        %v2357 = vsub.f32 %v2355, %v2356
        %v2358 = vand.u32 %v2357, 4294901760
        %2359 = vmatmul.mubr.f32.gmra.mrb[0].mxu0 %v2358
        %v2360 = vpop.f32.mrb[0].mxu0
        %v2361 = vadd.f32 %v2181, %v2360
        %v2362 = vpop.f32.mrb[0].mxu0
        %v2363 = vadd.f32 %v2181, %v2362
        %2364 = vmatprep.mubr.f32.mxu0 0.0
        %v2365 = vand.u32 %v2158, 4294901760
        %v2366 = vsub.f32 %v2158, %v2365
        %v2367 = vand.u32 %v2366, 4294901760
        %v2368 = vsub.f32 %v2366, %v2367
        %v2369 = vand.u32 %v2368, 4294901760
        %2370 = vmatmul.mubr.f32.gmra.mrb[0].mxu0 %v2369
        %v2371 = vpop.f32.mrb[0].mxu0
        %v2372 = vadd.f32 %v2185, %v2371
        %v2373 = vpop.f32.mrb[0].mxu0
        %v2374 = vadd.f32 %v2185, %v2373
        %2375 = vmatprep.mubr.f32.mxu0 0.0
        %v2376 = vand.u32 %v2159, 4294901760
        %v2377 = vsub.f32 %v2159, %v2376
        %v2378 = vand.u32 %v2377, 4294901760
        %v2379 = vsub.f32 %v2377, %v2378
        %v2380 = vand.u32 %v2379, 4294901760
        %2381 = vmatmul.mubr.f32.gmra.mrb[0].mxu0 %v2380
        %v2382 = vpop.f32.mrb[0].mxu0
        %v2383 = vadd.f32 %v2189, %v2382
        %v2384 = vpop.f32.mrb[0].mxu0
        %v2385 = vadd.f32 %v2189, %v2384
        %2386 = vmatprep.mubr.f32.mxu0 0.0
        %v2387 = vand.u32 %v2160, 4294901760
        %v2388 = vsub.f32 %v2160, %v2387
        %v2389 = vand.u32 %v2388, 4294901760
        %v2390 = vsub.f32 %v2388, %v2389
        %v2391 = vand.u32 %v2390, 4294901760
        %2392 = vmatmul.mubr.f32.gmra.mrb[0].mxu0 %v2391
        %v2393 = vpop.f32.mrb[0].mxu0
        %v2394 = vadd.f32 %v2193, %v2393
        %v2395 = vpop.f32.mrb[0].mxu0
        %v2396 = vadd.f32 %v2193, %v2395
        %2397 = vmatprep.mubr.f32.mxu0 0.0
        %v2398 = vand.u32 %v2161, 4294901760
        %v2399 = vsub.f32 %v2161, %v2398
        %v2400 = vand.u32 %v2399, 4294901760
        %v2401 = vsub.f32 %v2399, %v2400
        %v2402 = vand.u32 %v2401, 4294901760
        %2403 = vmatmul.mubr.f32.gmra.mrb[0].mxu0 %v2402
        %v2404 = vpop.f32.mrb[0].mxu0
        %v2405 = vadd.f32 %v2197, %v2404
        %v2406 = vpop.f32.mrb[0].mxu0
        %v2407 = vadd.f32 %v2197, %v2406
        %2408 = vmatprep.mubr.f32.mxu0 0.0
        %v2409 = vand.u32 %v2162, 4294901760
        %v2410 = vsub.f32 %v2162, %v2409
        %v2411 = vand.u32 %v2410, 4294901760
        %v2412 = vsub.f32 %v2410, %v2411
        %v2413 = vand.u32 %v2412, 4294901760
        %2414 = vmatmul.mubr.f32.gmra.mrb[0].mxu0 %v2413
        %v2415 = vpop.f32.mrb[0].mxu0
        %v2416 = vadd.f32 %v2201, %v2415
        %v2417 = vpop.f32.mrb[0].mxu0
        %v2418 = vadd.f32 %v2201, %v2417
        %2419 = vmatprep.mubr.f32.mxu0 0.0
        %v2420 = vand.u32 %v2163, 4294901760
        %v2421 = vsub.f32 %v2163, %v2420
        %v2422 = vand.u32 %v2421, 4294901760
        %v2423 = vsub.f32 %v2421, %v2422
        %v2424 = vand.u32 %v2423, 4294901760
        %2425 = vmatmul.mubr.f32.gmra.mrb[0].mxu0 %v2424
        %v2426 = vpop.f32.mrb[0].mxu0
        %v2427 = vadd.f32 %v2205, %v2426
        %v2428 = vpop.f32.mrb[0].mxu0
        %v2429 = vadd.f32 %v2205, %v2428
        %2430 = vmatprep.mubr.f32.mxu0 0.0
        %v2431 = vand.u32 %v2164, 4294901760
        %v2432 = vsub.f32 %v2164, %v2431
        %v2433 = vand.u32 %v2432, 4294901760
        %v2434 = vsub.f32 %v2432, %v2433
        %v2435 = vand.u32 %v2434, 4294901760
        %2436 = vmatmul.mubr.f32.gmra.mrb[0].mxu0 %v2435
        %v2437 = vpop.f32.mrb[0].mxu0
        %v2438 = vadd.f32 %v2209, %v2437
        %v2439 = vpop.f32.mrb[0].mxu0
        %v2440 = vadd.f32 %v2209, %v2439
        %2441 = vmatprep.mubr.f32.mxu0 0.0
        %v2442 = vand.u32 %v2165, 4294901760
        %v2443 = vsub.f32 %v2165, %v2442
        %v2444 = vand.u32 %v2443, 4294901760
        %v2445 = vsub.f32 %v2443, %v2444
        %v2446 = vand.u32 %v2445, 4294901760
        %2447 = vmatmul.mubr.f32.gmra.mrb[0].mxu0 %v2446
        %v2448 = vpop.f32.mrb[0].mxu0
        %v2449 = vadd.f32 %v2213, %v2448
        %v2450 = vpop.f32.mrb[0].mxu0
        %v2451 = vadd.f32 %v2213, %v2450
        %2452 = vmatprep.mubr.f32.mxu0 0.0
        %v2453 = vand.u32 %v2166, 4294901760
        %v2454 = vsub.f32 %v2166, %v2453
        %v2455 = vand.u32 %v2454, 4294901760
        %v2456 = vsub.f32 %v2454, %v2455
        %v2457 = vand.u32 %v2456, 4294901760
        %2458 = vmatmul.mubr.f32.gmra.mrb[0].mxu0 %v2457
        %v2459 = vpop.f32.mrb[0].mxu0
        %v2460 = vadd.f32 %v2217, %v2459
        %v2461 = vpop.f32.mrb[0].mxu0
        %v2462 = vadd.f32 %v2217, %v2461
        %2463 = vmatprep.mubr.f32.mxu0 0.0
        %v2464 = vand.u32 %v2167, 4294901760
        %v2465 = vsub.f32 %v2167, %v2464
        %v2466 = vand.u32 %v2465, 4294901760
        %v2467 = vsub.f32 %v2465, %v2466
        %v2468 = vand.u32 %v2467, 4294901760
        %2469 = vmatmul.mubr.f32.gmra.mrb[0].mxu0 %v2468
        %v2470 = vpop.f32.mrb[0].mxu0
        %v2471 = vadd.f32 %v2221, %v2470
        %v2472 = vpop.f32.mrb[0].mxu0
        %v2473 = vadd.f32 %v2221, %v2472
        %2474 = vmatprep.mubr.f32.mxu0 0.0
        %v2475 = vand.u32 %v2168, 4294901760
        %v2476 = vsub.f32 %v2168, %v2475
        %v2477 = vand.u32 %v2476, 4294901760
        %v2478 = vsub.f32 %v2476, %v2477
        %v2479 = vand.u32 %v2478, 4294901760
        %2480 = vmatmul.mubr.f32.gmra.mrb[0].mxu0 %v2479
        %v2481 = vpop.f32.mrb[0].mxu0
        %v2482 = vadd.f32 %v2225, %v2481
        %v2483 = vpop.f32.mrb[0].mxu0
        %v2484 = vadd.f32 %v2225, %v2483
        %2485 = vmatprep.mubr.f32.mxu0 0.0
        %v2486 = vand.u32 %v2169, 4294901760
        %v2487 = vsub.f32 %v2169, %v2486
        %v2488 = vand.u32 %v2487, 4294901760
        %v2489 = vsub.f32 %v2487, %v2488
        %v2490 = vand.u32 %v2489, 4294901760
        %2491 = vmatmul.mubr.f32.gmra.mrb[0].mxu0 %v2490
        %v2492 = vpop.f32.mrb[0].mxu0
        %v2493 = vadd.f32 %v2229, %v2492
        %v2494 = vpop.f32.mrb[0].mxu0
        %v2495 = vadd.f32 %v2229, %v2494
        %2496 = vmatprep.mubr.f32.mxu0 0.0
        %v2497 = vand.u32 %v2170, 4294901760
        %v2498 = vsub.f32 %v2170, %v2497
        %v2499 = vand.u32 %v2498, 4294901760
        %v2500 = vsub.f32 %v2498, %v2499
        %v2501 = vand.u32 %v2500, 4294901760
        %2502 = vmatmul.mubr.f32.gmra.mrb[0].mxu0 %v2501
        %v2503 = vpop.f32.mrb[0].mxu0
        %v2504 = vadd.f32 %v2233, %v2503
        %v2505 = vpop.f32.mrb[0].mxu0
        %v2506 = vadd.f32 %v2233, %v2505
        %2507 = vdwg.mxu0
        %v2508 = vand.u32 %v2123, 4294901760
        %v2509 = vsub.f32 %v2123, %v2508
        %v2510 = vand.u32 %v2509, 4294901760
        %v2511 = vsub.f32 %v2509, %v2510
        %v2512 = vand.u32 %v2511, 4294901760
        %2513 = vmatprep.subr.mxu0 %v2512
        %v2514 = vand.u32 %v2122, 4294901760
        %v2515 = vsub.f32 %v2122, %v2514
        %v2516 = vand.u32 %v2515, 4294901760
        %v2517 = vsub.f32 %v2515, %v2516
        %v2518 = vand.u32 %v2517, 4294901760
        %2519 = vmatpush1.msra.mxu0 %v2518
        %v2520 = vand.u32 %v2125, 4294901760
        %v2521 = vsub.f32 %v2125, %v2520
        %v2522 = vand.u32 %v2521, 4294901760
        %v2523 = vsub.f32 %v2521, %v2522
        %v2524 = vand.u32 %v2523, 4294901760
        %2525 = vmatprep.subr.mxu0 %v2524
        %v2526 = vand.u32 %v2124, 4294901760
        %v2527 = vsub.f32 %v2124, %v2526
        %v2528 = vand.u32 %v2527, 4294901760
        %v2529 = vsub.f32 %v2527, %v2528
        %v2530 = vand.u32 %v2529, 4294901760
        %2531 = vmatpush1.msra.mxu0 %v2530
        %v2532 = vand.u32 %v2127, 4294901760
        %v2533 = vsub.f32 %v2127, %v2532
        %v2534 = vand.u32 %v2533, 4294901760
        %v2535 = vsub.f32 %v2533, %v2534
        %v2536 = vand.u32 %v2535, 4294901760
        %2537 = vmatprep.subr.mxu0 %v2536
        %v2538 = vand.u32 %v2126, 4294901760
        %v2539 = vsub.f32 %v2126, %v2538
        %v2540 = vand.u32 %v2539, 4294901760
        %v2541 = vsub.f32 %v2539, %v2540
        %v2542 = vand.u32 %v2541, 4294901760
        %2543 = vmatpush1.msra.mxu0 %v2542
        %v2544 = vand.u32 %v2129, 4294901760
        %v2545 = vsub.f32 %v2129, %v2544
        %v2546 = vand.u32 %v2545, 4294901760
        %v2547 = vsub.f32 %v2545, %v2546
        %v2548 = vand.u32 %v2547, 4294901760
        %2549 = vmatprep.subr.mxu0 %v2548
        %v2550 = vand.u32 %v2128, 4294901760
        %v2551 = vsub.f32 %v2128, %v2550
        %v2552 = vand.u32 %v2551, 4294901760
        %v2553 = vsub.f32 %v2551, %v2552
        %v2554 = vand.u32 %v2553, 4294901760
        %2555 = vmatpush1.msra.mxu0 %v2554
        %v2556 = vand.u32 %v2131, 4294901760
        %v2557 = vsub.f32 %v2131, %v2556
        %v2558 = vand.u32 %v2557, 4294901760
        %v2559 = vsub.f32 %v2557, %v2558
        %v2560 = vand.u32 %v2559, 4294901760
        %2561 = vmatprep.subr.mxu0 %v2560
        %v2562 = vand.u32 %v2130, 4294901760
        %v2563 = vsub.f32 %v2130, %v2562
        %v2564 = vand.u32 %v2563, 4294901760
        %v2565 = vsub.f32 %v2563, %v2564
        %v2566 = vand.u32 %v2565, 4294901760
        %2567 = vmatpush1.msra.mxu0 %v2566
        %v2568 = vand.u32 %v2133, 4294901760
        %v2569 = vsub.f32 %v2133, %v2568
        %v2570 = vand.u32 %v2569, 4294901760
        %v2571 = vsub.f32 %v2569, %v2570
        %v2572 = vand.u32 %v2571, 4294901760
        %2573 = vmatprep.subr.mxu0 %v2572
        %v2574 = vand.u32 %v2132, 4294901760
        %v2575 = vsub.f32 %v2132, %v2574
        %v2576 = vand.u32 %v2575, 4294901760
        %v2577 = vsub.f32 %v2575, %v2576
        %v2578 = vand.u32 %v2577, 4294901760
        %2579 = vmatpush1.msra.mxu0 %v2578
        %v2580 = vand.u32 %v2135, 4294901760
        %v2581 = vsub.f32 %v2135, %v2580
        %v2582 = vand.u32 %v2581, 4294901760
        %v2583 = vsub.f32 %v2581, %v2582
        %v2584 = vand.u32 %v2583, 4294901760
        %2585 = vmatprep.subr.mxu0 %v2584
        %v2586 = vand.u32 %v2134, 4294901760
        %v2587 = vsub.f32 %v2134, %v2586
        %v2588 = vand.u32 %v2587, 4294901760
        %v2589 = vsub.f32 %v2587, %v2588
        %v2590 = vand.u32 %v2589, 4294901760
        %2591 = vmatpush1.msra.mxu0 %v2590
        %v2592 = vand.u32 %v2137, 4294901760
        %v2593 = vsub.f32 %v2137, %v2592
        %v2594 = vand.u32 %v2593, 4294901760
        %v2595 = vsub.f32 %v2593, %v2594
        %v2596 = vand.u32 %v2595, 4294901760
        %2597 = vmatprep.subr.mxu0 %v2596
        %v2598 = vand.u32 %v2136, 4294901760
        %v2599 = vsub.f32 %v2136, %v2598
        %v2600 = vand.u32 %v2599, 4294901760
        %v2601 = vsub.f32 %v2599, %v2600
        %v2602 = vand.u32 %v2601, 4294901760
        %2603 = vmatpush1.msra.mxu0 %v2602
        %v2604 = vand.u32 %v2139, 4294901760
        %v2605 = vsub.f32 %v2139, %v2604
        %v2606 = vand.u32 %v2605, 4294901760
        %v2607 = vsub.f32 %v2605, %v2606
        %v2608 = vand.u32 %v2607, 4294901760
        %2609 = vmatprep.subr.mxu0 %v2608
        %v2610 = vand.u32 %v2138, 4294901760
        %v2611 = vsub.f32 %v2138, %v2610
        %v2612 = vand.u32 %v2611, 4294901760
        %v2613 = vsub.f32 %v2611, %v2612
        %v2614 = vand.u32 %v2613, 4294901760
        %2615 = vmatpush1.msra.mxu0 %v2614
        %v2616 = vand.u32 %v2141, 4294901760
        %v2617 = vsub.f32 %v2141, %v2616
        %v2618 = vand.u32 %v2617, 4294901760
        %v2619 = vsub.f32 %v2617, %v2618
        %v2620 = vand.u32 %v2619, 4294901760
        %2621 = vmatprep.subr.mxu0 %v2620
        %v2622 = vand.u32 %v2140, 4294901760
        %v2623 = vsub.f32 %v2140, %v2622
        %v2624 = vand.u32 %v2623, 4294901760
        %v2625 = vsub.f32 %v2623, %v2624
        %v2626 = vand.u32 %v2625, 4294901760
        %2627 = vmatpush1.msra.mxu0 %v2626
        %v2628 = vand.u32 %v2143, 4294901760
        %v2629 = vsub.f32 %v2143, %v2628
        %v2630 = vand.u32 %v2629, 4294901760
        %v2631 = vsub.f32 %v2629, %v2630
        %v2632 = vand.u32 %v2631, 4294901760
        %2633 = vmatprep.subr.mxu0 %v2632
        %v2634 = vand.u32 %v2142, 4294901760
        %v2635 = vsub.f32 %v2142, %v2634
        %v2636 = vand.u32 %v2635, 4294901760
        %v2637 = vsub.f32 %v2635, %v2636
        %v2638 = vand.u32 %v2637, 4294901760
        %2639 = vmatpush1.msra.mxu0 %v2638
        %v2640 = vand.u32 %v2145, 4294901760
        %v2641 = vsub.f32 %v2145, %v2640
        %v2642 = vand.u32 %v2641, 4294901760
        %v2643 = vsub.f32 %v2641, %v2642
        %v2644 = vand.u32 %v2643, 4294901760
        %2645 = vmatprep.subr.mxu0 %v2644
        %v2646 = vand.u32 %v2144, 4294901760
        %v2647 = vsub.f32 %v2144, %v2646
        %v2648 = vand.u32 %v2647, 4294901760
        %v2649 = vsub.f32 %v2647, %v2648
        %v2650 = vand.u32 %v2649, 4294901760
        %2651 = vmatpush1.msra.mxu0 %v2650
        %v2652 = vand.u32 %v2147, 4294901760
        %v2653 = vsub.f32 %v2147, %v2652
        %v2654 = vand.u32 %v2653, 4294901760
        %v2655 = vsub.f32 %v2653, %v2654
        %v2656 = vand.u32 %v2655, 4294901760
        %2657 = vmatprep.subr.mxu0 %v2656
        %v2658 = vand.u32 %v2146, 4294901760
        %v2659 = vsub.f32 %v2146, %v2658
        %v2660 = vand.u32 %v2659, 4294901760
        %v2661 = vsub.f32 %v2659, %v2660
        %v2662 = vand.u32 %v2661, 4294901760
        %2663 = vmatpush1.msra.mxu0 %v2662
        %v2664 = vand.u32 %v2149, 4294901760
        %v2665 = vsub.f32 %v2149, %v2664
        %v2666 = vand.u32 %v2665, 4294901760
        %v2667 = vsub.f32 %v2665, %v2666
        %v2668 = vand.u32 %v2667, 4294901760
        %2669 = vmatprep.subr.mxu0 %v2668
        %v2670 = vand.u32 %v2148, 4294901760
        %v2671 = vsub.f32 %v2148, %v2670
        %v2672 = vand.u32 %v2671, 4294901760
        %v2673 = vsub.f32 %v2671, %v2672
        %v2674 = vand.u32 %v2673, 4294901760
        %2675 = vmatpush1.msra.mxu0 %v2674
        %v2676 = vand.u32 %v2151, 4294901760
        %v2677 = vsub.f32 %v2151, %v2676
        %v2678 = vand.u32 %v2677, 4294901760
        %v2679 = vsub.f32 %v2677, %v2678
        %v2680 = vand.u32 %v2679, 4294901760
        %2681 = vmatprep.subr.mxu0 %v2680
        %v2682 = vand.u32 %v2150, 4294901760
        %v2683 = vsub.f32 %v2150, %v2682
        %v2684 = vand.u32 %v2683, 4294901760
        %v2685 = vsub.f32 %v2683, %v2684
        %v2686 = vand.u32 %v2685, 4294901760
        %2687 = vmatpush1.msra.mxu0 %v2686
        %v2688 = vand.u32 %v2153, 4294901760
        %v2689 = vsub.f32 %v2153, %v2688
        %v2690 = vand.u32 %v2689, 4294901760
        %v2691 = vsub.f32 %v2689, %v2690
        %v2692 = vand.u32 %v2691, 4294901760
        %2693 = vmatprep.subr.mxu0 %v2692
        %v2694 = vand.u32 %v2152, 4294901760
        %v2695 = vsub.f32 %v2152, %v2694
        %v2696 = vand.u32 %v2695, 4294901760
        %v2697 = vsub.f32 %v2695, %v2696
        %v2698 = vand.u32 %v2697, 4294901760
        %2699 = vmatpush1.msra.mxu0 %v2698
        %2700 = vmatprep.subr.mxu0 0.0
        %2701 = vmatpush1.msra.mxu0 0.0
        %2702 = vmatprep.subr.mxu0 0.0
        %2703 = vmatpush1.msra.mxu0 0.0
        %2704 = vmatprep.subr.mxu0 0.0
        %2705 = vmatpush1.msra.mxu0 0.0
        %2706 = vmatprep.subr.mxu0 0.0
        %2707 = vmatpush1.msra.mxu0 0.0
        %2708 = vmatprep.subr.mxu0 0.0
        %2709 = vmatpush1.msra.mxu0 0.0
        %2710 = vmatprep.subr.mxu0 0.0
        %2711 = vmatpush1.msra.mxu0 0.0
        %2712 = vmatprep.subr.mxu0 0.0
        %2713 = vmatpush1.msra.mxu0 0.0
        %2714 = vmatprep.subr.mxu0 0.0
        %2715 = vmatpush1.msra.mxu0 0.0
        %2716 = vmatprep.subr.mxu0 0.0
        %2717 = vmatpush1.msra.mxu0 0.0
        %2718 = vmatprep.subr.mxu0 0.0
        %2719 = vmatpush1.msra.mxu0 0.0
        %2720 = vmatprep.subr.mxu0 0.0
        %2721 = vmatpush1.msra.mxu0 0.0
        %2722 = vmatprep.subr.mxu0 0.0
        %2723 = vmatpush1.msra.mxu0 0.0
        %2724 = vmatprep.subr.mxu0 0.0
        %2725 = vmatpush1.msra.mxu0 0.0
        %2726 = vmatprep.subr.mxu0 0.0
        %2727 = vmatpush1.msra.mxu0 0.0
        %2728 = vmatprep.subr.mxu0 0.0
        %2729 = vmatpush1.msra.mxu0 0.0
        %2730 = vmatprep.subr.mxu0 0.0
        %2731 = vmatpush1.msra.mxu0 0.0
        %2732 = vmatprep.mubr.f32.mxu0 0.0
        %v2733 = vand.u32 %v2155, 4294901760
        %2734 = vmatmul.mubr.f32.gmra.mrb[0].mxu0 %v2733
        %v2735 = vpop.f32.mrb[0].mxu0
        %v2736 = vadd.f32 %v2339, %v2735
        %v2737 = vpop.f32.mrb[0].mxu0
        %v2738 = vadd.f32 %v2341, %v2737
        %2739 = vmatprep.mubr.f32.mxu0 0.0
        %v2740 = vand.u32 %v2156, 4294901760
        %2741 = vmatmul.mubr.f32.gmra.mrb[0].mxu0 %v2740
        %v2742 = vpop.f32.mrb[0].mxu0
        %v2743 = vadd.f32 %v2350, %v2742
        %v2744 = vpop.f32.mrb[0].mxu0
        %v2745 = vadd.f32 %v2352, %v2744
        %2746 = vmatprep.mubr.f32.mxu0 0.0
        %v2747 = vand.u32 %v2157, 4294901760
        %2748 = vmatmul.mubr.f32.gmra.mrb[0].mxu0 %v2747
        %v2749 = vpop.f32.mrb[0].mxu0
        %v2750 = vadd.f32 %v2361, %v2749
        %v2751 = vpop.f32.mrb[0].mxu0
        %v2752 = vadd.f32 %v2363, %v2751
        %2753 = vmatprep.mubr.f32.mxu0 0.0
        %v2754 = vand.u32 %v2158, 4294901760
        %2755 = vmatmul.mubr.f32.gmra.mrb[0].mxu0 %v2754
        %v2756 = vpop.f32.mrb[0].mxu0
        %v2757 = vadd.f32 %v2372, %v2756
        %v2758 = vpop.f32.mrb[0].mxu0
        %v2759 = vadd.f32 %v2374, %v2758
        %2760 = vmatprep.mubr.f32.mxu0 0.0
        %v2761 = vand.u32 %v2159, 4294901760
        %2762 = vmatmul.mubr.f32.gmra.mrb[0].mxu0 %v2761
        %v2763 = vpop.f32.mrb[0].mxu0
        %v2764 = vadd.f32 %v2383, %v2763
        %v2765 = vpop.f32.mrb[0].mxu0
        %v2766 = vadd.f32 %v2385, %v2765
        %2767 = vmatprep.mubr.f32.mxu0 0.0
        %v2768 = vand.u32 %v2160, 4294901760
        %2769 = vmatmul.mubr.f32.gmra.mrb[0].mxu0 %v2768
        %v2770 = vpop.f32.mrb[0].mxu0
        %v2771 = vadd.f32 %v2394, %v2770
        %v2772 = vpop.f32.mrb[0].mxu0
        %v2773 = vadd.f32 %v2396, %v2772
        %2774 = vmatprep.mubr.f32.mxu0 0.0
        %v2775 = vand.u32 %v2161, 4294901760
        %2776 = vmatmul.mubr.f32.gmra.mrb[0].mxu0 %v2775
        %v2777 = vpop.f32.mrb[0].mxu0
        %v2778 = vadd.f32 %v2405, %v2777
        %v2779 = vpop.f32.mrb[0].mxu0
        %v2780 = vadd.f32 %v2407, %v2779
        %2781 = vmatprep.mubr.f32.mxu0 0.0
        %v2782 = vand.u32 %v2162, 4294901760
        %2783 = vmatmul.mubr.f32.gmra.mrb[0].mxu0 %v2782
        %v2784 = vpop.f32.mrb[0].mxu0
        %v2785 = vadd.f32 %v2416, %v2784
        %v2786 = vpop.f32.mrb[0].mxu0
        %v2787 = vadd.f32 %v2418, %v2786
        %2788 = vmatprep.mubr.f32.mxu0 0.0
        %v2789 = vand.u32 %v2163, 4294901760
        %2790 = vmatmul.mubr.f32.gmra.mrb[0].mxu0 %v2789
        %v2791 = vpop.f32.mrb[0].mxu0
        %v2792 = vadd.f32 %v2427, %v2791
        %v2793 = vpop.f32.mrb[0].mxu0
        %v2794 = vadd.f32 %v2429, %v2793
        %2795 = vmatprep.mubr.f32.mxu0 0.0
        %v2796 = vand.u32 %v2164, 4294901760
        %2797 = vmatmul.mubr.f32.gmra.mrb[0].mxu0 %v2796
        %v2798 = vpop.f32.mrb[0].mxu0
        %v2799 = vadd.f32 %v2438, %v2798
        %v2800 = vpop.f32.mrb[0].mxu0
        %v2801 = vadd.f32 %v2440, %v2800
        %2802 = vmatprep.mubr.f32.mxu0 0.0
        %v2803 = vand.u32 %v2165, 4294901760
        %2804 = vmatmul.mubr.f32.gmra.mrb[0].mxu0 %v2803
        %v2805 = vpop.f32.mrb[0].mxu0
        %v2806 = vadd.f32 %v2449, %v2805
        %v2807 = vpop.f32.mrb[0].mxu0
        %v2808 = vadd.f32 %v2451, %v2807
        %2809 = vmatprep.mubr.f32.mxu0 0.0
        %v2810 = vand.u32 %v2166, 4294901760
        %2811 = vmatmul.mubr.f32.gmra.mrb[0].mxu0 %v2810
        %v2812 = vpop.f32.mrb[0].mxu0
        %v2813 = vadd.f32 %v2460, %v2812
        %v2814 = vpop.f32.mrb[0].mxu0
        %v2815 = vadd.f32 %v2462, %v2814
        %2816 = vmatprep.mubr.f32.mxu0 0.0
        %v2817 = vand.u32 %v2167, 4294901760
        %2818 = vmatmul.mubr.f32.gmra.mrb[0].mxu0 %v2817
        %v2819 = vpop.f32.mrb[0].mxu0
        %v2820 = vadd.f32 %v2471, %v2819
        %v2821 = vpop.f32.mrb[0].mxu0
        %v2822 = vadd.f32 %v2473, %v2821
        %2823 = vmatprep.mubr.f32.mxu0 0.0
        %v2824 = vand.u32 %v2168, 4294901760
        %2825 = vmatmul.mubr.f32.gmra.mrb[0].mxu0 %v2824
        %v2826 = vpop.f32.mrb[0].mxu0
        %v2827 = vadd.f32 %v2482, %v2826
        %v2828 = vpop.f32.mrb[0].mxu0
        %v2829 = vadd.f32 %v2484, %v2828
        %2830 = vmatprep.mubr.f32.mxu0 0.0
        %v2831 = vand.u32 %v2169, 4294901760
        %2832 = vmatmul.mubr.f32.gmra.mrb[0].mxu0 %v2831
        %v2833 = vpop.f32.mrb[0].mxu0
        %v2834 = vadd.f32 %v2493, %v2833
        %v2835 = vpop.f32.mrb[0].mxu0
        %v2836 = vadd.f32 %v2495, %v2835
        %2837 = vmatprep.mubr.f32.mxu0 0.0
        %v2838 = vand.u32 %v2170, 4294901760
        %2839 = vmatmul.mubr.f32.gmra.mrb[0].mxu0 %v2838
        %v2840 = vpop.f32.mrb[0].mxu0
        %v2841 = vadd.f32 %v2504, %v2840
        %v2842 = vpop.f32.mrb[0].mxu0
        %v2843 = vadd.f32 %v2506, %v2842
        %2844 = vdwg.mxu0
        %v2845 = vand.u32 %v2123, 4294901760
        %v2846 = vsub.f32 %v2123, %v2845
        %2847 = vmatprep.subr.mxu0 %v2846
        %v2848 = vand.u32 %v2122, 4294901760
        %v2849 = vsub.f32 %v2122, %v2848
        %2850 = vmatpush1.msra.mxu0 %v2849
        %v2851 = vand.u32 %v2125, 4294901760
        %v2852 = vsub.f32 %v2125, %v2851
        %2853 = vmatprep.subr.mxu0 %v2852
        %v2854 = vand.u32 %v2124, 4294901760
        %v2855 = vsub.f32 %v2124, %v2854
        %2856 = vmatpush1.msra.mxu0 %v2855
        %v2857 = vand.u32 %v2127, 4294901760
        %v2858 = vsub.f32 %v2127, %v2857
        %2859 = vmatprep.subr.mxu0 %v2858
        %v2860 = vand.u32 %v2126, 4294901760
        %v2861 = vsub.f32 %v2126, %v2860
        %2862 = vmatpush1.msra.mxu0 %v2861
        %v2863 = vand.u32 %v2129, 4294901760
        %v2864 = vsub.f32 %v2129, %v2863
        %2865 = vmatprep.subr.mxu0 %v2864
        %v2866 = vand.u32 %v2128, 4294901760
        %v2867 = vsub.f32 %v2128, %v2866
        %2868 = vmatpush1.msra.mxu0 %v2867
        %v2869 = vand.u32 %v2131, 4294901760
        %v2870 = vsub.f32 %v2131, %v2869
        %2871 = vmatprep.subr.mxu0 %v2870
        %v2872 = vand.u32 %v2130, 4294901760
        %v2873 = vsub.f32 %v2130, %v2872
        %2874 = vmatpush1.msra.mxu0 %v2873
        %v2875 = vand.u32 %v2133, 4294901760
        %v2876 = vsub.f32 %v2133, %v2875
        %2877 = vmatprep.subr.mxu0 %v2876
        %v2878 = vand.u32 %v2132, 4294901760
        %v2879 = vsub.f32 %v2132, %v2878
        %2880 = vmatpush1.msra.mxu0 %v2879
        %v2881 = vand.u32 %v2135, 4294901760
        %v2882 = vsub.f32 %v2135, %v2881
        %2883 = vmatprep.subr.mxu0 %v2882
        %v2884 = vand.u32 %v2134, 4294901760
        %v2885 = vsub.f32 %v2134, %v2884
        %2886 = vmatpush1.msra.mxu0 %v2885
        %v2887 = vand.u32 %v2137, 4294901760
        %v2888 = vsub.f32 %v2137, %v2887
        %2889 = vmatprep.subr.mxu0 %v2888
        %v2890 = vand.u32 %v2136, 4294901760
        %v2891 = vsub.f32 %v2136, %v2890
        %2892 = vmatpush1.msra.mxu0 %v2891
        %v2893 = vand.u32 %v2139, 4294901760
        %v2894 = vsub.f32 %v2139, %v2893
        %2895 = vmatprep.subr.mxu0 %v2894
        %v2896 = vand.u32 %v2138, 4294901760
        %v2897 = vsub.f32 %v2138, %v2896
        %2898 = vmatpush1.msra.mxu0 %v2897
        %v2899 = vand.u32 %v2141, 4294901760
        %v2900 = vsub.f32 %v2141, %v2899
        %2901 = vmatprep.subr.mxu0 %v2900
        %v2902 = vand.u32 %v2140, 4294901760
        %v2903 = vsub.f32 %v2140, %v2902
        %2904 = vmatpush1.msra.mxu0 %v2903
        %v2905 = vand.u32 %v2143, 4294901760
        %v2906 = vsub.f32 %v2143, %v2905
        %2907 = vmatprep.subr.mxu0 %v2906
        %v2908 = vand.u32 %v2142, 4294901760
        %v2909 = vsub.f32 %v2142, %v2908
        %2910 = vmatpush1.msra.mxu0 %v2909
        %v2911 = vand.u32 %v2145, 4294901760
        %v2912 = vsub.f32 %v2145, %v2911
        %2913 = vmatprep.subr.mxu0 %v2912
        %v2914 = vand.u32 %v2144, 4294901760
        %v2915 = vsub.f32 %v2144, %v2914
        %2916 = vmatpush1.msra.mxu0 %v2915
        %v2917 = vand.u32 %v2147, 4294901760
        %v2918 = vsub.f32 %v2147, %v2917
        %2919 = vmatprep.subr.mxu0 %v2918
        %v2920 = vand.u32 %v2146, 4294901760
        %v2921 = vsub.f32 %v2146, %v2920
        %2922 = vmatpush1.msra.mxu0 %v2921
        %v2923 = vand.u32 %v2149, 4294901760
        %v2924 = vsub.f32 %v2149, %v2923
        %2925 = vmatprep.subr.mxu0 %v2924
        %v2926 = vand.u32 %v2148, 4294901760
        %v2927 = vsub.f32 %v2148, %v2926
        %2928 = vmatpush1.msra.mxu0 %v2927
        %v2929 = vand.u32 %v2151, 4294901760
        %v2930 = vsub.f32 %v2151, %v2929
        %2931 = vmatprep.subr.mxu0 %v2930
        %v2932 = vand.u32 %v2150, 4294901760
        %v2933 = vsub.f32 %v2150, %v2932
        %2934 = vmatpush1.msra.mxu0 %v2933
        %v2935 = vand.u32 %v2153, 4294901760
        %v2936 = vsub.f32 %v2153, %v2935
        %2937 = vmatprep.subr.mxu0 %v2936
        %v2938 = vand.u32 %v2152, 4294901760
        %v2939 = vsub.f32 %v2152, %v2938
        %2940 = vmatpush1.msra.mxu0 %v2939
        %2941 = vmatprep.subr.mxu0 0.0
        %2942 = vmatpush1.msra.mxu0 0.0
        %2943 = vmatprep.subr.mxu0 0.0
        %2944 = vmatpush1.msra.mxu0 0.0
        %2945 = vmatprep.subr.mxu0 0.0
        %2946 = vmatpush1.msra.mxu0 0.0
        %2947 = vmatprep.subr.mxu0 0.0
        %2948 = vmatpush1.msra.mxu0 0.0
        %2949 = vmatprep.subr.mxu0 0.0
        %2950 = vmatpush1.msra.mxu0 0.0
        %2951 = vmatprep.subr.mxu0 0.0
        %2952 = vmatpush1.msra.mxu0 0.0
        %2953 = vmatprep.subr.mxu0 0.0
        %2954 = vmatpush1.msra.mxu0 0.0
        %2955 = vmatprep.subr.mxu0 0.0
        %2956 = vmatpush1.msra.mxu0 0.0
        %2957 = vmatprep.subr.mxu0 0.0
        %2958 = vmatpush1.msra.mxu0 0.0
        %2959 = vmatprep.subr.mxu0 0.0
        %2960 = vmatpush1.msra.mxu0 0.0
        %2961 = vmatprep.subr.mxu0 0.0
        %2962 = vmatpush1.msra.mxu0 0.0
        %2963 = vmatprep.subr.mxu0 0.0
        %2964 = vmatpush1.msra.mxu0 0.0
        %2965 = vmatprep.subr.mxu0 0.0
        %2966 = vmatpush1.msra.mxu0 0.0
        %2967 = vmatprep.subr.mxu0 0.0
        %2968 = vmatpush1.msra.mxu0 0.0
        %2969 = vmatprep.subr.mxu0 0.0
        %2970 = vmatpush1.msra.mxu0 0.0
        %2971 = vmatprep.subr.mxu0 0.0
        %2972 = vmatpush1.msra.mxu0 0.0
        %2973 = vmatprep.mubr.f32.mxu0 0.0
        %v2974 = vand.u32 %v2155, 4294901760
        %v2975 = vsub.f32 %v2155, %v2974
        %2976 = vmatmul.mubr.f32.gmra.mrb[0].mxu0 %v2975
        %v2977 = vpop.f32.mrb[0].mxu0
        %v2978 = vadd.f32 %v2736, %v2977
        %v2979 = vpop.f32.mrb[0].mxu0
        %v2980 = vadd.f32 %v2738, %v2979
        %2981 = vmatprep.mubr.f32.mxu0 0.0
        %v2982 = vand.u32 %v2156, 4294901760
        %v2983 = vsub.f32 %v2156, %v2982
        %2984 = vmatmul.mubr.f32.gmra.mrb[0].mxu0 %v2983
        %v2985 = vpop.f32.mrb[0].mxu0
        %v2986 = vadd.f32 %v2743, %v2985
        %v2987 = vpop.f32.mrb[0].mxu0
        %v2988 = vadd.f32 %v2745, %v2987
        %2989 = vmatprep.mubr.f32.mxu0 0.0
        %v2990 = vand.u32 %v2157, 4294901760
        %v2991 = vsub.f32 %v2157, %v2990
        %2992 = vmatmul.mubr.f32.gmra.mrb[0].mxu0 %v2991
        %v2993 = vpop.f32.mrb[0].mxu0
        %v2994 = vadd.f32 %v2750, %v2993
        %v2995 = vpop.f32.mrb[0].mxu0
        %v2996 = vadd.f32 %v2752, %v2995
        %2997 = vmatprep.mubr.f32.mxu0 0.0
        %v2998 = vand.u32 %v2158, 4294901760
        %v2999 = vsub.f32 %v2158, %v2998
        %3000 = vmatmul.mubr.f32.gmra.mrb[0].mxu0 %v2999
        %v3001 = vpop.f32.mrb[0].mxu0
        %v3002 = vadd.f32 %v2757, %v3001
        %v3003 = vpop.f32.mrb[0].mxu0
        %v3004 = vadd.f32 %v2759, %v3003
        %3005 = vmatprep.mubr.f32.mxu0 0.0
        %v3006 = vand.u32 %v2159, 4294901760
        %v3007 = vsub.f32 %v2159, %v3006
        %3008 = vmatmul.mubr.f32.gmra.mrb[0].mxu0 %v3007
        %v3009 = vpop.f32.mrb[0].mxu0
        %v3010 = vadd.f32 %v2764, %v3009
        %v3011 = vpop.f32.mrb[0].mxu0
        %v3012 = vadd.f32 %v2766, %v3011
        %3013 = vmatprep.mubr.f32.mxu0 0.0
        %v3014 = vand.u32 %v2160, 4294901760
        %v3015 = vsub.f32 %v2160, %v3014
        %3016 = vmatmul.mubr.f32.gmra.mrb[0].mxu0 %v3015
        %v3017 = vpop.f32.mrb[0].mxu0
        %v3018 = vadd.f32 %v2771, %v3017
        %v3019 = vpop.f32.mrb[0].mxu0
        %v3020 = vadd.f32 %v2773, %v3019
        %3021 = vmatprep.mubr.f32.mxu0 0.0
        %v3022 = vand.u32 %v2161, 4294901760
        %v3023 = vsub.f32 %v2161, %v3022
        %3024 = vmatmul.mubr.f32.gmra.mrb[0].mxu0 %v3023
        %v3025 = vpop.f32.mrb[0].mxu0
        %v3026 = vadd.f32 %v2778, %v3025
        %v3027 = vpop.f32.mrb[0].mxu0
        %v3028 = vadd.f32 %v2780, %v3027
        %3029 = vmatprep.mubr.f32.mxu0 0.0
        %v3030 = vand.u32 %v2162, 4294901760
        %v3031 = vsub.f32 %v2162, %v3030
        %3032 = vmatmul.mubr.f32.gmra.mrb[0].mxu0 %v3031
        %v3033 = vpop.f32.mrb[0].mxu0
        %v3034 = vadd.f32 %v2785, %v3033
        %v3035 = vpop.f32.mrb[0].mxu0
        %v3036 = vadd.f32 %v2787, %v3035
        %3037 = vmatprep.mubr.f32.mxu0 0.0
        %v3038 = vand.u32 %v2163, 4294901760
        %v3039 = vsub.f32 %v2163, %v3038
        %3040 = vmatmul.mubr.f32.gmra.mrb[0].mxu0 %v3039
        %v3041 = vpop.f32.mrb[0].mxu0
        %v3042 = vadd.f32 %v2792, %v3041
        %v3043 = vpop.f32.mrb[0].mxu0
        %v3044 = vadd.f32 %v2794, %v3043
        %3045 = vmatprep.mubr.f32.mxu0 0.0
        %v3046 = vand.u32 %v2164, 4294901760
        %v3047 = vsub.f32 %v2164, %v3046
        %3048 = vmatmul.mubr.f32.gmra.mrb[0].mxu0 %v3047
        %v3049 = vpop.f32.mrb[0].mxu0
        %v3050 = vadd.f32 %v2799, %v3049
        %v3051 = vpop.f32.mrb[0].mxu0
        %v3052 = vadd.f32 %v2801, %v3051
        %3053 = vmatprep.mubr.f32.mxu0 0.0
        %v3054 = vand.u32 %v2165, 4294901760
        %v3055 = vsub.f32 %v2165, %v3054
        %3056 = vmatmul.mubr.f32.gmra.mrb[0].mxu0 %v3055
        %v3057 = vpop.f32.mrb[0].mxu0
        %v3058 = vadd.f32 %v2806, %v3057
        %v3059 = vpop.f32.mrb[0].mxu0
        %v3060 = vadd.f32 %v2808, %v3059
        %3061 = vmatprep.mubr.f32.mxu0 0.0
        %v3062 = vand.u32 %v2166, 4294901760
        %v3063 = vsub.f32 %v2166, %v3062
        %3064 = vmatmul.mubr.f32.gmra.mrb[0].mxu0 %v3063
        %v3065 = vpop.f32.mrb[0].mxu0
        %v3066 = vadd.f32 %v2813, %v3065
        %v3067 = vpop.f32.mrb[0].mxu0
        %v3068 = vadd.f32 %v2815, %v3067
        %3069 = vmatprep.mubr.f32.mxu0 0.0
        %v3070 = vand.u32 %v2167, 4294901760
        %v3071 = vsub.f32 %v2167, %v3070
        %3072 = vmatmul.mubr.f32.gmra.mrb[0].mxu0 %v3071
        %v3073 = vpop.f32.mrb[0].mxu0
        %v3074 = vadd.f32 %v2820, %v3073
        %v3075 = vpop.f32.mrb[0].mxu0
        %v3076 = vadd.f32 %v2822, %v3075
        %3077 = vmatprep.mubr.f32.mxu0 0.0
        %v3078 = vand.u32 %v2168, 4294901760
        %v3079 = vsub.f32 %v2168, %v3078
        %3080 = vmatmul.mubr.f32.gmra.mrb[0].mxu0 %v3079
        %v3081 = vpop.f32.mrb[0].mxu0
        %v3082 = vadd.f32 %v2827, %v3081
        %v3083 = vpop.f32.mrb[0].mxu0
        %v3084 = vadd.f32 %v2829, %v3083
        %3085 = vmatprep.mubr.f32.mxu0 0.0
        %v3086 = vand.u32 %v2169, 4294901760
        %v3087 = vsub.f32 %v2169, %v3086
        %3088 = vmatmul.mubr.f32.gmra.mrb[0].mxu0 %v3087
        %v3089 = vpop.f32.mrb[0].mxu0
        %v3090 = vadd.f32 %v2834, %v3089
        %v3091 = vpop.f32.mrb[0].mxu0
        %v3092 = vadd.f32 %v2836, %v3091
        %3093 = vmatprep.mubr.f32.mxu0 0.0
        %v3094 = vand.u32 %v2170, 4294901760
        %v3095 = vsub.f32 %v2170, %v3094
        %3096 = vmatmul.mubr.f32.gmra.mrb[0].mxu0 %v3095
        %v3097 = vpop.f32.mrb[0].mxu0
        %v3098 = vadd.f32 %v2841, %v3097
        %v3099 = vpop.f32.mrb[0].mxu0
        %v3100 = vadd.f32 %v2843, %v3099
        %3101 = vdwg.mxu0
        %v3102 = vand.u32 %v2123, 4294901760
        %3103 = vmatprep.subr.mxu0 %v3102
        %v3104 = vand.u32 %v2122, 4294901760
        %3105 = vmatpush1.msra.mxu0 %v3104
        %v3106 = vand.u32 %v2125, 4294901760
        %3107 = vmatprep.subr.mxu0 %v3106
        %v3108 = vand.u32 %v2124, 4294901760
        %3109 = vmatpush1.msra.mxu0 %v3108
        %v3110 = vand.u32 %v2127, 4294901760
        %3111 = vmatprep.subr.mxu0 %v3110
        %v3112 = vand.u32 %v2126, 4294901760
        %3113 = vmatpush1.msra.mxu0 %v3112
        %v3114 = vand.u32 %v2129, 4294901760
        %3115 = vmatprep.subr.mxu0 %v3114
        %v3116 = vand.u32 %v2128, 4294901760
        %3117 = vmatpush1.msra.mxu0 %v3116
        %v3118 = vand.u32 %v2131, 4294901760
        %3119 = vmatprep.subr.mxu0 %v3118
        %v3120 = vand.u32 %v2130, 4294901760
        %3121 = vmatpush1.msra.mxu0 %v3120
        %v3122 = vand.u32 %v2133, 4294901760
        %3123 = vmatprep.subr.mxu0 %v3122
        %v3124 = vand.u32 %v2132, 4294901760
        %3125 = vmatpush1.msra.mxu0 %v3124
        %v3126 = vand.u32 %v2135, 4294901760
        %3127 = vmatprep.subr.mxu0 %v3126
        %v3128 = vand.u32 %v2134, 4294901760
        %3129 = vmatpush1.msra.mxu0 %v3128
        %v3130 = vand.u32 %v2137, 4294901760
        %3131 = vmatprep.subr.mxu0 %v3130
        %v3132 = vand.u32 %v2136, 4294901760
        %3133 = vmatpush1.msra.mxu0 %v3132
        %v3134 = vand.u32 %v2139, 4294901760
        %3135 = vmatprep.subr.mxu0 %v3134
        %v3136 = vand.u32 %v2138, 4294901760
        %3137 = vmatpush1.msra.mxu0 %v3136
        %v3138 = vand.u32 %v2141, 4294901760
        %3139 = vmatprep.subr.mxu0 %v3138
        %v3140 = vand.u32 %v2140, 4294901760
        %3141 = vmatpush1.msra.mxu0 %v3140
        %v3142 = vand.u32 %v2143, 4294901760
        %3143 = vmatprep.subr.mxu0 %v3142
        %v3144 = vand.u32 %v2142, 4294901760
        %3145 = vmatpush1.msra.mxu0 %v3144
        %v3146 = vand.u32 %v2145, 4294901760
        %3147 = vmatprep.subr.mxu0 %v3146
        %v3148 = vand.u32 %v2144, 4294901760
        %3149 = vmatpush1.msra.mxu0 %v3148
        %v3150 = vand.u32 %v2147, 4294901760
        %3151 = vmatprep.subr.mxu0 %v3150
        %v3152 = vand.u32 %v2146, 4294901760
        %3153 = vmatpush1.msra.mxu0 %v3152
        %v3154 = vand.u32 %v2149, 4294901760
        %3155 = vmatprep.subr.mxu0 %v3154
        %v3156 = vand.u32 %v2148, 4294901760
        %3157 = vmatpush1.msra.mxu0 %v3156
        %v3158 = vand.u32 %v2151, 4294901760
        %3159 = vmatprep.subr.mxu0 %v3158
        %v3160 = vand.u32 %v2150, 4294901760
        %3161 = vmatpush1.msra.mxu0 %v3160
        %v3162 = vand.u32 %v2153, 4294901760
        %3163 = vmatprep.subr.mxu0 %v3162
        %v3164 = vand.u32 %v2152, 4294901760
        %3165 = vmatpush1.msra.mxu0 %v3164
        %3166 = vmatprep.subr.mxu0 0.0
        %3167 = vmatpush1.msra.mxu0 0.0
        %3168 = vmatprep.subr.mxu0 0.0
        %3169 = vmatpush1.msra.mxu0 0.0
        %3170 = vmatprep.subr.mxu0 0.0
        %3171 = vmatpush1.msra.mxu0 0.0
        %3172 = vmatprep.subr.mxu0 0.0
        %3173 = vmatpush1.msra.mxu0 0.0
        %3174 = vmatprep.subr.mxu0 0.0
        %3175 = vmatpush1.msra.mxu0 0.0
        %3176 = vmatprep.subr.mxu0 0.0
        %3177 = vmatpush1.msra.mxu0 0.0
        %3178 = vmatprep.subr.mxu0 0.0
        %3179 = vmatpush1.msra.mxu0 0.0
        %3180 = vmatprep.subr.mxu0 0.0
        %3181 = vmatpush1.msra.mxu0 0.0
        %3182 = vmatprep.subr.mxu0 0.0
        %3183 = vmatpush1.msra.mxu0 0.0
        %3184 = vmatprep.subr.mxu0 0.0
        %3185 = vmatpush1.msra.mxu0 0.0
        %3186 = vmatprep.subr.mxu0 0.0
        %3187 = vmatpush1.msra.mxu0 0.0
        %3188 = vmatprep.subr.mxu0 0.0
        %3189 = vmatpush1.msra.mxu0 0.0
        %3190 = vmatprep.subr.mxu0 0.0
        %3191 = vmatpush1.msra.mxu0 0.0
        %3192 = vmatprep.subr.mxu0 0.0
        %3193 = vmatpush1.msra.mxu0 0.0
        %3194 = vmatprep.subr.mxu0 0.0
        %3195 = vmatpush1.msra.mxu0 0.0
        %3196 = vmatprep.subr.mxu0 0.0
        %3197 = vmatpush1.msra.mxu0 0.0
        %3198 = vmatprep.mubr.f32.mxu0 0.0
        %v3199 = vand.u32 %v2155, 4294901760
        %v3200 = vsub.f32 %v2155, %v3199
        %v3201 = vand.u32 %v3200, 4294901760
        %3202 = vmatmul.mubr.f32.gmra.mrb[0].mxu0 %v3201
        %v3203 = vpop.f32.mrb[0].mxu0
        %v3204 = vadd.f32 %v2978, %v3203
        %v3205 = vpop.f32.mrb[0].mxu0
        %v3206 = vadd.f32 %v2980, %v3205
        %3207 = vmatprep.mubr.f32.mxu0 0.0
        %v3208 = vand.u32 %v2156, 4294901760
        %v3209 = vsub.f32 %v2156, %v3208
        %v3210 = vand.u32 %v3209, 4294901760
        %3211 = vmatmul.mubr.f32.gmra.mrb[0].mxu0 %v3210
        %v3212 = vpop.f32.mrb[0].mxu0
        %v3213 = vadd.f32 %v2986, %v3212
        %v3214 = vpop.f32.mrb[0].mxu0
        %v3215 = vadd.f32 %v2988, %v3214
        %3216 = vmatprep.mubr.f32.mxu0 0.0
        %v3217 = vand.u32 %v2157, 4294901760
        %v3218 = vsub.f32 %v2157, %v3217
        %v3219 = vand.u32 %v3218, 4294901760
        %3220 = vmatmul.mubr.f32.gmra.mrb[0].mxu0 %v3219
        %v3221 = vpop.f32.mrb[0].mxu0
        %v3222 = vadd.f32 %v2994, %v3221
        %v3223 = vpop.f32.mrb[0].mxu0
        %v3224 = vadd.f32 %v2996, %v3223
        %3225 = vmatprep.mubr.f32.mxu0 0.0
        %v3226 = vand.u32 %v2158, 4294901760
        %v3227 = vsub.f32 %v2158, %v3226
        %v3228 = vand.u32 %v3227, 4294901760
        %3229 = vmatmul.mubr.f32.gmra.mrb[0].mxu0 %v3228
        %v3230 = vpop.f32.mrb[0].mxu0
        %v3231 = vadd.f32 %v3002, %v3230
        %v3232 = vpop.f32.mrb[0].mxu0
        %v3233 = vadd.f32 %v3004, %v3232
        %3234 = vmatprep.mubr.f32.mxu0 0.0
        %v3235 = vand.u32 %v2159, 4294901760
        %v3236 = vsub.f32 %v2159, %v3235
        %v3237 = vand.u32 %v3236, 4294901760
        %3238 = vmatmul.mubr.f32.gmra.mrb[0].mxu0 %v3237
        %v3239 = vpop.f32.mrb[0].mxu0
        %v3240 = vadd.f32 %v3010, %v3239
        %v3241 = vpop.f32.mrb[0].mxu0
        %v3242 = vadd.f32 %v3012, %v3241
        %3243 = vmatprep.mubr.f32.mxu0 0.0
        %v3244 = vand.u32 %v2160, 4294901760
        %v3245 = vsub.f32 %v2160, %v3244
        %v3246 = vand.u32 %v3245, 4294901760
        %3247 = vmatmul.mubr.f32.gmra.mrb[0].mxu0 %v3246
        %v3248 = vpop.f32.mrb[0].mxu0
        %v3249 = vadd.f32 %v3018, %v3248
        %v3250 = vpop.f32.mrb[0].mxu0
        %v3251 = vadd.f32 %v3020, %v3250
        %3252 = vmatprep.mubr.f32.mxu0 0.0
        %v3253 = vand.u32 %v2161, 4294901760
        %v3254 = vsub.f32 %v2161, %v3253
        %v3255 = vand.u32 %v3254, 4294901760
        %3256 = vmatmul.mubr.f32.gmra.mrb[0].mxu0 %v3255
        %v3257 = vpop.f32.mrb[0].mxu0
        %v3258 = vadd.f32 %v3026, %v3257
        %v3259 = vpop.f32.mrb[0].mxu0
        %v3260 = vadd.f32 %v3028, %v3259
        %3261 = vmatprep.mubr.f32.mxu0 0.0
        %v3262 = vand.u32 %v2162, 4294901760
        %v3263 = vsub.f32 %v2162, %v3262
        %v3264 = vand.u32 %v3263, 4294901760
        %3265 = vmatmul.mubr.f32.gmra.mrb[0].mxu0 %v3264
        %v3266 = vpop.f32.mrb[0].mxu0
        %v3267 = vadd.f32 %v3034, %v3266
        %v3268 = vpop.f32.mrb[0].mxu0
        %v3269 = vadd.f32 %v3036, %v3268
        %3270 = vmatprep.mubr.f32.mxu0 0.0
        %v3271 = vand.u32 %v2163, 4294901760
        %v3272 = vsub.f32 %v2163, %v3271
        %v3273 = vand.u32 %v3272, 4294901760
        %3274 = vmatmul.mubr.f32.gmra.mrb[0].mxu0 %v3273
        %v3275 = vpop.f32.mrb[0].mxu0
        %v3276 = vadd.f32 %v3042, %v3275
        %v3277 = vpop.f32.mrb[0].mxu0
        %v3278 = vadd.f32 %v3044, %v3277
        %3279 = vmatprep.mubr.f32.mxu0 0.0
        %v3280 = vand.u32 %v2164, 4294901760
        %v3281 = vsub.f32 %v2164, %v3280
        %v3282 = vand.u32 %v3281, 4294901760
        %3283 = vmatmul.mubr.f32.gmra.mrb[0].mxu0 %v3282
        %v3284 = vpop.f32.mrb[0].mxu0
        %v3285 = vadd.f32 %v3050, %v3284
        %v3286 = vpop.f32.mrb[0].mxu0
        %v3287 = vadd.f32 %v3052, %v3286
        %3288 = vmatprep.mubr.f32.mxu0 0.0
        %v3289 = vand.u32 %v2165, 4294901760
        %v3290 = vsub.f32 %v2165, %v3289
        %v3291 = vand.u32 %v3290, 4294901760
        %3292 = vmatmul.mubr.f32.gmra.mrb[0].mxu0 %v3291
        %v3293 = vpop.f32.mrb[0].mxu0
        %v3294 = vadd.f32 %v3058, %v3293
        %v3295 = vpop.f32.mrb[0].mxu0
        %v3296 = vadd.f32 %v3060, %v3295
        %3297 = vmatprep.mubr.f32.mxu0 0.0
        %v3298 = vand.u32 %v2166, 4294901760
        %v3299 = vsub.f32 %v2166, %v3298
        %v3300 = vand.u32 %v3299, 4294901760
        %3301 = vmatmul.mubr.f32.gmra.mrb[0].mxu0 %v3300
        %v3302 = vpop.f32.mrb[0].mxu0
        %v3303 = vadd.f32 %v3066, %v3302
        %v3304 = vpop.f32.mrb[0].mxu0
        %v3305 = vadd.f32 %v3068, %v3304
        %3306 = vmatprep.mubr.f32.mxu0 0.0
        %v3307 = vand.u32 %v2167, 4294901760
        %v3308 = vsub.f32 %v2167, %v3307
        %v3309 = vand.u32 %v3308, 4294901760
        %3310 = vmatmul.mubr.f32.gmra.mrb[0].mxu0 %v3309
        %v3311 = vpop.f32.mrb[0].mxu0
        %v3312 = vadd.f32 %v3074, %v3311
        %v3313 = vpop.f32.mrb[0].mxu0
        %v3314 = vadd.f32 %v3076, %v3313
        %3315 = vmatprep.mubr.f32.mxu0 0.0
        %v3316 = vand.u32 %v2168, 4294901760
        %v3317 = vsub.f32 %v2168, %v3316
        %v3318 = vand.u32 %v3317, 4294901760
        %3319 = vmatmul.mubr.f32.gmra.mrb[0].mxu0 %v3318
        %v3320 = vpop.f32.mrb[0].mxu0
        %v3321 = vadd.f32 %v3082, %v3320
        %v3322 = vpop.f32.mrb[0].mxu0
        %v3323 = vadd.f32 %v3084, %v3322
        %3324 = vmatprep.mubr.f32.mxu0 0.0
        %v3325 = vand.u32 %v2169, 4294901760
        %v3326 = vsub.f32 %v2169, %v3325
        %v3327 = vand.u32 %v3326, 4294901760
        %3328 = vmatmul.mubr.f32.gmra.mrb[0].mxu0 %v3327
        %v3329 = vpop.f32.mrb[0].mxu0
        %v3330 = vadd.f32 %v3090, %v3329
        %v3331 = vpop.f32.mrb[0].mxu0
        %v3332 = vadd.f32 %v3092, %v3331
        %3333 = vmatprep.mubr.f32.mxu0 0.0
        %v3334 = vand.u32 %v2170, 4294901760
        %v3335 = vsub.f32 %v2170, %v3334
        %v3336 = vand.u32 %v3335, 4294901760
        %3337 = vmatmul.mubr.f32.gmra.mrb[0].mxu0 %v3336
        %v3338 = vpop.f32.mrb[0].mxu0
        %v3339 = vadd.f32 %v3098, %v3338
        %v3340 = vpop.f32.mrb[0].mxu0
        %v3341 = vadd.f32 %v3100, %v3340
        %3342 = vdwg.mxu0
        %v3343 = vand.u32 %v2123, 4294901760
        %v3344 = vsub.f32 %v2123, %v3343
        %v3345 = vand.u32 %v3344, 4294901760
        %3346 = vmatprep.subr.mxu0 %v3345
        %v3347 = vand.u32 %v2122, 4294901760
        %v3348 = vsub.f32 %v2122, %v3347
        %v3349 = vand.u32 %v3348, 4294901760
        %3350 = vmatpush1.msra.mxu0 %v3349
        %v3351 = vand.u32 %v2125, 4294901760
        %v3352 = vsub.f32 %v2125, %v3351
        %v3353 = vand.u32 %v3352, 4294901760
        %3354 = vmatprep.subr.mxu0 %v3353
        %v3355 = vand.u32 %v2124, 4294901760
        %v3356 = vsub.f32 %v2124, %v3355
        %v3357 = vand.u32 %v3356, 4294901760
        %3358 = vmatpush1.msra.mxu0 %v3357
        %v3359 = vand.u32 %v2127, 4294901760
        %v3360 = vsub.f32 %v2127, %v3359
        %v3361 = vand.u32 %v3360, 4294901760
        %3362 = vmatprep.subr.mxu0 %v3361
        %v3363 = vand.u32 %v2126, 4294901760
        %v3364 = vsub.f32 %v2126, %v3363
        %v3365 = vand.u32 %v3364, 4294901760
        %3366 = vmatpush1.msra.mxu0 %v3365
        %v3367 = vand.u32 %v2129, 4294901760
        %v3368 = vsub.f32 %v2129, %v3367
        %v3369 = vand.u32 %v3368, 4294901760
        %3370 = vmatprep.subr.mxu0 %v3369
        %v3371 = vand.u32 %v2128, 4294901760
        %v3372 = vsub.f32 %v2128, %v3371
        %v3373 = vand.u32 %v3372, 4294901760
        %3374 = vmatpush1.msra.mxu0 %v3373
        %v3375 = vand.u32 %v2131, 4294901760
        %v3376 = vsub.f32 %v2131, %v3375
        %v3377 = vand.u32 %v3376, 4294901760
        %3378 = vmatprep.subr.mxu0 %v3377
        %v3379 = vand.u32 %v2130, 4294901760
        %v3380 = vsub.f32 %v2130, %v3379
        %v3381 = vand.u32 %v3380, 4294901760
        %3382 = vmatpush1.msra.mxu0 %v3381
        %v3383 = vand.u32 %v2133, 4294901760
        %v3384 = vsub.f32 %v2133, %v3383
        %v3385 = vand.u32 %v3384, 4294901760
        %3386 = vmatprep.subr.mxu0 %v3385
        %v3387 = vand.u32 %v2132, 4294901760
        %v3388 = vsub.f32 %v2132, %v3387
        %v3389 = vand.u32 %v3388, 4294901760
        %3390 = vmatpush1.msra.mxu0 %v3389
        %v3391 = vand.u32 %v2135, 4294901760
        %v3392 = vsub.f32 %v2135, %v3391
        %v3393 = vand.u32 %v3392, 4294901760
        %3394 = vmatprep.subr.mxu0 %v3393
        %v3395 = vand.u32 %v2134, 4294901760
        %v3396 = vsub.f32 %v2134, %v3395
        %v3397 = vand.u32 %v3396, 4294901760
        %3398 = vmatpush1.msra.mxu0 %v3397
        %v3399 = vand.u32 %v2137, 4294901760
        %v3400 = vsub.f32 %v2137, %v3399
        %v3401 = vand.u32 %v3400, 4294901760
        %3402 = vmatprep.subr.mxu0 %v3401
        %v3403 = vand.u32 %v2136, 4294901760
        %v3404 = vsub.f32 %v2136, %v3403
        %v3405 = vand.u32 %v3404, 4294901760
        %3406 = vmatpush1.msra.mxu0 %v3405
        %v3407 = vand.u32 %v2139, 4294901760
        %v3408 = vsub.f32 %v2139, %v3407
        %v3409 = vand.u32 %v3408, 4294901760
        %3410 = vmatprep.subr.mxu0 %v3409
        %v3411 = vand.u32 %v2138, 4294901760
        %v3412 = vsub.f32 %v2138, %v3411
        %v3413 = vand.u32 %v3412, 4294901760
        %3414 = vmatpush1.msra.mxu0 %v3413
        %v3415 = vand.u32 %v2141, 4294901760
        %v3416 = vsub.f32 %v2141, %v3415
        %v3417 = vand.u32 %v3416, 4294901760
        %3418 = vmatprep.subr.mxu0 %v3417
        %v3419 = vand.u32 %v2140, 4294901760
        %v3420 = vsub.f32 %v2140, %v3419
        %v3421 = vand.u32 %v3420, 4294901760
        %3422 = vmatpush1.msra.mxu0 %v3421
        %v3423 = vand.u32 %v2143, 4294901760
        %v3424 = vsub.f32 %v2143, %v3423
        %v3425 = vand.u32 %v3424, 4294901760
        %3426 = vmatprep.subr.mxu0 %v3425
        %v3427 = vand.u32 %v2142, 4294901760
        %v3428 = vsub.f32 %v2142, %v3427
        %v3429 = vand.u32 %v3428, 4294901760
        %3430 = vmatpush1.msra.mxu0 %v3429
        %v3431 = vand.u32 %v2145, 4294901760
        %v3432 = vsub.f32 %v2145, %v3431
        %v3433 = vand.u32 %v3432, 4294901760
        %3434 = vmatprep.subr.mxu0 %v3433
        %v3435 = vand.u32 %v2144, 4294901760
        %v3436 = vsub.f32 %v2144, %v3435
        %v3437 = vand.u32 %v3436, 4294901760
        %3438 = vmatpush1.msra.mxu0 %v3437
        %v3439 = vand.u32 %v2147, 4294901760
        %v3440 = vsub.f32 %v2147, %v3439
        %v3441 = vand.u32 %v3440, 4294901760
        %3442 = vmatprep.subr.mxu0 %v3441
        %v3443 = vand.u32 %v2146, 4294901760
        %v3444 = vsub.f32 %v2146, %v3443
        %v3445 = vand.u32 %v3444, 4294901760
        %3446 = vmatpush1.msra.mxu0 %v3445
        %v3447 = vand.u32 %v2149, 4294901760
        %v3448 = vsub.f32 %v2149, %v3447
        %v3449 = vand.u32 %v3448, 4294901760
        %3450 = vmatprep.subr.mxu0 %v3449
        %v3451 = vand.u32 %v2148, 4294901760
        %v3452 = vsub.f32 %v2148, %v3451
        %v3453 = vand.u32 %v3452, 4294901760
        %3454 = vmatpush1.msra.mxu0 %v3453
        %v3455 = vand.u32 %v2151, 4294901760
        %v3456 = vsub.f32 %v2151, %v3455
        %v3457 = vand.u32 %v3456, 4294901760
        %3458 = vmatprep.subr.mxu0 %v3457
        %v3459 = vand.u32 %v2150, 4294901760
        %v3460 = vsub.f32 %v2150, %v3459
        %v3461 = vand.u32 %v3460, 4294901760
        %3462 = vmatpush1.msra.mxu0 %v3461
        %v3463 = vand.u32 %v2153, 4294901760
        %v3464 = vsub.f32 %v2153, %v3463
        %v3465 = vand.u32 %v3464, 4294901760
        %3466 = vmatprep.subr.mxu0 %v3465
        %v3467 = vand.u32 %v2152, 4294901760
        %v3468 = vsub.f32 %v2152, %v3467
        %v3469 = vand.u32 %v3468, 4294901760
        %3470 = vmatpush1.msra.mxu0 %v3469
        %3471 = vmatprep.subr.mxu0 0.0
        %3472 = vmatpush1.msra.mxu0 0.0
        %3473 = vmatprep.subr.mxu0 0.0
        %3474 = vmatpush1.msra.mxu0 0.0
        %3475 = vmatprep.subr.mxu0 0.0
        %3476 = vmatpush1.msra.mxu0 0.0
        %3477 = vmatprep.subr.mxu0 0.0
        %3478 = vmatpush1.msra.mxu0 0.0
        %3479 = vmatprep.subr.mxu0 0.0
        %3480 = vmatpush1.msra.mxu0 0.0
        %3481 = vmatprep.subr.mxu0 0.0
        %3482 = vmatpush1.msra.mxu0 0.0
        %3483 = vmatprep.subr.mxu0 0.0
        %3484 = vmatpush1.msra.mxu0 0.0
        %3485 = vmatprep.subr.mxu0 0.0
        %3486 = vmatpush1.msra.mxu0 0.0
        %3487 = vmatprep.subr.mxu0 0.0
        %3488 = vmatpush1.msra.mxu0 0.0
        %3489 = vmatprep.subr.mxu0 0.0
        %3490 = vmatpush1.msra.mxu0 0.0
        %3491 = vmatprep.subr.mxu0 0.0
        %3492 = vmatpush1.msra.mxu0 0.0
        %3493 = vmatprep.subr.mxu0 0.0
        %3494 = vmatpush1.msra.mxu0 0.0
        %3495 = vmatprep.subr.mxu0 0.0
        %3496 = vmatpush1.msra.mxu0 0.0
        %3497 = vmatprep.subr.mxu0 0.0
        %3498 = vmatpush1.msra.mxu0 0.0
        %3499 = vmatprep.subr.mxu0 0.0
        %3500 = vmatpush1.msra.mxu0 0.0
        %3501 = vmatprep.subr.mxu0 0.0
        %3502 = vmatpush1.msra.mxu0 0.0
        %3503 = vmatprep.mubr.f32.mxu0 0.0
        %v3504 = vand.u32 %v2155, 4294901760
        %3505 = vmatmul.mubr.f32.gmra.mrb[0].mxu0 %v3504
        %v3506 = vpop.f32.mrb[0].mxu0
        %v3507 = vadd.f32 %v3204, %v3506
        %v3508 = vpop.f32.mrb[0].mxu0
        %v3509 = vadd.f32 %v3206, %v3508
        %3510 = vmatprep.mubr.f32.mxu0 0.0
        %v3511 = vand.u32 %v2156, 4294901760
        %3512 = vmatmul.mubr.f32.gmra.mrb[0].mxu0 %v3511
        %v3513 = vpop.f32.mrb[0].mxu0
        %v3514 = vadd.f32 %v3213, %v3513
        %v3515 = vpop.f32.mrb[0].mxu0
        %v3516 = vadd.f32 %v3215, %v3515
        %3517 = vmatprep.mubr.f32.mxu0 0.0
        %v3518 = vand.u32 %v2157, 4294901760
        %3519 = vmatmul.mubr.f32.gmra.mrb[0].mxu0 %v3518
        %v3520 = vpop.f32.mrb[0].mxu0
        %v3521 = vadd.f32 %v3222, %v3520
        %v3522 = vpop.f32.mrb[0].mxu0
        %v3523 = vadd.f32 %v3224, %v3522
        %3524 = vmatprep.mubr.f32.mxu0 0.0
        %v3525 = vand.u32 %v2158, 4294901760
        %3526 = vmatmul.mubr.f32.gmra.mrb[0].mxu0 %v3525
        %v3527 = vpop.f32.mrb[0].mxu0
        %v3528 = vadd.f32 %v3231, %v3527
        %v3529 = vpop.f32.mrb[0].mxu0
        %v3530 = vadd.f32 %v3233, %v3529
        %3531 = vmatprep.mubr.f32.mxu0 0.0
        %v3532 = vand.u32 %v2159, 4294901760
        %3533 = vmatmul.mubr.f32.gmra.mrb[0].mxu0 %v3532
        %v3534 = vpop.f32.mrb[0].mxu0
        %v3535 = vadd.f32 %v3240, %v3534
        %v3536 = vpop.f32.mrb[0].mxu0
        %v3537 = vadd.f32 %v3242, %v3536
        %3538 = vmatprep.mubr.f32.mxu0 0.0
        %v3539 = vand.u32 %v2160, 4294901760
        %3540 = vmatmul.mubr.f32.gmra.mrb[0].mxu0 %v3539
        %v3541 = vpop.f32.mrb[0].mxu0
        %v3542 = vadd.f32 %v3249, %v3541
        %v3543 = vpop.f32.mrb[0].mxu0
        %v3544 = vadd.f32 %v3251, %v3543
        %3545 = vmatprep.mubr.f32.mxu0 0.0
        %v3546 = vand.u32 %v2161, 4294901760
        %3547 = vmatmul.mubr.f32.gmra.mrb[0].mxu0 %v3546
        %v3548 = vpop.f32.mrb[0].mxu0
        %v3549 = vadd.f32 %v3258, %v3548
        %v3550 = vpop.f32.mrb[0].mxu0
        %v3551 = vadd.f32 %v3260, %v3550
        %3552 = vmatprep.mubr.f32.mxu0 0.0
        %v3553 = vand.u32 %v2162, 4294901760
        %3554 = vmatmul.mubr.f32.gmra.mrb[0].mxu0 %v3553
        %v3555 = vpop.f32.mrb[0].mxu0
        %v3556 = vadd.f32 %v3267, %v3555
        %v3557 = vpop.f32.mrb[0].mxu0
        %v3558 = vadd.f32 %v3269, %v3557
        %3559 = vmatprep.mubr.f32.mxu0 0.0
        %v3560 = vand.u32 %v2163, 4294901760
        %3561 = vmatmul.mubr.f32.gmra.mrb[0].mxu0 %v3560
        %v3562 = vpop.f32.mrb[0].mxu0
        %v3563 = vadd.f32 %v3276, %v3562
        %v3564 = vpop.f32.mrb[0].mxu0
        %v3565 = vadd.f32 %v3278, %v3564
        %3566 = vmatprep.mubr.f32.mxu0 0.0
        %v3567 = vand.u32 %v2164, 4294901760
        %3568 = vmatmul.mubr.f32.gmra.mrb[0].mxu0 %v3567
        %v3569 = vpop.f32.mrb[0].mxu0
        %v3570 = vadd.f32 %v3285, %v3569
        %v3571 = vpop.f32.mrb[0].mxu0
        %v3572 = vadd.f32 %v3287, %v3571
        %3573 = vmatprep.mubr.f32.mxu0 0.0
        %v3574 = vand.u32 %v2165, 4294901760
        %3575 = vmatmul.mubr.f32.gmra.mrb[0].mxu0 %v3574
        %v3576 = vpop.f32.mrb[0].mxu0
        %v3577 = vadd.f32 %v3294, %v3576
        %v3578 = vpop.f32.mrb[0].mxu0
        %v3579 = vadd.f32 %v3296, %v3578
        %3580 = vmatprep.mubr.f32.mxu0 0.0
        %v3581 = vand.u32 %v2166, 4294901760
        %3582 = vmatmul.mubr.f32.gmra.mrb[0].mxu0 %v3581
        %v3583 = vpop.f32.mrb[0].mxu0
        %v3584 = vadd.f32 %v3303, %v3583
        %v3585 = vpop.f32.mrb[0].mxu0
        %v3586 = vadd.f32 %v3305, %v3585
        %3587 = vmatprep.mubr.f32.mxu0 0.0
        %v3588 = vand.u32 %v2167, 4294901760
        %3589 = vmatmul.mubr.f32.gmra.mrb[0].mxu0 %v3588
        %v3590 = vpop.f32.mrb[0].mxu0
        %v3591 = vadd.f32 %v3312, %v3590
        %v3592 = vpop.f32.mrb[0].mxu0
        %v3593 = vadd.f32 %v3314, %v3592
        %3594 = vmatprep.mubr.f32.mxu0 0.0
        %v3595 = vand.u32 %v2168, 4294901760
        %3596 = vmatmul.mubr.f32.gmra.mrb[0].mxu0 %v3595
        %v3597 = vpop.f32.mrb[0].mxu0
        %v3598 = vadd.f32 %v3321, %v3597
        %v3599 = vpop.f32.mrb[0].mxu0
        %v3600 = vadd.f32 %v3323, %v3599
        %3601 = vmatprep.mubr.f32.mxu0 0.0
        %v3602 = vand.u32 %v2169, 4294901760
        %3603 = vmatmul.mubr.f32.gmra.mrb[0].mxu0 %v3602
        %v3604 = vpop.f32.mrb[0].mxu0
        %v3605 = vadd.f32 %v3330, %v3604
        %v3606 = vpop.f32.mrb[0].mxu0
        %v3607 = vadd.f32 %v3332, %v3606
        %3608 = vmatprep.mubr.f32.mxu0 0.0
        %v3609 = vand.u32 %v2170, 4294901760
        %3610 = vmatmul.mubr.f32.gmra.mrb[0].mxu0 %v3609
        %v3611 = vpop.f32.mrb[0].mxu0
        %v3612 = vadd.f32 %v3339, %v3611
        %v3613 = vpop.f32.mrb[0].mxu0
        %v3614 = vadd.f32 %v3341, %v3613
        %3615 = vdwg.mxu0
        %v3616 = vand.u32 %v2123, 4294901760
        %3617 = vmatprep.subr.mxu0 %v3616
        %v3618 = vand.u32 %v2122, 4294901760
        %3619 = vmatpush1.msra.mxu0 %v3618
        %v3620 = vand.u32 %v2125, 4294901760
        %3621 = vmatprep.subr.mxu0 %v3620
        %v3622 = vand.u32 %v2124, 4294901760
        %3623 = vmatpush1.msra.mxu0 %v3622
        %v3624 = vand.u32 %v2127, 4294901760
        %3625 = vmatprep.subr.mxu0 %v3624
        %v3626 = vand.u32 %v2126, 4294901760
        %3627 = vmatpush1.msra.mxu0 %v3626
        %v3628 = vand.u32 %v2129, 4294901760
        %3629 = vmatprep.subr.mxu0 %v3628
        %v3630 = vand.u32 %v2128, 4294901760
        %3631 = vmatpush1.msra.mxu0 %v3630
        %v3632 = vand.u32 %v2131, 4294901760
        %3633 = vmatprep.subr.mxu0 %v3632
        %v3634 = vand.u32 %v2130, 4294901760
        %3635 = vmatpush1.msra.mxu0 %v3634
        %v3636 = vand.u32 %v2133, 4294901760
        %3637 = vmatprep.subr.mxu0 %v3636
        %v3638 = vand.u32 %v2132, 4294901760
        %3639 = vmatpush1.msra.mxu0 %v3638
        %v3640 = vand.u32 %v2135, 4294901760
        %3641 = vmatprep.subr.mxu0 %v3640
        %v3642 = vand.u32 %v2134, 4294901760
        %3643 = vmatpush1.msra.mxu0 %v3642
        %v3644 = vand.u32 %v2137, 4294901760
        %3645 = vmatprep.subr.mxu0 %v3644
        %v3646 = vand.u32 %v2136, 4294901760
        %3647 = vmatpush1.msra.mxu0 %v3646
        %v3648 = vand.u32 %v2139, 4294901760
        %3649 = vmatprep.subr.mxu0 %v3648
        %v3650 = vand.u32 %v2138, 4294901760
        %3651 = vmatpush1.msra.mxu0 %v3650
        %v3652 = vand.u32 %v2141, 4294901760
        %3653 = vmatprep.subr.mxu0 %v3652
        %v3654 = vand.u32 %v2140, 4294901760
        %3655 = vmatpush1.msra.mxu0 %v3654
        %v3656 = vand.u32 %v2143, 4294901760
        %3657 = vmatprep.subr.mxu0 %v3656
        %v3658 = vand.u32 %v2142, 4294901760
        %3659 = vmatpush1.msra.mxu0 %v3658
        %v3660 = vand.u32 %v2145, 4294901760
        %3661 = vmatprep.subr.mxu0 %v3660
        %v3662 = vand.u32 %v2144, 4294901760
        %3663 = vmatpush1.msra.mxu0 %v3662
        %v3664 = vand.u32 %v2147, 4294901760
        %3665 = vmatprep.subr.mxu0 %v3664
        %v3666 = vand.u32 %v2146, 4294901760
        %3667 = vmatpush1.msra.mxu0 %v3666
        %v3668 = vand.u32 %v2149, 4294901760
        %3669 = vmatprep.subr.mxu0 %v3668
        %v3670 = vand.u32 %v2148, 4294901760
        %3671 = vmatpush1.msra.mxu0 %v3670
        %v3672 = vand.u32 %v2151, 4294901760
        %3673 = vmatprep.subr.mxu0 %v3672
        %v3674 = vand.u32 %v2150, 4294901760
        %3675 = vmatpush1.msra.mxu0 %v3674
        %v3676 = vand.u32 %v2153, 4294901760
        %3677 = vmatprep.subr.mxu0 %v3676
        %v3678 = vand.u32 %v2152, 4294901760
        %3679 = vmatpush1.msra.mxu0 %v3678
        %3680 = vmatprep.subr.mxu0 0.0
        %3681 = vmatpush1.msra.mxu0 0.0
        %3682 = vmatprep.subr.mxu0 0.0
        %3683 = vmatpush1.msra.mxu0 0.0
        %3684 = vmatprep.subr.mxu0 0.0
        %3685 = vmatpush1.msra.mxu0 0.0
        %3686 = vmatprep.subr.mxu0 0.0
        %3687 = vmatpush1.msra.mxu0 0.0
        %3688 = vmatprep.subr.mxu0 0.0
        %3689 = vmatpush1.msra.mxu0 0.0
        %3690 = vmatprep.subr.mxu0 0.0
        %3691 = vmatpush1.msra.mxu0 0.0
        %3692 = vmatprep.subr.mxu0 0.0
        %3693 = vmatpush1.msra.mxu0 0.0
        %3694 = vmatprep.subr.mxu0 0.0
        %3695 = vmatpush1.msra.mxu0 0.0
        %3696 = vmatprep.subr.mxu0 0.0
        %3697 = vmatpush1.msra.mxu0 0.0
        %3698 = vmatprep.subr.mxu0 0.0
        %3699 = vmatpush1.msra.mxu0 0.0
        %3700 = vmatprep.subr.mxu0 0.0
        %3701 = vmatpush1.msra.mxu0 0.0
        %3702 = vmatprep.subr.mxu0 0.0
        %3703 = vmatpush1.msra.mxu0 0.0
        %3704 = vmatprep.subr.mxu0 0.0
        %3705 = vmatpush1.msra.mxu0 0.0
        %3706 = vmatprep.subr.mxu0 0.0
        %3707 = vmatpush1.msra.mxu0 0.0
        %3708 = vmatprep.subr.mxu0 0.0
        %3709 = vmatpush1.msra.mxu0 0.0
        %3710 = vmatprep.subr.mxu0 0.0
        %3711 = vmatpush1.msra.mxu0 0.0
        %3712 = vmatprep.mubr.f32.mxu0 0.0
        %v3713 = vand.u32 %v2155, 4294901760
        %3714 = vmatmul.mubr.f32.gmra.mrb[0].mxu0 %v3713
        %v3715 = vpop.f32.mrb[0].mxu0
        %v3716 = vadd.f32 %v3507, %v3715
        %v3717 = vpop.f32.mrb[0].mxu0
        %v3718 = vadd.f32 %v3509, %v3717
        %3719 = vmatprep.mubr.f32.mxu0 0.0
        %v3720 = vand.u32 %v2156, 4294901760
        %3721 = vmatmul.mubr.f32.gmra.mrb[0].mxu0 %v3720
        %v3722 = vpop.f32.mrb[0].mxu0
        %v3723 = vadd.f32 %v3514, %v3722
        %v3724 = vpop.f32.mrb[0].mxu0
        %v3725 = vadd.f32 %v3516, %v3724
        %3726 = vmatprep.mubr.f32.mxu0 0.0
        %v3727 = vand.u32 %v2157, 4294901760
        %3728 = vmatmul.mubr.f32.gmra.mrb[0].mxu0 %v3727
        %v3729 = vpop.f32.mrb[0].mxu0
        %v3730 = vadd.f32 %v3521, %v3729
        %v3731 = vpop.f32.mrb[0].mxu0
        %v3732 = vadd.f32 %v3523, %v3731
        %3733 = vmatprep.mubr.f32.mxu0 0.0
        %v3734 = vand.u32 %v2158, 4294901760
        %3735 = vmatmul.mubr.f32.gmra.mrb[0].mxu0 %v3734
        %v3736 = vpop.f32.mrb[0].mxu0
        %v3737 = vadd.f32 %v3528, %v3736
        %v3738 = vpop.f32.mrb[0].mxu0
        %v3739 = vadd.f32 %v3530, %v3738
        %3740 = vmatprep.mubr.f32.mxu0 0.0
        %v3741 = vand.u32 %v2159, 4294901760
        %3742 = vmatmul.mubr.f32.gmra.mrb[0].mxu0 %v3741
        %v3743 = vpop.f32.mrb[0].mxu0
        %v3744 = vadd.f32 %v3535, %v3743
        %v3745 = vpop.f32.mrb[0].mxu0
        %v3746 = vadd.f32 %v3537, %v3745
        %3747 = vmatprep.mubr.f32.mxu0 0.0
        %v3748 = vand.u32 %v2160, 4294901760
        %3749 = vmatmul.mubr.f32.gmra.mrb[0].mxu0 %v3748
        %v3750 = vpop.f32.mrb[0].mxu0
        %v3751 = vadd.f32 %v3542, %v3750
        %v3752 = vpop.f32.mrb[0].mxu0
        %v3753 = vadd.f32 %v3544, %v3752
        %3754 = vmatprep.mubr.f32.mxu0 0.0
        %v3755 = vand.u32 %v2161, 4294901760
        %3756 = vmatmul.mubr.f32.gmra.mrb[0].mxu0 %v3755
        %v3757 = vpop.f32.mrb[0].mxu0
        %v3758 = vadd.f32 %v3549, %v3757
        %v3759 = vpop.f32.mrb[0].mxu0
        %v3760 = vadd.f32 %v3551, %v3759
        %3761 = vmatprep.mubr.f32.mxu0 0.0
        %v3762 = vand.u32 %v2162, 4294901760
        %3763 = vmatmul.mubr.f32.gmra.mrb[0].mxu0 %v3762
        %v3764 = vpop.f32.mrb[0].mxu0
        %v3765 = vadd.f32 %v3556, %v3764
        %v3766 = vpop.f32.mrb[0].mxu0
        %v3767 = vadd.f32 %v3558, %v3766
        %3768 = vmatprep.mubr.f32.mxu0 0.0
        %v3769 = vand.u32 %v2163, 4294901760
        %3770 = vmatmul.mubr.f32.gmra.mrb[0].mxu0 %v3769
        %v3771 = vpop.f32.mrb[0].mxu0
        %v3772 = vadd.f32 %v3563, %v3771
        %v3773 = vpop.f32.mrb[0].mxu0
        %v3774 = vadd.f32 %v3565, %v3773
        %3775 = vmatprep.mubr.f32.mxu0 0.0
        %v3776 = vand.u32 %v2164, 4294901760
        %3777 = vmatmul.mubr.f32.gmra.mrb[0].mxu0 %v3776
        %v3778 = vpop.f32.mrb[0].mxu0
        %v3779 = vadd.f32 %v3570, %v3778
        %v3780 = vpop.f32.mrb[0].mxu0
        %v3781 = vadd.f32 %v3572, %v3780
        %3782 = vmatprep.mubr.f32.mxu0 0.0
        %v3783 = vand.u32 %v2165, 4294901760
        %3784 = vmatmul.mubr.f32.gmra.mrb[0].mxu0 %v3783
        %v3785 = vpop.f32.mrb[0].mxu0
        %v3786 = vadd.f32 %v3577, %v3785
        %v3787 = vpop.f32.mrb[0].mxu0
        %v3788 = vadd.f32 %v3579, %v3787
        %3789 = vmatprep.mubr.f32.mxu0 0.0
        %v3790 = vand.u32 %v2166, 4294901760
        %3791 = vmatmul.mubr.f32.gmra.mrb[0].mxu0 %v3790
        %v3792 = vpop.f32.mrb[0].mxu0
        %v3793 = vadd.f32 %v3584, %v3792
        %v3794 = vpop.f32.mrb[0].mxu0
        %v3795 = vadd.f32 %v3586, %v3794
        %3796 = vmatprep.mubr.f32.mxu0 0.0
        %v3797 = vand.u32 %v2167, 4294901760
        %3798 = vmatmul.mubr.f32.gmra.mrb[0].mxu0 %v3797
        %v3799 = vpop.f32.mrb[0].mxu0
        %v3800 = vadd.f32 %v3591, %v3799
        %v3801 = vpop.f32.mrb[0].mxu0
        %v3802 = vadd.f32 %v3593, %v3801
        %3803 = vmatprep.mubr.f32.mxu0 0.0
        %v3804 = vand.u32 %v2168, 4294901760
        %3805 = vmatmul.mubr.f32.gmra.mrb[0].mxu0 %v3804
        %v3806 = vpop.f32.mrb[0].mxu0
        %v3807 = vadd.f32 %v3598, %v3806
        %v3808 = vpop.f32.mrb[0].mxu0
        %v3809 = vadd.f32 %v3600, %v3808
        %3810 = vmatprep.mubr.f32.mxu0 0.0
        %v3811 = vand.u32 %v2169, 4294901760
        %3812 = vmatmul.mubr.f32.gmra.mrb[0].mxu0 %v3811
        %v3813 = vpop.f32.mrb[0].mxu0
        %v3814 = vadd.f32 %v3605, %v3813
        %v3815 = vpop.f32.mrb[0].mxu0
        %v3816 = vadd.f32 %v3607, %v3815
        %3817 = vmatprep.mubr.f32.mxu0 0.0
        %v3818 = vand.u32 %v2170, 4294901760
        %3819 = vmatmul.mubr.f32.gmra.mrb[0].mxu0 %v3818
        %v3820 = vpop.f32.mrb[0].mxu0
        %v3821 = vadd.f32 %v3612, %v3820
        %v3822 = vpop.f32.mrb[0].mxu0
        %v3823 = vadd.f32 %v3614, %v3822
        %3824 = vdwg.mxu0
        %v3825 = vtanh.pop %v3716
        %v3826 = vtanh.pop %v3718
        %v3827 = vtanh.pop %v3723
        %v3828 = vtanh.pop %v3725
        %v3829 = vtanh.pop %v3730
        %v3830 = vtanh.pop %v3732
        %v3831 = vtanh.pop %v3737
        %v3832 = vtanh.pop %v3739
        %v3833 = vtanh.pop %v3744
        %v3834 = vtanh.pop %v3746
        %v3835 = vtanh.pop %v3751
        %v3836 = vtanh.pop %v3753
        %v3837 = vtanh.pop %v3758
        %v3838 = vtanh.pop %v3760
        %v3839 = vtanh.pop %v3765
        %v3840 = vtanh.pop %v3767
        %v3841 = vtanh.pop %v3772
        %v3842 = vtanh.pop %v3774
        %v3843 = vtanh.pop %v3779
        %v3844 = vtanh.pop %v3781
        %v3845 = vtanh.pop %v3786
        %v3846 = vtanh.pop %v3788
        %v3847 = vtanh.pop %v3793
        %v3848 = vtanh.pop %v3795
        %v3849 = vtanh.pop %v3800
        %v3850 = vtanh.pop %v3802
        %v3851 = vtanh.pop %v3807
        %v3852 = vtanh.pop %v3809
        %v3853 = vtanh.pop %v3814
        %v3854 = vtanh.pop %v3816
        %v3855 = vtanh.pop %v3821
        %v3856 = vtanh.pop %v3823
        %s3857 = scalar_lea.vmem [#allocation2], 256
        %v3858 = vld [vmem:[%s3857] sm:$0xff]
        %v3859 = vld [vmem:[%s3857 + $0x8] sm:$0xff]
        %v3860 = vld [vmem:[%s3857 + $0x10] sm:$0xff]
        %v3861 = vld [vmem:[%s3857 + $0x18] sm:$0xff]
        %v3862 = vld [vmem:[%s3857 + $0x20] sm:$0xff]
        %v3863 = vld [vmem:[%s3857 + $0x28] sm:$0xff]
        %v3864 = vld [vmem:[%s3857 + $0x30] sm:$0xff]
        %v3865 = vld [vmem:[%s3857 + $0x38] sm:$0xff]
        %v3866 = vld [vmem:[%s3857 + $0x40] sm:$0xff]
        %v3867 = vld [vmem:[%s3857 + $0x48] sm:$0xff]
        %v3868 = vld [vmem:[%s3857 + $0x50] sm:$0xff]
        %v3869 = vld [vmem:[%s3857 + $0x58] sm:$0xff]
        %v3870 = vld [vmem:[%s3857 + $0x60] sm:$0xff]
        %v3871 = vld [vmem:[%s3857 + $0x68] sm:$0xff]
        %v3872 = vld [vmem:[%s3857 + $0x70] sm:$0xff]
        %v3873 = vld [vmem:[%s3857 + $0x78] sm:$0xff]
        %3874 = vset.pattern.permute.xlu0 4
        %3875 = vperm.xlu0 %3874, %v185
        %v3876 = vpop.permute.xlu0 %3875
        %3878 = vset.pattern.permute.xlu0 4
        %3879 = vperm.xlu0 %3878, %v186
        %v3880 = vpop.permute.xlu0 %3879
        %3882 = vset.pattern.permute.xlu0 4
        %3883 = vperm.xlu0 %3882, %v187
        %v3884 = vpop.permute.xlu0 %3883
        %3886 = vset.pattern.permute.xlu0 4
        %3887 = vperm.xlu0 %3886, %v188
        %v3888 = vpop.permute.xlu0 %3887
        %3890 = vset.pattern.permute.xlu0 4
        %3891 = vperm.xlu0 %3890, %v189
        %v3892 = vpop.permute.xlu0 %3891
        %3894 = vset.pattern.permute.xlu0 4
        %3895 = vperm.xlu0 %3894, %v190
        %v3896 = vpop.permute.xlu0 %3895
        %3898 = vset.pattern.permute.xlu0 4
        %3899 = vperm.xlu0 %3898, %v191
        %v3900 = vpop.permute.xlu0 %3899
        %3902 = vset.pattern.permute.xlu0 4
        %3903 = vperm.xlu0 %3902, %v192
        %v3904 = vpop.permute.xlu0 %3903
        %3906 = vset.pattern.permute.xlu0 4
        %3907 = vperm.xlu0 %3906, %v193
        %v3908 = vpop.permute.xlu0 %3907
        %3910 = vset.pattern.permute.xlu0 4
        %3911 = vperm.xlu0 %3910, %v194
        %v3912 = vpop.permute.xlu0 %3911
        %3914 = vset.pattern.permute.xlu0 4
        %3915 = vperm.xlu0 %3914, %v195
        %v3916 = vpop.permute.xlu0 %3915
        %3918 = vset.pattern.permute.xlu0 4
        %3919 = vperm.xlu0 %3918, %v196
        %v3920 = vpop.permute.xlu0 %3919
        %3922 = vset.pattern.permute.xlu0 4
        %3923 = vperm.xlu0 %3922, %v197
        %v3924 = vpop.permute.xlu0 %3923
        %3926 = vset.pattern.permute.xlu0 4
        %3927 = vperm.xlu0 %3926, %v198
        %v3928 = vpop.permute.xlu0 %3927
        %3930 = vset.pattern.permute.xlu0 4
        %3931 = vperm.xlu0 %3930, %v199
        %v3932 = vpop.permute.xlu0 %3931
        %3934 = vset.pattern.permute.xlu0 4
        %3935 = vperm.xlu0 %3934, %v200
        %v3936 = vpop.permute.xlu0 %3935
        %v3938 = vand.u32 %v3826, 4294901760
        %3939 = vmatprep.subr.mxu0 %v3938
        %v3940 = vand.u32 %v3825, 4294901760
        %3941 = vmatpush1.msra.mxu0 %v3940
        %v3942 = vand.u32 %v3828, 4294901760
        %3943 = vmatprep.subr.mxu0 %v3942
        %v3944 = vand.u32 %v3827, 4294901760
        %3945 = vmatpush1.msra.mxu0 %v3944
        %v3946 = vand.u32 %v3830, 4294901760
        %3947 = vmatprep.subr.mxu0 %v3946
        %v3948 = vand.u32 %v3829, 4294901760
        %3949 = vmatpush1.msra.mxu0 %v3948
        %v3950 = vand.u32 %v3832, 4294901760
        %3951 = vmatprep.subr.mxu0 %v3950
        %v3952 = vand.u32 %v3831, 4294901760
        %3953 = vmatpush1.msra.mxu0 %v3952
        %v3954 = vand.u32 %v3834, 4294901760
        %3955 = vmatprep.subr.mxu0 %v3954
        %v3956 = vand.u32 %v3833, 4294901760
        %3957 = vmatpush1.msra.mxu0 %v3956
        %v3958 = vand.u32 %v3836, 4294901760
        %3959 = vmatprep.subr.mxu0 %v3958
        %v3960 = vand.u32 %v3835, 4294901760
        %3961 = vmatpush1.msra.mxu0 %v3960
        %v3962 = vand.u32 %v3838, 4294901760
        %3963 = vmatprep.subr.mxu0 %v3962
        %v3964 = vand.u32 %v3837, 4294901760
        %3965 = vmatpush1.msra.mxu0 %v3964
        %v3966 = vand.u32 %v3840, 4294901760
        %3967 = vmatprep.subr.mxu0 %v3966
        %v3968 = vand.u32 %v3839, 4294901760
        %3969 = vmatpush1.msra.mxu0 %v3968
        %v3970 = vand.u32 %v3842, 4294901760
        %3971 = vmatprep.subr.mxu0 %v3970
        %v3972 = vand.u32 %v3841, 4294901760
        %3973 = vmatpush1.msra.mxu0 %v3972
        %v3974 = vand.u32 %v3844, 4294901760
        %3975 = vmatprep.subr.mxu0 %v3974
        %v3976 = vand.u32 %v3843, 4294901760
        %3977 = vmatpush1.msra.mxu0 %v3976
        %v3978 = vand.u32 %v3846, 4294901760
        %3979 = vmatprep.subr.mxu0 %v3978
        %v3980 = vand.u32 %v3845, 4294901760
        %3981 = vmatpush1.msra.mxu0 %v3980
        %v3982 = vand.u32 %v3848, 4294901760
        %3983 = vmatprep.subr.mxu0 %v3982
        %v3984 = vand.u32 %v3847, 4294901760
        %3985 = vmatpush1.msra.mxu0 %v3984
        %v3986 = vand.u32 %v3850, 4294901760
        %3987 = vmatprep.subr.mxu0 %v3986
        %v3988 = vand.u32 %v3849, 4294901760
        %3989 = vmatpush1.msra.mxu0 %v3988
        %v3990 = vand.u32 %v3852, 4294901760
        %3991 = vmatprep.subr.mxu0 %v3990
        %v3992 = vand.u32 %v3851, 4294901760
        %3993 = vmatpush1.msra.mxu0 %v3992
        %v3994 = vand.u32 %v3854, 4294901760
        %3995 = vmatprep.subr.mxu0 %v3994
        %v3996 = vand.u32 %v3853, 4294901760
        %3997 = vmatpush1.msra.mxu0 %v3996
        %v3998 = vand.u32 %v3856, 4294901760
        %3999 = vmatprep.subr.mxu0 %v3998
        %v4000 = vand.u32 %v3855, 4294901760
        %4001 = vmatpush1.msra.mxu0 %v4000
        %4002 = vmatprep.subr.mxu0 0.0
        %4003 = vmatpush1.msra.mxu0 0.0
        %4004 = vmatprep.subr.mxu0 0.0
        %4005 = vmatpush1.msra.mxu0 0.0
        %4006 = vmatprep.subr.mxu0 0.0
        %4007 = vmatpush1.msra.mxu0 0.0
        %4008 = vmatprep.subr.mxu0 0.0
        %4009 = vmatpush1.msra.mxu0 0.0
        %4010 = vmatprep.subr.mxu0 0.0
        %4011 = vmatpush1.msra.mxu0 0.0
        %4012 = vmatprep.subr.mxu0 0.0
        %4013 = vmatpush1.msra.mxu0 0.0
        %4014 = vmatprep.subr.mxu0 0.0
        %4015 = vmatpush1.msra.mxu0 0.0
        %4016 = vmatprep.subr.mxu0 0.0
        %4017 = vmatpush1.msra.mxu0 0.0
        %4018 = vmatprep.subr.mxu0 0.0
        %4019 = vmatpush1.msra.mxu0 0.0
        %4020 = vmatprep.subr.mxu0 0.0
        %4021 = vmatpush1.msra.mxu0 0.0
        %4022 = vmatprep.subr.mxu0 0.0
        %4023 = vmatpush1.msra.mxu0 0.0
        %4024 = vmatprep.subr.mxu0 0.0
        %4025 = vmatpush1.msra.mxu0 0.0
        %4026 = vmatprep.subr.mxu0 0.0
        %4027 = vmatpush1.msra.mxu0 0.0
        %4028 = vmatprep.subr.mxu0 0.0
        %4029 = vmatpush1.msra.mxu0 0.0
        %4030 = vmatprep.subr.mxu0 0.0
        %4031 = vmatpush1.msra.mxu0 0.0
        %4032 = vmatprep.subr.mxu0 0.0
        %4033 = vmatpush1.msra.mxu0 0.0
        %4034 = vmatprep.mubr.f32.mxu0 0.0
        %v4035 = vand.u32 %v3858, 4294901760
        %v4036 = vsub.f32 %v3858, %v4035
        %v4037 = vand.u32 %v4036, 4294901760
        %v4038 = vsub.f32 %v4036, %v4037
        %v4039 = vand.u32 %v4038, 4294901760
        %4040 = vmatmul.mubr.f32.gmra.mrb[0].mxu0 %v4039
        %v4041 = vpop.f32.mrb[0].mxu0
        %v4042 = vadd.f32 %v3876, %v4041
        %v4043 = vpop.f32.mrb[0].mxu0
        %v4044 = vadd.f32 %v3876, %v4043
        %4045 = vmatprep.mubr.f32.mxu0 0.0
        %v4046 = vand.u32 %v3859, 4294901760
        %v4047 = vsub.f32 %v3859, %v4046
        %v4048 = vand.u32 %v4047, 4294901760
        %v4049 = vsub.f32 %v4047, %v4048
        %v4050 = vand.u32 %v4049, 4294901760
        %4051 = vmatmul.mubr.f32.gmra.mrb[0].mxu0 %v4050
        %v4052 = vpop.f32.mrb[0].mxu0
        %v4053 = vadd.f32 %v3880, %v4052
        %v4054 = vpop.f32.mrb[0].mxu0
        %v4055 = vadd.f32 %v3880, %v4054
        %4056 = vmatprep.mubr.f32.mxu0 0.0
        %v4057 = vand.u32 %v3860, 4294901760
        %v4058 = vsub.f32 %v3860, %v4057
        %v4059 = vand.u32 %v4058, 4294901760
        %v4060 = vsub.f32 %v4058, %v4059
        %v4061 = vand.u32 %v4060, 4294901760
        %4062 = vmatmul.mubr.f32.gmra.mrb[0].mxu0 %v4061
        %v4063 = vpop.f32.mrb[0].mxu0
        %v4064 = vadd.f32 %v3884, %v4063
        %v4065 = vpop.f32.mrb[0].mxu0
        %v4066 = vadd.f32 %v3884, %v4065
        %4067 = vmatprep.mubr.f32.mxu0 0.0
        %v4068 = vand.u32 %v3861, 4294901760
        %v4069 = vsub.f32 %v3861, %v4068
        %v4070 = vand.u32 %v4069, 4294901760
        %v4071 = vsub.f32 %v4069, %v4070
        %v4072 = vand.u32 %v4071, 4294901760
        %4073 = vmatmul.mubr.f32.gmra.mrb[0].mxu0 %v4072
        %v4074 = vpop.f32.mrb[0].mxu0
        %v4075 = vadd.f32 %v3888, %v4074
        %v4076 = vpop.f32.mrb[0].mxu0
        %v4077 = vadd.f32 %v3888, %v4076
        %4078 = vmatprep.mubr.f32.mxu0 0.0
        %v4079 = vand.u32 %v3862, 4294901760
        %v4080 = vsub.f32 %v3862, %v4079
        %v4081 = vand.u32 %v4080, 4294901760
        %v4082 = vsub.f32 %v4080, %v4081
        %v4083 = vand.u32 %v4082, 4294901760
        %4084 = vmatmul.mubr.f32.gmra.mrb[0].mxu0 %v4083
        %v4085 = vpop.f32.mrb[0].mxu0
        %v4086 = vadd.f32 %v3892, %v4085
        %v4087 = vpop.f32.mrb[0].mxu0
        %v4088 = vadd.f32 %v3892, %v4087
        %4089 = vmatprep.mubr.f32.mxu0 0.0
        %v4090 = vand.u32 %v3863, 4294901760
        %v4091 = vsub.f32 %v3863, %v4090
        %v4092 = vand.u32 %v4091, 4294901760
        %v4093 = vsub.f32 %v4091, %v4092
        %v4094 = vand.u32 %v4093, 4294901760
        %4095 = vmatmul.mubr.f32.gmra.mrb[0].mxu0 %v4094
        %v4096 = vpop.f32.mrb[0].mxu0
        %v4097 = vadd.f32 %v3896, %v4096
        %v4098 = vpop.f32.mrb[0].mxu0
        %v4099 = vadd.f32 %v3896, %v4098
        %4100 = vmatprep.mubr.f32.mxu0 0.0
        %v4101 = vand.u32 %v3864, 4294901760
        %v4102 = vsub.f32 %v3864, %v4101
        %v4103 = vand.u32 %v4102, 4294901760
        %v4104 = vsub.f32 %v4102, %v4103
        %v4105 = vand.u32 %v4104, 4294901760
        %4106 = vmatmul.mubr.f32.gmra.mrb[0].mxu0 %v4105
        %v4107 = vpop.f32.mrb[0].mxu0
        %v4108 = vadd.f32 %v3900, %v4107
        %v4109 = vpop.f32.mrb[0].mxu0
        %v4110 = vadd.f32 %v3900, %v4109
        %4111 = vmatprep.mubr.f32.mxu0 0.0
        %v4112 = vand.u32 %v3865, 4294901760
        %v4113 = vsub.f32 %v3865, %v4112
        %v4114 = vand.u32 %v4113, 4294901760
        %v4115 = vsub.f32 %v4113, %v4114
        %v4116 = vand.u32 %v4115, 4294901760
        %4117 = vmatmul.mubr.f32.gmra.mrb[0].mxu0 %v4116
        %v4118 = vpop.f32.mrb[0].mxu0
        %v4119 = vadd.f32 %v3904, %v4118
        %v4120 = vpop.f32.mrb[0].mxu0
        %v4121 = vadd.f32 %v3904, %v4120
        %4122 = vmatprep.mubr.f32.mxu0 0.0
        %v4123 = vand.u32 %v3866, 4294901760
        %v4124 = vsub.f32 %v3866, %v4123
        %v4125 = vand.u32 %v4124, 4294901760
        %v4126 = vsub.f32 %v4124, %v4125
        %v4127 = vand.u32 %v4126, 4294901760
        %4128 = vmatmul.mubr.f32.gmra.mrb[0].mxu0 %v4127
        %v4129 = vpop.f32.mrb[0].mxu0
        %v4130 = vadd.f32 %v3908, %v4129
        %v4131 = vpop.f32.mrb[0].mxu0
        %v4132 = vadd.f32 %v3908, %v4131
        %4133 = vmatprep.mubr.f32.mxu0 0.0
        %v4134 = vand.u32 %v3867, 4294901760
        %v4135 = vsub.f32 %v3867, %v4134
        %v4136 = vand.u32 %v4135, 4294901760
        %v4137 = vsub.f32 %v4135, %v4136
        %v4138 = vand.u32 %v4137, 4294901760
        %4139 = vmatmul.mubr.f32.gmra.mrb[0].mxu0 %v4138
        %v4140 = vpop.f32.mrb[0].mxu0
        %v4141 = vadd.f32 %v3912, %v4140
        %v4142 = vpop.f32.mrb[0].mxu0
        %v4143 = vadd.f32 %v3912, %v4142
        %4144 = vmatprep.mubr.f32.mxu0 0.0
        %v4145 = vand.u32 %v3868, 4294901760
        %v4146 = vsub.f32 %v3868, %v4145
        %v4147 = vand.u32 %v4146, 4294901760
        %v4148 = vsub.f32 %v4146, %v4147
        %v4149 = vand.u32 %v4148, 4294901760
        %4150 = vmatmul.mubr.f32.gmra.mrb[0].mxu0 %v4149
        %v4151 = vpop.f32.mrb[0].mxu0
        %v4152 = vadd.f32 %v3916, %v4151
        %v4153 = vpop.f32.mrb[0].mxu0
        %v4154 = vadd.f32 %v3916, %v4153
        %4155 = vmatprep.mubr.f32.mxu0 0.0
        %v4156 = vand.u32 %v3869, 4294901760
        %v4157 = vsub.f32 %v3869, %v4156
        %v4158 = vand.u32 %v4157, 4294901760
        %v4159 = vsub.f32 %v4157, %v4158
        %v4160 = vand.u32 %v4159, 4294901760
        %4161 = vmatmul.mubr.f32.gmra.mrb[0].mxu0 %v4160
        %v4162 = vpop.f32.mrb[0].mxu0
        %v4163 = vadd.f32 %v3920, %v4162
        %v4164 = vpop.f32.mrb[0].mxu0
        %v4165 = vadd.f32 %v3920, %v4164
        %4166 = vmatprep.mubr.f32.mxu0 0.0
        %v4167 = vand.u32 %v3870, 4294901760
        %v4168 = vsub.f32 %v3870, %v4167
        %v4169 = vand.u32 %v4168, 4294901760
        %v4170 = vsub.f32 %v4168, %v4169
        %v4171 = vand.u32 %v4170, 4294901760
        %4172 = vmatmul.mubr.f32.gmra.mrb[0].mxu0 %v4171
        %v4173 = vpop.f32.mrb[0].mxu0
        %v4174 = vadd.f32 %v3924, %v4173
        %v4175 = vpop.f32.mrb[0].mxu0
        %v4176 = vadd.f32 %v3924, %v4175
        %4177 = vmatprep.mubr.f32.mxu0 0.0
        %v4178 = vand.u32 %v3871, 4294901760
        %v4179 = vsub.f32 %v3871, %v4178
        %v4180 = vand.u32 %v4179, 4294901760
        %v4181 = vsub.f32 %v4179, %v4180
        %v4182 = vand.u32 %v4181, 4294901760
        %4183 = vmatmul.mubr.f32.gmra.mrb[0].mxu0 %v4182
        %v4184 = vpop.f32.mrb[0].mxu0
        %v4185 = vadd.f32 %v3928, %v4184
        %v4186 = vpop.f32.mrb[0].mxu0
        %v4187 = vadd.f32 %v3928, %v4186
        %4188 = vmatprep.mubr.f32.mxu0 0.0
        %v4189 = vand.u32 %v3872, 4294901760
        %v4190 = vsub.f32 %v3872, %v4189
        %v4191 = vand.u32 %v4190, 4294901760
        %v4192 = vsub.f32 %v4190, %v4191
        %v4193 = vand.u32 %v4192, 4294901760
        %4194 = vmatmul.mubr.f32.gmra.mrb[0].mxu0 %v4193
        %v4195 = vpop.f32.mrb[0].mxu0
        %v4196 = vadd.f32 %v3932, %v4195
        %v4197 = vpop.f32.mrb[0].mxu0
        %v4198 = vadd.f32 %v3932, %v4197
        %4199 = vmatprep.mubr.f32.mxu0 0.0
        %v4200 = vand.u32 %v3873, 4294901760
        %v4201 = vsub.f32 %v3873, %v4200
        %v4202 = vand.u32 %v4201, 4294901760
        %v4203 = vsub.f32 %v4201, %v4202
        %v4204 = vand.u32 %v4203, 4294901760
        %4205 = vmatmul.mubr.f32.gmra.mrb[0].mxu0 %v4204
        %v4206 = vpop.f32.mrb[0].mxu0
        %v4207 = vadd.f32 %v3936, %v4206
        %v4208 = vpop.f32.mrb[0].mxu0
        %v4209 = vadd.f32 %v3936, %v4208
        %4210 = vdwg.mxu0
        %v4211 = vand.u32 %v3826, 4294901760
        %v4212 = vsub.f32 %v3826, %v4211
        %v4213 = vand.u32 %v4212, 4294901760
        %v4214 = vsub.f32 %v4212, %v4213
        %v4215 = vand.u32 %v4214, 4294901760
        %4216 = vmatprep.subr.mxu0 %v4215
        %v4217 = vand.u32 %v3825, 4294901760
        %v4218 = vsub.f32 %v3825, %v4217
        %v4219 = vand.u32 %v4218, 4294901760
        %v4220 = vsub.f32 %v4218, %v4219
        %v4221 = vand.u32 %v4220, 4294901760
        %4222 = vmatpush1.msra.mxu0 %v4221
        %v4223 = vand.u32 %v3828, 4294901760
        %v4224 = vsub.f32 %v3828, %v4223
        %v4225 = vand.u32 %v4224, 4294901760
        %v4226 = vsub.f32 %v4224, %v4225
        %v4227 = vand.u32 %v4226, 4294901760
        %4228 = vmatprep.subr.mxu0 %v4227
        %v4229 = vand.u32 %v3827, 4294901760
        %v4230 = vsub.f32 %v3827, %v4229
        %v4231 = vand.u32 %v4230, 4294901760
        %v4232 = vsub.f32 %v4230, %v4231
        %v4233 = vand.u32 %v4232, 4294901760
        %4234 = vmatpush1.msra.mxu0 %v4233
        %v4235 = vand.u32 %v3830, 4294901760
        %v4236 = vsub.f32 %v3830, %v4235
        %v4237 = vand.u32 %v4236, 4294901760
        %v4238 = vsub.f32 %v4236, %v4237
        %v4239 = vand.u32 %v4238, 4294901760
        %4240 = vmatprep.subr.mxu0 %v4239
        %v4241 = vand.u32 %v3829, 4294901760
        %v4242 = vsub.f32 %v3829, %v4241
        %v4243 = vand.u32 %v4242, 4294901760
        %v4244 = vsub.f32 %v4242, %v4243
        %v4245 = vand.u32 %v4244, 4294901760
        %4246 = vmatpush1.msra.mxu0 %v4245
        %v4247 = vand.u32 %v3832, 4294901760
        %v4248 = vsub.f32 %v3832, %v4247
        %v4249 = vand.u32 %v4248, 4294901760
        %v4250 = vsub.f32 %v4248, %v4249
        %v4251 = vand.u32 %v4250, 4294901760
        %4252 = vmatprep.subr.mxu0 %v4251
        %v4253 = vand.u32 %v3831, 4294901760
        %v4254 = vsub.f32 %v3831, %v4253
        %v4255 = vand.u32 %v4254, 4294901760
        %v4256 = vsub.f32 %v4254, %v4255
        %v4257 = vand.u32 %v4256, 4294901760
        %4258 = vmatpush1.msra.mxu0 %v4257
        %v4259 = vand.u32 %v3834, 4294901760
        %v4260 = vsub.f32 %v3834, %v4259
        %v4261 = vand.u32 %v4260, 4294901760
        %v4262 = vsub.f32 %v4260, %v4261
        %v4263 = vand.u32 %v4262, 4294901760
        %4264 = vmatprep.subr.mxu0 %v4263
        %v4265 = vand.u32 %v3833, 4294901760
        %v4266 = vsub.f32 %v3833, %v4265
        %v4267 = vand.u32 %v4266, 4294901760
        %v4268 = vsub.f32 %v4266, %v4267
        %v4269 = vand.u32 %v4268, 4294901760
        %4270 = vmatpush1.msra.mxu0 %v4269
        %v4271 = vand.u32 %v3836, 4294901760
        %v4272 = vsub.f32 %v3836, %v4271
        %v4273 = vand.u32 %v4272, 4294901760
        %v4274 = vsub.f32 %v4272, %v4273
        %v4275 = vand.u32 %v4274, 4294901760
        %4276 = vmatprep.subr.mxu0 %v4275
        %v4277 = vand.u32 %v3835, 4294901760
        %v4278 = vsub.f32 %v3835, %v4277
        %v4279 = vand.u32 %v4278, 4294901760
        %v4280 = vsub.f32 %v4278, %v4279
        %v4281 = vand.u32 %v4280, 4294901760
        %4282 = vmatpush1.msra.mxu0 %v4281
        %v4283 = vand.u32 %v3838, 4294901760
        %v4284 = vsub.f32 %v3838, %v4283
        %v4285 = vand.u32 %v4284, 4294901760
        %v4286 = vsub.f32 %v4284, %v4285
        %v4287 = vand.u32 %v4286, 4294901760
        %4288 = vmatprep.subr.mxu0 %v4287
        %v4289 = vand.u32 %v3837, 4294901760
        %v4290 = vsub.f32 %v3837, %v4289
        %v4291 = vand.u32 %v4290, 4294901760
        %v4292 = vsub.f32 %v4290, %v4291
        %v4293 = vand.u32 %v4292, 4294901760
        %4294 = vmatpush1.msra.mxu0 %v4293
        %v4295 = vand.u32 %v3840, 4294901760
        %v4296 = vsub.f32 %v3840, %v4295
        %v4297 = vand.u32 %v4296, 4294901760
        %v4298 = vsub.f32 %v4296, %v4297
        %v4299 = vand.u32 %v4298, 4294901760
        %4300 = vmatprep.subr.mxu0 %v4299
        %v4301 = vand.u32 %v3839, 4294901760
        %v4302 = vsub.f32 %v3839, %v4301
        %v4303 = vand.u32 %v4302, 4294901760
        %v4304 = vsub.f32 %v4302, %v4303
        %v4305 = vand.u32 %v4304, 4294901760
        %4306 = vmatpush1.msra.mxu0 %v4305
        %v4307 = vand.u32 %v3842, 4294901760
        %v4308 = vsub.f32 %v3842, %v4307
        %v4309 = vand.u32 %v4308, 4294901760
        %v4310 = vsub.f32 %v4308, %v4309
        %v4311 = vand.u32 %v4310, 4294901760
        %4312 = vmatprep.subr.mxu0 %v4311
        %v4313 = vand.u32 %v3841, 4294901760
        %v4314 = vsub.f32 %v3841, %v4313
        %v4315 = vand.u32 %v4314, 4294901760
        %v4316 = vsub.f32 %v4314, %v4315
        %v4317 = vand.u32 %v4316, 4294901760
        %4318 = vmatpush1.msra.mxu0 %v4317
        %v4319 = vand.u32 %v3844, 4294901760
        %v4320 = vsub.f32 %v3844, %v4319
        %v4321 = vand.u32 %v4320, 4294901760
        %v4322 = vsub.f32 %v4320, %v4321
        %v4323 = vand.u32 %v4322, 4294901760
        %4324 = vmatprep.subr.mxu0 %v4323
        %v4325 = vand.u32 %v3843, 4294901760
        %v4326 = vsub.f32 %v3843, %v4325
        %v4327 = vand.u32 %v4326, 4294901760
        %v4328 = vsub.f32 %v4326, %v4327
        %v4329 = vand.u32 %v4328, 4294901760
        %4330 = vmatpush1.msra.mxu0 %v4329
        %v4331 = vand.u32 %v3846, 4294901760
        %v4332 = vsub.f32 %v3846, %v4331
        %v4333 = vand.u32 %v4332, 4294901760
        %v4334 = vsub.f32 %v4332, %v4333
        %v4335 = vand.u32 %v4334, 4294901760
        %4336 = vmatprep.subr.mxu0 %v4335
        %v4337 = vand.u32 %v3845, 4294901760
        %v4338 = vsub.f32 %v3845, %v4337
        %v4339 = vand.u32 %v4338, 4294901760
        %v4340 = vsub.f32 %v4338, %v4339
        %v4341 = vand.u32 %v4340, 4294901760
        %4342 = vmatpush1.msra.mxu0 %v4341
        %v4343 = vand.u32 %v3848, 4294901760
        %v4344 = vsub.f32 %v3848, %v4343
        %v4345 = vand.u32 %v4344, 4294901760
        %v4346 = vsub.f32 %v4344, %v4345
        %v4347 = vand.u32 %v4346, 4294901760
        %4348 = vmatprep.subr.mxu0 %v4347
        %v4349 = vand.u32 %v3847, 4294901760
        %v4350 = vsub.f32 %v3847, %v4349
        %v4351 = vand.u32 %v4350, 4294901760
        %v4352 = vsub.f32 %v4350, %v4351
        %v4353 = vand.u32 %v4352, 4294901760
        %4354 = vmatpush1.msra.mxu0 %v4353
        %v4355 = vand.u32 %v3850, 4294901760
        %v4356 = vsub.f32 %v3850, %v4355
        %v4357 = vand.u32 %v4356, 4294901760
        %v4358 = vsub.f32 %v4356, %v4357
        %v4359 = vand.u32 %v4358, 4294901760
        %4360 = vmatprep.subr.mxu0 %v4359
        %v4361 = vand.u32 %v3849, 4294901760
        %v4362 = vsub.f32 %v3849, %v4361
        %v4363 = vand.u32 %v4362, 4294901760
        %v4364 = vsub.f32 %v4362, %v4363
        %v4365 = vand.u32 %v4364, 4294901760
        %4366 = vmatpush1.msra.mxu0 %v4365
        %v4367 = vand.u32 %v3852, 4294901760
        %v4368 = vsub.f32 %v3852, %v4367
        %v4369 = vand.u32 %v4368, 4294901760
        %v4370 = vsub.f32 %v4368, %v4369
        %v4371 = vand.u32 %v4370, 4294901760
        %4372 = vmatprep.subr.mxu0 %v4371
        %v4373 = vand.u32 %v3851, 4294901760
        %v4374 = vsub.f32 %v3851, %v4373
        %v4375 = vand.u32 %v4374, 4294901760
        %v4376 = vsub.f32 %v4374, %v4375
        %v4377 = vand.u32 %v4376, 4294901760
        %4378 = vmatpush1.msra.mxu0 %v4377
        %v4379 = vand.u32 %v3854, 4294901760
        %v4380 = vsub.f32 %v3854, %v4379
        %v4381 = vand.u32 %v4380, 4294901760
        %v4382 = vsub.f32 %v4380, %v4381
        %v4383 = vand.u32 %v4382, 4294901760
        %4384 = vmatprep.subr.mxu0 %v4383
        %v4385 = vand.u32 %v3853, 4294901760
        %v4386 = vsub.f32 %v3853, %v4385
        %v4387 = vand.u32 %v4386, 4294901760
        %v4388 = vsub.f32 %v4386, %v4387
        %v4389 = vand.u32 %v4388, 4294901760
        %4390 = vmatpush1.msra.mxu0 %v4389
        %v4391 = vand.u32 %v3856, 4294901760
        %v4392 = vsub.f32 %v3856, %v4391
        %v4393 = vand.u32 %v4392, 4294901760
        %v4394 = vsub.f32 %v4392, %v4393
        %v4395 = vand.u32 %v4394, 4294901760
        %4396 = vmatprep.subr.mxu0 %v4395
        %v4397 = vand.u32 %v3855, 4294901760
        %v4398 = vsub.f32 %v3855, %v4397
        %v4399 = vand.u32 %v4398, 4294901760
        %v4400 = vsub.f32 %v4398, %v4399
        %v4401 = vand.u32 %v4400, 4294901760
        %4402 = vmatpush1.msra.mxu0 %v4401
        %4403 = vmatprep.subr.mxu0 0.0
        %4404 = vmatpush1.msra.mxu0 0.0
        %4405 = vmatprep.subr.mxu0 0.0
        %4406 = vmatpush1.msra.mxu0 0.0
        %4407 = vmatprep.subr.mxu0 0.0
        %4408 = vmatpush1.msra.mxu0 0.0
        %4409 = vmatprep.subr.mxu0 0.0
        %4410 = vmatpush1.msra.mxu0 0.0
        %4411 = vmatprep.subr.mxu0 0.0
        %4412 = vmatpush1.msra.mxu0 0.0
        %4413 = vmatprep.subr.mxu0 0.0
        %4414 = vmatpush1.msra.mxu0 0.0
        %4415 = vmatprep.subr.mxu0 0.0
        %4416 = vmatpush1.msra.mxu0 0.0
        %4417 = vmatprep.subr.mxu0 0.0
        %4418 = vmatpush1.msra.mxu0 0.0
        %4419 = vmatprep.subr.mxu0 0.0
        %4420 = vmatpush1.msra.mxu0 0.0
        %4421 = vmatprep.subr.mxu0 0.0
        %4422 = vmatpush1.msra.mxu0 0.0
        %4423 = vmatprep.subr.mxu0 0.0
        %4424 = vmatpush1.msra.mxu0 0.0
        %4425 = vmatprep.subr.mxu0 0.0
        %4426 = vmatpush1.msra.mxu0 0.0
        %4427 = vmatprep.subr.mxu0 0.0
        %4428 = vmatpush1.msra.mxu0 0.0
        %4429 = vmatprep.subr.mxu0 0.0
        %4430 = vmatpush1.msra.mxu0 0.0
        %4431 = vmatprep.subr.mxu0 0.0
        %4432 = vmatpush1.msra.mxu0 0.0
        %4433 = vmatprep.subr.mxu0 0.0
        %4434 = vmatpush1.msra.mxu0 0.0
        %4435 = vmatprep.mubr.f32.mxu0 0.0
        %v4436 = vand.u32 %v3858, 4294901760
        %4437 = vmatmul.mubr.f32.gmra.mrb[0].mxu0 %v4436
        %v4438 = vpop.f32.mrb[0].mxu0
        %v4439 = vadd.f32 %v4042, %v4438
        %v4440 = vpop.f32.mrb[0].mxu0
        %v4441 = vadd.f32 %v4044, %v4440
        %4442 = vmatprep.mubr.f32.mxu0 0.0
        %v4443 = vand.u32 %v3859, 4294901760
        %4444 = vmatmul.mubr.f32.gmra.mrb[0].mxu0 %v4443
        %v4445 = vpop.f32.mrb[0].mxu0
        %v4446 = vadd.f32 %v4053, %v4445
        %v4447 = vpop.f32.mrb[0].mxu0
        %v4448 = vadd.f32 %v4055, %v4447
        %4449 = vmatprep.mubr.f32.mxu0 0.0
        %v4450 = vand.u32 %v3860, 4294901760
        %4451 = vmatmul.mubr.f32.gmra.mrb[0].mxu0 %v4450
        %v4452 = vpop.f32.mrb[0].mxu0
        %v4453 = vadd.f32 %v4064, %v4452
        %v4454 = vpop.f32.mrb[0].mxu0
        %v4455 = vadd.f32 %v4066, %v4454
        %4456 = vmatprep.mubr.f32.mxu0 0.0
        %v4457 = vand.u32 %v3861, 4294901760
        %4458 = vmatmul.mubr.f32.gmra.mrb[0].mxu0 %v4457
        %v4459 = vpop.f32.mrb[0].mxu0
        %v4460 = vadd.f32 %v4075, %v4459
        %v4461 = vpop.f32.mrb[0].mxu0
        %v4462 = vadd.f32 %v4077, %v4461
        %4463 = vmatprep.mubr.f32.mxu0 0.0
        %v4464 = vand.u32 %v3862, 4294901760
        %4465 = vmatmul.mubr.f32.gmra.mrb[0].mxu0 %v4464
        %v4466 = vpop.f32.mrb[0].mxu0
        %v4467 = vadd.f32 %v4086, %v4466
        %v4468 = vpop.f32.mrb[0].mxu0
        %v4469 = vadd.f32 %v4088, %v4468
        %4470 = vmatprep.mubr.f32.mxu0 0.0
        %v4471 = vand.u32 %v3863, 4294901760
        %4472 = vmatmul.mubr.f32.gmra.mrb[0].mxu0 %v4471
        %v4473 = vpop.f32.mrb[0].mxu0
        %v4474 = vadd.f32 %v4097, %v4473
        %v4475 = vpop.f32.mrb[0].mxu0
        %v4476 = vadd.f32 %v4099, %v4475
        %4477 = vmatprep.mubr.f32.mxu0 0.0
        %v4478 = vand.u32 %v3864, 4294901760
        %4479 = vmatmul.mubr.f32.gmra.mrb[0].mxu0 %v4478
        %v4480 = vpop.f32.mrb[0].mxu0
        %v4481 = vadd.f32 %v4108, %v4480
        %v4482 = vpop.f32.mrb[0].mxu0
        %v4483 = vadd.f32 %v4110, %v4482
        %4484 = vmatprep.mubr.f32.mxu0 0.0
        %v4485 = vand.u32 %v3865, 4294901760
        %4486 = vmatmul.mubr.f32.gmra.mrb[0].mxu0 %v4485
        %v4487 = vpop.f32.mrb[0].mxu0
        %v4488 = vadd.f32 %v4119, %v4487
        %v4489 = vpop.f32.mrb[0].mxu0
        %v4490 = vadd.f32 %v4121, %v4489
        %4491 = vmatprep.mubr.f32.mxu0 0.0
        %v4492 = vand.u32 %v3866, 4294901760
        %4493 = vmatmul.mubr.f32.gmra.mrb[0].mxu0 %v4492
        %v4494 = vpop.f32.mrb[0].mxu0
        %v4495 = vadd.f32 %v4130, %v4494
        %v4496 = vpop.f32.mrb[0].mxu0
        %v4497 = vadd.f32 %v4132, %v4496
        %4498 = vmatprep.mubr.f32.mxu0 0.0
        %v4499 = vand.u32 %v3867, 4294901760
        %4500 = vmatmul.mubr.f32.gmra.mrb[0].mxu0 %v4499
        %v4501 = vpop.f32.mrb[0].mxu0
        %v4502 = vadd.f32 %v4141, %v4501
        %v4503 = vpop.f32.mrb[0].mxu0
        %v4504 = vadd.f32 %v4143, %v4503
        %4505 = vmatprep.mubr.f32.mxu0 0.0
        %v4506 = vand.u32 %v3868, 4294901760
        %4507 = vmatmul.mubr.f32.gmra.mrb[0].mxu0 %v4506
        %v4508 = vpop.f32.mrb[0].mxu0
        %v4509 = vadd.f32 %v4152, %v4508
        %v4510 = vpop.f32.mrb[0].mxu0
        %v4511 = vadd.f32 %v4154, %v4510
        %4512 = vmatprep.mubr.f32.mxu0 0.0
        %v4513 = vand.u32 %v3869, 4294901760
        %4514 = vmatmul.mubr.f32.gmra.mrb[0].mxu0 %v4513
        %v4515 = vpop.f32.mrb[0].mxu0
        %v4516 = vadd.f32 %v4163, %v4515
        %v4517 = vpop.f32.mrb[0].mxu0
        %v4518 = vadd.f32 %v4165, %v4517
        %4519 = vmatprep.mubr.f32.mxu0 0.0
        %v4520 = vand.u32 %v3870, 4294901760
        %4521 = vmatmul.mubr.f32.gmra.mrb[0].mxu0 %v4520
        %v4522 = vpop.f32.mrb[0].mxu0
        %v4523 = vadd.f32 %v4174, %v4522
        %v4524 = vpop.f32.mrb[0].mxu0
        %v4525 = vadd.f32 %v4176, %v4524
        %4526 = vmatprep.mubr.f32.mxu0 0.0
        %v4527 = vand.u32 %v3871, 4294901760
        %4528 = vmatmul.mubr.f32.gmra.mrb[0].mxu0 %v4527
        %v4529 = vpop.f32.mrb[0].mxu0
        %v4530 = vadd.f32 %v4185, %v4529
        %v4531 = vpop.f32.mrb[0].mxu0
        %v4532 = vadd.f32 %v4187, %v4531
        %4533 = vmatprep.mubr.f32.mxu0 0.0
        %v4534 = vand.u32 %v3872, 4294901760
        %4535 = vmatmul.mubr.f32.gmra.mrb[0].mxu0 %v4534
        %v4536 = vpop.f32.mrb[0].mxu0
        %v4537 = vadd.f32 %v4196, %v4536
        %v4538 = vpop.f32.mrb[0].mxu0
        %v4539 = vadd.f32 %v4198, %v4538
        %4540 = vmatprep.mubr.f32.mxu0 0.0
        %v4541 = vand.u32 %v3873, 4294901760
        %4542 = vmatmul.mubr.f32.gmra.mrb[0].mxu0 %v4541
        %v4543 = vpop.f32.mrb[0].mxu0
        %v4544 = vadd.f32 %v4207, %v4543
        %v4545 = vpop.f32.mrb[0].mxu0
        %v4546 = vadd.f32 %v4209, %v4545
        %4547 = vdwg.mxu0
        %v4548 = vand.u32 %v3826, 4294901760
        %v4549 = vsub.f32 %v3826, %v4548
        %4550 = vmatprep.subr.mxu0 %v4549
        %v4551 = vand.u32 %v3825, 4294901760
        %v4552 = vsub.f32 %v3825, %v4551
        %4553 = vmatpush1.msra.mxu0 %v4552
        %v4554 = vand.u32 %v3828, 4294901760
        %v4555 = vsub.f32 %v3828, %v4554
        %4556 = vmatprep.subr.mxu0 %v4555
        %v4557 = vand.u32 %v3827, 4294901760
        %v4558 = vsub.f32 %v3827, %v4557
        %4559 = vmatpush1.msra.mxu0 %v4558
        %v4560 = vand.u32 %v3830, 4294901760
        %v4561 = vsub.f32 %v3830, %v4560
        %4562 = vmatprep.subr.mxu0 %v4561
        %v4563 = vand.u32 %v3829, 4294901760
        %v4564 = vsub.f32 %v3829, %v4563
        %4565 = vmatpush1.msra.mxu0 %v4564
        %v4566 = vand.u32 %v3832, 4294901760
        %v4567 = vsub.f32 %v3832, %v4566
        %4568 = vmatprep.subr.mxu0 %v4567
        %v4569 = vand.u32 %v3831, 4294901760
        %v4570 = vsub.f32 %v3831, %v4569
        %4571 = vmatpush1.msra.mxu0 %v4570
        %v4572 = vand.u32 %v3834, 4294901760
        %v4573 = vsub.f32 %v3834, %v4572
        %4574 = vmatprep.subr.mxu0 %v4573
        %v4575 = vand.u32 %v3833, 4294901760
        %v4576 = vsub.f32 %v3833, %v4575
        %4577 = vmatpush1.msra.mxu0 %v4576
        %v4578 = vand.u32 %v3836, 4294901760
        %v4579 = vsub.f32 %v3836, %v4578
        %4580 = vmatprep.subr.mxu0 %v4579
        %v4581 = vand.u32 %v3835, 4294901760
        %v4582 = vsub.f32 %v3835, %v4581
        %4583 = vmatpush1.msra.mxu0 %v4582
        %v4584 = vand.u32 %v3838, 4294901760
        %v4585 = vsub.f32 %v3838, %v4584
        %4586 = vmatprep.subr.mxu0 %v4585
        %v4587 = vand.u32 %v3837, 4294901760
        %v4588 = vsub.f32 %v3837, %v4587
        %4589 = vmatpush1.msra.mxu0 %v4588
        %v4590 = vand.u32 %v3840, 4294901760
        %v4591 = vsub.f32 %v3840, %v4590
        %4592 = vmatprep.subr.mxu0 %v4591
        %v4593 = vand.u32 %v3839, 4294901760
        %v4594 = vsub.f32 %v3839, %v4593
        %4595 = vmatpush1.msra.mxu0 %v4594
        %v4596 = vand.u32 %v3842, 4294901760
        %v4597 = vsub.f32 %v3842, %v4596
        %4598 = vmatprep.subr.mxu0 %v4597
        %v4599 = vand.u32 %v3841, 4294901760
        %v4600 = vsub.f32 %v3841, %v4599
        %4601 = vmatpush1.msra.mxu0 %v4600
        %v4602 = vand.u32 %v3844, 4294901760
        %v4603 = vsub.f32 %v3844, %v4602
        %4604 = vmatprep.subr.mxu0 %v4603
        %v4605 = vand.u32 %v3843, 4294901760
        %v4606 = vsub.f32 %v3843, %v4605
        %4607 = vmatpush1.msra.mxu0 %v4606
        %v4608 = vand.u32 %v3846, 4294901760
        %v4609 = vsub.f32 %v3846, %v4608
        %4610 = vmatprep.subr.mxu0 %v4609
        %v4611 = vand.u32 %v3845, 4294901760
        %v4612 = vsub.f32 %v3845, %v4611
        %4613 = vmatpush1.msra.mxu0 %v4612
        %v4614 = vand.u32 %v3848, 4294901760
        %v4615 = vsub.f32 %v3848, %v4614
        %4616 = vmatprep.subr.mxu0 %v4615
        %v4617 = vand.u32 %v3847, 4294901760
        %v4618 = vsub.f32 %v3847, %v4617
        %4619 = vmatpush1.msra.mxu0 %v4618
        %v4620 = vand.u32 %v3850, 4294901760
        %v4621 = vsub.f32 %v3850, %v4620
        %4622 = vmatprep.subr.mxu0 %v4621
        %v4623 = vand.u32 %v3849, 4294901760
        %v4624 = vsub.f32 %v3849, %v4623
        %4625 = vmatpush1.msra.mxu0 %v4624
        %v4626 = vand.u32 %v3852, 4294901760
        %v4627 = vsub.f32 %v3852, %v4626
        %4628 = vmatprep.subr.mxu0 %v4627
        %v4629 = vand.u32 %v3851, 4294901760
        %v4630 = vsub.f32 %v3851, %v4629
        %4631 = vmatpush1.msra.mxu0 %v4630
        %v4632 = vand.u32 %v3854, 4294901760
        %v4633 = vsub.f32 %v3854, %v4632
        %4634 = vmatprep.subr.mxu0 %v4633
        %v4635 = vand.u32 %v3853, 4294901760
        %v4636 = vsub.f32 %v3853, %v4635
        %4637 = vmatpush1.msra.mxu0 %v4636
        %v4638 = vand.u32 %v3856, 4294901760
        %v4639 = vsub.f32 %v3856, %v4638
        %4640 = vmatprep.subr.mxu0 %v4639
        %v4641 = vand.u32 %v3855, 4294901760
        %v4642 = vsub.f32 %v3855, %v4641
        %4643 = vmatpush1.msra.mxu0 %v4642
        %4644 = vmatprep.subr.mxu0 0.0
        %4645 = vmatpush1.msra.mxu0 0.0
        %4646 = vmatprep.subr.mxu0 0.0
        %4647 = vmatpush1.msra.mxu0 0.0
        %4648 = vmatprep.subr.mxu0 0.0
        %4649 = vmatpush1.msra.mxu0 0.0
        %4650 = vmatprep.subr.mxu0 0.0
        %4651 = vmatpush1.msra.mxu0 0.0
        %4652 = vmatprep.subr.mxu0 0.0
        %4653 = vmatpush1.msra.mxu0 0.0
        %4654 = vmatprep.subr.mxu0 0.0
        %4655 = vmatpush1.msra.mxu0 0.0
        %4656 = vmatprep.subr.mxu0 0.0
        %4657 = vmatpush1.msra.mxu0 0.0
        %4658 = vmatprep.subr.mxu0 0.0
        %4659 = vmatpush1.msra.mxu0 0.0
        %4660 = vmatprep.subr.mxu0 0.0
        %4661 = vmatpush1.msra.mxu0 0.0
        %4662 = vmatprep.subr.mxu0 0.0
        %4663 = vmatpush1.msra.mxu0 0.0
        %4664 = vmatprep.subr.mxu0 0.0
        %4665 = vmatpush1.msra.mxu0 0.0
        %4666 = vmatprep.subr.mxu0 0.0
        %4667 = vmatpush1.msra.mxu0 0.0
        %4668 = vmatprep.subr.mxu0 0.0
        %4669 = vmatpush1.msra.mxu0 0.0
        %4670 = vmatprep.subr.mxu0 0.0
        %4671 = vmatpush1.msra.mxu0 0.0
        %4672 = vmatprep.subr.mxu0 0.0
        %4673 = vmatpush1.msra.mxu0 0.0
        %4674 = vmatprep.subr.mxu0 0.0
        %4675 = vmatpush1.msra.mxu0 0.0
        %4676 = vmatprep.mubr.f32.mxu0 0.0
        %v4677 = vand.u32 %v3858, 4294901760
        %v4678 = vsub.f32 %v3858, %v4677
        %4679 = vmatmul.mubr.f32.gmra.mrb[0].mxu0 %v4678
        %v4680 = vpop.f32.mrb[0].mxu0
        %v4681 = vadd.f32 %v4439, %v4680
        %v4682 = vpop.f32.mrb[0].mxu0
        %v4683 = vadd.f32 %v4441, %v4682
        %4684 = vmatprep.mubr.f32.mxu0 0.0
        %v4685 = vand.u32 %v3859, 4294901760
        %v4686 = vsub.f32 %v3859, %v4685
        %4687 = vmatmul.mubr.f32.gmra.mrb[0].mxu0 %v4686
        %v4688 = vpop.f32.mrb[0].mxu0
        %v4689 = vadd.f32 %v4446, %v4688
        %v4690 = vpop.f32.mrb[0].mxu0
        %v4691 = vadd.f32 %v4448, %v4690
        %4692 = vmatprep.mubr.f32.mxu0 0.0
        %v4693 = vand.u32 %v3860, 4294901760
        %v4694 = vsub.f32 %v3860, %v4693
        %4695 = vmatmul.mubr.f32.gmra.mrb[0].mxu0 %v4694
        %v4696 = vpop.f32.mrb[0].mxu0
        %v4697 = vadd.f32 %v4453, %v4696
        %v4698 = vpop.f32.mrb[0].mxu0
        %v4699 = vadd.f32 %v4455, %v4698
        %4700 = vmatprep.mubr.f32.mxu0 0.0
        %v4701 = vand.u32 %v3861, 4294901760
        %v4702 = vsub.f32 %v3861, %v4701
        %4703 = vmatmul.mubr.f32.gmra.mrb[0].mxu0 %v4702
        %v4704 = vpop.f32.mrb[0].mxu0
        %v4705 = vadd.f32 %v4460, %v4704
        %v4706 = vpop.f32.mrb[0].mxu0
        %v4707 = vadd.f32 %v4462, %v4706
        %4708 = vmatprep.mubr.f32.mxu0 0.0
        %v4709 = vand.u32 %v3862, 4294901760
        %v4710 = vsub.f32 %v3862, %v4709
        %4711 = vmatmul.mubr.f32.gmra.mrb[0].mxu0 %v4710
        %v4712 = vpop.f32.mrb[0].mxu0
        %v4713 = vadd.f32 %v4467, %v4712
        %v4714 = vpop.f32.mrb[0].mxu0
        %v4715 = vadd.f32 %v4469, %v4714
        %4716 = vmatprep.mubr.f32.mxu0 0.0
        %v4717 = vand.u32 %v3863, 4294901760
        %v4718 = vsub.f32 %v3863, %v4717
        %4719 = vmatmul.mubr.f32.gmra.mrb[0].mxu0 %v4718
        %v4720 = vpop.f32.mrb[0].mxu0
        %v4721 = vadd.f32 %v4474, %v4720
        %v4722 = vpop.f32.mrb[0].mxu0
        %v4723 = vadd.f32 %v4476, %v4722
        %4724 = vmatprep.mubr.f32.mxu0 0.0
        %v4725 = vand.u32 %v3864, 4294901760
        %v4726 = vsub.f32 %v3864, %v4725
        %4727 = vmatmul.mubr.f32.gmra.mrb[0].mxu0 %v4726
        %v4728 = vpop.f32.mrb[0].mxu0
        %v4729 = vadd.f32 %v4481, %v4728
        %v4730 = vpop.f32.mrb[0].mxu0
        %v4731 = vadd.f32 %v4483, %v4730
        %4732 = vmatprep.mubr.f32.mxu0 0.0
        %v4733 = vand.u32 %v3865, 4294901760
        %v4734 = vsub.f32 %v3865, %v4733
        %4735 = vmatmul.mubr.f32.gmra.mrb[0].mxu0 %v4734
        %v4736 = vpop.f32.mrb[0].mxu0
        %v4737 = vadd.f32 %v4488, %v4736
        %v4738 = vpop.f32.mrb[0].mxu0
        %v4739 = vadd.f32 %v4490, %v4738
        %4740 = vmatprep.mubr.f32.mxu0 0.0
        %v4741 = vand.u32 %v3866, 4294901760
        %v4742 = vsub.f32 %v3866, %v4741
        %4743 = vmatmul.mubr.f32.gmra.mrb[0].mxu0 %v4742
        %v4744 = vpop.f32.mrb[0].mxu0
        %v4745 = vadd.f32 %v4495, %v4744
        %v4746 = vpop.f32.mrb[0].mxu0
        %v4747 = vadd.f32 %v4497, %v4746
        %4748 = vmatprep.mubr.f32.mxu0 0.0
        %v4749 = vand.u32 %v3867, 4294901760
        %v4750 = vsub.f32 %v3867, %v4749
        %4751 = vmatmul.mubr.f32.gmra.mrb[0].mxu0 %v4750
        %v4752 = vpop.f32.mrb[0].mxu0
        %v4753 = vadd.f32 %v4502, %v4752
        %v4754 = vpop.f32.mrb[0].mxu0
        %v4755 = vadd.f32 %v4504, %v4754
        %4756 = vmatprep.mubr.f32.mxu0 0.0
        %v4757 = vand.u32 %v3868, 4294901760
        %v4758 = vsub.f32 %v3868, %v4757
        %4759 = vmatmul.mubr.f32.gmra.mrb[0].mxu0 %v4758
        %v4760 = vpop.f32.mrb[0].mxu0
        %v4761 = vadd.f32 %v4509, %v4760
        %v4762 = vpop.f32.mrb[0].mxu0
        %v4763 = vadd.f32 %v4511, %v4762
        %4764 = vmatprep.mubr.f32.mxu0 0.0
        %v4765 = vand.u32 %v3869, 4294901760
        %v4766 = vsub.f32 %v3869, %v4765
        %4767 = vmatmul.mubr.f32.gmra.mrb[0].mxu0 %v4766
        %v4768 = vpop.f32.mrb[0].mxu0
        %v4769 = vadd.f32 %v4516, %v4768
        %v4770 = vpop.f32.mrb[0].mxu0
        %v4771 = vadd.f32 %v4518, %v4770
        %4772 = vmatprep.mubr.f32.mxu0 0.0
        %v4773 = vand.u32 %v3870, 4294901760
        %v4774 = vsub.f32 %v3870, %v4773
        %4775 = vmatmul.mubr.f32.gmra.mrb[0].mxu0 %v4774
        %v4776 = vpop.f32.mrb[0].mxu0
        %v4777 = vadd.f32 %v4523, %v4776
        %v4778 = vpop.f32.mrb[0].mxu0
        %v4779 = vadd.f32 %v4525, %v4778
        %4780 = vmatprep.mubr.f32.mxu0 0.0
        %v4781 = vand.u32 %v3871, 4294901760
        %v4782 = vsub.f32 %v3871, %v4781
        %4783 = vmatmul.mubr.f32.gmra.mrb[0].mxu0 %v4782
        %v4784 = vpop.f32.mrb[0].mxu0
        %v4785 = vadd.f32 %v4530, %v4784
        %v4786 = vpop.f32.mrb[0].mxu0
        %v4787 = vadd.f32 %v4532, %v4786
        %4788 = vmatprep.mubr.f32.mxu0 0.0
        %v4789 = vand.u32 %v3872, 4294901760
        %v4790 = vsub.f32 %v3872, %v4789
        %4791 = vmatmul.mubr.f32.gmra.mrb[0].mxu0 %v4790
        %v4792 = vpop.f32.mrb[0].mxu0
        %v4793 = vadd.f32 %v4537, %v4792
        %v4794 = vpop.f32.mrb[0].mxu0
        %v4795 = vadd.f32 %v4539, %v4794
        %4796 = vmatprep.mubr.f32.mxu0 0.0
        %v4797 = vand.u32 %v3873, 4294901760
        %v4798 = vsub.f32 %v3873, %v4797
        %4799 = vmatmul.mubr.f32.gmra.mrb[0].mxu0 %v4798
        %v4800 = vpop.f32.mrb[0].mxu0
        %v4801 = vadd.f32 %v4544, %v4800
        %v4802 = vpop.f32.mrb[0].mxu0
        %v4803 = vadd.f32 %v4546, %v4802
        %4804 = vdwg.mxu0
        %v4805 = vand.u32 %v3826, 4294901760
        %4806 = vmatprep.subr.mxu0 %v4805
        %v4807 = vand.u32 %v3825, 4294901760
        %4808 = vmatpush1.msra.mxu0 %v4807
        %v4809 = vand.u32 %v3828, 4294901760
        %4810 = vmatprep.subr.mxu0 %v4809
        %v4811 = vand.u32 %v3827, 4294901760
        %4812 = vmatpush1.msra.mxu0 %v4811
        %v4813 = vand.u32 %v3830, 4294901760
        %4814 = vmatprep.subr.mxu0 %v4813
        %v4815 = vand.u32 %v3829, 4294901760
        %4816 = vmatpush1.msra.mxu0 %v4815
        %v4817 = vand.u32 %v3832, 4294901760
        %4818 = vmatprep.subr.mxu0 %v4817
        %v4819 = vand.u32 %v3831, 4294901760
        %4820 = vmatpush1.msra.mxu0 %v4819
        %v4821 = vand.u32 %v3834, 4294901760
        %4822 = vmatprep.subr.mxu0 %v4821
        %v4823 = vand.u32 %v3833, 4294901760
        %4824 = vmatpush1.msra.mxu0 %v4823
        %v4825 = vand.u32 %v3836, 4294901760
        %4826 = vmatprep.subr.mxu0 %v4825
        %v4827 = vand.u32 %v3835, 4294901760
        %4828 = vmatpush1.msra.mxu0 %v4827
        %v4829 = vand.u32 %v3838, 4294901760
        %4830 = vmatprep.subr.mxu0 %v4829
        %v4831 = vand.u32 %v3837, 4294901760
        %4832 = vmatpush1.msra.mxu0 %v4831
        %v4833 = vand.u32 %v3840, 4294901760
        %4834 = vmatprep.subr.mxu0 %v4833
        %v4835 = vand.u32 %v3839, 4294901760
        %4836 = vmatpush1.msra.mxu0 %v4835
        %v4837 = vand.u32 %v3842, 4294901760
        %4838 = vmatprep.subr.mxu0 %v4837
        %v4839 = vand.u32 %v3841, 4294901760
        %4840 = vmatpush1.msra.mxu0 %v4839
        %v4841 = vand.u32 %v3844, 4294901760
        %4842 = vmatprep.subr.mxu0 %v4841
        %v4843 = vand.u32 %v3843, 4294901760
        %4844 = vmatpush1.msra.mxu0 %v4843
        %v4845 = vand.u32 %v3846, 4294901760
        %4846 = vmatprep.subr.mxu0 %v4845
        %v4847 = vand.u32 %v3845, 4294901760
        %4848 = vmatpush1.msra.mxu0 %v4847
        %v4849 = vand.u32 %v3848, 4294901760
        %4850 = vmatprep.subr.mxu0 %v4849
        %v4851 = vand.u32 %v3847, 4294901760
        %4852 = vmatpush1.msra.mxu0 %v4851
        %v4853 = vand.u32 %v3850, 4294901760
        %4854 = vmatprep.subr.mxu0 %v4853
        %v4855 = vand.u32 %v3849, 4294901760
        %4856 = vmatpush1.msra.mxu0 %v4855
        %v4857 = vand.u32 %v3852, 4294901760
        %4858 = vmatprep.subr.mxu0 %v4857
        %v4859 = vand.u32 %v3851, 4294901760
        %4860 = vmatpush1.msra.mxu0 %v4859
        %v4861 = vand.u32 %v3854, 4294901760
        %4862 = vmatprep.subr.mxu0 %v4861
        %v4863 = vand.u32 %v3853, 4294901760
        %4864 = vmatpush1.msra.mxu0 %v4863
        %v4865 = vand.u32 %v3856, 4294901760
        %4866 = vmatprep.subr.mxu0 %v4865
        %v4867 = vand.u32 %v3855, 4294901760
        %4868 = vmatpush1.msra.mxu0 %v4867
        %4869 = vmatprep.subr.mxu0 0.0
        %4870 = vmatpush1.msra.mxu0 0.0
        %4871 = vmatprep.subr.mxu0 0.0
        %4872 = vmatpush1.msra.mxu0 0.0
        %4873 = vmatprep.subr.mxu0 0.0
        %4874 = vmatpush1.msra.mxu0 0.0
        %4875 = vmatprep.subr.mxu0 0.0
        %4876 = vmatpush1.msra.mxu0 0.0
        %4877 = vmatprep.subr.mxu0 0.0
        %4878 = vmatpush1.msra.mxu0 0.0
        %4879 = vmatprep.subr.mxu0 0.0
        %4880 = vmatpush1.msra.mxu0 0.0
        %4881 = vmatprep.subr.mxu0 0.0
        %4882 = vmatpush1.msra.mxu0 0.0
        %4883 = vmatprep.subr.mxu0 0.0
        %4884 = vmatpush1.msra.mxu0 0.0
        %4885 = vmatprep.subr.mxu0 0.0
        %4886 = vmatpush1.msra.mxu0 0.0
        %4887 = vmatprep.subr.mxu0 0.0
        %4888 = vmatpush1.msra.mxu0 0.0
        %4889 = vmatprep.subr.mxu0 0.0
        %4890 = vmatpush1.msra.mxu0 0.0
        %4891 = vmatprep.subr.mxu0 0.0
        %4892 = vmatpush1.msra.mxu0 0.0
        %4893 = vmatprep.subr.mxu0 0.0
        %4894 = vmatpush1.msra.mxu0 0.0
        %4895 = vmatprep.subr.mxu0 0.0
        %4896 = vmatpush1.msra.mxu0 0.0
        %4897 = vmatprep.subr.mxu0 0.0
        %4898 = vmatpush1.msra.mxu0 0.0
        %4899 = vmatprep.subr.mxu0 0.0
        %4900 = vmatpush1.msra.mxu0 0.0
        %4901 = vmatprep.mubr.f32.mxu0 0.0
        %v4902 = vand.u32 %v3858, 4294901760
        %v4903 = vsub.f32 %v3858, %v4902
        %v4904 = vand.u32 %v4903, 4294901760
        %4905 = vmatmul.mubr.f32.gmra.mrb[0].mxu0 %v4904
        %v4906 = vpop.f32.mrb[0].mxu0
        %v4907 = vadd.f32 %v4681, %v4906
        %v4908 = vpop.f32.mrb[0].mxu0
        %v4909 = vadd.f32 %v4683, %v4908
        %4910 = vmatprep.mubr.f32.mxu0 0.0
        %v4911 = vand.u32 %v3859, 4294901760
        %v4912 = vsub.f32 %v3859, %v4911
        %v4913 = vand.u32 %v4912, 4294901760
        %4914 = vmatmul.mubr.f32.gmra.mrb[0].mxu0 %v4913
        %v4915 = vpop.f32.mrb[0].mxu0
        %v4916 = vadd.f32 %v4689, %v4915
        %v4917 = vpop.f32.mrb[0].mxu0
        %v4918 = vadd.f32 %v4691, %v4917
        %4919 = vmatprep.mubr.f32.mxu0 0.0
        %v4920 = vand.u32 %v3860, 4294901760
        %v4921 = vsub.f32 %v3860, %v4920
        %v4922 = vand.u32 %v4921, 4294901760
        %4923 = vmatmul.mubr.f32.gmra.mrb[0].mxu0 %v4922
        %v4924 = vpop.f32.mrb[0].mxu0
        %v4925 = vadd.f32 %v4697, %v4924
        %v4926 = vpop.f32.mrb[0].mxu0
        %v4927 = vadd.f32 %v4699, %v4926
        %4928 = vmatprep.mubr.f32.mxu0 0.0
        %v4929 = vand.u32 %v3861, 4294901760
        %v4930 = vsub.f32 %v3861, %v4929
        %v4931 = vand.u32 %v4930, 4294901760
        %4932 = vmatmul.mubr.f32.gmra.mrb[0].mxu0 %v4931
        %v4933 = vpop.f32.mrb[0].mxu0
        %v4934 = vadd.f32 %v4705, %v4933
        %v4935 = vpop.f32.mrb[0].mxu0
        %v4936 = vadd.f32 %v4707, %v4935
        %4937 = vmatprep.mubr.f32.mxu0 0.0
        %v4938 = vand.u32 %v3862, 4294901760
        %v4939 = vsub.f32 %v3862, %v4938
        %v4940 = vand.u32 %v4939, 4294901760
        %4941 = vmatmul.mubr.f32.gmra.mrb[0].mxu0 %v4940
        %v4942 = vpop.f32.mrb[0].mxu0
        %v4943 = vadd.f32 %v4713, %v4942
        %v4944 = vpop.f32.mrb[0].mxu0
        %v4945 = vadd.f32 %v4715, %v4944
        %4946 = vmatprep.mubr.f32.mxu0 0.0
        %v4947 = vand.u32 %v3863, 4294901760
        %v4948 = vsub.f32 %v3863, %v4947
        %v4949 = vand.u32 %v4948, 4294901760
        %4950 = vmatmul.mubr.f32.gmra.mrb[0].mxu0 %v4949
        %v4951 = vpop.f32.mrb[0].mxu0
        %v4952 = vadd.f32 %v4721, %v4951
        %v4953 = vpop.f32.mrb[0].mxu0
        %v4954 = vadd.f32 %v4723, %v4953
        %4955 = vmatprep.mubr.f32.mxu0 0.0
        %v4956 = vand.u32 %v3864, 4294901760
        %v4957 = vsub.f32 %v3864, %v4956
        %v4958 = vand.u32 %v4957, 4294901760
        %4959 = vmatmul.mubr.f32.gmra.mrb[0].mxu0 %v4958
        %v4960 = vpop.f32.mrb[0].mxu0
        %v4961 = vadd.f32 %v4729, %v4960
        %v4962 = vpop.f32.mrb[0].mxu0
        %v4963 = vadd.f32 %v4731, %v4962
        %4964 = vmatprep.mubr.f32.mxu0 0.0
        %v4965 = vand.u32 %v3865, 4294901760
        %v4966 = vsub.f32 %v3865, %v4965
        %v4967 = vand.u32 %v4966, 4294901760
        %4968 = vmatmul.mubr.f32.gmra.mrb[0].mxu0 %v4967
        %v4969 = vpop.f32.mrb[0].mxu0
        %v4970 = vadd.f32 %v4737, %v4969
        %v4971 = vpop.f32.mrb[0].mxu0
        %v4972 = vadd.f32 %v4739, %v4971
        %4973 = vmatprep.mubr.f32.mxu0 0.0
        %v4974 = vand.u32 %v3866, 4294901760
        %v4975 = vsub.f32 %v3866, %v4974
        %v4976 = vand.u32 %v4975, 4294901760
        %4977 = vmatmul.mubr.f32.gmra.mrb[0].mxu0 %v4976
        %v4978 = vpop.f32.mrb[0].mxu0
        %v4979 = vadd.f32 %v4745, %v4978
        %v4980 = vpop.f32.mrb[0].mxu0
        %v4981 = vadd.f32 %v4747, %v4980
        %4982 = vmatprep.mubr.f32.mxu0 0.0
        %v4983 = vand.u32 %v3867, 4294901760
        %v4984 = vsub.f32 %v3867, %v4983
        %v4985 = vand.u32 %v4984, 4294901760
        %4986 = vmatmul.mubr.f32.gmra.mrb[0].mxu0 %v4985
        %v4987 = vpop.f32.mrb[0].mxu0
        %v4988 = vadd.f32 %v4753, %v4987
        %v4989 = vpop.f32.mrb[0].mxu0
        %v4990 = vadd.f32 %v4755, %v4989
        %4991 = vmatprep.mubr.f32.mxu0 0.0
        %v4992 = vand.u32 %v3868, 4294901760
        %v4993 = vsub.f32 %v3868, %v4992
        %v4994 = vand.u32 %v4993, 4294901760
        %4995 = vmatmul.mubr.f32.gmra.mrb[0].mxu0 %v4994
        %v4996 = vpop.f32.mrb[0].mxu0
        %v4997 = vadd.f32 %v4761, %v4996
        %v4998 = vpop.f32.mrb[0].mxu0
        %v4999 = vadd.f32 %v4763, %v4998
        %5000 = vmatprep.mubr.f32.mxu0 0.0
        %v5001 = vand.u32 %v3869, 4294901760
        %v5002 = vsub.f32 %v3869, %v5001
        %v5003 = vand.u32 %v5002, 4294901760
        %5004 = vmatmul.mubr.f32.gmra.mrb[0].mxu0 %v5003
        %v5005 = vpop.f32.mrb[0].mxu0
        %v5006 = vadd.f32 %v4769, %v5005
        %v5007 = vpop.f32.mrb[0].mxu0
        %v5008 = vadd.f32 %v4771, %v5007
        %5009 = vmatprep.mubr.f32.mxu0 0.0
        %v5010 = vand.u32 %v3870, 4294901760
        %v5011 = vsub.f32 %v3870, %v5010
        %v5012 = vand.u32 %v5011, 4294901760
        %5013 = vmatmul.mubr.f32.gmra.mrb[0].mxu0 %v5012
        %v5014 = vpop.f32.mrb[0].mxu0
        %v5015 = vadd.f32 %v4777, %v5014
        %v5016 = vpop.f32.mrb[0].mxu0
        %v5017 = vadd.f32 %v4779, %v5016
        %5018 = vmatprep.mubr.f32.mxu0 0.0
        %v5019 = vand.u32 %v3871, 4294901760
        %v5020 = vsub.f32 %v3871, %v5019
        %v5021 = vand.u32 %v5020, 4294901760
        %5022 = vmatmul.mubr.f32.gmra.mrb[0].mxu0 %v5021
        %v5023 = vpop.f32.mrb[0].mxu0
        %v5024 = vadd.f32 %v4785, %v5023
        %v5025 = vpop.f32.mrb[0].mxu0
        %v5026 = vadd.f32 %v4787, %v5025
        %5027 = vmatprep.mubr.f32.mxu0 0.0
        %v5028 = vand.u32 %v3872, 4294901760
        %v5029 = vsub.f32 %v3872, %v5028
        %v5030 = vand.u32 %v5029, 4294901760
        %5031 = vmatmul.mubr.f32.gmra.mrb[0].mxu0 %v5030
        %v5032 = vpop.f32.mrb[0].mxu0
        %v5033 = vadd.f32 %v4793, %v5032
        %v5034 = vpop.f32.mrb[0].mxu0
        %v5035 = vadd.f32 %v4795, %v5034
        %5036 = vmatprep.mubr.f32.mxu0 0.0
        %v5037 = vand.u32 %v3873, 4294901760
        %v5038 = vsub.f32 %v3873, %v5037
        %v5039 = vand.u32 %v5038, 4294901760
        %5040 = vmatmul.mubr.f32.gmra.mrb[0].mxu0 %v5039
        %v5041 = vpop.f32.mrb[0].mxu0
        %v5042 = vadd.f32 %v4801, %v5041
        %v5043 = vpop.f32.mrb[0].mxu0
        %v5044 = vadd.f32 %v4803, %v5043
        %5045 = vdwg.mxu0
        %v5046 = vand.u32 %v3826, 4294901760
        %v5047 = vsub.f32 %v3826, %v5046
        %v5048 = vand.u32 %v5047, 4294901760
        %5049 = vmatprep.subr.mxu0 %v5048
        %v5050 = vand.u32 %v3825, 4294901760
        %v5051 = vsub.f32 %v3825, %v5050
        %v5052 = vand.u32 %v5051, 4294901760
        %5053 = vmatpush1.msra.mxu0 %v5052
        %v5054 = vand.u32 %v3828, 4294901760
        %v5055 = vsub.f32 %v3828, %v5054
        %v5056 = vand.u32 %v5055, 4294901760
        %5057 = vmatprep.subr.mxu0 %v5056
        %v5058 = vand.u32 %v3827, 4294901760
        %v5059 = vsub.f32 %v3827, %v5058
        %v5060 = vand.u32 %v5059, 4294901760
        %5061 = vmatpush1.msra.mxu0 %v5060
        %v5062 = vand.u32 %v3830, 4294901760
        %v5063 = vsub.f32 %v3830, %v5062
        %v5064 = vand.u32 %v5063, 4294901760
        %5065 = vmatprep.subr.mxu0 %v5064
        %v5066 = vand.u32 %v3829, 4294901760
        %v5067 = vsub.f32 %v3829, %v5066
        %v5068 = vand.u32 %v5067, 4294901760
        %5069 = vmatpush1.msra.mxu0 %v5068
        %v5070 = vand.u32 %v3832, 4294901760
        %v5071 = vsub.f32 %v3832, %v5070
        %v5072 = vand.u32 %v5071, 4294901760
        %5073 = vmatprep.subr.mxu0 %v5072
        %v5074 = vand.u32 %v3831, 4294901760
        %v5075 = vsub.f32 %v3831, %v5074
        %v5076 = vand.u32 %v5075, 4294901760
        %5077 = vmatpush1.msra.mxu0 %v5076
        %v5078 = vand.u32 %v3834, 4294901760
        %v5079 = vsub.f32 %v3834, %v5078
        %v5080 = vand.u32 %v5079, 4294901760
        %5081 = vmatprep.subr.mxu0 %v5080
        %v5082 = vand.u32 %v3833, 4294901760
        %v5083 = vsub.f32 %v3833, %v5082
        %v5084 = vand.u32 %v5083, 4294901760
        %5085 = vmatpush1.msra.mxu0 %v5084
        %v5086 = vand.u32 %v3836, 4294901760
        %v5087 = vsub.f32 %v3836, %v5086
        %v5088 = vand.u32 %v5087, 4294901760
        %5089 = vmatprep.subr.mxu0 %v5088
        %v5090 = vand.u32 %v3835, 4294901760
        %v5091 = vsub.f32 %v3835, %v5090
        %v5092 = vand.u32 %v5091, 4294901760
        %5093 = vmatpush1.msra.mxu0 %v5092
        %v5094 = vand.u32 %v3838, 4294901760
        %v5095 = vsub.f32 %v3838, %v5094
        %v5096 = vand.u32 %v5095, 4294901760
        %5097 = vmatprep.subr.mxu0 %v5096
        %v5098 = vand.u32 %v3837, 4294901760
        %v5099 = vsub.f32 %v3837, %v5098
        %v5100 = vand.u32 %v5099, 4294901760
        %5101 = vmatpush1.msra.mxu0 %v5100
        %v5102 = vand.u32 %v3840, 4294901760
        %v5103 = vsub.f32 %v3840, %v5102
        %v5104 = vand.u32 %v5103, 4294901760
        %5105 = vmatprep.subr.mxu0 %v5104
        %v5106 = vand.u32 %v3839, 4294901760
        %v5107 = vsub.f32 %v3839, %v5106
        %v5108 = vand.u32 %v5107, 4294901760
        %5109 = vmatpush1.msra.mxu0 %v5108
        %v5110 = vand.u32 %v3842, 4294901760
        %v5111 = vsub.f32 %v3842, %v5110
        %v5112 = vand.u32 %v5111, 4294901760
        %5113 = vmatprep.subr.mxu0 %v5112
        %v5114 = vand.u32 %v3841, 4294901760
        %v5115 = vsub.f32 %v3841, %v5114
        %v5116 = vand.u32 %v5115, 4294901760
        %5117 = vmatpush1.msra.mxu0 %v5116
        %v5118 = vand.u32 %v3844, 4294901760
        %v5119 = vsub.f32 %v3844, %v5118
        %v5120 = vand.u32 %v5119, 4294901760
        %5121 = vmatprep.subr.mxu0 %v5120
        %v5122 = vand.u32 %v3843, 4294901760
        %v5123 = vsub.f32 %v3843, %v5122
        %v5124 = vand.u32 %v5123, 4294901760
        %5125 = vmatpush1.msra.mxu0 %v5124
        %v5126 = vand.u32 %v3846, 4294901760
        %v5127 = vsub.f32 %v3846, %v5126
        %v5128 = vand.u32 %v5127, 4294901760
        %5129 = vmatprep.subr.mxu0 %v5128
        %v5130 = vand.u32 %v3845, 4294901760
        %v5131 = vsub.f32 %v3845, %v5130
        %v5132 = vand.u32 %v5131, 4294901760
        %5133 = vmatpush1.msra.mxu0 %v5132
        %v5134 = vand.u32 %v3848, 4294901760
        %v5135 = vsub.f32 %v3848, %v5134
        %v5136 = vand.u32 %v5135, 4294901760
        %5137 = vmatprep.subr.mxu0 %v5136
        %v5138 = vand.u32 %v3847, 4294901760
        %v5139 = vsub.f32 %v3847, %v5138
        %v5140 = vand.u32 %v5139, 4294901760
        %5141 = vmatpush1.msra.mxu0 %v5140
        %v5142 = vand.u32 %v3850, 4294901760
        %v5143 = vsub.f32 %v3850, %v5142
        %v5144 = vand.u32 %v5143, 4294901760
        %5145 = vmatprep.subr.mxu0 %v5144
        %v5146 = vand.u32 %v3849, 4294901760
        %v5147 = vsub.f32 %v3849, %v5146
        %v5148 = vand.u32 %v5147, 4294901760
        %5149 = vmatpush1.msra.mxu0 %v5148
        %v5150 = vand.u32 %v3852, 4294901760
        %v5151 = vsub.f32 %v3852, %v5150
        %v5152 = vand.u32 %v5151, 4294901760
        %5153 = vmatprep.subr.mxu0 %v5152
        %v5154 = vand.u32 %v3851, 4294901760
        %v5155 = vsub.f32 %v3851, %v5154
        %v5156 = vand.u32 %v5155, 4294901760
        %5157 = vmatpush1.msra.mxu0 %v5156
        %v5158 = vand.u32 %v3854, 4294901760
        %v5159 = vsub.f32 %v3854, %v5158
        %v5160 = vand.u32 %v5159, 4294901760
        %5161 = vmatprep.subr.mxu0 %v5160
        %v5162 = vand.u32 %v3853, 4294901760
        %v5163 = vsub.f32 %v3853, %v5162
        %v5164 = vand.u32 %v5163, 4294901760
        %5165 = vmatpush1.msra.mxu0 %v5164
        %v5166 = vand.u32 %v3856, 4294901760
        %v5167 = vsub.f32 %v3856, %v5166
        %v5168 = vand.u32 %v5167, 4294901760
        %5169 = vmatprep.subr.mxu0 %v5168
        %v5170 = vand.u32 %v3855, 4294901760
        %v5171 = vsub.f32 %v3855, %v5170
        %v5172 = vand.u32 %v5171, 4294901760
        %5173 = vmatpush1.msra.mxu0 %v5172
        %5174 = vmatprep.subr.mxu0 0.0
        %5175 = vmatpush1.msra.mxu0 0.0
        %5176 = vmatprep.subr.mxu0 0.0
        %5177 = vmatpush1.msra.mxu0 0.0
        %5178 = vmatprep.subr.mxu0 0.0
        %5179 = vmatpush1.msra.mxu0 0.0
        %5180 = vmatprep.subr.mxu0 0.0
        %5181 = vmatpush1.msra.mxu0 0.0
        %5182 = vmatprep.subr.mxu0 0.0
        %5183 = vmatpush1.msra.mxu0 0.0
        %5184 = vmatprep.subr.mxu0 0.0
        %5185 = vmatpush1.msra.mxu0 0.0
        %5186 = vmatprep.subr.mxu0 0.0
        %5187 = vmatpush1.msra.mxu0 0.0
        %5188 = vmatprep.subr.mxu0 0.0
        %5189 = vmatpush1.msra.mxu0 0.0
        %5190 = vmatprep.subr.mxu0 0.0
        %5191 = vmatpush1.msra.mxu0 0.0
        %5192 = vmatprep.subr.mxu0 0.0
        %5193 = vmatpush1.msra.mxu0 0.0
        %5194 = vmatprep.subr.mxu0 0.0
        %5195 = vmatpush1.msra.mxu0 0.0
        %5196 = vmatprep.subr.mxu0 0.0
        %5197 = vmatpush1.msra.mxu0 0.0
        %5198 = vmatprep.subr.mxu0 0.0
        %5199 = vmatpush1.msra.mxu0 0.0
        %5200 = vmatprep.subr.mxu0 0.0
        %5201 = vmatpush1.msra.mxu0 0.0
        %5202 = vmatprep.subr.mxu0 0.0
        %5203 = vmatpush1.msra.mxu0 0.0
        %5204 = vmatprep.subr.mxu0 0.0
        %5205 = vmatpush1.msra.mxu0 0.0
        %5206 = vmatprep.mubr.f32.mxu0 0.0
        %v5207 = vand.u32 %v3858, 4294901760
        %5208 = vmatmul.mubr.f32.gmra.mrb[0].mxu0 %v5207
        %v5209 = vpop.f32.mrb[0].mxu0
        %v5210 = vadd.f32 %v4907, %v5209
        %v5211 = vpop.f32.mrb[0].mxu0
        %v5212 = vadd.f32 %v4909, %v5211
        %5213 = vmatprep.mubr.f32.mxu0 0.0
        %v5214 = vand.u32 %v3859, 4294901760
        %5215 = vmatmul.mubr.f32.gmra.mrb[0].mxu0 %v5214
        %v5216 = vpop.f32.mrb[0].mxu0
        %v5217 = vadd.f32 %v4916, %v5216
        %v5218 = vpop.f32.mrb[0].mxu0
        %v5219 = vadd.f32 %v4918, %v5218
        %5220 = vmatprep.mubr.f32.mxu0 0.0
        %v5221 = vand.u32 %v3860, 4294901760
        %5222 = vmatmul.mubr.f32.gmra.mrb[0].mxu0 %v5221
        %v5223 = vpop.f32.mrb[0].mxu0
        %v5224 = vadd.f32 %v4925, %v5223
        %v5225 = vpop.f32.mrb[0].mxu0
        %v5226 = vadd.f32 %v4927, %v5225
        %5227 = vmatprep.mubr.f32.mxu0 0.0
        %v5228 = vand.u32 %v3861, 4294901760
        %5229 = vmatmul.mubr.f32.gmra.mrb[0].mxu0 %v5228
        %v5230 = vpop.f32.mrb[0].mxu0
        %v5231 = vadd.f32 %v4934, %v5230
        %v5232 = vpop.f32.mrb[0].mxu0
        %v5233 = vadd.f32 %v4936, %v5232
        %5234 = vmatprep.mubr.f32.mxu0 0.0
        %v5235 = vand.u32 %v3862, 4294901760
        %5236 = vmatmul.mubr.f32.gmra.mrb[0].mxu0 %v5235
        %v5237 = vpop.f32.mrb[0].mxu0
        %v5238 = vadd.f32 %v4943, %v5237
        %v5239 = vpop.f32.mrb[0].mxu0
        %v5240 = vadd.f32 %v4945, %v5239
        %5241 = vmatprep.mubr.f32.mxu0 0.0
        %v5242 = vand.u32 %v3863, 4294901760
        %5243 = vmatmul.mubr.f32.gmra.mrb[0].mxu0 %v5242
        %v5244 = vpop.f32.mrb[0].mxu0
        %v5245 = vadd.f32 %v4952, %v5244
        %v5246 = vpop.f32.mrb[0].mxu0
        %v5247 = vadd.f32 %v4954, %v5246
        %5248 = vmatprep.mubr.f32.mxu0 0.0
        %v5249 = vand.u32 %v3864, 4294901760
        %5250 = vmatmul.mubr.f32.gmra.mrb[0].mxu0 %v5249
        %v5251 = vpop.f32.mrb[0].mxu0
        %v5252 = vadd.f32 %v4961, %v5251
        %v5253 = vpop.f32.mrb[0].mxu0
        %v5254 = vadd.f32 %v4963, %v5253
        %5255 = vmatprep.mubr.f32.mxu0 0.0
        %v5256 = vand.u32 %v3865, 4294901760
        %5257 = vmatmul.mubr.f32.gmra.mrb[0].mxu0 %v5256
        %v5258 = vpop.f32.mrb[0].mxu0
        %v5259 = vadd.f32 %v4970, %v5258
        %v5260 = vpop.f32.mrb[0].mxu0
        %v5261 = vadd.f32 %v4972, %v5260
        %5262 = vmatprep.mubr.f32.mxu0 0.0
        %v5263 = vand.u32 %v3866, 4294901760
        %5264 = vmatmul.mubr.f32.gmra.mrb[0].mxu0 %v5263
        %v5265 = vpop.f32.mrb[0].mxu0
        %v5266 = vadd.f32 %v4979, %v5265
        %v5267 = vpop.f32.mrb[0].mxu0
        %v5268 = vadd.f32 %v4981, %v5267
        %5269 = vmatprep.mubr.f32.mxu0 0.0
        %v5270 = vand.u32 %v3867, 4294901760
        %5271 = vmatmul.mubr.f32.gmra.mrb[0].mxu0 %v5270
        %v5272 = vpop.f32.mrb[0].mxu0
        %v5273 = vadd.f32 %v4988, %v5272
        %v5274 = vpop.f32.mrb[0].mxu0
        %v5275 = vadd.f32 %v4990, %v5274
        %5276 = vmatprep.mubr.f32.mxu0 0.0
        %v5277 = vand.u32 %v3868, 4294901760
        %5278 = vmatmul.mubr.f32.gmra.mrb[0].mxu0 %v5277
        %v5279 = vpop.f32.mrb[0].mxu0
        %v5280 = vadd.f32 %v4997, %v5279
        %v5281 = vpop.f32.mrb[0].mxu0
        %v5282 = vadd.f32 %v4999, %v5281
        %5283 = vmatprep.mubr.f32.mxu0 0.0
        %v5284 = vand.u32 %v3869, 4294901760
        %5285 = vmatmul.mubr.f32.gmra.mrb[0].mxu0 %v5284
        %v5286 = vpop.f32.mrb[0].mxu0
        %v5287 = vadd.f32 %v5006, %v5286
        %v5288 = vpop.f32.mrb[0].mxu0
        %v5289 = vadd.f32 %v5008, %v5288
        %5290 = vmatprep.mubr.f32.mxu0 0.0
        %v5291 = vand.u32 %v3870, 4294901760
        %5292 = vmatmul.mubr.f32.gmra.mrb[0].mxu0 %v5291
        %v5293 = vpop.f32.mrb[0].mxu0
        %v5294 = vadd.f32 %v5015, %v5293
        %v5295 = vpop.f32.mrb[0].mxu0
        %v5296 = vadd.f32 %v5017, %v5295
        %5297 = vmatprep.mubr.f32.mxu0 0.0
        %v5298 = vand.u32 %v3871, 4294901760
        %5299 = vmatmul.mubr.f32.gmra.mrb[0].mxu0 %v5298
        %v5300 = vpop.f32.mrb[0].mxu0
        %v5301 = vadd.f32 %v5024, %v5300
        %v5302 = vpop.f32.mrb[0].mxu0
        %v5303 = vadd.f32 %v5026, %v5302
        %5304 = vmatprep.mubr.f32.mxu0 0.0
        %v5305 = vand.u32 %v3872, 4294901760
        %5306 = vmatmul.mubr.f32.gmra.mrb[0].mxu0 %v5305
        %v5307 = vpop.f32.mrb[0].mxu0
        %v5308 = vadd.f32 %v5033, %v5307
        %v5309 = vpop.f32.mrb[0].mxu0
        %v5310 = vadd.f32 %v5035, %v5309
        %5311 = vmatprep.mubr.f32.mxu0 0.0
        %v5312 = vand.u32 %v3873, 4294901760
        %5313 = vmatmul.mubr.f32.gmra.mrb[0].mxu0 %v5312
        %v5314 = vpop.f32.mrb[0].mxu0
        %v5315 = vadd.f32 %v5042, %v5314
        %v5316 = vpop.f32.mrb[0].mxu0
        %v5317 = vadd.f32 %v5044, %v5316
        %5318 = vdwg.mxu0
        %v5319 = vand.u32 %v3826, 4294901760
        %5320 = vmatprep.subr.mxu0 %v5319
        %v5321 = vand.u32 %v3825, 4294901760
        %5322 = vmatpush1.msra.mxu0 %v5321
        %v5323 = vand.u32 %v3828, 4294901760
        %5324 = vmatprep.subr.mxu0 %v5323
        %v5325 = vand.u32 %v3827, 4294901760
        %5326 = vmatpush1.msra.mxu0 %v5325
        %v5327 = vand.u32 %v3830, 4294901760
        %5328 = vmatprep.subr.mxu0 %v5327
        %v5329 = vand.u32 %v3829, 4294901760
        %5330 = vmatpush1.msra.mxu0 %v5329
        %v5331 = vand.u32 %v3832, 4294901760
        %5332 = vmatprep.subr.mxu0 %v5331
        %v5333 = vand.u32 %v3831, 4294901760
        %5334 = vmatpush1.msra.mxu0 %v5333
        %v5335 = vand.u32 %v3834, 4294901760
        %5336 = vmatprep.subr.mxu0 %v5335
        %v5337 = vand.u32 %v3833, 4294901760
        %5338 = vmatpush1.msra.mxu0 %v5337
        %v5339 = vand.u32 %v3836, 4294901760
        %5340 = vmatprep.subr.mxu0 %v5339
        %v5341 = vand.u32 %v3835, 4294901760
        %5342 = vmatpush1.msra.mxu0 %v5341
        %v5343 = vand.u32 %v3838, 4294901760
        %5344 = vmatprep.subr.mxu0 %v5343
        %v5345 = vand.u32 %v3837, 4294901760
        %5346 = vmatpush1.msra.mxu0 %v5345
        %v5347 = vand.u32 %v3840, 4294901760
        %5348 = vmatprep.subr.mxu0 %v5347
        %v5349 = vand.u32 %v3839, 4294901760
        %5350 = vmatpush1.msra.mxu0 %v5349
        %v5351 = vand.u32 %v3842, 4294901760
        %5352 = vmatprep.subr.mxu0 %v5351
        %v5353 = vand.u32 %v3841, 4294901760
        %5354 = vmatpush1.msra.mxu0 %v5353
        %v5355 = vand.u32 %v3844, 4294901760
        %5356 = vmatprep.subr.mxu0 %v5355
        %v5357 = vand.u32 %v3843, 4294901760
        %5358 = vmatpush1.msra.mxu0 %v5357
        %v5359 = vand.u32 %v3846, 4294901760
        %5360 = vmatprep.subr.mxu0 %v5359
        %v5361 = vand.u32 %v3845, 4294901760
        %5362 = vmatpush1.msra.mxu0 %v5361
        %v5363 = vand.u32 %v3848, 4294901760
        %5364 = vmatprep.subr.mxu0 %v5363
        %v5365 = vand.u32 %v3847, 4294901760
        %5366 = vmatpush1.msra.mxu0 %v5365
        %v5367 = vand.u32 %v3850, 4294901760
        %5368 = vmatprep.subr.mxu0 %v5367
        %v5369 = vand.u32 %v3849, 4294901760
        %5370 = vmatpush1.msra.mxu0 %v5369
        %v5371 = vand.u32 %v3852, 4294901760
        %5372 = vmatprep.subr.mxu0 %v5371
        %v5373 = vand.u32 %v3851, 4294901760
        %5374 = vmatpush1.msra.mxu0 %v5373
        %v5375 = vand.u32 %v3854, 4294901760
        %5376 = vmatprep.subr.mxu0 %v5375
        %v5377 = vand.u32 %v3853, 4294901760
        %5378 = vmatpush1.msra.mxu0 %v5377
        %v5379 = vand.u32 %v3856, 4294901760
        %5380 = vmatprep.subr.mxu0 %v5379
        %v5381 = vand.u32 %v3855, 4294901760
        %5382 = vmatpush1.msra.mxu0 %v5381
        %5383 = vmatprep.subr.mxu0 0.0
        %5384 = vmatpush1.msra.mxu0 0.0
        %5385 = vmatprep.subr.mxu0 0.0
        %5386 = vmatpush1.msra.mxu0 0.0
        %5387 = vmatprep.subr.mxu0 0.0
        %5388 = vmatpush1.msra.mxu0 0.0
        %5389 = vmatprep.subr.mxu0 0.0
        %5390 = vmatpush1.msra.mxu0 0.0
        %5391 = vmatprep.subr.mxu0 0.0
        %5392 = vmatpush1.msra.mxu0 0.0
        %5393 = vmatprep.subr.mxu0 0.0
        %5394 = vmatpush1.msra.mxu0 0.0
        %5395 = vmatprep.subr.mxu0 0.0
        %5396 = vmatpush1.msra.mxu0 0.0
        %5397 = vmatprep.subr.mxu0 0.0
        %5398 = vmatpush1.msra.mxu0 0.0
        %5399 = vmatprep.subr.mxu0 0.0
        %5400 = vmatpush1.msra.mxu0 0.0
        %5401 = vmatprep.subr.mxu0 0.0
        %5402 = vmatpush1.msra.mxu0 0.0
        %5403 = vmatprep.subr.mxu0 0.0
        %5404 = vmatpush1.msra.mxu0 0.0
        %5405 = vmatprep.subr.mxu0 0.0
        %5406 = vmatpush1.msra.mxu0 0.0
        %5407 = vmatprep.subr.mxu0 0.0
        %5408 = vmatpush1.msra.mxu0 0.0
        %5409 = vmatprep.subr.mxu0 0.0
        %5410 = vmatpush1.msra.mxu0 0.0
        %5411 = vmatprep.subr.mxu0 0.0
        %5412 = vmatpush1.msra.mxu0 0.0
        %5413 = vmatprep.subr.mxu0 0.0
        %5414 = vmatpush1.msra.mxu0 0.0
        %5415 = vmatprep.mubr.f32.mxu0 0.0
        %v5416 = vand.u32 %v3858, 4294901760
        %5417 = vmatmul.mubr.f32.gmra.mrb[0].mxu0 %v5416
        %v5418 = vpop.f32.mrb[0].mxu0
        %v5419 = vadd.f32 %v5210, %v5418
        %v5420 = vpop.f32.mrb[0].mxu0
        %v5421 = vadd.f32 %v5212, %v5420
        %5422 = vmatprep.mubr.f32.mxu0 0.0
        %v5423 = vand.u32 %v3859, 4294901760
        %5424 = vmatmul.mubr.f32.gmra.mrb[0].mxu0 %v5423
        %v5425 = vpop.f32.mrb[0].mxu0
        %v5426 = vadd.f32 %v5217, %v5425
        %v5427 = vpop.f32.mrb[0].mxu0
        %v5428 = vadd.f32 %v5219, %v5427
        %5429 = vmatprep.mubr.f32.mxu0 0.0
        %v5430 = vand.u32 %v3860, 4294901760
        %5431 = vmatmul.mubr.f32.gmra.mrb[0].mxu0 %v5430
        %v5432 = vpop.f32.mrb[0].mxu0
        %v5433 = vadd.f32 %v5224, %v5432
        %v5434 = vpop.f32.mrb[0].mxu0
        %v5435 = vadd.f32 %v5226, %v5434
        %5436 = vmatprep.mubr.f32.mxu0 0.0
        %v5437 = vand.u32 %v3861, 4294901760
        %5438 = vmatmul.mubr.f32.gmra.mrb[0].mxu0 %v5437
        %v5439 = vpop.f32.mrb[0].mxu0
        %v5440 = vadd.f32 %v5231, %v5439
        %v5441 = vpop.f32.mrb[0].mxu0
        %v5442 = vadd.f32 %v5233, %v5441
        %5443 = vmatprep.mubr.f32.mxu0 0.0
        %v5444 = vand.u32 %v3862, 4294901760
        %5445 = vmatmul.mubr.f32.gmra.mrb[0].mxu0 %v5444
        %v5446 = vpop.f32.mrb[0].mxu0
        %v5447 = vadd.f32 %v5238, %v5446
        %v5448 = vpop.f32.mrb[0].mxu0
        %v5449 = vadd.f32 %v5240, %v5448
        %5450 = vmatprep.mubr.f32.mxu0 0.0
        %v5451 = vand.u32 %v3863, 4294901760
        %5452 = vmatmul.mubr.f32.gmra.mrb[0].mxu0 %v5451
        %v5453 = vpop.f32.mrb[0].mxu0
        %v5454 = vadd.f32 %v5245, %v5453
        %v5455 = vpop.f32.mrb[0].mxu0
        %v5456 = vadd.f32 %v5247, %v5455
        %5457 = vmatprep.mubr.f32.mxu0 0.0
        %v5458 = vand.u32 %v3864, 4294901760
        %5459 = vmatmul.mubr.f32.gmra.mrb[0].mxu0 %v5458
        %v5460 = vpop.f32.mrb[0].mxu0
        %v5461 = vadd.f32 %v5252, %v5460
        %v5462 = vpop.f32.mrb[0].mxu0
        %v5463 = vadd.f32 %v5254, %v5462
        %5464 = vmatprep.mubr.f32.mxu0 0.0
        %v5465 = vand.u32 %v3865, 4294901760
        %5466 = vmatmul.mubr.f32.gmra.mrb[0].mxu0 %v5465
        %v5467 = vpop.f32.mrb[0].mxu0
        %v5468 = vadd.f32 %v5259, %v5467
        %v5469 = vpop.f32.mrb[0].mxu0
        %v5470 = vadd.f32 %v5261, %v5469
        %5471 = vmatprep.mubr.f32.mxu0 0.0
        %v5472 = vand.u32 %v3866, 4294901760
        %5473 = vmatmul.mubr.f32.gmra.mrb[0].mxu0 %v5472
        %v5474 = vpop.f32.mrb[0].mxu0
        %v5475 = vadd.f32 %v5266, %v5474
        %v5476 = vpop.f32.mrb[0].mxu0
        %v5477 = vadd.f32 %v5268, %v5476
        %5478 = vmatprep.mubr.f32.mxu0 0.0
        %v5479 = vand.u32 %v3867, 4294901760
        %5480 = vmatmul.mubr.f32.gmra.mrb[0].mxu0 %v5479
        %v5481 = vpop.f32.mrb[0].mxu0
        %v5482 = vadd.f32 %v5273, %v5481
        %v5483 = vpop.f32.mrb[0].mxu0
        %v5484 = vadd.f32 %v5275, %v5483
        %5485 = vmatprep.mubr.f32.mxu0 0.0
        %v5486 = vand.u32 %v3868, 4294901760
        %5487 = vmatmul.mubr.f32.gmra.mrb[0].mxu0 %v5486
        %v5488 = vpop.f32.mrb[0].mxu0
        %v5489 = vadd.f32 %v5280, %v5488
        %v5490 = vpop.f32.mrb[0].mxu0
        %v5491 = vadd.f32 %v5282, %v5490
        %5492 = vmatprep.mubr.f32.mxu0 0.0
        %v5493 = vand.u32 %v3869, 4294901760
        %5494 = vmatmul.mubr.f32.gmra.mrb[0].mxu0 %v5493
        %v5495 = vpop.f32.mrb[0].mxu0
        %v5496 = vadd.f32 %v5287, %v5495
        %v5497 = vpop.f32.mrb[0].mxu0
        %v5498 = vadd.f32 %v5289, %v5497
        %5499 = vmatprep.mubr.f32.mxu0 0.0
        %v5500 = vand.u32 %v3870, 4294901760
        %5501 = vmatmul.mubr.f32.gmra.mrb[0].mxu0 %v5500
        %v5502 = vpop.f32.mrb[0].mxu0
        %v5503 = vadd.f32 %v5294, %v5502
        %v5504 = vpop.f32.mrb[0].mxu0
        %v5505 = vadd.f32 %v5296, %v5504
        %5506 = vmatprep.mubr.f32.mxu0 0.0
        %v5507 = vand.u32 %v3871, 4294901760
        %5508 = vmatmul.mubr.f32.gmra.mrb[0].mxu0 %v5507
        %v5509 = vpop.f32.mrb[0].mxu0
        %v5510 = vadd.f32 %v5301, %v5509
        %v5511 = vpop.f32.mrb[0].mxu0
        %v5512 = vadd.f32 %v5303, %v5511
        %5513 = vmatprep.mubr.f32.mxu0 0.0
        %v5514 = vand.u32 %v3872, 4294901760
        %5515 = vmatmul.mubr.f32.gmra.mrb[0].mxu0 %v5514
        %v5516 = vpop.f32.mrb[0].mxu0
        %v5517 = vadd.f32 %v5308, %v5516
        %v5518 = vpop.f32.mrb[0].mxu0
        %v5519 = vadd.f32 %v5310, %v5518
        %5520 = vmatprep.mubr.f32.mxu0 0.0
        %v5521 = vand.u32 %v3873, 4294901760
        %5522 = vmatmul.mubr.f32.gmra.mrb[0].mxu0 %v5521
        %v5523 = vpop.f32.mrb[0].mxu0
        %v5524 = vadd.f32 %v5315, %v5523
        %v5525 = vpop.f32.mrb[0].mxu0
        %v5526 = vadd.f32 %v5317, %v5525
        %5527 = vdwg.mxu0
        %v5528 = vtanh.pop %v5419
        %v5529 = vtanh.pop %v5421
        %v5530 = vtanh.pop %v5426
        %v5531 = vtanh.pop %v5428
        %v5532 = vtanh.pop %v5433
        %v5533 = vtanh.pop %v5435
        %v5534 = vtanh.pop %v5440
        %v5535 = vtanh.pop %v5442
        %v5536 = vtanh.pop %v5447
        %v5537 = vtanh.pop %v5449
        %v5538 = vtanh.pop %v5454
        %v5539 = vtanh.pop %v5456
        %v5540 = vtanh.pop %v5461
        %v5541 = vtanh.pop %v5463
        %v5542 = vtanh.pop %v5468
        %v5543 = vtanh.pop %v5470
        %v5544 = vtanh.pop %v5475
        %v5545 = vtanh.pop %v5477
        %v5546 = vtanh.pop %v5482
        %v5547 = vtanh.pop %v5484
        %v5548 = vtanh.pop %v5489
        %v5549 = vtanh.pop %v5491
        %v5550 = vtanh.pop %v5496
        %v5551 = vtanh.pop %v5498
        %v5552 = vtanh.pop %v5503
        %v5553 = vtanh.pop %v5505
        %v5554 = vtanh.pop %v5510
        %v5555 = vtanh.pop %v5512
        %v5556 = vtanh.pop %v5517
        %v5557 = vtanh.pop %v5519
        %v5558 = vtanh.pop %v5524
        %v5559 = vtanh.pop %v5526
        %s5560 = scalar_lea.vmem [#allocation2], 384
        %v5561 = vld [vmem:[%s5560] sm:$0xff]
        %v5562 = vld [vmem:[%s5560 + $0x8] sm:$0xff]
        %v5563 = vld [vmem:[%s5560 + $0x10] sm:$0xff]
        %v5564 = vld [vmem:[%s5560 + $0x18] sm:$0xff]
        %v5565 = vld [vmem:[%s5560 + $0x20] sm:$0xff]
        %v5566 = vld [vmem:[%s5560 + $0x28] sm:$0xff]
        %v5567 = vld [vmem:[%s5560 + $0x30] sm:$0xff]
        %v5568 = vld [vmem:[%s5560 + $0x38] sm:$0xff]
        %v5569 = vld [vmem:[%s5560 + $0x40] sm:$0xff]
        %v5570 = vld [vmem:[%s5560 + $0x48] sm:$0xff]
        %v5571 = vld [vmem:[%s5560 + $0x50] sm:$0xff]
        %v5572 = vld [vmem:[%s5560 + $0x58] sm:$0xff]
        %v5573 = vld [vmem:[%s5560 + $0x60] sm:$0xff]
        %v5574 = vld [vmem:[%s5560 + $0x68] sm:$0xff]
        %v5575 = vld [vmem:[%s5560 + $0x70] sm:$0xff]
        %v5576 = vld [vmem:[%s5560 + $0x78] sm:$0xff]
        %5577 = vset.pattern.permute.xlu0 5
        %5578 = vperm.xlu0 %5577, %v185
        %v5579 = vpop.permute.xlu0 %5578
        %5581 = vset.pattern.permute.xlu0 5
        %5582 = vperm.xlu0 %5581, %v186
        %v5583 = vpop.permute.xlu0 %5582
        %5585 = vset.pattern.permute.xlu0 5
        %5586 = vperm.xlu0 %5585, %v187
        %v5587 = vpop.permute.xlu0 %5586
        %5589 = vset.pattern.permute.xlu0 5
        %5590 = vperm.xlu0 %5589, %v188
        %v5591 = vpop.permute.xlu0 %5590
        %5593 = vset.pattern.permute.xlu0 5
        %5594 = vperm.xlu0 %5593, %v189
        %v5595 = vpop.permute.xlu0 %5594
        %5597 = vset.pattern.permute.xlu0 5
        %5598 = vperm.xlu0 %5597, %v190
        %v5599 = vpop.permute.xlu0 %5598
        %5601 = vset.pattern.permute.xlu0 5
        %5602 = vperm.xlu0 %5601, %v191
        %v5603 = vpop.permute.xlu0 %5602
        %5605 = vset.pattern.permute.xlu0 5
        %5606 = vperm.xlu0 %5605, %v192
        %v5607 = vpop.permute.xlu0 %5606
        %5609 = vset.pattern.permute.xlu0 5
        %5610 = vperm.xlu0 %5609, %v193
        %v5611 = vpop.permute.xlu0 %5610
        %5613 = vset.pattern.permute.xlu0 5
        %5614 = vperm.xlu0 %5613, %v194
        %v5615 = vpop.permute.xlu0 %5614
        %5617 = vset.pattern.permute.xlu0 5
        %5618 = vperm.xlu0 %5617, %v195
        %v5619 = vpop.permute.xlu0 %5618
        %5621 = vset.pattern.permute.xlu0 5
        %5622 = vperm.xlu0 %5621, %v196
        %v5623 = vpop.permute.xlu0 %5622
        %5625 = vset.pattern.permute.xlu0 5
        %5626 = vperm.xlu0 %5625, %v197
        %v5627 = vpop.permute.xlu0 %5626
        %5629 = vset.pattern.permute.xlu0 5
        %5630 = vperm.xlu0 %5629, %v198
        %v5631 = vpop.permute.xlu0 %5630
        %5633 = vset.pattern.permute.xlu0 5
        %5634 = vperm.xlu0 %5633, %v199
        %v5635 = vpop.permute.xlu0 %5634
        %5637 = vset.pattern.permute.xlu0 5
        %5638 = vperm.xlu0 %5637, %v200
        %v5639 = vpop.permute.xlu0 %5638
        %v5641 = vand.u32 %v5529, 4294901760
        %5642 = vmatprep.subr.mxu0 %v5641
        %v5643 = vand.u32 %v5528, 4294901760
        %5644 = vmatpush1.msra.mxu0 %v5643
        %v5645 = vand.u32 %v5531, 4294901760
        %5646 = vmatprep.subr.mxu0 %v5645
        %v5647 = vand.u32 %v5530, 4294901760
        %5648 = vmatpush1.msra.mxu0 %v5647
        %v5649 = vand.u32 %v5533, 4294901760
        %5650 = vmatprep.subr.mxu0 %v5649
        %v5651 = vand.u32 %v5532, 4294901760
        %5652 = vmatpush1.msra.mxu0 %v5651
        %v5653 = vand.u32 %v5535, 4294901760
        %5654 = vmatprep.subr.mxu0 %v5653
        %v5655 = vand.u32 %v5534, 4294901760
        %5656 = vmatpush1.msra.mxu0 %v5655
        %v5657 = vand.u32 %v5537, 4294901760
        %5658 = vmatprep.subr.mxu0 %v5657
        %v5659 = vand.u32 %v5536, 4294901760
        %5660 = vmatpush1.msra.mxu0 %v5659
        %v5661 = vand.u32 %v5539, 4294901760
        %5662 = vmatprep.subr.mxu0 %v5661
        %v5663 = vand.u32 %v5538, 4294901760
        %5664 = vmatpush1.msra.mxu0 %v5663
        %v5665 = vand.u32 %v5541, 4294901760
        %5666 = vmatprep.subr.mxu0 %v5665
        %v5667 = vand.u32 %v5540, 4294901760
        %5668 = vmatpush1.msra.mxu0 %v5667
        %v5669 = vand.u32 %v5543, 4294901760
        %5670 = vmatprep.subr.mxu0 %v5669
        %v5671 = vand.u32 %v5542, 4294901760
        %5672 = vmatpush1.msra.mxu0 %v5671
        %v5673 = vand.u32 %v5545, 4294901760
        %5674 = vmatprep.subr.mxu0 %v5673
        %v5675 = vand.u32 %v5544, 4294901760
        %5676 = vmatpush1.msra.mxu0 %v5675
        %v5677 = vand.u32 %v5547, 4294901760
        %5678 = vmatprep.subr.mxu0 %v5677
        %v5679 = vand.u32 %v5546, 4294901760
        %5680 = vmatpush1.msra.mxu0 %v5679
        %v5681 = vand.u32 %v5549, 4294901760
        %5682 = vmatprep.subr.mxu0 %v5681
        %v5683 = vand.u32 %v5548, 4294901760
        %5684 = vmatpush1.msra.mxu0 %v5683
        %v5685 = vand.u32 %v5551, 4294901760
        %5686 = vmatprep.subr.mxu0 %v5685
        %v5687 = vand.u32 %v5550, 4294901760
        %5688 = vmatpush1.msra.mxu0 %v5687
        %v5689 = vand.u32 %v5553, 4294901760
        %5690 = vmatprep.subr.mxu0 %v5689
        %v5691 = vand.u32 %v5552, 4294901760
        %5692 = vmatpush1.msra.mxu0 %v5691
        %v5693 = vand.u32 %v5555, 4294901760
        %5694 = vmatprep.subr.mxu0 %v5693
        %v5695 = vand.u32 %v5554, 4294901760
        %5696 = vmatpush1.msra.mxu0 %v5695
        %v5697 = vand.u32 %v5557, 4294901760
        %5698 = vmatprep.subr.mxu0 %v5697
        %v5699 = vand.u32 %v5556, 4294901760
        %5700 = vmatpush1.msra.mxu0 %v5699
        %v5701 = vand.u32 %v5559, 4294901760
        %5702 = vmatprep.subr.mxu0 %v5701
        %v5703 = vand.u32 %v5558, 4294901760
        %5704 = vmatpush1.msra.mxu0 %v5703
        %5705 = vmatprep.subr.mxu0 0.0
        %5706 = vmatpush1.msra.mxu0 0.0
        %5707 = vmatprep.subr.mxu0 0.0
        %5708 = vmatpush1.msra.mxu0 0.0
        %5709 = vmatprep.subr.mxu0 0.0
        %5710 = vmatpush1.msra.mxu0 0.0
        %5711 = vmatprep.subr.mxu0 0.0
        %5712 = vmatpush1.msra.mxu0 0.0
        %5713 = vmatprep.subr.mxu0 0.0
        %5714 = vmatpush1.msra.mxu0 0.0
        %5715 = vmatprep.subr.mxu0 0.0
        %5716 = vmatpush1.msra.mxu0 0.0
        %5717 = vmatprep.subr.mxu0 0.0
        %5718 = vmatpush1.msra.mxu0 0.0
        %5719 = vmatprep.subr.mxu0 0.0
        %5720 = vmatpush1.msra.mxu0 0.0
        %5721 = vmatprep.subr.mxu0 0.0
        %5722 = vmatpush1.msra.mxu0 0.0
        %5723 = vmatprep.subr.mxu0 0.0
        %5724 = vmatpush1.msra.mxu0 0.0
        %5725 = vmatprep.subr.mxu0 0.0
        %5726 = vmatpush1.msra.mxu0 0.0
        %5727 = vmatprep.subr.mxu0 0.0
        %5728 = vmatpush1.msra.mxu0 0.0
        %5729 = vmatprep.subr.mxu0 0.0
        %5730 = vmatpush1.msra.mxu0 0.0
        %5731 = vmatprep.subr.mxu0 0.0
        %5732 = vmatpush1.msra.mxu0 0.0
        %5733 = vmatprep.subr.mxu0 0.0
        %5734 = vmatpush1.msra.mxu0 0.0
        %5735 = vmatprep.subr.mxu0 0.0
        %5736 = vmatpush1.msra.mxu0 0.0
        %5737 = vmatprep.mubr.f32.mxu0 0.0
        %v5738 = vand.u32 %v5561, 4294901760
        %v5739 = vsub.f32 %v5561, %v5738
        %v5740 = vand.u32 %v5739, 4294901760
        %v5741 = vsub.f32 %v5739, %v5740
        %v5742 = vand.u32 %v5741, 4294901760
        %5743 = vmatmul.mubr.f32.gmra.mrb[0].mxu0 %v5742
        %v5744 = vpop.f32.mrb[0].mxu0
        %v5745 = vadd.f32 %v5579, %v5744
        %v5746 = vpop.f32.mrb[0].mxu0
        %v5747 = vadd.f32 %v5579, %v5746
        %5748 = vmatprep.mubr.f32.mxu0 0.0
        %v5749 = vand.u32 %v5562, 4294901760
        %v5750 = vsub.f32 %v5562, %v5749
        %v5751 = vand.u32 %v5750, 4294901760
        %v5752 = vsub.f32 %v5750, %v5751
        %v5753 = vand.u32 %v5752, 4294901760
        %5754 = vmatmul.mubr.f32.gmra.mrb[0].mxu0 %v5753
        %v5755 = vpop.f32.mrb[0].mxu0
        %v5756 = vadd.f32 %v5583, %v5755
        %v5757 = vpop.f32.mrb[0].mxu0
        %v5758 = vadd.f32 %v5583, %v5757
        %5759 = vmatprep.mubr.f32.mxu0 0.0
        %v5760 = vand.u32 %v5563, 4294901760
        %v5761 = vsub.f32 %v5563, %v5760
        %v5762 = vand.u32 %v5761, 4294901760
        %v5763 = vsub.f32 %v5761, %v5762
        %v5764 = vand.u32 %v5763, 4294901760
        %5765 = vmatmul.mubr.f32.gmra.mrb[0].mxu0 %v5764
        %v5766 = vpop.f32.mrb[0].mxu0
        %v5767 = vadd.f32 %v5587, %v5766
        %v5768 = vpop.f32.mrb[0].mxu0
        %v5769 = vadd.f32 %v5587, %v5768
        %5770 = vmatprep.mubr.f32.mxu0 0.0
        %v5771 = vand.u32 %v5564, 4294901760
        %v5772 = vsub.f32 %v5564, %v5771
        %v5773 = vand.u32 %v5772, 4294901760
        %v5774 = vsub.f32 %v5772, %v5773
        %v5775 = vand.u32 %v5774, 4294901760
        %5776 = vmatmul.mubr.f32.gmra.mrb[0].mxu0 %v5775
        %v5777 = vpop.f32.mrb[0].mxu0
        %v5778 = vadd.f32 %v5591, %v5777
        %v5779 = vpop.f32.mrb[0].mxu0
        %v5780 = vadd.f32 %v5591, %v5779
        %5781 = vmatprep.mubr.f32.mxu0 0.0
        %v5782 = vand.u32 %v5565, 4294901760
        %v5783 = vsub.f32 %v5565, %v5782
        %v5784 = vand.u32 %v5783, 4294901760
        %v5785 = vsub.f32 %v5783, %v5784
        %v5786 = vand.u32 %v5785, 4294901760
        %5787 = vmatmul.mubr.f32.gmra.mrb[0].mxu0 %v5786
        %v5788 = vpop.f32.mrb[0].mxu0
        %v5789 = vadd.f32 %v5595, %v5788
        %v5790 = vpop.f32.mrb[0].mxu0
        %v5791 = vadd.f32 %v5595, %v5790
        %5792 = vmatprep.mubr.f32.mxu0 0.0
        %v5793 = vand.u32 %v5566, 4294901760
        %v5794 = vsub.f32 %v5566, %v5793
        %v5795 = vand.u32 %v5794, 4294901760
        %v5796 = vsub.f32 %v5794, %v5795
        %v5797 = vand.u32 %v5796, 4294901760
        %5798 = vmatmul.mubr.f32.gmra.mrb[0].mxu0 %v5797
        %v5799 = vpop.f32.mrb[0].mxu0
        %v5800 = vadd.f32 %v5599, %v5799
        %v5801 = vpop.f32.mrb[0].mxu0
        %v5802 = vadd.f32 %v5599, %v5801
        %5803 = vmatprep.mubr.f32.mxu0 0.0
        %v5804 = vand.u32 %v5567, 4294901760
        %v5805 = vsub.f32 %v5567, %v5804
        %v5806 = vand.u32 %v5805, 4294901760
        %v5807 = vsub.f32 %v5805, %v5806
        %v5808 = vand.u32 %v5807, 4294901760
        %5809 = vmatmul.mubr.f32.gmra.mrb[0].mxu0 %v5808
        %v5810 = vpop.f32.mrb[0].mxu0
        %v5811 = vadd.f32 %v5603, %v5810
        %v5812 = vpop.f32.mrb[0].mxu0
        %v5813 = vadd.f32 %v5603, %v5812
        %5814 = vmatprep.mubr.f32.mxu0 0.0
        %v5815 = vand.u32 %v5568, 4294901760
        %v5816 = vsub.f32 %v5568, %v5815
        %v5817 = vand.u32 %v5816, 4294901760
        %v5818 = vsub.f32 %v5816, %v5817
        %v5819 = vand.u32 %v5818, 4294901760
        %5820 = vmatmul.mubr.f32.gmra.mrb[0].mxu0 %v5819
        %v5821 = vpop.f32.mrb[0].mxu0
        %v5822 = vadd.f32 %v5607, %v5821
        %v5823 = vpop.f32.mrb[0].mxu0
        %v5824 = vadd.f32 %v5607, %v5823
        %5825 = vmatprep.mubr.f32.mxu0 0.0
        %v5826 = vand.u32 %v5569, 4294901760
        %v5827 = vsub.f32 %v5569, %v5826
        %v5828 = vand.u32 %v5827, 4294901760
        %v5829 = vsub.f32 %v5827, %v5828
        %v5830 = vand.u32 %v5829, 4294901760
        %5831 = vmatmul.mubr.f32.gmra.mrb[0].mxu0 %v5830
        %v5832 = vpop.f32.mrb[0].mxu0
        %v5833 = vadd.f32 %v5611, %v5832
        %v5834 = vpop.f32.mrb[0].mxu0
        %v5835 = vadd.f32 %v5611, %v5834
        %5836 = vmatprep.mubr.f32.mxu0 0.0
        %v5837 = vand.u32 %v5570, 4294901760
        %v5838 = vsub.f32 %v5570, %v5837
        %v5839 = vand.u32 %v5838, 4294901760
        %v5840 = vsub.f32 %v5838, %v5839
        %v5841 = vand.u32 %v5840, 4294901760
        %5842 = vmatmul.mubr.f32.gmra.mrb[0].mxu0 %v5841
        %v5843 = vpop.f32.mrb[0].mxu0
        %v5844 = vadd.f32 %v5615, %v5843
        %v5845 = vpop.f32.mrb[0].mxu0
        %v5846 = vadd.f32 %v5615, %v5845
        %5847 = vmatprep.mubr.f32.mxu0 0.0
        %v5848 = vand.u32 %v5571, 4294901760
        %v5849 = vsub.f32 %v5571, %v5848
        %v5850 = vand.u32 %v5849, 4294901760
        %v5851 = vsub.f32 %v5849, %v5850
        %v5852 = vand.u32 %v5851, 4294901760
        %5853 = vmatmul.mubr.f32.gmra.mrb[0].mxu0 %v5852
        %v5854 = vpop.f32.mrb[0].mxu0
        %v5855 = vadd.f32 %v5619, %v5854
        %v5856 = vpop.f32.mrb[0].mxu0
        %v5857 = vadd.f32 %v5619, %v5856
        %5858 = vmatprep.mubr.f32.mxu0 0.0
        %v5859 = vand.u32 %v5572, 4294901760
        %v5860 = vsub.f32 %v5572, %v5859
        %v5861 = vand.u32 %v5860, 4294901760
        %v5862 = vsub.f32 %v5860, %v5861
        %v5863 = vand.u32 %v5862, 4294901760
        %5864 = vmatmul.mubr.f32.gmra.mrb[0].mxu0 %v5863
        %v5865 = vpop.f32.mrb[0].mxu0
        %v5866 = vadd.f32 %v5623, %v5865
        %v5867 = vpop.f32.mrb[0].mxu0
        %v5868 = vadd.f32 %v5623, %v5867
        %5869 = vmatprep.mubr.f32.mxu0 0.0
        %v5870 = vand.u32 %v5573, 4294901760
        %v5871 = vsub.f32 %v5573, %v5870
        %v5872 = vand.u32 %v5871, 4294901760
        %v5873 = vsub.f32 %v5871, %v5872
        %v5874 = vand.u32 %v5873, 4294901760
        %5875 = vmatmul.mubr.f32.gmra.mrb[0].mxu0 %v5874
        %v5876 = vpop.f32.mrb[0].mxu0
        %v5877 = vadd.f32 %v5627, %v5876
        %v5878 = vpop.f32.mrb[0].mxu0
        %v5879 = vadd.f32 %v5627, %v5878
        %5880 = vmatprep.mubr.f32.mxu0 0.0
        %v5881 = vand.u32 %v5574, 4294901760
        %v5882 = vsub.f32 %v5574, %v5881
        %v5883 = vand.u32 %v5882, 4294901760
        %v5884 = vsub.f32 %v5882, %v5883
        %v5885 = vand.u32 %v5884, 4294901760
        %5886 = vmatmul.mubr.f32.gmra.mrb[0].mxu0 %v5885
        %v5887 = vpop.f32.mrb[0].mxu0
        %v5888 = vadd.f32 %v5631, %v5887
        %v5889 = vpop.f32.mrb[0].mxu0
        %v5890 = vadd.f32 %v5631, %v5889
        %5891 = vmatprep.mubr.f32.mxu0 0.0
        %v5892 = vand.u32 %v5575, 4294901760
        %v5893 = vsub.f32 %v5575, %v5892
        %v5894 = vand.u32 %v5893, 4294901760
        %v5895 = vsub.f32 %v5893, %v5894
        %v5896 = vand.u32 %v5895, 4294901760
        %5897 = vmatmul.mubr.f32.gmra.mrb[0].mxu0 %v5896
        %v5898 = vpop.f32.mrb[0].mxu0
        %v5899 = vadd.f32 %v5635, %v5898
        %v5900 = vpop.f32.mrb[0].mxu0
        %v5901 = vadd.f32 %v5635, %v5900
        %5902 = vmatprep.mubr.f32.mxu0 0.0
        %v5903 = vand.u32 %v5576, 4294901760
        %v5904 = vsub.f32 %v5576, %v5903
        %v5905 = vand.u32 %v5904, 4294901760
        %v5906 = vsub.f32 %v5904, %v5905
        %v5907 = vand.u32 %v5906, 4294901760
        %5908 = vmatmul.mubr.f32.gmra.mrb[0].mxu0 %v5907
        %v5909 = vpop.f32.mrb[0].mxu0
        %v5910 = vadd.f32 %v5639, %v5909
        %v5911 = vpop.f32.mrb[0].mxu0
        %v5912 = vadd.f32 %v5639, %v5911
        %5913 = vdwg.mxu0
        %v5914 = vand.u32 %v5529, 4294901760
        %v5915 = vsub.f32 %v5529, %v5914
        %v5916 = vand.u32 %v5915, 4294901760
        %v5917 = vsub.f32 %v5915, %v5916
        %v5918 = vand.u32 %v5917, 4294901760
        %5919 = vmatprep.subr.mxu0 %v5918
        %v5920 = vand.u32 %v5528, 4294901760
        %v5921 = vsub.f32 %v5528, %v5920
        %v5922 = vand.u32 %v5921, 4294901760
        %v5923 = vsub.f32 %v5921, %v5922
        %v5924 = vand.u32 %v5923, 4294901760
        %5925 = vmatpush1.msra.mxu0 %v5924
        %v5926 = vand.u32 %v5531, 4294901760
        %v5927 = vsub.f32 %v5531, %v5926
        %v5928 = vand.u32 %v5927, 4294901760
        %v5929 = vsub.f32 %v5927, %v5928
        %v5930 = vand.u32 %v5929, 4294901760
        %5931 = vmatprep.subr.mxu0 %v5930
        %v5932 = vand.u32 %v5530, 4294901760
        %v5933 = vsub.f32 %v5530, %v5932
        %v5934 = vand.u32 %v5933, 4294901760
        %v5935 = vsub.f32 %v5933, %v5934
        %v5936 = vand.u32 %v5935, 4294901760
        %5937 = vmatpush1.msra.mxu0 %v5936
        %v5938 = vand.u32 %v5533, 4294901760
        %v5939 = vsub.f32 %v5533, %v5938
        %v5940 = vand.u32 %v5939, 4294901760
        %v5941 = vsub.f32 %v5939, %v5940
        %v5942 = vand.u32 %v5941, 4294901760
        %5943 = vmatprep.subr.mxu0 %v5942
        %v5944 = vand.u32 %v5532, 4294901760
        %v5945 = vsub.f32 %v5532, %v5944
        %v5946 = vand.u32 %v5945, 4294901760
        %v5947 = vsub.f32 %v5945, %v5946
        %v5948 = vand.u32 %v5947, 4294901760
        %5949 = vmatpush1.msra.mxu0 %v5948
        %v5950 = vand.u32 %v5535, 4294901760
        %v5951 = vsub.f32 %v5535, %v5950
        %v5952 = vand.u32 %v5951, 4294901760
        %v5953 = vsub.f32 %v5951, %v5952
        %v5954 = vand.u32 %v5953, 4294901760
        %5955 = vmatprep.subr.mxu0 %v5954
        %v5956 = vand.u32 %v5534, 4294901760
        %v5957 = vsub.f32 %v5534, %v5956
        %v5958 = vand.u32 %v5957, 4294901760
        %v5959 = vsub.f32 %v5957, %v5958
        %v5960 = vand.u32 %v5959, 4294901760
        %5961 = vmatpush1.msra.mxu0 %v5960
        %v5962 = vand.u32 %v5537, 4294901760
        %v5963 = vsub.f32 %v5537, %v5962
        %v5964 = vand.u32 %v5963, 4294901760
        %v5965 = vsub.f32 %v5963, %v5964
        %v5966 = vand.u32 %v5965, 4294901760
        %5967 = vmatprep.subr.mxu0 %v5966
        %v5968 = vand.u32 %v5536, 4294901760
        %v5969 = vsub.f32 %v5536, %v5968
        %v5970 = vand.u32 %v5969, 4294901760
        %v5971 = vsub.f32 %v5969, %v5970
        %v5972 = vand.u32 %v5971, 4294901760
        %5973 = vmatpush1.msra.mxu0 %v5972
        %v5974 = vand.u32 %v5539, 4294901760
        %v5975 = vsub.f32 %v5539, %v5974
        %v5976 = vand.u32 %v5975, 4294901760
        %v5977 = vsub.f32 %v5975, %v5976
        %v5978 = vand.u32 %v5977, 4294901760
        %5979 = vmatprep.subr.mxu0 %v5978
        %v5980 = vand.u32 %v5538, 4294901760
        %v5981 = vsub.f32 %v5538, %v5980
        %v5982 = vand.u32 %v5981, 4294901760
        %v5983 = vsub.f32 %v5981, %v5982
        %v5984 = vand.u32 %v5983, 4294901760
        %5985 = vmatpush1.msra.mxu0 %v5984
        %v5986 = vand.u32 %v5541, 4294901760
        %v5987 = vsub.f32 %v5541, %v5986
        %v5988 = vand.u32 %v5987, 4294901760
        %v5989 = vsub.f32 %v5987, %v5988
        %v5990 = vand.u32 %v5989, 4294901760
        %5991 = vmatprep.subr.mxu0 %v5990
        %v5992 = vand.u32 %v5540, 4294901760
        %v5993 = vsub.f32 %v5540, %v5992
        %v5994 = vand.u32 %v5993, 4294901760
        %v5995 = vsub.f32 %v5993, %v5994
        %v5996 = vand.u32 %v5995, 4294901760
        %5997 = vmatpush1.msra.mxu0 %v5996
        %v5998 = vand.u32 %v5543, 4294901760
        %v5999 = vsub.f32 %v5543, %v5998
        %v6000 = vand.u32 %v5999, 4294901760
        %v6001 = vsub.f32 %v5999, %v6000
        %v6002 = vand.u32 %v6001, 4294901760
        %6003 = vmatprep.subr.mxu0 %v6002
        %v6004 = vand.u32 %v5542, 4294901760
        %v6005 = vsub.f32 %v5542, %v6004
        %v6006 = vand.u32 %v6005, 4294901760
        %v6007 = vsub.f32 %v6005, %v6006
        %v6008 = vand.u32 %v6007, 4294901760
        %6009 = vmatpush1.msra.mxu0 %v6008
        %v6010 = vand.u32 %v5545, 4294901760
        %v6011 = vsub.f32 %v5545, %v6010
        %v6012 = vand.u32 %v6011, 4294901760
        %v6013 = vsub.f32 %v6011, %v6012
        %v6014 = vand.u32 %v6013, 4294901760
        %6015 = vmatprep.subr.mxu0 %v6014
        %v6016 = vand.u32 %v5544, 4294901760
        %v6017 = vsub.f32 %v5544, %v6016
        %v6018 = vand.u32 %v6017, 4294901760
        %v6019 = vsub.f32 %v6017, %v6018
        %v6020 = vand.u32 %v6019, 4294901760
        %6021 = vmatpush1.msra.mxu0 %v6020
        %v6022 = vand.u32 %v5547, 4294901760
        %v6023 = vsub.f32 %v5547, %v6022
        %v6024 = vand.u32 %v6023, 4294901760
        %v6025 = vsub.f32 %v6023, %v6024
        %v6026 = vand.u32 %v6025, 4294901760
        %6027 = vmatprep.subr.mxu0 %v6026
        %v6028 = vand.u32 %v5546, 4294901760
        %v6029 = vsub.f32 %v5546, %v6028
        %v6030 = vand.u32 %v6029, 4294901760
        %v6031 = vsub.f32 %v6029, %v6030
        %v6032 = vand.u32 %v6031, 4294901760
        %6033 = vmatpush1.msra.mxu0 %v6032
        %v6034 = vand.u32 %v5549, 4294901760
        %v6035 = vsub.f32 %v5549, %v6034
        %v6036 = vand.u32 %v6035, 4294901760
        %v6037 = vsub.f32 %v6035, %v6036
        %v6038 = vand.u32 %v6037, 4294901760
        %6039 = vmatprep.subr.mxu0 %v6038
        %v6040 = vand.u32 %v5548, 4294901760
        %v6041 = vsub.f32 %v5548, %v6040
        %v6042 = vand.u32 %v6041, 4294901760
        %v6043 = vsub.f32 %v6041, %v6042
        %v6044 = vand.u32 %v6043, 4294901760
        %6045 = vmatpush1.msra.mxu0 %v6044
        %v6046 = vand.u32 %v5551, 4294901760
        %v6047 = vsub.f32 %v5551, %v6046
        %v6048 = vand.u32 %v6047, 4294901760
        %v6049 = vsub.f32 %v6047, %v6048
        %v6050 = vand.u32 %v6049, 4294901760
        %6051 = vmatprep.subr.mxu0 %v6050
        %v6052 = vand.u32 %v5550, 4294901760
        %v6053 = vsub.f32 %v5550, %v6052
        %v6054 = vand.u32 %v6053, 4294901760
        %v6055 = vsub.f32 %v6053, %v6054
        %v6056 = vand.u32 %v6055, 4294901760
        %6057 = vmatpush1.msra.mxu0 %v6056
        %v6058 = vand.u32 %v5553, 4294901760
        %v6059 = vsub.f32 %v5553, %v6058
        %v6060 = vand.u32 %v6059, 4294901760
        %v6061 = vsub.f32 %v6059, %v6060
        %v6062 = vand.u32 %v6061, 4294901760
        %6063 = vmatprep.subr.mxu0 %v6062
        %v6064 = vand.u32 %v5552, 4294901760
        %v6065 = vsub.f32 %v5552, %v6064
        %v6066 = vand.u32 %v6065, 4294901760
        %v6067 = vsub.f32 %v6065, %v6066
        %v6068 = vand.u32 %v6067, 4294901760
        %6069 = vmatpush1.msra.mxu0 %v6068
        %v6070 = vand.u32 %v5555, 4294901760
        %v6071 = vsub.f32 %v5555, %v6070
        %v6072 = vand.u32 %v6071, 4294901760
        %v6073 = vsub.f32 %v6071, %v6072
        %v6074 = vand.u32 %v6073, 4294901760
        %6075 = vmatprep.subr.mxu0 %v6074
        %v6076 = vand.u32 %v5554, 4294901760
        %v6077 = vsub.f32 %v5554, %v6076
        %v6078 = vand.u32 %v6077, 4294901760
        %v6079 = vsub.f32 %v6077, %v6078
        %v6080 = vand.u32 %v6079, 4294901760
        %6081 = vmatpush1.msra.mxu0 %v6080
        %v6082 = vand.u32 %v5557, 4294901760
        %v6083 = vsub.f32 %v5557, %v6082
        %v6084 = vand.u32 %v6083, 4294901760
        %v6085 = vsub.f32 %v6083, %v6084
        %v6086 = vand.u32 %v6085, 4294901760
        %6087 = vmatprep.subr.mxu0 %v6086
        %v6088 = vand.u32 %v5556, 4294901760
        %v6089 = vsub.f32 %v5556, %v6088
        %v6090 = vand.u32 %v6089, 4294901760
        %v6091 = vsub.f32 %v6089, %v6090
        %v6092 = vand.u32 %v6091, 4294901760
        %6093 = vmatpush1.msra.mxu0 %v6092
        %v6094 = vand.u32 %v5559, 4294901760
        %v6095 = vsub.f32 %v5559, %v6094
        %v6096 = vand.u32 %v6095, 4294901760
        %v6097 = vsub.f32 %v6095, %v6096
        %v6098 = vand.u32 %v6097, 4294901760
        %6099 = vmatprep.subr.mxu0 %v6098
        %v6100 = vand.u32 %v5558, 4294901760
        %v6101 = vsub.f32 %v5558, %v6100
        %v6102 = vand.u32 %v6101, 4294901760
        %v6103 = vsub.f32 %v6101, %v6102
        %v6104 = vand.u32 %v6103, 4294901760
        %6105 = vmatpush1.msra.mxu0 %v6104
        %6106 = vmatprep.subr.mxu0 0.0
        %6107 = vmatpush1.msra.mxu0 0.0
        %6108 = vmatprep.subr.mxu0 0.0
        %6109 = vmatpush1.msra.mxu0 0.0
        %6110 = vmatprep.subr.mxu0 0.0
        %6111 = vmatpush1.msra.mxu0 0.0
        %6112 = vmatprep.subr.mxu0 0.0
        %6113 = vmatpush1.msra.mxu0 0.0
        %6114 = vmatprep.subr.mxu0 0.0
        %6115 = vmatpush1.msra.mxu0 0.0
        %6116 = vmatprep.subr.mxu0 0.0
        %6117 = vmatpush1.msra.mxu0 0.0
        %6118 = vmatprep.subr.mxu0 0.0
        %6119 = vmatpush1.msra.mxu0 0.0
        %6120 = vmatprep.subr.mxu0 0.0
        %6121 = vmatpush1.msra.mxu0 0.0
        %6122 = vmatprep.subr.mxu0 0.0
        %6123 = vmatpush1.msra.mxu0 0.0
        %6124 = vmatprep.subr.mxu0 0.0
        %6125 = vmatpush1.msra.mxu0 0.0
        %6126 = vmatprep.subr.mxu0 0.0
        %6127 = vmatpush1.msra.mxu0 0.0
        %6128 = vmatprep.subr.mxu0 0.0
        %6129 = vmatpush1.msra.mxu0 0.0
        %6130 = vmatprep.subr.mxu0 0.0
        %6131 = vmatpush1.msra.mxu0 0.0
        %6132 = vmatprep.subr.mxu0 0.0
        %6133 = vmatpush1.msra.mxu0 0.0
        %6134 = vmatprep.subr.mxu0 0.0
        %6135 = vmatpush1.msra.mxu0 0.0
        %6136 = vmatprep.subr.mxu0 0.0
        %6137 = vmatpush1.msra.mxu0 0.0
        %6138 = vmatprep.mubr.f32.mxu0 0.0
        %v6139 = vand.u32 %v5561, 4294901760
        %6140 = vmatmul.mubr.f32.gmra.mrb[0].mxu0 %v6139
        %v6141 = vpop.f32.mrb[0].mxu0
        %v6142 = vadd.f32 %v5745, %v6141
        %v6143 = vpop.f32.mrb[0].mxu0
        %v6144 = vadd.f32 %v5747, %v6143
        %6145 = vmatprep.mubr.f32.mxu0 0.0
        %v6146 = vand.u32 %v5562, 4294901760
        %6147 = vmatmul.mubr.f32.gmra.mrb[0].mxu0 %v6146
        %v6148 = vpop.f32.mrb[0].mxu0
        %v6149 = vadd.f32 %v5756, %v6148
        %v6150 = vpop.f32.mrb[0].mxu0
        %v6151 = vadd.f32 %v5758, %v6150
        %6152 = vmatprep.mubr.f32.mxu0 0.0
        %v6153 = vand.u32 %v5563, 4294901760
        %6154 = vmatmul.mubr.f32.gmra.mrb[0].mxu0 %v6153
        %v6155 = vpop.f32.mrb[0].mxu0
        %v6156 = vadd.f32 %v5767, %v6155
        %v6157 = vpop.f32.mrb[0].mxu0
        %v6158 = vadd.f32 %v5769, %v6157
        %6159 = vmatprep.mubr.f32.mxu0 0.0
        %v6160 = vand.u32 %v5564, 4294901760
        %6161 = vmatmul.mubr.f32.gmra.mrb[0].mxu0 %v6160
        %v6162 = vpop.f32.mrb[0].mxu0
        %v6163 = vadd.f32 %v5778, %v6162
        %v6164 = vpop.f32.mrb[0].mxu0
        %v6165 = vadd.f32 %v5780, %v6164
        %6166 = vmatprep.mubr.f32.mxu0 0.0
        %v6167 = vand.u32 %v5565, 4294901760
        %6168 = vmatmul.mubr.f32.gmra.mrb[0].mxu0 %v6167
        %v6169 = vpop.f32.mrb[0].mxu0
        %v6170 = vadd.f32 %v5789, %v6169
        %v6171 = vpop.f32.mrb[0].mxu0
        %v6172 = vadd.f32 %v5791, %v6171
        %6173 = vmatprep.mubr.f32.mxu0 0.0
        %v6174 = vand.u32 %v5566, 4294901760
        %6175 = vmatmul.mubr.f32.gmra.mrb[0].mxu0 %v6174
        %v6176 = vpop.f32.mrb[0].mxu0
        %v6177 = vadd.f32 %v5800, %v6176
        %v6178 = vpop.f32.mrb[0].mxu0
        %v6179 = vadd.f32 %v5802, %v6178
        %6180 = vmatprep.mubr.f32.mxu0 0.0
        %v6181 = vand.u32 %v5567, 4294901760
        %6182 = vmatmul.mubr.f32.gmra.mrb[0].mxu0 %v6181
        %v6183 = vpop.f32.mrb[0].mxu0
        %v6184 = vadd.f32 %v5811, %v6183
        %v6185 = vpop.f32.mrb[0].mxu0
        %v6186 = vadd.f32 %v5813, %v6185
        %6187 = vmatprep.mubr.f32.mxu0 0.0
        %v6188 = vand.u32 %v5568, 4294901760
        %6189 = vmatmul.mubr.f32.gmra.mrb[0].mxu0 %v6188
        %v6190 = vpop.f32.mrb[0].mxu0
        %v6191 = vadd.f32 %v5822, %v6190
        %v6192 = vpop.f32.mrb[0].mxu0
        %v6193 = vadd.f32 %v5824, %v6192
        %6194 = vmatprep.mubr.f32.mxu0 0.0
        %v6195 = vand.u32 %v5569, 4294901760
        %6196 = vmatmul.mubr.f32.gmra.mrb[0].mxu0 %v6195
        %v6197 = vpop.f32.mrb[0].mxu0
        %v6198 = vadd.f32 %v5833, %v6197
        %v6199 = vpop.f32.mrb[0].mxu0
        %v6200 = vadd.f32 %v5835, %v6199
        %6201 = vmatprep.mubr.f32.mxu0 0.0
        %v6202 = vand.u32 %v5570, 4294901760
        %6203 = vmatmul.mubr.f32.gmra.mrb[0].mxu0 %v6202
        %v6204 = vpop.f32.mrb[0].mxu0
        %v6205 = vadd.f32 %v5844, %v6204
        %v6206 = vpop.f32.mrb[0].mxu0
        %v6207 = vadd.f32 %v5846, %v6206
        %6208 = vmatprep.mubr.f32.mxu0 0.0
        %v6209 = vand.u32 %v5571, 4294901760
        %6210 = vmatmul.mubr.f32.gmra.mrb[0].mxu0 %v6209
        %v6211 = vpop.f32.mrb[0].mxu0
        %v6212 = vadd.f32 %v5855, %v6211
        %v6213 = vpop.f32.mrb[0].mxu0
        %v6214 = vadd.f32 %v5857, %v6213
        %6215 = vmatprep.mubr.f32.mxu0 0.0
        %v6216 = vand.u32 %v5572, 4294901760
        %6217 = vmatmul.mubr.f32.gmra.mrb[0].mxu0 %v6216
        %v6218 = vpop.f32.mrb[0].mxu0
        %v6219 = vadd.f32 %v5866, %v6218
        %v6220 = vpop.f32.mrb[0].mxu0
        %v6221 = vadd.f32 %v5868, %v6220
        %6222 = vmatprep.mubr.f32.mxu0 0.0
        %v6223 = vand.u32 %v5573, 4294901760
        %6224 = vmatmul.mubr.f32.gmra.mrb[0].mxu0 %v6223
        %v6225 = vpop.f32.mrb[0].mxu0
        %v6226 = vadd.f32 %v5877, %v6225
        %v6227 = vpop.f32.mrb[0].mxu0
        %v6228 = vadd.f32 %v5879, %v6227
        %6229 = vmatprep.mubr.f32.mxu0 0.0
        %v6230 = vand.u32 %v5574, 4294901760
        %6231 = vmatmul.mubr.f32.gmra.mrb[0].mxu0 %v6230
        %v6232 = vpop.f32.mrb[0].mxu0
        %v6233 = vadd.f32 %v5888, %v6232
        %v6234 = vpop.f32.mrb[0].mxu0
        %v6235 = vadd.f32 %v5890, %v6234
        %6236 = vmatprep.mubr.f32.mxu0 0.0
        %v6237 = vand.u32 %v5575, 4294901760
        %6238 = vmatmul.mubr.f32.gmra.mrb[0].mxu0 %v6237
        %v6239 = vpop.f32.mrb[0].mxu0
        %v6240 = vadd.f32 %v5899, %v6239
        %v6241 = vpop.f32.mrb[0].mxu0
        %v6242 = vadd.f32 %v5901, %v6241
        %6243 = vmatprep.mubr.f32.mxu0 0.0
        %v6244 = vand.u32 %v5576, 4294901760
        %6245 = vmatmul.mubr.f32.gmra.mrb[0].mxu0 %v6244
        %v6246 = vpop.f32.mrb[0].mxu0
        %v6247 = vadd.f32 %v5910, %v6246
        %v6248 = vpop.f32.mrb[0].mxu0
        %v6249 = vadd.f32 %v5912, %v6248
        %6250 = vdwg.mxu0
        %v6251 = vand.u32 %v5529, 4294901760
        %v6252 = vsub.f32 %v5529, %v6251
        %6253 = vmatprep.subr.mxu0 %v6252
        %v6254 = vand.u32 %v5528, 4294901760
        %v6255 = vsub.f32 %v5528, %v6254
        %6256 = vmatpush1.msra.mxu0 %v6255
        %v6257 = vand.u32 %v5531, 4294901760
        %v6258 = vsub.f32 %v5531, %v6257
        %6259 = vmatprep.subr.mxu0 %v6258
        %v6260 = vand.u32 %v5530, 4294901760
        %v6261 = vsub.f32 %v5530, %v6260
        %6262 = vmatpush1.msra.mxu0 %v6261
        %v6263 = vand.u32 %v5533, 4294901760
        %v6264 = vsub.f32 %v5533, %v6263
        %6265 = vmatprep.subr.mxu0 %v6264
        %v6266 = vand.u32 %v5532, 4294901760
        %v6267 = vsub.f32 %v5532, %v6266
        %6268 = vmatpush1.msra.mxu0 %v6267
        %v6269 = vand.u32 %v5535, 4294901760
        %v6270 = vsub.f32 %v5535, %v6269
        %6271 = vmatprep.subr.mxu0 %v6270
        %v6272 = vand.u32 %v5534, 4294901760
        %v6273 = vsub.f32 %v5534, %v6272
        %6274 = vmatpush1.msra.mxu0 %v6273
        %v6275 = vand.u32 %v5537, 4294901760
        %v6276 = vsub.f32 %v5537, %v6275
        %6277 = vmatprep.subr.mxu0 %v6276
        %v6278 = vand.u32 %v5536, 4294901760
        %v6279 = vsub.f32 %v5536, %v6278
        %6280 = vmatpush1.msra.mxu0 %v6279
        %v6281 = vand.u32 %v5539, 4294901760
        %v6282 = vsub.f32 %v5539, %v6281
        %6283 = vmatprep.subr.mxu0 %v6282
        %v6284 = vand.u32 %v5538, 4294901760
        %v6285 = vsub.f32 %v5538, %v6284
        %6286 = vmatpush1.msra.mxu0 %v6285
        %v6287 = vand.u32 %v5541, 4294901760
        %v6288 = vsub.f32 %v5541, %v6287
        %6289 = vmatprep.subr.mxu0 %v6288
        %v6290 = vand.u32 %v5540, 4294901760
        %v6291 = vsub.f32 %v5540, %v6290
        %6292 = vmatpush1.msra.mxu0 %v6291
        %v6293 = vand.u32 %v5543, 4294901760
        %v6294 = vsub.f32 %v5543, %v6293
        %6295 = vmatprep.subr.mxu0 %v6294
        %v6296 = vand.u32 %v5542, 4294901760
        %v6297 = vsub.f32 %v5542, %v6296
        %6298 = vmatpush1.msra.mxu0 %v6297
        %v6299 = vand.u32 %v5545, 4294901760
        %v6300 = vsub.f32 %v5545, %v6299
        %6301 = vmatprep.subr.mxu0 %v6300
        %v6302 = vand.u32 %v5544, 4294901760
        %v6303 = vsub.f32 %v5544, %v6302
        %6304 = vmatpush1.msra.mxu0 %v6303
        %v6305 = vand.u32 %v5547, 4294901760
        %v6306 = vsub.f32 %v5547, %v6305
        %6307 = vmatprep.subr.mxu0 %v6306
        %v6308 = vand.u32 %v5546, 4294901760
        %v6309 = vsub.f32 %v5546, %v6308
        %6310 = vmatpush1.msra.mxu0 %v6309
        %v6311 = vand.u32 %v5549, 4294901760
        %v6312 = vsub.f32 %v5549, %v6311
        %6313 = vmatprep.subr.mxu0 %v6312
        %v6314 = vand.u32 %v5548, 4294901760
        %v6315 = vsub.f32 %v5548, %v6314
        %6316 = vmatpush1.msra.mxu0 %v6315
        %v6317 = vand.u32 %v5551, 4294901760
        %v6318 = vsub.f32 %v5551, %v6317
        %6319 = vmatprep.subr.mxu0 %v6318
        %v6320 = vand.u32 %v5550, 4294901760
        %v6321 = vsub.f32 %v5550, %v6320
        %6322 = vmatpush1.msra.mxu0 %v6321
        %v6323 = vand.u32 %v5553, 4294901760
        %v6324 = vsub.f32 %v5553, %v6323
        %6325 = vmatprep.subr.mxu0 %v6324
        %v6326 = vand.u32 %v5552, 4294901760
        %v6327 = vsub.f32 %v5552, %v6326
        %6328 = vmatpush1.msra.mxu0 %v6327
        %v6329 = vand.u32 %v5555, 4294901760
        %v6330 = vsub.f32 %v5555, %v6329
        %6331 = vmatprep.subr.mxu0 %v6330
        %v6332 = vand.u32 %v5554, 4294901760
        %v6333 = vsub.f32 %v5554, %v6332
        %6334 = vmatpush1.msra.mxu0 %v6333
        %v6335 = vand.u32 %v5557, 4294901760
        %v6336 = vsub.f32 %v5557, %v6335
        %6337 = vmatprep.subr.mxu0 %v6336
        %v6338 = vand.u32 %v5556, 4294901760
        %v6339 = vsub.f32 %v5556, %v6338
        %6340 = vmatpush1.msra.mxu0 %v6339
        %v6341 = vand.u32 %v5559, 4294901760
        %v6342 = vsub.f32 %v5559, %v6341
        %6343 = vmatprep.subr.mxu0 %v6342
        %v6344 = vand.u32 %v5558, 4294901760
        %v6345 = vsub.f32 %v5558, %v6344
        %6346 = vmatpush1.msra.mxu0 %v6345
        %6347 = vmatprep.subr.mxu0 0.0
        %6348 = vmatpush1.msra.mxu0 0.0
        %6349 = vmatprep.subr.mxu0 0.0
        %6350 = vmatpush1.msra.mxu0 0.0
        %6351 = vmatprep.subr.mxu0 0.0
        %6352 = vmatpush1.msra.mxu0 0.0
        %6353 = vmatprep.subr.mxu0 0.0
        %6354 = vmatpush1.msra.mxu0 0.0
        %6355 = vmatprep.subr.mxu0 0.0
        %6356 = vmatpush1.msra.mxu0 0.0
        %6357 = vmatprep.subr.mxu0 0.0
        %6358 = vmatpush1.msra.mxu0 0.0
        %6359 = vmatprep.subr.mxu0 0.0
        %6360 = vmatpush1.msra.mxu0 0.0
        %6361 = vmatprep.subr.mxu0 0.0
        %6362 = vmatpush1.msra.mxu0 0.0
        %6363 = vmatprep.subr.mxu0 0.0
        %6364 = vmatpush1.msra.mxu0 0.0
        %6365 = vmatprep.subr.mxu0 0.0
        %6366 = vmatpush1.msra.mxu0 0.0
        %6367 = vmatprep.subr.mxu0 0.0
        %6368 = vmatpush1.msra.mxu0 0.0
        %6369 = vmatprep.subr.mxu0 0.0
        %6370 = vmatpush1.msra.mxu0 0.0
        %6371 = vmatprep.subr.mxu0 0.0
        %6372 = vmatpush1.msra.mxu0 0.0
        %6373 = vmatprep.subr.mxu0 0.0
        %6374 = vmatpush1.msra.mxu0 0.0
        %6375 = vmatprep.subr.mxu0 0.0
        %6376 = vmatpush1.msra.mxu0 0.0
        %6377 = vmatprep.subr.mxu0 0.0
        %6378 = vmatpush1.msra.mxu0 0.0
        %6379 = vmatprep.mubr.f32.mxu0 0.0
        %v6380 = vand.u32 %v5561, 4294901760
        %v6381 = vsub.f32 %v5561, %v6380
        %6382 = vmatmul.mubr.f32.gmra.mrb[0].mxu0 %v6381
        %v6383 = vpop.f32.mrb[0].mxu0
        %v6384 = vadd.f32 %v6142, %v6383
        %v6385 = vpop.f32.mrb[0].mxu0
        %v6386 = vadd.f32 %v6144, %v6385
        %6387 = vmatprep.mubr.f32.mxu0 0.0
        %v6388 = vand.u32 %v5562, 4294901760
        %v6389 = vsub.f32 %v5562, %v6388
        %6390 = vmatmul.mubr.f32.gmra.mrb[0].mxu0 %v6389
        %v6391 = vpop.f32.mrb[0].mxu0
        %v6392 = vadd.f32 %v6149, %v6391
        %v6393 = vpop.f32.mrb[0].mxu0
        %v6394 = vadd.f32 %v6151, %v6393
        %6395 = vmatprep.mubr.f32.mxu0 0.0
        %v6396 = vand.u32 %v5563, 4294901760
        %v6397 = vsub.f32 %v5563, %v6396
        %6398 = vmatmul.mubr.f32.gmra.mrb[0].mxu0 %v6397
        %v6399 = vpop.f32.mrb[0].mxu0
        %v6400 = vadd.f32 %v6156, %v6399
        %v6401 = vpop.f32.mrb[0].mxu0
        %v6402 = vadd.f32 %v6158, %v6401
        %6403 = vmatprep.mubr.f32.mxu0 0.0
        %v6404 = vand.u32 %v5564, 4294901760
        %v6405 = vsub.f32 %v5564, %v6404
        %6406 = vmatmul.mubr.f32.gmra.mrb[0].mxu0 %v6405
        %v6407 = vpop.f32.mrb[0].mxu0
        %v6408 = vadd.f32 %v6163, %v6407
        %v6409 = vpop.f32.mrb[0].mxu0
        %v6410 = vadd.f32 %v6165, %v6409
        %6411 = vmatprep.mubr.f32.mxu0 0.0
        %v6412 = vand.u32 %v5565, 4294901760
        %v6413 = vsub.f32 %v5565, %v6412
        %6414 = vmatmul.mubr.f32.gmra.mrb[0].mxu0 %v6413
        %v6415 = vpop.f32.mrb[0].mxu0
        %v6416 = vadd.f32 %v6170, %v6415
        %v6417 = vpop.f32.mrb[0].mxu0
        %v6418 = vadd.f32 %v6172, %v6417
        %6419 = vmatprep.mubr.f32.mxu0 0.0
        %v6420 = vand.u32 %v5566, 4294901760
        %v6421 = vsub.f32 %v5566, %v6420
        %6422 = vmatmul.mubr.f32.gmra.mrb[0].mxu0 %v6421
        %v6423 = vpop.f32.mrb[0].mxu0
        %v6424 = vadd.f32 %v6177, %v6423
        %v6425 = vpop.f32.mrb[0].mxu0
        %v6426 = vadd.f32 %v6179, %v6425
        %6427 = vmatprep.mubr.f32.mxu0 0.0
        %v6428 = vand.u32 %v5567, 4294901760
        %v6429 = vsub.f32 %v5567, %v6428
        %6430 = vmatmul.mubr.f32.gmra.mrb[0].mxu0 %v6429
        %v6431 = vpop.f32.mrb[0].mxu0
        %v6432 = vadd.f32 %v6184, %v6431
        %v6433 = vpop.f32.mrb[0].mxu0
        %v6434 = vadd.f32 %v6186, %v6433
        %6435 = vmatprep.mubr.f32.mxu0 0.0
        %v6436 = vand.u32 %v5568, 4294901760
        %v6437 = vsub.f32 %v5568, %v6436
        %6438 = vmatmul.mubr.f32.gmra.mrb[0].mxu0 %v6437
        %v6439 = vpop.f32.mrb[0].mxu0
        %v6440 = vadd.f32 %v6191, %v6439
        %v6441 = vpop.f32.mrb[0].mxu0
        %v6442 = vadd.f32 %v6193, %v6441
        %6443 = vmatprep.mubr.f32.mxu0 0.0
        %v6444 = vand.u32 %v5569, 4294901760
        %v6445 = vsub.f32 %v5569, %v6444
        %6446 = vmatmul.mubr.f32.gmra.mrb[0].mxu0 %v6445
        %v6447 = vpop.f32.mrb[0].mxu0
        %v6448 = vadd.f32 %v6198, %v6447
        %v6449 = vpop.f32.mrb[0].mxu0
        %v6450 = vadd.f32 %v6200, %v6449
        %6451 = vmatprep.mubr.f32.mxu0 0.0
        %v6452 = vand.u32 %v5570, 4294901760
        %v6453 = vsub.f32 %v5570, %v6452
        %6454 = vmatmul.mubr.f32.gmra.mrb[0].mxu0 %v6453
        %v6455 = vpop.f32.mrb[0].mxu0
        %v6456 = vadd.f32 %v6205, %v6455
        %v6457 = vpop.f32.mrb[0].mxu0
        %v6458 = vadd.f32 %v6207, %v6457
        %6459 = vmatprep.mubr.f32.mxu0 0.0
        %v6460 = vand.u32 %v5571, 4294901760
        %v6461 = vsub.f32 %v5571, %v6460
        %6462 = vmatmul.mubr.f32.gmra.mrb[0].mxu0 %v6461
        %v6463 = vpop.f32.mrb[0].mxu0
        %v6464 = vadd.f32 %v6212, %v6463
        %v6465 = vpop.f32.mrb[0].mxu0
        %v6466 = vadd.f32 %v6214, %v6465
        %6467 = vmatprep.mubr.f32.mxu0 0.0
        %v6468 = vand.u32 %v5572, 4294901760
        %v6469 = vsub.f32 %v5572, %v6468
        %6470 = vmatmul.mubr.f32.gmra.mrb[0].mxu0 %v6469
        %v6471 = vpop.f32.mrb[0].mxu0
        %v6472 = vadd.f32 %v6219, %v6471
        %v6473 = vpop.f32.mrb[0].mxu0
        %v6474 = vadd.f32 %v6221, %v6473
        %6475 = vmatprep.mubr.f32.mxu0 0.0
        %v6476 = vand.u32 %v5573, 4294901760
        %v6477 = vsub.f32 %v5573, %v6476
        %6478 = vmatmul.mubr.f32.gmra.mrb[0].mxu0 %v6477
        %v6479 = vpop.f32.mrb[0].mxu0
        %v6480 = vadd.f32 %v6226, %v6479
        %v6481 = vpop.f32.mrb[0].mxu0
        %v6482 = vadd.f32 %v6228, %v6481
        %6483 = vmatprep.mubr.f32.mxu0 0.0
        %v6484 = vand.u32 %v5574, 4294901760
        %v6485 = vsub.f32 %v5574, %v6484
        %6486 = vmatmul.mubr.f32.gmra.mrb[0].mxu0 %v6485
        %v6487 = vpop.f32.mrb[0].mxu0
        %v6488 = vadd.f32 %v6233, %v6487
        %v6489 = vpop.f32.mrb[0].mxu0
        %v6490 = vadd.f32 %v6235, %v6489
        %6491 = vmatprep.mubr.f32.mxu0 0.0
        %v6492 = vand.u32 %v5575, 4294901760
        %v6493 = vsub.f32 %v5575, %v6492
        %6494 = vmatmul.mubr.f32.gmra.mrb[0].mxu0 %v6493
        %v6495 = vpop.f32.mrb[0].mxu0
        %v6496 = vadd.f32 %v6240, %v6495
        %v6497 = vpop.f32.mrb[0].mxu0
        %v6498 = vadd.f32 %v6242, %v6497
        %6499 = vmatprep.mubr.f32.mxu0 0.0
        %v6500 = vand.u32 %v5576, 4294901760
        %v6501 = vsub.f32 %v5576, %v6500
        %6502 = vmatmul.mubr.f32.gmra.mrb[0].mxu0 %v6501
        %v6503 = vpop.f32.mrb[0].mxu0
        %v6504 = vadd.f32 %v6247, %v6503
        %v6505 = vpop.f32.mrb[0].mxu0
        %v6506 = vadd.f32 %v6249, %v6505
        %6507 = vdwg.mxu0
        %v6508 = vand.u32 %v5529, 4294901760
        %6509 = vmatprep.subr.mxu0 %v6508
        %v6510 = vand.u32 %v5528, 4294901760
        %6511 = vmatpush1.msra.mxu0 %v6510
        %v6512 = vand.u32 %v5531, 4294901760
        %6513 = vmatprep.subr.mxu0 %v6512
        %v6514 = vand.u32 %v5530, 4294901760
        %6515 = vmatpush1.msra.mxu0 %v6514
        %v6516 = vand.u32 %v5533, 4294901760
        %6517 = vmatprep.subr.mxu0 %v6516
        %v6518 = vand.u32 %v5532, 4294901760
        %6519 = vmatpush1.msra.mxu0 %v6518
        %v6520 = vand.u32 %v5535, 4294901760
        %6521 = vmatprep.subr.mxu0 %v6520
        %v6522 = vand.u32 %v5534, 4294901760
        %6523 = vmatpush1.msra.mxu0 %v6522
        %v6524 = vand.u32 %v5537, 4294901760
        %6525 = vmatprep.subr.mxu0 %v6524
        %v6526 = vand.u32 %v5536, 4294901760
        %6527 = vmatpush1.msra.mxu0 %v6526
        %v6528 = vand.u32 %v5539, 4294901760
        %6529 = vmatprep.subr.mxu0 %v6528
        %v6530 = vand.u32 %v5538, 4294901760
        %6531 = vmatpush1.msra.mxu0 %v6530
        %v6532 = vand.u32 %v5541, 4294901760
        %6533 = vmatprep.subr.mxu0 %v6532
        %v6534 = vand.u32 %v5540, 4294901760
        %6535 = vmatpush1.msra.mxu0 %v6534
        %v6536 = vand.u32 %v5543, 4294901760
        %6537 = vmatprep.subr.mxu0 %v6536
        %v6538 = vand.u32 %v5542, 4294901760
        %6539 = vmatpush1.msra.mxu0 %v6538
        %v6540 = vand.u32 %v5545, 4294901760
        %6541 = vmatprep.subr.mxu0 %v6540
        %v6542 = vand.u32 %v5544, 4294901760
        %6543 = vmatpush1.msra.mxu0 %v6542
        %v6544 = vand.u32 %v5547, 4294901760
        %6545 = vmatprep.subr.mxu0 %v6544
        %v6546 = vand.u32 %v5546, 4294901760
        %6547 = vmatpush1.msra.mxu0 %v6546
        %v6548 = vand.u32 %v5549, 4294901760
        %6549 = vmatprep.subr.mxu0 %v6548
        %v6550 = vand.u32 %v5548, 4294901760
        %6551 = vmatpush1.msra.mxu0 %v6550
        %v6552 = vand.u32 %v5551, 4294901760
        %6553 = vmatprep.subr.mxu0 %v6552
        %v6554 = vand.u32 %v5550, 4294901760
        %6555 = vmatpush1.msra.mxu0 %v6554
        %v6556 = vand.u32 %v5553, 4294901760
        %6557 = vmatprep.subr.mxu0 %v6556
        %v6558 = vand.u32 %v5552, 4294901760
        %6559 = vmatpush1.msra.mxu0 %v6558
        %v6560 = vand.u32 %v5555, 4294901760
        %6561 = vmatprep.subr.mxu0 %v6560
        %v6562 = vand.u32 %v5554, 4294901760
        %6563 = vmatpush1.msra.mxu0 %v6562
        %v6564 = vand.u32 %v5557, 4294901760
        %6565 = vmatprep.subr.mxu0 %v6564
        %v6566 = vand.u32 %v5556, 4294901760
        %6567 = vmatpush1.msra.mxu0 %v6566
        %v6568 = vand.u32 %v5559, 4294901760
        %6569 = vmatprep.subr.mxu0 %v6568
        %v6570 = vand.u32 %v5558, 4294901760
        %6571 = vmatpush1.msra.mxu0 %v6570
        %6572 = vmatprep.subr.mxu0 0.0
        %6573 = vmatpush1.msra.mxu0 0.0
        %6574 = vmatprep.subr.mxu0 0.0
        %6575 = vmatpush1.msra.mxu0 0.0
        %6576 = vmatprep.subr.mxu0 0.0
        %6577 = vmatpush1.msra.mxu0 0.0
        %6578 = vmatprep.subr.mxu0 0.0
        %6579 = vmatpush1.msra.mxu0 0.0
        %6580 = vmatprep.subr.mxu0 0.0
        %6581 = vmatpush1.msra.mxu0 0.0
        %6582 = vmatprep.subr.mxu0 0.0
        %6583 = vmatpush1.msra.mxu0 0.0
        %6584 = vmatprep.subr.mxu0 0.0
        %6585 = vmatpush1.msra.mxu0 0.0
        %6586 = vmatprep.subr.mxu0 0.0
        %6587 = vmatpush1.msra.mxu0 0.0
        %6588 = vmatprep.subr.mxu0 0.0
        %6589 = vmatpush1.msra.mxu0 0.0
        %6590 = vmatprep.subr.mxu0 0.0
        %6591 = vmatpush1.msra.mxu0 0.0
        %6592 = vmatprep.subr.mxu0 0.0
        %6593 = vmatpush1.msra.mxu0 0.0
        %6594 = vmatprep.subr.mxu0 0.0
        %6595 = vmatpush1.msra.mxu0 0.0
        %6596 = vmatprep.subr.mxu0 0.0
        %6597 = vmatpush1.msra.mxu0 0.0
        %6598 = vmatprep.subr.mxu0 0.0
        %6599 = vmatpush1.msra.mxu0 0.0
        %6600 = vmatprep.subr.mxu0 0.0
        %6601 = vmatpush1.msra.mxu0 0.0
        %6602 = vmatprep.subr.mxu0 0.0
        %6603 = vmatpush1.msra.mxu0 0.0
        %6604 = vmatprep.mubr.f32.mxu0 0.0
        %v6605 = vand.u32 %v5561, 4294901760
        %v6606 = vsub.f32 %v5561, %v6605
        %v6607 = vand.u32 %v6606, 4294901760
        %6608 = vmatmul.mubr.f32.gmra.mrb[0].mxu0 %v6607
        %v6609 = vpop.f32.mrb[0].mxu0
        %v6610 = vadd.f32 %v6384, %v6609
        %v6611 = vpop.f32.mrb[0].mxu0
        %v6612 = vadd.f32 %v6386, %v6611
        %6613 = vmatprep.mubr.f32.mxu0 0.0
        %v6614 = vand.u32 %v5562, 4294901760
        %v6615 = vsub.f32 %v5562, %v6614
        %v6616 = vand.u32 %v6615, 4294901760
        %6617 = vmatmul.mubr.f32.gmra.mrb[0].mxu0 %v6616
        %v6618 = vpop.f32.mrb[0].mxu0
        %v6619 = vadd.f32 %v6392, %v6618
        %v6620 = vpop.f32.mrb[0].mxu0
        %v6621 = vadd.f32 %v6394, %v6620
        %6622 = vmatprep.mubr.f32.mxu0 0.0
        %v6623 = vand.u32 %v5563, 4294901760
        %v6624 = vsub.f32 %v5563, %v6623
        %v6625 = vand.u32 %v6624, 4294901760
        %6626 = vmatmul.mubr.f32.gmra.mrb[0].mxu0 %v6625
        %v6627 = vpop.f32.mrb[0].mxu0
        %v6628 = vadd.f32 %v6400, %v6627
        %v6629 = vpop.f32.mrb[0].mxu0
        %v6630 = vadd.f32 %v6402, %v6629
        %6631 = vmatprep.mubr.f32.mxu0 0.0
        %v6632 = vand.u32 %v5564, 4294901760
        %v6633 = vsub.f32 %v5564, %v6632
        %v6634 = vand.u32 %v6633, 4294901760
        %6635 = vmatmul.mubr.f32.gmra.mrb[0].mxu0 %v6634
        %v6636 = vpop.f32.mrb[0].mxu0
        %v6637 = vadd.f32 %v6408, %v6636
        %v6638 = vpop.f32.mrb[0].mxu0
        %v6639 = vadd.f32 %v6410, %v6638
        %6640 = vmatprep.mubr.f32.mxu0 0.0
        %v6641 = vand.u32 %v5565, 4294901760
        %v6642 = vsub.f32 %v5565, %v6641
        %v6643 = vand.u32 %v6642, 4294901760
        %6644 = vmatmul.mubr.f32.gmra.mrb[0].mxu0 %v6643
        %v6645 = vpop.f32.mrb[0].mxu0
        %v6646 = vadd.f32 %v6416, %v6645
        %v6647 = vpop.f32.mrb[0].mxu0
        %v6648 = vadd.f32 %v6418, %v6647
        %6649 = vmatprep.mubr.f32.mxu0 0.0
        %v6650 = vand.u32 %v5566, 4294901760
        %v6651 = vsub.f32 %v5566, %v6650
        %v6652 = vand.u32 %v6651, 4294901760
        %6653 = vmatmul.mubr.f32.gmra.mrb[0].mxu0 %v6652
        %v6654 = vpop.f32.mrb[0].mxu0
        %v6655 = vadd.f32 %v6424, %v6654
        %v6656 = vpop.f32.mrb[0].mxu0
        %v6657 = vadd.f32 %v6426, %v6656
        %6658 = vmatprep.mubr.f32.mxu0 0.0
        %v6659 = vand.u32 %v5567, 4294901760
        %v6660 = vsub.f32 %v5567, %v6659
        %v6661 = vand.u32 %v6660, 4294901760
        %6662 = vmatmul.mubr.f32.gmra.mrb[0].mxu0 %v6661
        %v6663 = vpop.f32.mrb[0].mxu0
        %v6664 = vadd.f32 %v6432, %v6663
        %v6665 = vpop.f32.mrb[0].mxu0
        %v6666 = vadd.f32 %v6434, %v6665
        %6667 = vmatprep.mubr.f32.mxu0 0.0
        %v6668 = vand.u32 %v5568, 4294901760
        %v6669 = vsub.f32 %v5568, %v6668
        %v6670 = vand.u32 %v6669, 4294901760
        %6671 = vmatmul.mubr.f32.gmra.mrb[0].mxu0 %v6670
        %v6672 = vpop.f32.mrb[0].mxu0
        %v6673 = vadd.f32 %v6440, %v6672
        %v6674 = vpop.f32.mrb[0].mxu0
        %v6675 = vadd.f32 %v6442, %v6674
        %6676 = vmatprep.mubr.f32.mxu0 0.0
        %v6677 = vand.u32 %v5569, 4294901760
        %v6678 = vsub.f32 %v5569, %v6677
        %v6679 = vand.u32 %v6678, 4294901760
        %6680 = vmatmul.mubr.f32.gmra.mrb[0].mxu0 %v6679
        %v6681 = vpop.f32.mrb[0].mxu0
        %v6682 = vadd.f32 %v6448, %v6681
        %v6683 = vpop.f32.mrb[0].mxu0
        %v6684 = vadd.f32 %v6450, %v6683
        %6685 = vmatprep.mubr.f32.mxu0 0.0
        %v6686 = vand.u32 %v5570, 4294901760
        %v6687 = vsub.f32 %v5570, %v6686
        %v6688 = vand.u32 %v6687, 4294901760
        %6689 = vmatmul.mubr.f32.gmra.mrb[0].mxu0 %v6688
        %v6690 = vpop.f32.mrb[0].mxu0
        %v6691 = vadd.f32 %v6456, %v6690
        %v6692 = vpop.f32.mrb[0].mxu0
        %v6693 = vadd.f32 %v6458, %v6692
        %6694 = vmatprep.mubr.f32.mxu0 0.0
        %v6695 = vand.u32 %v5571, 4294901760
        %v6696 = vsub.f32 %v5571, %v6695
        %v6697 = vand.u32 %v6696, 4294901760
        %6698 = vmatmul.mubr.f32.gmra.mrb[0].mxu0 %v6697
        %v6699 = vpop.f32.mrb[0].mxu0
        %v6700 = vadd.f32 %v6464, %v6699
        %v6701 = vpop.f32.mrb[0].mxu0
        %v6702 = vadd.f32 %v6466, %v6701
        %6703 = vmatprep.mubr.f32.mxu0 0.0
        %v6704 = vand.u32 %v5572, 4294901760
        %v6705 = vsub.f32 %v5572, %v6704
        %v6706 = vand.u32 %v6705, 4294901760
        %6707 = vmatmul.mubr.f32.gmra.mrb[0].mxu0 %v6706
        %v6708 = vpop.f32.mrb[0].mxu0
        %v6709 = vadd.f32 %v6472, %v6708
        %v6710 = vpop.f32.mrb[0].mxu0
        %v6711 = vadd.f32 %v6474, %v6710
        %6712 = vmatprep.mubr.f32.mxu0 0.0
        %v6713 = vand.u32 %v5573, 4294901760
        %v6714 = vsub.f32 %v5573, %v6713
        %v6715 = vand.u32 %v6714, 4294901760
        %6716 = vmatmul.mubr.f32.gmra.mrb[0].mxu0 %v6715
        %v6717 = vpop.f32.mrb[0].mxu0
        %v6718 = vadd.f32 %v6480, %v6717
        %v6719 = vpop.f32.mrb[0].mxu0
        %v6720 = vadd.f32 %v6482, %v6719
        %6721 = vmatprep.mubr.f32.mxu0 0.0
        %v6722 = vand.u32 %v5574, 4294901760
        %v6723 = vsub.f32 %v5574, %v6722
        %v6724 = vand.u32 %v6723, 4294901760
        %6725 = vmatmul.mubr.f32.gmra.mrb[0].mxu0 %v6724
        %v6726 = vpop.f32.mrb[0].mxu0
        %v6727 = vadd.f32 %v6488, %v6726
        %v6728 = vpop.f32.mrb[0].mxu0
        %v6729 = vadd.f32 %v6490, %v6728
        %6730 = vmatprep.mubr.f32.mxu0 0.0
        %v6731 = vand.u32 %v5575, 4294901760
        %v6732 = vsub.f32 %v5575, %v6731
        %v6733 = vand.u32 %v6732, 4294901760
        %6734 = vmatmul.mubr.f32.gmra.mrb[0].mxu0 %v6733
        %v6735 = vpop.f32.mrb[0].mxu0
        %v6736 = vadd.f32 %v6496, %v6735
        %v6737 = vpop.f32.mrb[0].mxu0
        %v6738 = vadd.f32 %v6498, %v6737
        %6739 = vmatprep.mubr.f32.mxu0 0.0
        %v6740 = vand.u32 %v5576, 4294901760
        %v6741 = vsub.f32 %v5576, %v6740
        %v6742 = vand.u32 %v6741, 4294901760
        %6743 = vmatmul.mubr.f32.gmra.mrb[0].mxu0 %v6742
        %v6744 = vpop.f32.mrb[0].mxu0
        %v6745 = vadd.f32 %v6504, %v6744
        %v6746 = vpop.f32.mrb[0].mxu0
        %v6747 = vadd.f32 %v6506, %v6746
        %6748 = vdwg.mxu0
        %v6749 = vand.u32 %v5529, 4294901760
        %v6750 = vsub.f32 %v5529, %v6749
        %v6751 = vand.u32 %v6750, 4294901760
        %6752 = vmatprep.subr.mxu0 %v6751
        %v6753 = vand.u32 %v5528, 4294901760
        %v6754 = vsub.f32 %v5528, %v6753
        %v6755 = vand.u32 %v6754, 4294901760
        %6756 = vmatpush1.msra.mxu0 %v6755
        %v6757 = vand.u32 %v5531, 4294901760
        %v6758 = vsub.f32 %v5531, %v6757
        %v6759 = vand.u32 %v6758, 4294901760
        %6760 = vmatprep.subr.mxu0 %v6759
        %v6761 = vand.u32 %v5530, 4294901760
        %v6762 = vsub.f32 %v5530, %v6761
        %v6763 = vand.u32 %v6762, 4294901760
        %6764 = vmatpush1.msra.mxu0 %v6763
        %v6765 = vand.u32 %v5533, 4294901760
        %v6766 = vsub.f32 %v5533, %v6765
        %v6767 = vand.u32 %v6766, 4294901760
        %6768 = vmatprep.subr.mxu0 %v6767
        %v6769 = vand.u32 %v5532, 4294901760
        %v6770 = vsub.f32 %v5532, %v6769
        %v6771 = vand.u32 %v6770, 4294901760
        %6772 = vmatpush1.msra.mxu0 %v6771
        %v6773 = vand.u32 %v5535, 4294901760
        %v6774 = vsub.f32 %v5535, %v6773
        %v6775 = vand.u32 %v6774, 4294901760
        %6776 = vmatprep.subr.mxu0 %v6775
        %v6777 = vand.u32 %v5534, 4294901760
        %v6778 = vsub.f32 %v5534, %v6777
        %v6779 = vand.u32 %v6778, 4294901760
        %6780 = vmatpush1.msra.mxu0 %v6779
        %v6781 = vand.u32 %v5537, 4294901760
        %v6782 = vsub.f32 %v5537, %v6781
        %v6783 = vand.u32 %v6782, 4294901760
        %6784 = vmatprep.subr.mxu0 %v6783
        %v6785 = vand.u32 %v5536, 4294901760
        %v6786 = vsub.f32 %v5536, %v6785
        %v6787 = vand.u32 %v6786, 4294901760
        %6788 = vmatpush1.msra.mxu0 %v6787
        %v6789 = vand.u32 %v5539, 4294901760
        %v6790 = vsub.f32 %v5539, %v6789
        %v6791 = vand.u32 %v6790, 4294901760
        %6792 = vmatprep.subr.mxu0 %v6791
        %v6793 = vand.u32 %v5538, 4294901760
        %v6794 = vsub.f32 %v5538, %v6793
        %v6795 = vand.u32 %v6794, 4294901760
        %6796 = vmatpush1.msra.mxu0 %v6795
        %v6797 = vand.u32 %v5541, 4294901760
        %v6798 = vsub.f32 %v5541, %v6797
        %v6799 = vand.u32 %v6798, 4294901760
        %6800 = vmatprep.subr.mxu0 %v6799
        %v6801 = vand.u32 %v5540, 4294901760
        %v6802 = vsub.f32 %v5540, %v6801
        %v6803 = vand.u32 %v6802, 4294901760
        %6804 = vmatpush1.msra.mxu0 %v6803
        %v6805 = vand.u32 %v5543, 4294901760
        %v6806 = vsub.f32 %v5543, %v6805
        %v6807 = vand.u32 %v6806, 4294901760
        %6808 = vmatprep.subr.mxu0 %v6807
        %v6809 = vand.u32 %v5542, 4294901760
        %v6810 = vsub.f32 %v5542, %v6809
        %v6811 = vand.u32 %v6810, 4294901760
        %6812 = vmatpush1.msra.mxu0 %v6811
        %v6813 = vand.u32 %v5545, 4294901760
        %v6814 = vsub.f32 %v5545, %v6813
        %v6815 = vand.u32 %v6814, 4294901760
        %6816 = vmatprep.subr.mxu0 %v6815
        %v6817 = vand.u32 %v5544, 4294901760
        %v6818 = vsub.f32 %v5544, %v6817
        %v6819 = vand.u32 %v6818, 4294901760
        %6820 = vmatpush1.msra.mxu0 %v6819
        %v6821 = vand.u32 %v5547, 4294901760
        %v6822 = vsub.f32 %v5547, %v6821
        %v6823 = vand.u32 %v6822, 4294901760
        %6824 = vmatprep.subr.mxu0 %v6823
        %v6825 = vand.u32 %v5546, 4294901760
        %v6826 = vsub.f32 %v5546, %v6825
        %v6827 = vand.u32 %v6826, 4294901760
        %6828 = vmatpush1.msra.mxu0 %v6827
        %v6829 = vand.u32 %v5549, 4294901760
        %v6830 = vsub.f32 %v5549, %v6829
        %v6831 = vand.u32 %v6830, 4294901760
        %6832 = vmatprep.subr.mxu0 %v6831
        %v6833 = vand.u32 %v5548, 4294901760
        %v6834 = vsub.f32 %v5548, %v6833
        %v6835 = vand.u32 %v6834, 4294901760
        %6836 = vmatpush1.msra.mxu0 %v6835
        %v6837 = vand.u32 %v5551, 4294901760
        %v6838 = vsub.f32 %v5551, %v6837
        %v6839 = vand.u32 %v6838, 4294901760
        %6840 = vmatprep.subr.mxu0 %v6839
        %v6841 = vand.u32 %v5550, 4294901760
        %v6842 = vsub.f32 %v5550, %v6841
        %v6843 = vand.u32 %v6842, 4294901760
        %6844 = vmatpush1.msra.mxu0 %v6843
        %v6845 = vand.u32 %v5553, 4294901760
        %v6846 = vsub.f32 %v5553, %v6845
        %v6847 = vand.u32 %v6846, 4294901760
        %6848 = vmatprep.subr.mxu0 %v6847
        %v6849 = vand.u32 %v5552, 4294901760
        %v6850 = vsub.f32 %v5552, %v6849
        %v6851 = vand.u32 %v6850, 4294901760
        %6852 = vmatpush1.msra.mxu0 %v6851
        %v6853 = vand.u32 %v5555, 4294901760
        %v6854 = vsub.f32 %v5555, %v6853
        %v6855 = vand.u32 %v6854, 4294901760
        %6856 = vmatprep.subr.mxu0 %v6855
        %v6857 = vand.u32 %v5554, 4294901760
        %v6858 = vsub.f32 %v5554, %v6857
        %v6859 = vand.u32 %v6858, 4294901760
        %6860 = vmatpush1.msra.mxu0 %v6859
        %v6861 = vand.u32 %v5557, 4294901760
        %v6862 = vsub.f32 %v5557, %v6861
        %v6863 = vand.u32 %v6862, 4294901760
        %6864 = vmatprep.subr.mxu0 %v6863
        %v6865 = vand.u32 %v5556, 4294901760
        %v6866 = vsub.f32 %v5556, %v6865
        %v6867 = vand.u32 %v6866, 4294901760
        %6868 = vmatpush1.msra.mxu0 %v6867
        %v6869 = vand.u32 %v5559, 4294901760
        %v6870 = vsub.f32 %v5559, %v6869
        %v6871 = vand.u32 %v6870, 4294901760
        %6872 = vmatprep.subr.mxu0 %v6871
        %v6873 = vand.u32 %v5558, 4294901760
        %v6874 = vsub.f32 %v5558, %v6873
        %v6875 = vand.u32 %v6874, 4294901760
        %6876 = vmatpush1.msra.mxu0 %v6875
        %6877 = vmatprep.subr.mxu0 0.0
        %6878 = vmatpush1.msra.mxu0 0.0
        %6879 = vmatprep.subr.mxu0 0.0
        %6880 = vmatpush1.msra.mxu0 0.0
        %6881 = vmatprep.subr.mxu0 0.0
        %6882 = vmatpush1.msra.mxu0 0.0
        %6883 = vmatprep.subr.mxu0 0.0
        %6884 = vmatpush1.msra.mxu0 0.0
        %6885 = vmatprep.subr.mxu0 0.0
        %6886 = vmatpush1.msra.mxu0 0.0
        %6887 = vmatprep.subr.mxu0 0.0
        %6888 = vmatpush1.msra.mxu0 0.0
        %6889 = vmatprep.subr.mxu0 0.0
        %6890 = vmatpush1.msra.mxu0 0.0
        %6891 = vmatprep.subr.mxu0 0.0
        %6892 = vmatpush1.msra.mxu0 0.0
        %6893 = vmatprep.subr.mxu0 0.0
        %6894 = vmatpush1.msra.mxu0 0.0
        %6895 = vmatprep.subr.mxu0 0.0
        %6896 = vmatpush1.msra.mxu0 0.0
        %6897 = vmatprep.subr.mxu0 0.0
        %6898 = vmatpush1.msra.mxu0 0.0
        %6899 = vmatprep.subr.mxu0 0.0
        %6900 = vmatpush1.msra.mxu0 0.0
        %6901 = vmatprep.subr.mxu0 0.0
        %6902 = vmatpush1.msra.mxu0 0.0
        %6903 = vmatprep.subr.mxu0 0.0
        %6904 = vmatpush1.msra.mxu0 0.0
        %6905 = vmatprep.subr.mxu0 0.0
        %6906 = vmatpush1.msra.mxu0 0.0
        %6907 = vmatprep.subr.mxu0 0.0
        %6908 = vmatpush1.msra.mxu0 0.0
        %6909 = vmatprep.mubr.f32.mxu0 0.0
        %v6910 = vand.u32 %v5561, 4294901760
        %6911 = vmatmul.mubr.f32.gmra.mrb[0].mxu0 %v6910
        %v6912 = vpop.f32.mrb[0].mxu0
        %v6913 = vadd.f32 %v6610, %v6912
        %v6914 = vpop.f32.mrb[0].mxu0
        %v6915 = vadd.f32 %v6612, %v6914
        %6916 = vmatprep.mubr.f32.mxu0 0.0
        %v6917 = vand.u32 %v5562, 4294901760
        %6918 = vmatmul.mubr.f32.gmra.mrb[0].mxu0 %v6917
        %v6919 = vpop.f32.mrb[0].mxu0
        %v6920 = vadd.f32 %v6619, %v6919
        %v6921 = vpop.f32.mrb[0].mxu0
        %v6922 = vadd.f32 %v6621, %v6921
        %6923 = vmatprep.mubr.f32.mxu0 0.0
        %v6924 = vand.u32 %v5563, 4294901760
        %6925 = vmatmul.mubr.f32.gmra.mrb[0].mxu0 %v6924
        %v6926 = vpop.f32.mrb[0].mxu0
        %v6927 = vadd.f32 %v6628, %v6926
        %v6928 = vpop.f32.mrb[0].mxu0
        %v6929 = vadd.f32 %v6630, %v6928
        %6930 = vmatprep.mubr.f32.mxu0 0.0
        %v6931 = vand.u32 %v5564, 4294901760
        %6932 = vmatmul.mubr.f32.gmra.mrb[0].mxu0 %v6931
        %v6933 = vpop.f32.mrb[0].mxu0
        %v6934 = vadd.f32 %v6637, %v6933
        %v6935 = vpop.f32.mrb[0].mxu0
        %v6936 = vadd.f32 %v6639, %v6935
        %6937 = vmatprep.mubr.f32.mxu0 0.0
        %v6938 = vand.u32 %v5565, 4294901760
        %6939 = vmatmul.mubr.f32.gmra.mrb[0].mxu0 %v6938
        %v6940 = vpop.f32.mrb[0].mxu0
        %v6941 = vadd.f32 %v6646, %v6940
        %v6942 = vpop.f32.mrb[0].mxu0
        %v6943 = vadd.f32 %v6648, %v6942
        %6944 = vmatprep.mubr.f32.mxu0 0.0
        %v6945 = vand.u32 %v5566, 4294901760
        %6946 = vmatmul.mubr.f32.gmra.mrb[0].mxu0 %v6945
        %v6947 = vpop.f32.mrb[0].mxu0
        %v6948 = vadd.f32 %v6655, %v6947
        %v6949 = vpop.f32.mrb[0].mxu0
        %v6950 = vadd.f32 %v6657, %v6949
        %6951 = vmatprep.mubr.f32.mxu0 0.0
        %v6952 = vand.u32 %v5567, 4294901760
        %6953 = vmatmul.mubr.f32.gmra.mrb[0].mxu0 %v6952
        %v6954 = vpop.f32.mrb[0].mxu0
        %v6955 = vadd.f32 %v6664, %v6954
        %v6956 = vpop.f32.mrb[0].mxu0
        %v6957 = vadd.f32 %v6666, %v6956
        %6958 = vmatprep.mubr.f32.mxu0 0.0
        %v6959 = vand.u32 %v5568, 4294901760
        %6960 = vmatmul.mubr.f32.gmra.mrb[0].mxu0 %v6959
        %v6961 = vpop.f32.mrb[0].mxu0
        %v6962 = vadd.f32 %v6673, %v6961
        %v6963 = vpop.f32.mrb[0].mxu0
        %v6964 = vadd.f32 %v6675, %v6963
        %6965 = vmatprep.mubr.f32.mxu0 0.0
        %v6966 = vand.u32 %v5569, 4294901760
        %6967 = vmatmul.mubr.f32.gmra.mrb[0].mxu0 %v6966
        %v6968 = vpop.f32.mrb[0].mxu0
        %v6969 = vadd.f32 %v6682, %v6968
        %v6970 = vpop.f32.mrb[0].mxu0
        %v6971 = vadd.f32 %v6684, %v6970
        %6972 = vmatprep.mubr.f32.mxu0 0.0
        %v6973 = vand.u32 %v5570, 4294901760
        %6974 = vmatmul.mubr.f32.gmra.mrb[0].mxu0 %v6973
        %v6975 = vpop.f32.mrb[0].mxu0
        %v6976 = vadd.f32 %v6691, %v6975
        %v6977 = vpop.f32.mrb[0].mxu0
        %v6978 = vadd.f32 %v6693, %v6977
        %6979 = vmatprep.mubr.f32.mxu0 0.0
        %v6980 = vand.u32 %v5571, 4294901760
        %6981 = vmatmul.mubr.f32.gmra.mrb[0].mxu0 %v6980
        %v6982 = vpop.f32.mrb[0].mxu0
        %v6983 = vadd.f32 %v6700, %v6982
        %v6984 = vpop.f32.mrb[0].mxu0
        %v6985 = vadd.f32 %v6702, %v6984
        %6986 = vmatprep.mubr.f32.mxu0 0.0
        %v6987 = vand.u32 %v5572, 4294901760
        %6988 = vmatmul.mubr.f32.gmra.mrb[0].mxu0 %v6987
        %v6989 = vpop.f32.mrb[0].mxu0
        %v6990 = vadd.f32 %v6709, %v6989
        %v6991 = vpop.f32.mrb[0].mxu0
        %v6992 = vadd.f32 %v6711, %v6991
        %6993 = vmatprep.mubr.f32.mxu0 0.0
        %v6994 = vand.u32 %v5573, 4294901760
        %6995 = vmatmul.mubr.f32.gmra.mrb[0].mxu0 %v6994
        %v6996 = vpop.f32.mrb[0].mxu0
        %v6997 = vadd.f32 %v6718, %v6996
        %v6998 = vpop.f32.mrb[0].mxu0
        %v6999 = vadd.f32 %v6720, %v6998
        %7000 = vmatprep.mubr.f32.mxu0 0.0
        %v7001 = vand.u32 %v5574, 4294901760
        %7002 = vmatmul.mubr.f32.gmra.mrb[0].mxu0 %v7001
        %v7003 = vpop.f32.mrb[0].mxu0
        %v7004 = vadd.f32 %v6727, %v7003
        %v7005 = vpop.f32.mrb[0].mxu0
        %v7006 = vadd.f32 %v6729, %v7005
        %7007 = vmatprep.mubr.f32.mxu0 0.0
        %v7008 = vand.u32 %v5575, 4294901760
        %7009 = vmatmul.mubr.f32.gmra.mrb[0].mxu0 %v7008
        %v7010 = vpop.f32.mrb[0].mxu0
        %v7011 = vadd.f32 %v6736, %v7010
        %v7012 = vpop.f32.mrb[0].mxu0
        %v7013 = vadd.f32 %v6738, %v7012
        %7014 = vmatprep.mubr.f32.mxu0 0.0
        %v7015 = vand.u32 %v5576, 4294901760
        %7016 = vmatmul.mubr.f32.gmra.mrb[0].mxu0 %v7015
        %v7017 = vpop.f32.mrb[0].mxu0
        %v7018 = vadd.f32 %v6745, %v7017
        %v7019 = vpop.f32.mrb[0].mxu0
        %v7020 = vadd.f32 %v6747, %v7019
        %7021 = vdwg.mxu0
        %v7022 = vand.u32 %v5529, 4294901760
        %7023 = vmatprep.subr.mxu0 %v7022
        %v7024 = vand.u32 %v5528, 4294901760
        %7025 = vmatpush1.msra.mxu0 %v7024
        %v7026 = vand.u32 %v5531, 4294901760
        %7027 = vmatprep.subr.mxu0 %v7026
        %v7028 = vand.u32 %v5530, 4294901760
        %7029 = vmatpush1.msra.mxu0 %v7028
        %v7030 = vand.u32 %v5533, 4294901760
        %7031 = vmatprep.subr.mxu0 %v7030
        %v7032 = vand.u32 %v5532, 4294901760
        %7033 = vmatpush1.msra.mxu0 %v7032
        %v7034 = vand.u32 %v5535, 4294901760
        %7035 = vmatprep.subr.mxu0 %v7034
        %v7036 = vand.u32 %v5534, 4294901760
        %7037 = vmatpush1.msra.mxu0 %v7036
        %v7038 = vand.u32 %v5537, 4294901760
        %7039 = vmatprep.subr.mxu0 %v7038
        %v7040 = vand.u32 %v5536, 4294901760
        %7041 = vmatpush1.msra.mxu0 %v7040
        %v7042 = vand.u32 %v5539, 4294901760
        %7043 = vmatprep.subr.mxu0 %v7042
        %v7044 = vand.u32 %v5538, 4294901760
        %7045 = vmatpush1.msra.mxu0 %v7044
        %v7046 = vand.u32 %v5541, 4294901760
        %7047 = vmatprep.subr.mxu0 %v7046
        %v7048 = vand.u32 %v5540, 4294901760
        %7049 = vmatpush1.msra.mxu0 %v7048
        %v7050 = vand.u32 %v5543, 4294901760
        %7051 = vmatprep.subr.mxu0 %v7050
        %v7052 = vand.u32 %v5542, 4294901760
        %7053 = vmatpush1.msra.mxu0 %v7052
        %v7054 = vand.u32 %v5545, 4294901760
        %7055 = vmatprep.subr.mxu0 %v7054
        %v7056 = vand.u32 %v5544, 4294901760
        %7057 = vmatpush1.msra.mxu0 %v7056
        %v7058 = vand.u32 %v5547, 4294901760
        %7059 = vmatprep.subr.mxu0 %v7058
        %v7060 = vand.u32 %v5546, 4294901760
        %7061 = vmatpush1.msra.mxu0 %v7060
        %v7062 = vand.u32 %v5549, 4294901760
        %7063 = vmatprep.subr.mxu0 %v7062
        %v7064 = vand.u32 %v5548, 4294901760
        %7065 = vmatpush1.msra.mxu0 %v7064
        %v7066 = vand.u32 %v5551, 4294901760
        %7067 = vmatprep.subr.mxu0 %v7066
        %v7068 = vand.u32 %v5550, 4294901760
        %7069 = vmatpush1.msra.mxu0 %v7068
        %v7070 = vand.u32 %v5553, 4294901760
        %7071 = vmatprep.subr.mxu0 %v7070
        %v7072 = vand.u32 %v5552, 4294901760
        %7073 = vmatpush1.msra.mxu0 %v7072
        %v7074 = vand.u32 %v5555, 4294901760
        %7075 = vmatprep.subr.mxu0 %v7074
        %v7076 = vand.u32 %v5554, 4294901760
        %7077 = vmatpush1.msra.mxu0 %v7076
        %v7078 = vand.u32 %v5557, 4294901760
        %7079 = vmatprep.subr.mxu0 %v7078
        %v7080 = vand.u32 %v5556, 4294901760
        %7081 = vmatpush1.msra.mxu0 %v7080
        %v7082 = vand.u32 %v5559, 4294901760
        %7083 = vmatprep.subr.mxu0 %v7082
        %v7084 = vand.u32 %v5558, 4294901760
        %7085 = vmatpush1.msra.mxu0 %v7084
        %7086 = vmatprep.subr.mxu0 0.0
        %7087 = vmatpush1.msra.mxu0 0.0
        %7088 = vmatprep.subr.mxu0 0.0
        %7089 = vmatpush1.msra.mxu0 0.0
        %7090 = vmatprep.subr.mxu0 0.0
        %7091 = vmatpush1.msra.mxu0 0.0
        %7092 = vmatprep.subr.mxu0 0.0
        %7093 = vmatpush1.msra.mxu0 0.0
        %7094 = vmatprep.subr.mxu0 0.0
        %7095 = vmatpush1.msra.mxu0 0.0
        %7096 = vmatprep.subr.mxu0 0.0
        %7097 = vmatpush1.msra.mxu0 0.0
        %7098 = vmatprep.subr.mxu0 0.0
        %7099 = vmatpush1.msra.mxu0 0.0
        %7100 = vmatprep.subr.mxu0 0.0
        %7101 = vmatpush1.msra.mxu0 0.0
        %7102 = vmatprep.subr.mxu0 0.0
        %7103 = vmatpush1.msra.mxu0 0.0
        %7104 = vmatprep.subr.mxu0 0.0
        %7105 = vmatpush1.msra.mxu0 0.0
        %7106 = vmatprep.subr.mxu0 0.0
        %7107 = vmatpush1.msra.mxu0 0.0
        %7108 = vmatprep.subr.mxu0 0.0
        %7109 = vmatpush1.msra.mxu0 0.0
        %7110 = vmatprep.subr.mxu0 0.0
        %7111 = vmatpush1.msra.mxu0 0.0
        %7112 = vmatprep.subr.mxu0 0.0
        %7113 = vmatpush1.msra.mxu0 0.0
        %7114 = vmatprep.subr.mxu0 0.0
        %7115 = vmatpush1.msra.mxu0 0.0
        %7116 = vmatprep.subr.mxu0 0.0
        %7117 = vmatpush1.msra.mxu0 0.0
        %7118 = vmatprep.mubr.f32.mxu0 0.0
        %v7119 = vand.u32 %v5561, 4294901760
        %7120 = vmatmul.mubr.f32.gmra.mrb[0].mxu0 %v7119
        %v7121 = vpop.f32.mrb[0].mxu0
        %v7122 = vadd.f32 %v6913, %v7121
        %v7123 = vpop.f32.mrb[0].mxu0
        %v7124 = vadd.f32 %v6915, %v7123
        %7125 = vmatprep.mubr.f32.mxu0 0.0
        %v7126 = vand.u32 %v5562, 4294901760
        %7127 = vmatmul.mubr.f32.gmra.mrb[0].mxu0 %v7126
        %v7128 = vpop.f32.mrb[0].mxu0
        %v7129 = vadd.f32 %v6920, %v7128
        %v7130 = vpop.f32.mrb[0].mxu0
        %v7131 = vadd.f32 %v6922, %v7130
        %7132 = vmatprep.mubr.f32.mxu0 0.0
        %v7133 = vand.u32 %v5563, 4294901760
        %7134 = vmatmul.mubr.f32.gmra.mrb[0].mxu0 %v7133
        %v7135 = vpop.f32.mrb[0].mxu0
        %v7136 = vadd.f32 %v6927, %v7135
        %v7137 = vpop.f32.mrb[0].mxu0
        %v7138 = vadd.f32 %v6929, %v7137
        %7139 = vmatprep.mubr.f32.mxu0 0.0
        %v7140 = vand.u32 %v5564, 4294901760
        %7141 = vmatmul.mubr.f32.gmra.mrb[0].mxu0 %v7140
        %v7142 = vpop.f32.mrb[0].mxu0
        %v7143 = vadd.f32 %v6934, %v7142
        %v7144 = vpop.f32.mrb[0].mxu0
        %v7145 = vadd.f32 %v6936, %v7144
        %7146 = vmatprep.mubr.f32.mxu0 0.0
        %v7147 = vand.u32 %v5565, 4294901760
        %7148 = vmatmul.mubr.f32.gmra.mrb[0].mxu0 %v7147
        %v7149 = vpop.f32.mrb[0].mxu0
        %v7150 = vadd.f32 %v6941, %v7149
        %v7151 = vpop.f32.mrb[0].mxu0
        %v7152 = vadd.f32 %v6943, %v7151
        %7153 = vmatprep.mubr.f32.mxu0 0.0
        %v7154 = vand.u32 %v5566, 4294901760
        %7155 = vmatmul.mubr.f32.gmra.mrb[0].mxu0 %v7154
        %v7156 = vpop.f32.mrb[0].mxu0
        %v7157 = vadd.f32 %v6948, %v7156
        %v7158 = vpop.f32.mrb[0].mxu0
        %v7159 = vadd.f32 %v6950, %v7158
        %7160 = vmatprep.mubr.f32.mxu0 0.0
        %v7161 = vand.u32 %v5567, 4294901760
        %7162 = vmatmul.mubr.f32.gmra.mrb[0].mxu0 %v7161
        %v7163 = vpop.f32.mrb[0].mxu0
        %v7164 = vadd.f32 %v6955, %v7163
        %v7165 = vpop.f32.mrb[0].mxu0
        %v7166 = vadd.f32 %v6957, %v7165
        %7167 = vmatprep.mubr.f32.mxu0 0.0
        %v7168 = vand.u32 %v5568, 4294901760
        %7169 = vmatmul.mubr.f32.gmra.mrb[0].mxu0 %v7168
        %v7170 = vpop.f32.mrb[0].mxu0
        %v7171 = vadd.f32 %v6962, %v7170
        %v7172 = vpop.f32.mrb[0].mxu0
        %v7173 = vadd.f32 %v6964, %v7172
        %7174 = vmatprep.mubr.f32.mxu0 0.0
        %v7175 = vand.u32 %v5569, 4294901760
        %7176 = vmatmul.mubr.f32.gmra.mrb[0].mxu0 %v7175
        %v7177 = vpop.f32.mrb[0].mxu0
        %v7178 = vadd.f32 %v6969, %v7177
        %v7179 = vpop.f32.mrb[0].mxu0
        %v7180 = vadd.f32 %v6971, %v7179
        %7181 = vmatprep.mubr.f32.mxu0 0.0
        %v7182 = vand.u32 %v5570, 4294901760
        %7183 = vmatmul.mubr.f32.gmra.mrb[0].mxu0 %v7182
        %v7184 = vpop.f32.mrb[0].mxu0
        %v7185 = vadd.f32 %v6976, %v7184
        %v7186 = vpop.f32.mrb[0].mxu0
        %v7187 = vadd.f32 %v6978, %v7186
        %7188 = vmatprep.mubr.f32.mxu0 0.0
        %v7189 = vand.u32 %v5571, 4294901760
        %7190 = vmatmul.mubr.f32.gmra.mrb[0].mxu0 %v7189
        %v7191 = vpop.f32.mrb[0].mxu0
        %v7192 = vadd.f32 %v6983, %v7191
        %v7193 = vpop.f32.mrb[0].mxu0
        %v7194 = vadd.f32 %v6985, %v7193
        %7195 = vmatprep.mubr.f32.mxu0 0.0
        %v7196 = vand.u32 %v5572, 4294901760
        %7197 = vmatmul.mubr.f32.gmra.mrb[0].mxu0 %v7196
        %v7198 = vpop.f32.mrb[0].mxu0
        %v7199 = vadd.f32 %v6990, %v7198
        %v7200 = vpop.f32.mrb[0].mxu0
        %v7201 = vadd.f32 %v6992, %v7200
        %7202 = vmatprep.mubr.f32.mxu0 0.0
        %v7203 = vand.u32 %v5573, 4294901760
        %7204 = vmatmul.mubr.f32.gmra.mrb[0].mxu0 %v7203
        %v7205 = vpop.f32.mrb[0].mxu0
        %v7206 = vadd.f32 %v6997, %v7205
        %v7207 = vpop.f32.mrb[0].mxu0
        %v7208 = vadd.f32 %v6999, %v7207
        %7209 = vmatprep.mubr.f32.mxu0 0.0
        %v7210 = vand.u32 %v5574, 4294901760
        %7211 = vmatmul.mubr.f32.gmra.mrb[0].mxu0 %v7210
        %v7212 = vpop.f32.mrb[0].mxu0
        %v7213 = vadd.f32 %v7004, %v7212
        %v7214 = vpop.f32.mrb[0].mxu0
        %v7215 = vadd.f32 %v7006, %v7214
        %7216 = vmatprep.mubr.f32.mxu0 0.0
        %v7217 = vand.u32 %v5575, 4294901760
        %7218 = vmatmul.mubr.f32.gmra.mrb[0].mxu0 %v7217
        %v7219 = vpop.f32.mrb[0].mxu0
        %v7220 = vadd.f32 %v7011, %v7219
        %v7221 = vpop.f32.mrb[0].mxu0
        %v7222 = vadd.f32 %v7013, %v7221
        %7223 = vmatprep.mubr.f32.mxu0 0.0
        %v7224 = vand.u32 %v5576, 4294901760
        %7225 = vmatmul.mubr.f32.gmra.mrb[0].mxu0 %v7224
        %v7226 = vpop.f32.mrb[0].mxu0
        %v7227 = vadd.f32 %v7018, %v7226
        %v7228 = vpop.f32.mrb[0].mxu0
        %v7229 = vadd.f32 %v7020, %v7228
        %7230 = vdwg.mxu0
        %v7231 = vtanh.pop %v7122
        %v7232 = vtanh.pop %v7124
        %v7233 = vtanh.pop %v7129
        %v7234 = vtanh.pop %v7131
        %v7235 = vtanh.pop %v7136
        %v7236 = vtanh.pop %v7138
        %v7237 = vtanh.pop %v7143
        %v7238 = vtanh.pop %v7145
        %v7239 = vtanh.pop %v7150
        %v7240 = vtanh.pop %v7152
        %v7241 = vtanh.pop %v7157
        %v7242 = vtanh.pop %v7159
        %v7243 = vtanh.pop %v7164
        %v7244 = vtanh.pop %v7166
        %v7245 = vtanh.pop %v7171
        %v7246 = vtanh.pop %v7173
        %v7247 = vtanh.pop %v7178
        %v7248 = vtanh.pop %v7180
        %v7249 = vtanh.pop %v7185
        %v7250 = vtanh.pop %v7187
        %v7251 = vtanh.pop %v7192
        %v7252 = vtanh.pop %v7194
        %v7253 = vtanh.pop %v7199
        %v7254 = vtanh.pop %v7201
        %v7255 = vtanh.pop %v7206
        %v7256 = vtanh.pop %v7208
        %v7257 = vtanh.pop %v7213
        %v7258 = vtanh.pop %v7215
        %v7259 = vtanh.pop %v7220
        %v7260 = vtanh.pop %v7222
        %v7261 = vtanh.pop %v7227
        %v7262 = vtanh.pop %v7229
        %v7263 = vld [vmem:[%s2] sm:$0x1]
        %7264 = vset.pattern.permute.xlu0 6
        %7265 = vperm.xlu0 %7264, %v185
        %v7266 = vpop.permute.xlu0 %7265
        %7268 = vset.pattern.permute.xlu0 6
        %7269 = vperm.xlu0 %7268, %v186
        %v7270 = vpop.permute.xlu0 %7269
        %7272 = vset.pattern.permute.xlu0 6
        %7273 = vperm.xlu0 %7272, %v187
        %v7274 = vpop.permute.xlu0 %7273
        %7276 = vset.pattern.permute.xlu0 6
        %7277 = vperm.xlu0 %7276, %v188
        %v7278 = vpop.permute.xlu0 %7277
        %7280 = vset.pattern.permute.xlu0 6
        %7281 = vperm.xlu0 %7280, %v189
        %v7282 = vpop.permute.xlu0 %7281
        %7284 = vset.pattern.permute.xlu0 6
        %7285 = vperm.xlu0 %7284, %v190
        %v7286 = vpop.permute.xlu0 %7285
        %7288 = vset.pattern.permute.xlu0 6
        %7289 = vperm.xlu0 %7288, %v191
        %v7290 = vpop.permute.xlu0 %7289
        %7292 = vset.pattern.permute.xlu0 6
        %7293 = vperm.xlu0 %7292, %v192
        %v7294 = vpop.permute.xlu0 %7293
        %7296 = vset.pattern.permute.xlu0 6
        %7297 = vperm.xlu0 %7296, %v193
        %v7298 = vpop.permute.xlu0 %7297
        %7300 = vset.pattern.permute.xlu0 6
        %7301 = vperm.xlu0 %7300, %v194
        %v7302 = vpop.permute.xlu0 %7301
        %7304 = vset.pattern.permute.xlu0 6
        %7305 = vperm.xlu0 %7304, %v195
        %v7306 = vpop.permute.xlu0 %7305
        %7308 = vset.pattern.permute.xlu0 6
        %7309 = vperm.xlu0 %7308, %v196
        %v7310 = vpop.permute.xlu0 %7309
        %7312 = vset.pattern.permute.xlu0 6
        %7313 = vperm.xlu0 %7312, %v197
        %v7314 = vpop.permute.xlu0 %7313
        %7316 = vset.pattern.permute.xlu0 6
        %7317 = vperm.xlu0 %7316, %v198
        %v7318 = vpop.permute.xlu0 %7317
        %7320 = vset.pattern.permute.xlu0 6
        %7321 = vperm.xlu0 %7320, %v199
        %v7322 = vpop.permute.xlu0 %7321
        %7324 = vset.pattern.permute.xlu0 6
        %7325 = vperm.xlu0 %7324, %v200
        %v7326 = vpop.permute.xlu0 %7325
        %v7328 = vmul.f32 %v7266, %v7231
        %v7329 = vmul.f32 %v7266, %v7232
        %v7330 = vmul.f32 %v7270, %v7233
        %v7331 = vmul.f32 %v7270, %v7234
        %v7332 = vmul.f32 %v7274, %v7235
        %v7333 = vmul.f32 %v7274, %v7236
        %v7334 = vmul.f32 %v7278, %v7237
        %v7335 = vmul.f32 %v7278, %v7238
        %v7336 = vmul.f32 %v7282, %v7239
        %v7337 = vmul.f32 %v7282, %v7240
        %v7338 = vmul.f32 %v7286, %v7241
        %v7339 = vmul.f32 %v7286, %v7242
        %v7340 = vmul.f32 %v7290, %v7243
        %v7341 = vmul.f32 %v7290, %v7244
        %v7342 = vmul.f32 %v7294, %v7245
        %v7343 = vmul.f32 %v7294, %v7246
        %v7344 = vmul.f32 %v7298, %v7247
        %v7345 = vmul.f32 %v7298, %v7248
        %v7346 = vmul.f32 %v7302, %v7249
        %v7347 = vmul.f32 %v7302, %v7250
        %v7348 = vmul.f32 %v7306, %v7251
        %v7349 = vmul.f32 %v7306, %v7252
        %v7350 = vmul.f32 %v7310, %v7253
        %v7351 = vmul.f32 %v7310, %v7254
        %v7352 = vmul.f32 %v7314, %v7255
        %v7353 = vmul.f32 %v7314, %v7256
        %v7354 = vmul.f32 %v7318, %v7257
        %v7355 = vmul.f32 %v7318, %v7258
        %v7356 = vmul.f32 %v7322, %v7259
        %v7357 = vmul.f32 %v7322, %v7260
        %v7358 = vmul.f32 %v7326, %v7261
        %v7359 = vmul.f32 %v7326, %v7262
        %v7360 = vadd.f32 %v7328, %v7330
        %v7361 = vadd.f32 %v7360, %v7332
        %v7362 = vadd.f32 %v7361, %v7334
        %v7363 = vadd.f32 %v7362, %v7336
        %v7364 = vadd.f32 %v7363, %v7338
        %v7365 = vadd.f32 %v7364, %v7340
        %v7366 = vadd.f32 %v7365, %v7342
        %v7367 = vadd.f32 %v7366, %v7344
        %v7368 = vadd.f32 %v7367, %v7346
        %v7369 = vadd.f32 %v7368, %v7348
        %v7370 = vadd.f32 %v7369, %v7350
        %v7371 = vadd.f32 %v7370, %v7352
        %v7372 = vadd.f32 %v7371, %v7354
        %v7373 = vadd.f32 %v7372, %v7356
        %v7374 = vadd.f32 %v7373, %v7358
        %v7375 = vrot.slane %v7374, 4
        %v7376 = vadd.f32 %v7374, %v7375
        %v7377 = vrot.slane %v7376, 2
        %v7378 = vadd.f32 %v7376, %v7377
        %v7379 = vrot.slane %v7378, 1
        %v7380 = vadd.f32 %v7378, %v7379
        %v7381 = vadd.f32 %v7329, %v7331
        %v7382 = vadd.f32 %v7381, %v7333
        %v7383 = vadd.f32 %v7382, %v7335
        %v7384 = vadd.f32 %v7383, %v7337
        %v7385 = vadd.f32 %v7384, %v7339
        %v7386 = vadd.f32 %v7385, %v7341
        %v7387 = vadd.f32 %v7386, %v7343
        %v7388 = vadd.f32 %v7387, %v7345
        %v7389 = vadd.f32 %v7388, %v7347
        %v7390 = vadd.f32 %v7389, %v7349
        %v7391 = vadd.f32 %v7390, %v7351
        %v7392 = vadd.f32 %v7391, %v7353
        %v7393 = vadd.f32 %v7392, %v7355
        %v7394 = vadd.f32 %v7393, %v7357
        %v7395 = vadd.f32 %v7394, %v7359
        %v7396 = vrot.slane %v7395, 4
        %v7397 = vadd.f32 %v7395, %v7396
        %v7398 = vrot.slane %v7397, 2
        %v7399 = vadd.f32 %v7397, %v7398
        %v7400 = vrot.slane %v7399, 1
        %v7401 = vadd.f32 %v7399, %v7400
        %7403 = vset.pattern.permute.xlu0 7
        %7404 = vperm.xlu0 %7403, %v7263
        %v7405 = vpop.permute.xlu0 %7404
        %v7407 = vadd.f32 %v7380, %v7405
        %v7408 = vadd.f32 %v7401, %v7405
        %v7411 = vcombine.low %v7407, %v7408
        %v7413 = vunpack.c.l.s4 1966171168
        %v7414 = vunpack.c.0.s8 %v7413
        %v7415 = vlaneseq
        %v7416 = vshrl.u32 %v7415, 7
        %v7417 = vsub.s32 %v7414, %v7416
        %v7418 = vrot.slane %v7411, %v7417
        %v7420 = vunpack.c.l.s4 1966171168
        %v7421 = vunpack.c.0.s8 %v7420
        %v7422 = vlaneseq
        %v7423 = vshrl.u32 %v7422, 7
        %v7424 = vsub.s32 %v7421, %v7423
        %v7425 = vrot.slane %v7418, %v7424
        %v7427 = vlaneseq
        %vm7428 = vcmp.ge.s32.totalorder %v7427, 0
        %vm7429 = vcmp.lt.s32.totalorder %v7427, 256
        %vm7430 = vmand %vm7428, %vm7429
        %7431 = vst.msk [vmem:[%s177] sm:$0x3] %vm7430, %v7425
        %s7432 = sand.u32 %s94, 1
        %s7433 = scalar_lea.sflag [#allocation4], %s7432
        %s7434 = sand.u32 %s94, 1
        %s7435 = smul.addr %s7434, 2
        %s7436 = scalar_lea.vmem [#allocation5], %s7435
        // Predicated region
        $region37: #{tpu_custom_call.1} parent=31 // pred_check
          %p7437 = pneg %p104
        $region38: #{tpu_custom_call.1} parent=31 // pred_check_branch
          %7439 = sbr.rel (%p7437) target = $region40
        $region39: #{tpu_custom_call.1} parent=31 // pred_region
          %s7440 = smul.u32 2, %s18
          %s7442 = ssub.s32 32, 32
          %7443 = vsyncadd %s7433, %s7442
          %s7444 = smul.addr %s7440, 16
          %s7445 = scalar_lea.hbm %s3, %s7444
          %s7447 = sshll.u32 %s7436, 4
          %s7448 = int_to_ptr.vmem [resolvable:$true] %s7447
          %7450 = dma.vmem_to_hbm [thread:$0]  %s7448, 32, %s7445, %s7433
        $region40: #{tpu_custom_call.1} parent=31 // pred_fallthru
          _
      $region32: #{tpu_custom_call.1} parent=5 // pred_fallthru
        _
      %p7451 = scmp.le.s32.totalorder 2, %s13
      // Predicated region
      $region41: #{tpu_custom_call.1} parent=5 // pred_check
        %p7452 = pneg %p7451
      $region42: #{tpu_custom_call.1} parent=5 // pred_check_branch
        %7454 = sbr.rel (%p7452) target = $region44
      $region43: #{tpu_custom_call.1} parent=5 // pred_region
        %s7455 = ssub.s32 %s13, 2
        // Predicated region
        $region45: #{tpu_custom_call.1} parent=43 // pred_check
          %p7456 = pneg %p110
        $region46: #{tpu_custom_call.1} parent=43 // pred_check_branch
          %7458 = sbr.rel (%p7456) target = $region48
        $region47: #{tpu_custom_call.1} parent=43 // pred_region
          %s7459 = sand.u32 %s95, 1
          %s7460 = scalar_lea.sflag [#allocation4], %s7459
          %s7461 = sand.u32 %s95, 1
          %s7462 = smul.addr %s7461, 2
          %s7463 = scalar_lea.vmem [#allocation5], %s7462
          %7464 = dma.done %s7460, 32
        $region48: #{tpu_custom_call.1} parent=43 // pred_fallthru
          _
      $region44: #{tpu_custom_call.1} parent=5 // pred_fallthru
        _
    $region6: #{tpu_custom_call.1} parent=1 // loop_footer
      %s17 = sadd.s32 1, %s13
    $region7: #{tpu_custom_call.1} parent=1 // loop_footer_branch
      %12 = sbr.rel target = $region3
    $region8: #{tpu_custom_call.1} parent=1 // loop_exit
      _
    %7465 = vsyncpa [#allocation3], 1
    %s7466 = scalar_lea.sflag [#allocation3], 1
    %7467 = vsyncpa %s7466, 1
    %7468 = vsyncpa [#allocation4], 1
    %s7469 = scalar_lea.sflag [#allocation4], 1
    %7470 = vsyncpa %s7469, 1

</llo_original>
